<compile_context>
chip_gen: v5e
topology: v5e:2x2
jax: 0.10.0
libtpu: 0.0.40
codegen_flags: <defaults>
</compile_context>

<pallas_src>
import functools

import jax
import jax.numpy as jnp
from jax.experimental import pallas as pl
from jax.experimental.pallas import tpu as pltpu


def _round_up(x, m):
    return (x + m - 1) // m * m


# ------------------ batched, tiled matmul + bias (MXU) kernel ---------------

def _mm_kernel(a_ref, w_ref, b_ref, o_ref, acc_ref):
    @pl.when(pl.program_id(3) == 0)
    def _():
        acc_ref[...] = jnp.zeros_like(acc_ref)

    acc_ref[...] += jnp.dot(a_ref[...], w_ref[...],
                            preferred_element_type=jnp.float32)

    @pl.when(pl.program_id(3) == pl.num_programs(3) - 1)
    def _():
        o_ref[...] = acc_ref[...] + b_ref[...]


def batched_matmul_bias(a, w, b):
    """a: (G, M, K), w: (G, K, N), b: (G, N) -> (G, M, N) float32."""
    G, M, K = a.shape
    N = w.shape[2]

    # Lane-dense output: pad output channels to a multiple of 128 (256 tiles
    # when possible to match the 2x256x256 MXU on v6e/v7x).
    tn = 256 if (N % 256 == 0 and N >= 256) else 128
    n_pad = _round_up(N, tn)
    k_pad = _round_up(K, 128)
    tk = 512 if k_pad % 512 == 0 else (256 if k_pad % 256 == 0 else 128)
    tm = 512 if M >= 512 else _round_up(M, 16)
    m_pad = _round_up(M, tm)

    a_p = jnp.zeros((G, m_pad, k_pad), jnp.bfloat16)
    a_p = a_p.at[:, :M, :K].set(a.astype(jnp.bfloat16))
    w_p = jnp.zeros((G, k_pad, n_pad), jnp.bfloat16)
    w_p = w_p.at[:, :K, :N].set(w.astype(jnp.bfloat16))
    b_p = jnp.zeros((G, 1, n_pad), jnp.float32)
    b_p = b_p.at[:, 0, :N].set(b.astype(jnp.float32))

    grid = (G, m_pad // tm, n_pad // tn, k_pad // tk)
    out = pl.pallas_call(
        _mm_kernel,
        out_shape=jax.ShapeDtypeStruct((G, m_pad, n_pad), jnp.float32),
        grid_spec=pltpu.PrefetchScalarGridSpec(
            num_scalar_prefetch=0,
            grid=grid,
            in_specs=[
                pl.BlockSpec((None, tm, tk), lambda g, i, j, k: (g, i, k)),
                pl.BlockSpec((None, tk, tn), lambda g, i, j, k: (g, k, j)),
                pl.BlockSpec((None, 1, tn), lambda g, i, j, k: (g, 0, j)),
            ],
            out_specs=pl.BlockSpec((None, tm, tn),
                                   lambda g, i, j, k: (g, i, j)),
            scratch_shapes=[pltpu.VMEM((tm, tn), jnp.float32)],
        ),
        compiler_params=pltpu.CompilerParams(
            dimension_semantics=("parallel", "parallel", "parallel",
                                 "arbitrary")),
        cost_estimate=pl.CostEstimate(
            flops=2 * G * m_pad * n_pad * k_pad,
            transcendentals=0,
            bytes_accessed=(a_p.size + w_p.size) * 2 + G * m_pad * n_pad * 4),
    )(a_p, w_p, b_p)
    return out[:, :M, :N]


# ------------------------- BatchNorm2d (training mode) ----------------------

def _bn_stats_kernel(x_ref, o_ref):
    @pl.when(pl.program_id(0) == 0)
    def _():
        o_ref[...] = jnp.zeros_like(o_ref)
    x = x_ref[...]
    s = jnp.sum(x, axis=0, keepdims=True)
    s2 = jnp.sum(x * x, axis=0, keepdims=True)
    o_ref[...] += jnp.concatenate([s, s2], axis=0)


def _bn_apply_kernel(x_ref, sc_ref, sh_ref, o_ref):
    o_ref[...] = x_ref[...] * sc_ref[...] + sh_ref[...]


def batchnorm2d(x, gamma, beta, eps=1e-5):
    """x: (N, H, W, C) NHWC. PyTorch BatchNorm2d default (training) mode."""
    n, h, w, c = x.shape
    l = n * h * w
    c_pad = _round_up(c, 128)
    tl = min(1024, _round_up(l, 8))
    l_pad = _round_up(l, tl)

    xr = jnp.zeros((l_pad, c_pad), jnp.float32)
    xr = xr.at[:l, :c].set(x.reshape(l, c).astype(jnp.float32))

    stats = pl.pallas_call(
        _bn_stats_kernel,
        out_shape=jax.ShapeDtypeStruct((2, c_pad), jnp.float32),
        grid=(l_pad // tl,),
        in_specs=[pl.BlockSpec((tl, c_pad), lambda i: (i, 0))],
        out_specs=pl.BlockSpec((2, c_pad), lambda i: (0, 0)),
        compiler_params=pltpu.CompilerParams(
            dimension_semantics=("arbitrary",)),
    )(xr)

    mean = stats[0] / l
    var = stats[1] / l - mean * mean                    # biased variance
    g = jnp.zeros((c_pad,), jnp.float32).at[:c].set(gamma)
    bb = jnp.zeros((c_pad,), jnp.float32).at[:c].set(beta)
    scale = g * jax.lax.rsqrt(var + eps)
    shift = bb - mean * scale

    out = pl.pallas_call(
        _bn_apply_kernel,
        out_shape=jax.ShapeDtypeStruct((l_pad, c_pad), jnp.float32),
        grid=(l_pad // tl,),
        in_specs=[pl.BlockSpec((tl, c_pad), lambda i: (i, 0)),
                  pl.BlockSpec((1, c_pad), lambda i: (0, 0)),
                  pl.BlockSpec((1, c_pad), lambda i: (0, 0))],
        out_specs=pl.BlockSpec((tl, c_pad), lambda i: (i, 0)),
        compiler_params=pltpu.CompilerParams(
            dimension_semantics=("parallel",)),
    )(xr, scale.reshape(1, c_pad), shift.reshape(1, c_pad))

    return out[:l, :c].reshape(n, h, w, c)


# ------------------------------- conv layers --------------------------------

def _act(x, act):
    if act == 1:                       # LeakyReLU(0.2) applied to conv input
        return jnp.where(x > 0, x, 0.2 * x)
    if act == 2:                       # ReLU applied to conv input
        return jnp.maximum(x, 0.0)
    return x


def conv2d_k4s2p1(x, w, b, act=0):
    """x: (N, H, W, Cin) NHWC; w: (Cout, Cin, 4, 4) PyTorch Conv2d layout."""
    n, h, wd, c = x.shape
    cout = w.shape[0]
    xp = jnp.pad(_act(x, act), ((0, 0), (1, 1), (1, 1), (0, 0)))
    ho, wo = h // 2, wd // 2
    cols = []
    for kh in range(4):
        for kw in range(4):
            cols.append(xp[:, kh:kh + 2 * ho:2, kw:kw + 2 * wo:2, :])
    patches = jnp.stack(cols, axis=3).reshape(n * ho * wo, 16 * c)
    wm = w.transpose(2, 3, 1, 0).reshape(16 * c, cout)
    out = batched_matmul_bias(patches[None], wm[None], b[None])[0]
    return out.reshape(n, ho, wo, cout)
    # TODO(synk): im2col still materialized via XLA slicing (not in-kernel
    # pl.ds taps); acceptable at these sizes, revisit for 256x256/ngf=64.


def conv_transpose2d_k4s2p1(x, w, b, act=0):
    """x: (N,H,W,Cin) NHWC; w: (Cin, Cout, 4, 4) PyTorch ConvTranspose2d.

    Phase-decomposed: output pixel (2i+ph, 2j+pw) = 2x2 conv of padded x with
    the (ph, pw) sub-kernel -> 4 small matmuls batched on the grid's G axis.
    """
    n, h, wd, c = x.shape
    cout = w.shape[1]
    xp = jnp.pad(_act(x, act), ((0, 0), (1, 1), (1, 1), (0, 0)))
    a_list, w_list = [], []
    for ph in range(2):
        for pw in range(2):
            taps, wrows = [], []
            for dh in range(2):
                for dw in range(2):
                    taps.append(xp[:, ph + dh:ph + dh + h,
                                   pw + dw:pw + dw + wd, :])
                    wrows.append(w[:, :, 3 - ph - 2 * dh, 3 - pw - 2 * dw])
            a_list.append(jnp.stack(taps, axis=3).reshape(n * h * wd, 4 * c))
            w_list.append(jnp.stack(wrows, axis=0).reshape(4 * c, cout))
    a_all = jnp.stack(a_list, axis=0)                   # (4, N*H*W, 4*Cin)
    w_all = jnp.stack(w_list, axis=0)                   # (4, 4*Cin, Cout)
    b_all = jnp.broadcast_to(b[None, :], (4, cout))
    out = batched_matmul_bias(a_all, w_all, b_all)      # (4, N*H*W, Cout)
    out = out.reshape(2, 2, n, h, wd, cout)
    out = out.transpose(2, 3, 0, 4, 1, 5).reshape(n, 2 * h, 2 * wd, cout)
    return out


# -------------------------------- parameters --------------------------------

def _init_conv(key, cout, cin, k=4):
    k1, k2 = jax.random.split(key)
    bound = 1.0 / (cin * k * k) ** 0.5
    w = jax.random.uniform(k1, (cout, cin, k, k), jnp.float32, -bound, bound)
    b = jax.random.uniform(k2, (cout,), jnp.float32, -bound, bound)
    return w, b


def _init_convT(key, cin, cout, k=4):
    k1, k2 = jax.random.split(key)
    bound = 1.0 / (cout * k * k) ** 0.5
    w = jax.random.uniform(k1, (cin, cout, k, k), jnp.float32, -bound, bound)
    b = jax.random.uniform(k2, (cout,), jnp.float32, -bound, bound)
    return w, b


def _init_bn(c):
    return jnp.ones((c,), jnp.float32), jnp.zeros((c,), jnp.float32)


def init_unet_params(key, input_nc, output_nc, ngf):
    keys = jax.random.split(key, 10)
    p = {}
    # innermost block: outer_nc = inner_nc = ngf*8
    p['inner_down_w'], p['inner_down_b'] = _init_conv(keys[0], ngf * 8, ngf * 8)
    p['inner_up_w'], p['inner_up_b'] = _init_convT(keys[1], ngf * 8, ngf * 8)
    p['inner_upnorm_g'], p['inner_upnorm_b'] = _init_bn(ngf * 8)
    # middle blocks, innermost-wrapping first: (outer_nc, inner_nc)
    mids_cfg = [(ngf * 4, ngf * 8), (ngf * 2, ngf * 4), (ngf, ngf * 2)]
    p['mids'] = []
    for i, (onc, inc) in enumerate(mids_cfg):
        kd, ku = jax.random.split(keys[2 + i])
        dw, db = _init_conv(kd, inc, onc)
        uw, ub = _init_convT(ku, inc * 2, onc)
        dng, dnb = _init_bn(inc)
        ung, unb = _init_bn(onc)
        p['mids'].append(dict(down_w=dw, down_b=db,
                              downnorm_g=dng, downnorm_b=dnb,
                              up_w=uw, up_b=ub,
                              upnorm_g=ung, upnorm_b=unb))
    # outermost block
    p['outer_down_w'], p['outer_down_b'] = _init_conv(keys[8], ngf, input_nc)
    p['outer_up_w'], p['outer_up_b'] = _init_convT(keys[9], ngf * 2, output_nc)
    return p


# ---------------------------------- forward ---------------------------------

def _skip_pad_cat(x, y):
    # mirrors F.pad(y, (0, x.H - y.H, 0, x.W - y.W)) on NCHW (the reference's
    # axis quirk); both deltas are 0 for this architecture.
    pad_h_axis = x.shape[2] - y.shape[2]
    pad_w_axis = x.shape[1] - y.shape[1]
    if pad_h_axis or pad_w_axis:
        y = jnp.pad(y, ((0, 0), (0, pad_h_axis), (0, pad_w_axis), (0, 0)))
    return jnp.concatenate([x, y], axis=-1)


def unet_forward(params, x_nchw):
    x = x_nchw.transpose(0, 2, 3, 1)                    # NHWC internally

    def innermost(h):
        d = conv2d_k4s2p1(h, params['inner_down_w'],
                          params['inner_down_b'], act=1)
        u = conv_transpose2d_k4s2p1(d, params['inner_up_w'],
                                    params['inner_up_b'], act=2)
        u = batchnorm2d(u, params['inner_upnorm_g'], params['inner_upnorm_b'])
        return _skip_pad_cat(h, u)

    def mid(h, mp, sub):
        d = conv2d_k4s2p1(h, mp['down_w'], mp['down_b'], act=1)
        d = batchnorm2d(d, mp['downnorm_g'], mp['downnorm_b'])
        s = sub(d)
        u = conv_transpose2d_k4s2p1(s, mp['up_w'], mp['up_b'], act=2)
        u = batchnorm2d(u, mp['upnorm_g'], mp['upnorm_b'])
        return _skip_pad_cat(h, u)

    sub = innermost
    for mp in params['mids']:
        sub = functools.partial(mid, mp=mp, sub=sub)

    # outermost: down = [downconv]; up = [ReLU, upconv]; no skip, no norm
    d = conv2d_k4s2p1(x, params['outer_down_w'], params['outer_down_b'], act=0)
    s = sub(d)
    y = conv_transpose2d_k4s2p1(s, params['outer_up_w'],
                                params['outer_up_b'], act=2)
    return y.transpose(0, 3, 1, 2)                      # back to NCHW
    # TODO(synk): Dropout branch (use_dropout=True) not exercised; default
    # config has no dropout.


# ------------------------------------ main -----------------------------------

if __name__ == "__main__":
    key = jax.random.PRNGKey(0)
    kx, kp = jax.random.split(key)

    input_nc, output_nc, ngf = 3, 3, 4
    # This UNetGenerator variant always builds 5 down/up levels, so the
    # spatial size must be >= 32 (32 -> 16 -> 8 -> 4 -> 2 -> 1).
    x = jax.random.normal(kx, (2, input_nc, 32, 32), jnp.float32)

    params = init_unet_params(kp, input_nc, output_nc, ngf)
    fwd = jax.jit(unet_forward)
    out = jax.block_until_ready(fwd(params, x))
    assert out.shape == (2, output_nc, 32, 32), out.shape
    assert out.dtype == jnp.float32
    print("KERNEL_OK")
</pallas_src>

<mosaic_0001>
module attributes {stable_mosaic.version = 11 : i64} {
  func.func @_mm_kernel(%arg0: i32, %arg1: i32, %arg2: i32, %arg3: i32, %arg4: memref<1x512x128xbf16, #tpu.memory_space<vmem>>, %arg5: memref<1x128x128xbf16, #tpu.memory_space<vmem>>, %arg6: memref<1x1x128xf32, #tpu.memory_space<vmem>>, %arg7: memref<1x512x128xf32, #tpu.memory_space<vmem>>, %arg8: memref<512x128xf32, #tpu.memory_space<vmem>>) attributes {dimension_semantics = [#tpu.dimension_semantics<parallel>, #tpu.dimension_semantics<parallel>, #tpu.dimension_semantics<parallel>, #tpu.dimension_semantics<arbitrary>], iteration_bounds = array<i64: 1, 1, 1, 1>, scalar_prefetch = 0 : i64, scratch_operands = 1 : i64, tpu.core_type = #tpu.core_type<tc>, window_params = [{transform_indices = @transform_0, window_bounds = array<i64: 1, 512, 128>}, {transform_indices = @transform_1, window_bounds = array<i64: 1, 128, 128>}, {transform_indices = @transform_2, window_bounds = array<i64: 1, 1, 128>}, {transform_indices = @transform_3, window_bounds = array<i64: 1, 512, 128>}]} {
    %c0_i32 = arith.constant 0 : i32
    %0 = arith.cmpi eq, %arg3, %c0_i32 : i32
    %1 = arith.extui %0 : i1 to i32
    %c0_i32_0 = arith.constant 0 : i32
    %2 = arith.cmpi ne, %1, %c0_i32_0 : i32
    scf.if %2 {
      %cst_12 = arith.constant 0.000000e+00 : f32
      %14 = vector.broadcast %cst_12 : f32 to vector<512x128xf32>
      %c0_13 = arith.constant 0 : index
      %c0_14 = arith.constant 0 : index
      %15 = vector.load %arg8[%c0_13, %c0_14] : memref<512x128xf32, #tpu.memory_space<vmem>>, vector<512x128xf32>
      tpu.vector_store %arg8[%c0_13, %c0_14], %14 {strides = array<i32>} : memref<512x128xf32, #tpu.memory_space<vmem>>, vector<512x128xf32>,
    } else {
    }
    %c0 = arith.constant 0 : index
    %c0_1 = arith.constant 0 : index
    %3 = vector.load %arg8[%c0, %c0_1] : memref<512x128xf32, #tpu.memory_space<vmem>>, vector<512x128xf32>
    %c0_2 = arith.constant 0 : index
    %c0_3 = arith.constant 0 : index
    %c0_4 = arith.constant 0 : index
    %4 = vector.load %arg4[%c0_2, %c0_3, %c0_4] : memref<1x512x128xbf16, #tpu.memory_space<vmem>>, vector<1x512x128xbf16>
    %5 = vector.shape_cast %4 : vector<1x512x128xbf16> to vector<512x128xbf16>
    %c0_5 = arith.constant 0 : index
    %c0_6 = arith.constant 0 : index
    %c0_7 = arith.constant 0 : index
    %6 = vector.load %arg5[%c0_5, %c0_6, %c0_7] : memref<1x128x128xbf16, #tpu.memory_space<vmem>>, vector<1x128x128xbf16>
    %7 = vector.shape_cast %6 : vector<1x128x128xbf16> to vector<128x128xbf16>
    %cst = arith.constant dense<0.000000e+00> : vector<512x128xf32>
    %8 = tpu.matmul %5, %7, %cst {dimension_numbers = #tpu.dot_dimension_numbers<[1], [0], [0], [1], [0, 0, 1, 1], [], []>} : vector<512x128xbf16>, vector<128x128xbf16>, vector<512x128xf32> -> vector<512x128xf32>
    %9 = arith.addf %3, %8 : vector<512x128xf32>
    %c0_8 = arith.constant 0 : index
    %c0_9 = arith.constant 0 : index
    %10 = vector.load %arg8[%c0_8, %c0_9] : memref<512x128xf32, #tpu.memory_space<vmem>>, vector<512x128xf32>
    tpu.vector_store %arg8[%c0_8, %c0_9], %9 {strides = array<i32>} : memref<512x128xf32, #tpu.memory_space<vmem>>, vector<512x128xf32>,
    %c0_i32_10 = arith.constant 0 : i32
    %11 = arith.cmpi eq, %arg3, %c0_i32_10 : i32
    %12 = arith.extui %11 : i1 to i32
    %c0_i32_11 = arith.constant 0 : i32
    %13 = arith.cmpi ne, %12, %c0_i32_11 : i32
    scf.if %13 {
      %c0_12 = arith.constant 0 : index
      %c0_13 = arith.constant 0 : index
      %14 = vector.load %arg8[%c0_12, %c0_13] : memref<512x128xf32, #tpu.memory_space<vmem>>, vector<512x128xf32>
      %c0_14 = arith.constant 0 : index
      %c0_15 = arith.constant 0 : index
      %c0_16 = arith.constant 0 : index
      %15 = vector.load %arg6[%c0_14, %c0_15, %c0_16] : memref<1x1x128xf32, #tpu.memory_space<vmem>>, vector<1x1x128xf32>
      %16 = vector.shape_cast %15 : vector<1x1x128xf32> to vector<1x128xf32>
      %17 = vector.broadcast %16 : vector<1x128xf32> to vector<512x128xf32>
      %18 = arith.addf %14, %17 : vector<512x128xf32>
      %c0_17 = arith.constant 0 : index
      %c0_18 = arith.constant 0 : index
      %c0_19 = arith.constant 0 : index
      %19 = vector.load %arg7[%c0_17, %c0_18, %c0_19] : memref<1x512x128xf32, #tpu.memory_space<vmem>>, vector<1x512x128xf32>
      %20 = vector.shape_cast %19 : vector<1x512x128xf32> to vector<512x128xf32>
      %21 = vector.shape_cast %18 : vector<512x128xf32> to vector<1x512x128xf32>
      tpu.vector_store %arg7[%c0_17, %c0_18, %c0_19], %21 {strides = array<i32>} : memref<1x512x128xf32, #tpu.memory_space<vmem>>, vector<1x512x128xf32>,
    } else {
    }
    return
  }
  func.func @transform_0(%arg0: i32, %arg1: i32, %arg2: i32, %arg3: i32) -> (i32, i32, i32) {
    %c0_i32 = arith.constant 0 : i32
    return %arg0, %arg1, %arg3 : i32, i32, i32
  }
  func.func @transform_1(%arg0: i32, %arg1: i32, %arg2: i32, %arg3: i32) -> (i32, i32, i32) {
    %c0_i32 = arith.constant 0 : i32
    return %arg0, %arg3, %arg2 : i32, i32, i32
  }
  func.func @transform_2(%arg0: i32, %arg1: i32, %arg2: i32, %arg3: i32) -> (i32, i32, i32) {
    %c0_i32 = arith.constant 0 : i32
    %c0_i32_0 = arith.constant 0 : i32
    return %arg0, %c0_i32, %arg2 : i32, i32, i32
  }
  func.func @transform_3(%arg0: i32, %arg1: i32, %arg2: i32, %arg3: i32) -> (i32, i32, i32) {
    %c0_i32 = arith.constant 0 : i32
    return %arg0, %arg1, %arg2 : i32, i32, i32
  }
}

module attributes {stable_mosaic.version = 11 : i64} {
  func.func @_bn_stats_kernel(%arg0: i32, %arg1: memref<128x128xf32, #tpu.memory_space<vmem>>, %arg2: memref<2x128xf32, #tpu.memory_space<vmem>>) attributes {dimension_semantics = [#tpu.dimension_semantics<arbitrary>], iteration_bounds = array<i64: 1>, scalar_prefetch = 0 : i64, scratch_operands = 0 : i64, tpu.core_type = #tpu.core_type<tc>, window_params = [{transform_indices = @transform_0, window_bounds = array<i64: 128, 128>}, {pipeline_mode = #tpu.pipeline_mode<synchronous>, transform_indices = @transform_1, window_bounds = array<i64: 2, 128>}]} {
    %c0_i32 = arith.constant 0 : i32
    %0 = arith.cmpi eq, %arg0, %c0_i32 : i32
    %1 = arith.extui %0 : i1 to i32
    %c0_i32_0 = arith.constant 0 : i32
    %2 = arith.cmpi ne, %1, %c0_i32_0 : i32
    scf.if %2 {
      %cst_7 = arith.constant 0.000000e+00 : f32
      %13 = vector.broadcast %cst_7 : f32 to vector<2x128xf32>
      %c0_8 = arith.constant 0 : index
      %c0_9 = arith.constant 0 : index
      %14 = vector.load %arg2[%c0_8, %c0_9] : memref<2x128xf32, #tpu.memory_space<vmem>>, vector<2x128xf32>
      tpu.vector_store %arg2[%c0_8, %c0_9], %13 {strides = array<i32>} : memref<2x128xf32, #tpu.memory_space<vmem>>, vector<2x128xf32>,
    } else {
    }
    %c0 = arith.constant 0 : index
    %c0_1 = arith.constant 0 : index
    %3 = vector.load %arg1[%c0, %c0_1] : memref<128x128xf32, #tpu.memory_space<vmem>>, vector<128x128xf32>
    %cst = arith.constant dense<0.000000e+00> : vector<128xf32>
    %4 = vector.multi_reduction <add>, %3, %cst [0] : vector<128x128xf32> to vector<128xf32>
    %5 = vector.shape_cast %4 : vector<128xf32> to vector<1x128xf32>
    %6 = arith.mulf %3, %3 : vector<128x128xf32>
    %cst_2 = arith.constant dense<0.000000e+00> : vector<128xf32>
    %7 = vector.multi_reduction <add>, %6, %cst_2 [0] : vector<128x128xf32> to vector<128xf32>
    %8 = vector.shape_cast %7 : vector<128xf32> to vector<1x128xf32>
    %c0_3 = arith.constant 0 : index
    %c0_4 = arith.constant 0 : index
    %9 = vector.load %arg2[%c0_3, %c0_4] : memref<2x128xf32, #tpu.memory_space<vmem>>, vector<2x128xf32>
    %10 = tpu.concatenate %5, %8 in 0 : vector<1x128xf32>, vector<1x128xf32> -> vector<2x128xf32>
    %11 = arith.addf %9, %10 : vector<2x128xf32>
    %c0_5 = arith.constant 0 : index
    %c0_6 = arith.constant 0 : index
    %12 = vector.load %arg2[%c0_5, %c0_6] : memref<2x128xf32, #tpu.memory_space<vmem>>, vector<2x128xf32>
    tpu.vector_store %arg2[%c0_5, %c0_6], %11 {strides = array<i32>} : memref<2x128xf32, #tpu.memory_space<vmem>>, vector<2x128xf32>,
    return
  }
  func.func @transform_0(%arg0: i32) -> (i32, i32) {
    %c0_i32 = arith.constant 0 : i32
    %c0_i32_0 = arith.constant 0 : i32
    return %arg0, %c0_i32 : i32, i32
  }
  func.func @transform_1(%arg0: i32) -> (i32, i32) {
    %c0_i32 = arith.constant 0 : i32
    %c0_i32_0 = arith.constant 0 : i32
    %c0_i32_1 = arith.constant 0 : i32
    return %c0_i32, %c0_i32_0 : i32, i32
  }
}

module attributes {stable_mosaic.version = 11 : i64} {
  func.func @_mm_kernel(%arg0: i32, %arg1: i32, %arg2: i32, %arg3: i32, %arg4: memref<1x128x128xbf16, #tpu.memory_space<vmem>>, %arg5: memref<1x128x128xbf16, #tpu.memory_space<vmem>>, %arg6: memref<1x1x128xf32, #tpu.memory_space<vmem>>, %arg7: memref<1x128x128xf32, #tpu.memory_space<vmem>>, %arg8: memref<128x128xf32, #tpu.memory_space<vmem>>) attributes {dimension_semantics = [#tpu.dimension_semantics<parallel>, #tpu.dimension_semantics<parallel>, #tpu.dimension_semantics<parallel>, #tpu.dimension_semantics<arbitrary>], iteration_bounds = array<i64: 1, 1, 1, 1>, scalar_prefetch = 0 : i64, scratch_operands = 1 : i64, tpu.core_type = #tpu.core_type<tc>, window_params = [{transform_indices = @transform_0, window_bounds = array<i64: 1, 128, 128>}, {transform_indices = @transform_1, window_bounds = array<i64: 1, 128, 128>}, {transform_indices = @transform_2, window_bounds = array<i64: 1, 1, 128>}, {transform_indices = @transform_3, window_bounds = array<i64: 1, 128, 128>}]} {
    %c0_i32 = arith.constant 0 : i32
    %0 = arith.cmpi eq, %arg3, %c0_i32 : i32
    %1 = arith.extui %0 : i1 to i32
    %c0_i32_0 = arith.constant 0 : i32
    %2 = arith.cmpi ne, %1, %c0_i32_0 : i32
    scf.if %2 {
      %cst_12 = arith.constant 0.000000e+00 : f32
      %14 = vector.broadcast %cst_12 : f32 to vector<128x128xf32>
      %c0_13 = arith.constant 0 : index
      %c0_14 = arith.constant 0 : index
      %15 = vector.load %arg8[%c0_13, %c0_14] : memref<128x128xf32, #tpu.memory_space<vmem>>, vector<128x128xf32>
      tpu.vector_store %arg8[%c0_13, %c0_14], %14 {strides = array<i32>} : memref<128x128xf32, #tpu.memory_space<vmem>>, vector<128x128xf32>,
    } else {
    }
    %c0 = arith.constant 0 : index
    %c0_1 = arith.constant 0 : index
    %3 = vector.load %arg8[%c0, %c0_1] : memref<128x128xf32, #tpu.memory_space<vmem>>, vector<128x128xf32>
    %c0_2 = arith.constant 0 : index
    %c0_3 = arith.constant 0 : index
    %c0_4 = arith.constant 0 : index
    %4 = vector.load %arg4[%c0_2, %c0_3, %c0_4] : memref<1x128x128xbf16, #tpu.memory_space<vmem>>, vector<1x128x128xbf16>
    %5 = vector.shape_cast %4 : vector<1x128x128xbf16> to vector<128x128xbf16>
    %c0_5 = arith.constant 0 : index
    %c0_6 = arith.constant 0 : index
    %c0_7 = arith.constant 0 : index
    %6 = vector.load %arg5[%c0_5, %c0_6, %c0_7] : memref<1x128x128xbf16, #tpu.memory_space<vmem>>, vector<1x128x128xbf16>
    %7 = vector.shape_cast %6 : vector<1x128x128xbf16> to vector<128x128xbf16>
    %cst = arith.constant dense<0.000000e+00> : vector<128x128xf32>
    %8 = tpu.matmul %5, %7, %cst {dimension_numbers = #tpu.dot_dimension_numbers<[1], [0], [0], [1], [0, 0, 1, 1], [], []>} : vector<128x128xbf16>, vector<128x128xbf16>, vector<128x128xf32> -> vector<128x128xf32>
    %9 = arith.addf %3, %8 : vector<128x128xf32>
    %c0_8 = arith.constant 0 : index
    %c0_9 = arith.constant 0 : index
    %10 = vector.load %arg8[%c0_8, %c0_9] : memref<128x128xf32, #tpu.memory_space<vmem>>, vector<128x128xf32>
    tpu.vector_store %arg8[%c0_8, %c0_9], %9 {strides = array<i32>} : memref<128x128xf32, #tpu.memory_space<vmem>>, vector<128x128xf32>,
    %c0_i32_10 = arith.constant 0 : i32
    %11 = arith.cmpi eq, %arg3, %c0_i32_10 : i32
    %12 = arith.extui %11 : i1 to i32
    %c0_i32_11 = arith.constant 0 : i32
    %13 = arith.cmpi ne, %12, %c0_i32_11 : i32
    scf.if %13 {
      %c0_12 = arith.constant 0 : index
      %c0_13 = arith.constant 0 : index
      %14 = vector.load %arg8[%c0_12, %c0_13] : memref<128x128xf32, #tpu.memory_space<vmem>>, vector<128x128xf32>
      %c0_14 = arith.constant 0 : index
      %c0_15 = arith.constant 0 : index
      %c0_16 = arith.constant 0 : index
      %15 = vector.load %arg6[%c0_14, %c0_15, %c0_16] : memref<1x1x128xf32, #tpu.memory_space<vmem>>, vector<1x1x128xf32>
      %16 = vector.shape_cast %15 : vector<1x1x128xf32> to vector<1x128xf32>
      %17 = vector.broadcast %16 : vector<1x128xf32> to vector<128x128xf32>
      %18 = arith.addf %14, %17 : vector<128x128xf32>
      %c0_17 = arith.constant 0 : index
      %c0_18 = arith.constant 0 : index
      %c0_19 = arith.constant 0 : index
      %19 = vector.load %arg7[%c0_17, %c0_18, %c0_19] : memref<1x128x128xf32, #tpu.memory_space<vmem>>, vector<1x128x128xf32>
      %20 = vector.shape_cast %19 : vector<1x128x128xf32> to vector<128x128xf32>
      %21 = vector.shape_cast %18 : vector<128x128xf32> to vector<1x128x128xf32>
      tpu.vector_store %arg7[%c0_17, %c0_18, %c0_19], %21 {strides = array<i32>} : memref<1x128x128xf32, #tpu.memory_space<vmem>>, vector<1x128x128xf32>,
    } else {
    }
    return
  }
  func.func @transform_0(%arg0: i32, %arg1: i32, %arg2: i32, %arg3: i32) -> (i32, i32, i32) {
    %c0_i32 = arith.constant 0 : i32
    return %arg0, %arg1, %arg3 : i32, i32, i32
  }
  func.func @transform_1(%arg0: i32, %arg1: i32, %arg2: i32, %arg3: i32) -> (i32, i32, i32) {
    %c0_i32 = arith.constant 0 : i32
    return %arg0, %arg3, %arg2 : i32, i32, i32
  }
  func.func @transform_2(%arg0: i32, %arg1: i32, %arg2: i32, %arg3: i32) -> (i32, i32, i32) {
    %c0_i32 = arith.constant 0 : i32
    %c0_i32_0 = arith.constant 0 : i32
    return %arg0, %c0_i32, %arg2 : i32, i32, i32
  }
  func.func @transform_3(%arg0: i32, %arg1: i32, %arg2: i32, %arg3: i32) -> (i32, i32, i32) {
    %c0_i32 = arith.constant 0 : i32
    return %arg0, %arg1, %arg2 : i32, i32, i32
  }
}

module attributes {stable_mosaic.version = 11 : i64} {
  func.func @_bn_apply_kernel(%arg0: i32, %arg1: memref<128x128xf32, #tpu.memory_space<vmem>>, %arg2: memref<1x128xf32, #tpu.memory_space<vmem>>, %arg3: memref<1x128xf32, #tpu.memory_space<vmem>>, %arg4: memref<128x128xf32, #tpu.memory_space<vmem>>) attributes {dimension_semantics = [#tpu.dimension_semantics<parallel>], iteration_bounds = array<i64: 1>, scalar_prefetch = 0 : i64, scratch_operands = 0 : i64, tpu.core_type = #tpu.core_type<tc>, window_params = [{transform_indices = @transform_0, window_bounds = array<i64: 128, 128>}, {pipeline_mode = #tpu.pipeline_mode<synchronous>, transform_indices = @transform_1, window_bounds = array<i64: 1, 128>}, {pipeline_mode = #tpu.pipeline_mode<synchronous>, transform_indices = @transform_2, window_bounds = array<i64: 1, 128>}, {transform_indices = @transform_3, window_bounds = array<i64: 128, 128>}]} {
    %c0 = arith.constant 0 : index
    %c0_0 = arith.constant 0 : index
    %0 = vector.load %arg1[%c0, %c0_0] : memref<128x128xf32, #tpu.memory_space<vmem>>, vector<128x128xf32>
    %c0_1 = arith.constant 0 : index
    %c0_2 = arith.constant 0 : index
    %1 = vector.load %arg2[%c0_1, %c0_2] : memref<1x128xf32, #tpu.memory_space<vmem>>, vector<1x128xf32>
    %2 = vector.broadcast %1 : vector<1x128xf32> to vector<128x128xf32>
    %3 = arith.mulf %0, %2 : vector<128x128xf32>
    %c0_3 = arith.constant 0 : index
    %c0_4 = arith.constant 0 : index
    %4 = vector.load %arg3[%c0_3, %c0_4] : memref<1x128xf32, #tpu.memory_space<vmem>>, vector<1x128xf32>
    %5 = vector.broadcast %4 : vector<1x128xf32> to vector<128x128xf32>
    %6 = arith.addf %3, %5 : vector<128x128xf32>
    %c0_5 = arith.constant 0 : index
    %c0_6 = arith.constant 0 : index
    %7 = vector.load %arg4[%c0_5, %c0_6] : memref<128x128xf32, #tpu.memory_space<vmem>>, vector<128x128xf32>
    tpu.vector_store %arg4[%c0_5, %c0_6], %6 {strides = array<i32>} : memref<128x128xf32, #tpu.memory_space<vmem>>, vector<128x128xf32>,
    return
  }
  func.func @transform_0(%arg0: i32) -> (i32, i32) {
    %c0_i32 = arith.constant 0 : i32
    %c0_i32_0 = arith.constant 0 : i32
    return %arg0, %c0_i32 : i32, i32
  }
  func.func @transform_1(%arg0: i32) -> (i32, i32) {
    %c0_i32 = arith.constant 0 : i32
    %c0_i32_0 = arith.constant 0 : i32
    %c0_i32_1 = arith.constant 0 : i32
    return %c0_i32, %c0_i32_0 : i32, i32
  }
  func.func @transform_2(%arg0: i32) -> (i32, i32) {
    %c0_i32 = arith.constant 0 : i32
    %c0_i32_0 = arith.constant 0 : i32
    %c0_i32_1 = arith.constant 0 : i32
    return %c0_i32, %c0_i32_0 : i32, i32
  }
  func.func @transform_3(%arg0: i32) -> (i32, i32) {
    %c0_i32 = arith.constant 0 : i32
    %c0_i32_0 = arith.constant 0 : i32
    return %arg0, %c0_i32 : i32, i32
  }
}

module attributes {stable_mosaic.version = 11 : i64} {
  func.func @_mm_kernel(%arg0: i32, %arg1: i32, %arg2: i32, %arg3: i32, %arg4: memref<1x32x128xbf16, #tpu.memory_space<vmem>>, %arg5: memref<1x128x128xbf16, #tpu.memory_space<vmem>>, %arg6: memref<1x1x128xf32, #tpu.memory_space<vmem>>, %arg7: memref<1x32x128xf32, #tpu.memory_space<vmem>>, %arg8: memref<32x128xf32, #tpu.memory_space<vmem>>) attributes {dimension_semantics = [#tpu.dimension_semantics<parallel>, #tpu.dimension_semantics<parallel>, #tpu.dimension_semantics<parallel>, #tpu.dimension_semantics<arbitrary>], iteration_bounds = array<i64: 1, 1, 1, 1>, scalar_prefetch = 0 : i64, scratch_operands = 1 : i64, tpu.core_type = #tpu.core_type<tc>, window_params = [{transform_indices = @transform_0, window_bounds = array<i64: 1, 32, 128>}, {transform_indices = @transform_1, window_bounds = array<i64: 1, 128, 128>}, {transform_indices = @transform_2, window_bounds = array<i64: 1, 1, 128>}, {transform_indices = @transform_3, window_bounds = array<i64: 1, 32, 128>}]} {
    %c0_i32 = arith.constant 0 : i32
    %0 = arith.cmpi eq, %arg3, %c0_i32 : i32
    %1 = arith.extui %0 : i1 to i32
    %c0_i32_0 = arith.constant 0 : i32
    %2 = arith.cmpi ne, %1, %c0_i32_0 : i32
    scf.if %2 {
      %cst_12 = arith.constant 0.000000e+00 : f32
      %14 = vector.broadcast %cst_12 : f32 to vector<32x128xf32>
      %c0_13 = arith.constant 0 : index
      %c0_14 = arith.constant 0 : index
      %15 = vector.load %arg8[%c0_13, %c0_14] : memref<32x128xf32, #tpu.memory_space<vmem>>, vector<32x128xf32>
      tpu.vector_store %arg8[%c0_13, %c0_14], %14 {strides = array<i32>} : memref<32x128xf32, #tpu.memory_space<vmem>>, vector<32x128xf32>,
    } else {
    }
    %c0 = arith.constant 0 : index
    %c0_1 = arith.constant 0 : index
    %3 = vector.load %arg8[%c0, %c0_1] : memref<32x128xf32, #tpu.memory_space<vmem>>, vector<32x128xf32>
    %c0_2 = arith.constant 0 : index
    %c0_3 = arith.constant 0 : index
    %c0_4 = arith.constant 0 : index
    %4 = vector.load %arg4[%c0_2, %c0_3, %c0_4] : memref<1x32x128xbf16, #tpu.memory_space<vmem>>, vector<1x32x128xbf16>
    %5 = vector.shape_cast %4 : vector<1x32x128xbf16> to vector<32x128xbf16>
    %c0_5 = arith.constant 0 : index
    %c0_6 = arith.constant 0 : index
    %c0_7 = arith.constant 0 : index
    %6 = vector.load %arg5[%c0_5, %c0_6, %c0_7] : memref<1x128x128xbf16, #tpu.memory_space<vmem>>, vector<1x128x128xbf16>
    %7 = vector.shape_cast %6 : vector<1x128x128xbf16> to vector<128x128xbf16>
    %cst = arith.constant dense<0.000000e+00> : vector<32x128xf32>
    %8 = tpu.matmul %5, %7, %cst {dimension_numbers = #tpu.dot_dimension_numbers<[1], [0], [0], [1], [0, 0, 1, 1], [], []>} : vector<32x128xbf16>, vector<128x128xbf16>, vector<32x128xf32> -> vector<32x128xf32>
    %9 = arith.addf %3, %8 : vector<32x128xf32>
    %c0_8 = arith.constant 0 : index
    %c0_9 = arith.constant 0 : index
    %10 = vector.load %arg8[%c0_8, %c0_9] : memref<32x128xf32, #tpu.memory_space<vmem>>, vector<32x128xf32>
    tpu.vector_store %arg8[%c0_8, %c0_9], %9 {strides = array<i32>} : memref<32x128xf32, #tpu.memory_space<vmem>>, vector<32x128xf32>,
    %c0_i32_10 = arith.constant 0 : i32
    %11 = arith.cmpi eq, %arg3, %c0_i32_10 : i32
    %12 = arith.extui %11 : i1 to i32
    %c0_i32_11 = arith.constant 0 : i32
    %13 = arith.cmpi ne, %12, %c0_i32_11 : i32
    scf.if %13 {
      %c0_12 = arith.constant 0 : index
      %c0_13 = arith.constant 0 : index
      %14 = vector.load %arg8[%c0_12, %c0_13] : memref<32x128xf32, #tpu.memory_space<vmem>>, vector<32x128xf32>
      %c0_14 = arith.constant 0 : index
      %c0_15 = arith.constant 0 : index
      %c0_16 = arith.constant 0 : index
      %15 = vector.load %arg6[%c0_14, %c0_15, %c0_16] : memref<1x1x128xf32, #tpu.memory_space<vmem>>, vector<1x1x128xf32>
      %16 = vector.shape_cast %15 : vector<1x1x128xf32> to vector<1x128xf32>
      %17 = vector.broadcast %16 : vector<1x128xf32> to vector<32x128xf32>
      %18 = arith.addf %14, %17 : vector<32x128xf32>
      %c0_17 = arith.constant 0 : index
      %c0_18 = arith.constant 0 : index
      %c0_19 = arith.constant 0 : index
      %19 = vector.load %arg7[%c0_17, %c0_18, %c0_19] : memref<1x32x128xf32, #tpu.memory_space<vmem>>, vector<1x32x128xf32>
      %20 = vector.shape_cast %19 : vector<1x32x128xf32> to vector<32x128xf32>
      %21 = vector.shape_cast %18 : vector<32x128xf32> to vector<1x32x128xf32>
      tpu.vector_store %arg7[%c0_17, %c0_18, %c0_19], %21 {strides = array<i32>} : memref<1x32x128xf32, #tpu.memory_space<vmem>>, vector<1x32x128xf32>,
    } else {
    }
    return
  }
  func.func @transform_0(%arg0: i32, %arg1: i32, %arg2: i32, %arg3: i32) -> (i32, i32, i32) {
    %c0_i32 = arith.constant 0 : i32
    return %arg0, %arg1, %arg3 : i32, i32, i32
  }
  func.func @transform_1(%arg0: i32, %arg1: i32, %arg2: i32, %arg3: i32) -> (i32, i32, i32) {
    %c0_i32 = arith.constant 0 : i32
    return %arg0, %arg3, %arg2 : i32, i32, i32
  }
  func.func @transform_2(%arg0: i32, %arg1: i32, %arg2: i32, %arg3: i32) -> (i32, i32, i32) {
    %c0_i32 = arith.constant 0 : i32
    %c0_i32_0 = arith.constant 0 : i32
    return %arg0, %c0_i32, %arg2 : i32, i32, i32
  }
  func.func @transform_3(%arg0: i32, %arg1: i32, %arg2: i32, %arg3: i32) -> (i32, i32, i32) {
    %c0_i32 = arith.constant 0 : i32
    return %arg0, %arg1, %arg2 : i32, i32, i32
  }
}

module attributes {stable_mosaic.version = 11 : i64} {
  func.func @_bn_stats_kernel(%arg0: i32, %arg1: memref<32x128xf32, #tpu.memory_space<vmem>>, %arg2: memref<2x128xf32, #tpu.memory_space<vmem>>) attributes {dimension_semantics = [#tpu.dimension_semantics<arbitrary>], iteration_bounds = array<i64: 1>, scalar_prefetch = 0 : i64, scratch_operands = 0 : i64, tpu.core_type = #tpu.core_type<tc>, window_params = [{transform_indices = @transform_0, window_bounds = array<i64: 32, 128>}, {pipeline_mode = #tpu.pipeline_mode<synchronous>, transform_indices = @transform_1, window_bounds = array<i64: 2, 128>}]} {
    %c0_i32 = arith.constant 0 : i32
    %0 = arith.cmpi eq, %arg0, %c0_i32 : i32
    %1 = arith.extui %0 : i1 to i32
    %c0_i32_0 = arith.constant 0 : i32
    %2 = arith.cmpi ne, %1, %c0_i32_0 : i32
    scf.if %2 {
      %cst_7 = arith.constant 0.000000e+00 : f32
      %13 = vector.broadcast %cst_7 : f32 to vector<2x128xf32>
      %c0_8 = arith.constant 0 : index
      %c0_9 = arith.constant 0 : index
      %14 = vector.load %arg2[%c0_8, %c0_9] : memref<2x128xf32, #tpu.memory_space<vmem>>, vector<2x128xf32>
      tpu.vector_store %arg2[%c0_8, %c0_9], %13 {strides = array<i32>} : memref<2x128xf32, #tpu.memory_space<vmem>>, vector<2x128xf32>,
    } else {
    }
    %c0 = arith.constant 0 : index
    %c0_1 = arith.constant 0 : index
    %3 = vector.load %arg1[%c0, %c0_1] : memref<32x128xf32, #tpu.memory_space<vmem>>, vector<32x128xf32>
    %cst = arith.constant dense<0.000000e+00> : vector<128xf32>
    %4 = vector.multi_reduction <add>, %3, %cst [0] : vector<32x128xf32> to vector<128xf32>
    %5 = vector.shape_cast %4 : vector<128xf32> to vector<1x128xf32>
    %6 = arith.mulf %3, %3 : vector<32x128xf32>
    %cst_2 = arith.constant dense<0.000000e+00> : vector<128xf32>
    %7 = vector.multi_reduction <add>, %6, %cst_2 [0] : vector<32x128xf32> to vector<128xf32>
    %8 = vector.shape_cast %7 : vector<128xf32> to vector<1x128xf32>
    %c0_3 = arith.constant 0 : index
    %c0_4 = arith.constant 0 : index
    %9 = vector.load %arg2[%c0_3, %c0_4] : memref<2x128xf32, #tpu.memory_space<vmem>>, vector<2x128xf32>
    %10 = tpu.concatenate %5, %8 in 0 : vector<1x128xf32>, vector<1x128xf32> -> vector<2x128xf32>
    %11 = arith.addf %9, %10 : vector<2x128xf32>
    %c0_5 = arith.constant 0 : index
    %c0_6 = arith.constant 0 : index
    %12 = vector.load %arg2[%c0_5, %c0_6] : memref<2x128xf32, #tpu.memory_space<vmem>>, vector<2x128xf32>
    tpu.vector_store %arg2[%c0_5, %c0_6], %11 {strides = array<i32>} : memref<2x128xf32, #tpu.memory_space<vmem>>, vector<2x128xf32>,
    return
  }
  func.func @transform_0(%arg0: i32) -> (i32, i32) {
    %c0_i32 = arith.constant 0 : i32
    %c0_i32_0 = arith.constant 0 : i32
    return %arg0, %c0_i32 : i32, i32
  }
  func.func @transform_1(%arg0: i32) -> (i32, i32) {
    %c0_i32 = arith.constant 0 : i32
    %c0_i32_0 = arith.constant 0 : i32
    %c0_i32_1 = arith.constant 0 : i32
    return %c0_i32, %c0_i32_0 : i32, i32
  }
}

module attributes {stable_mosaic.version = 11 : i64} {
  func.func @_bn_apply_kernel(%arg0: i32, %arg1: memref<32x128xf32, #tpu.memory_space<vmem>>, %arg2: memref<1x128xf32, #tpu.memory_space<vmem>>, %arg3: memref<1x128xf32, #tpu.memory_space<vmem>>, %arg4: memref<32x128xf32, #tpu.memory_space<vmem>>) attributes {dimension_semantics = [#tpu.dimension_semantics<parallel>], iteration_bounds = array<i64: 1>, scalar_prefetch = 0 : i64, scratch_operands = 0 : i64, tpu.core_type = #tpu.core_type<tc>, window_params = [{transform_indices = @transform_0, window_bounds = array<i64: 32, 128>}, {pipeline_mode = #tpu.pipeline_mode<synchronous>, transform_indices = @transform_1, window_bounds = array<i64: 1, 128>}, {pipeline_mode = #tpu.pipeline_mode<synchronous>, transform_indices = @transform_2, window_bounds = array<i64: 1, 128>}, {transform_indices = @transform_3, window_bounds = array<i64: 32, 128>}]} {
    %c0 = arith.constant 0 : index
    %c0_0 = arith.constant 0 : index
    %0 = vector.load %arg1[%c0, %c0_0] : memref<32x128xf32, #tpu.memory_space<vmem>>, vector<32x128xf32>
    %c0_1 = arith.constant 0 : index
    %c0_2 = arith.constant 0 : index
    %1 = vector.load %arg2[%c0_1, %c0_2] : memref<1x128xf32, #tpu.memory_space<vmem>>, vector<1x128xf32>
    %2 = vector.broadcast %1 : vector<1x128xf32> to vector<32x128xf32>
    %3 = arith.mulf %0, %2 : vector<32x128xf32>
    %c0_3 = arith.constant 0 : index
    %c0_4 = arith.constant 0 : index
    %4 = vector.load %arg3[%c0_3, %c0_4] : memref<1x128xf32, #tpu.memory_space<vmem>>, vector<1x128xf32>
    %5 = vector.broadcast %4 : vector<1x128xf32> to vector<32x128xf32>
    %6 = arith.addf %3, %5 : vector<32x128xf32>
    %c0_5 = arith.constant 0 : index
    %c0_6 = arith.constant 0 : index
    %7 = vector.load %arg4[%c0_5, %c0_6] : memref<32x128xf32, #tpu.memory_space<vmem>>, vector<32x128xf32>
    tpu.vector_store %arg4[%c0_5, %c0_6], %6 {strides = array<i32>} : memref<32x128xf32, #tpu.memory_space<vmem>>, vector<32x128xf32>,
    return
  }
  func.func @transform_0(%arg0: i32) -> (i32, i32) {
    %c0_i32 = arith.constant 0 : i32
    %c0_i32_0 = arith.constant 0 : i32
    return %arg0, %c0_i32 : i32, i32
  }
  func.func @transform_1(%arg0: i32) -> (i32, i32) {
    %c0_i32 = arith.constant 0 : i32
    %c0_i32_0 = arith.constant 0 : i32
    %c0_i32_1 = arith.constant 0 : i32
    return %c0_i32, %c0_i32_0 : i32, i32
  }
  func.func @transform_2(%arg0: i32) -> (i32, i32) {
    %c0_i32 = arith.constant 0 : i32
    %c0_i32_0 = arith.constant 0 : i32
    %c0_i32_1 = arith.constant 0 : i32
    return %c0_i32, %c0_i32_0 : i32, i32
  }
  func.func @transform_3(%arg0: i32) -> (i32, i32) {
    %c0_i32 = arith.constant 0 : i32
    %c0_i32_0 = arith.constant 0 : i32
    return %arg0, %c0_i32 : i32, i32
  }
}

module attributes {stable_mosaic.version = 11 : i64} {
  func.func @_bn_apply_kernel(%arg0: i32, %arg1: memref<8x128xf32, #tpu.memory_space<vmem>>, %arg2: memref<1x128xf32, #tpu.memory_space<vmem>>, %arg3: memref<1x128xf32, #tpu.memory_space<vmem>>, %arg4: memref<8x128xf32, #tpu.memory_space<vmem>>) attributes {dimension_semantics = [#tpu.dimension_semantics<parallel>], iteration_bounds = array<i64: 1>, scalar_prefetch = 0 : i64, scratch_operands = 0 : i64, tpu.core_type = #tpu.core_type<tc>, window_params = [{transform_indices = @transform_0, window_bounds = array<i64: 8, 128>}, {pipeline_mode = #tpu.pipeline_mode<synchronous>, transform_indices = @transform_1, window_bounds = array<i64: 1, 128>}, {pipeline_mode = #tpu.pipeline_mode<synchronous>, transform_indices = @transform_2, window_bounds = array<i64: 1, 128>}, {transform_indices = @transform_3, window_bounds = array<i64: 8, 128>}]} {
    %c0 = arith.constant 0 : index
    %c0_0 = arith.constant 0 : index
    %0 = vector.load %arg1[%c0, %c0_0] : memref<8x128xf32, #tpu.memory_space<vmem>>, vector<8x128xf32>
    %c0_1 = arith.constant 0 : index
    %c0_2 = arith.constant 0 : index
    %1 = vector.load %arg2[%c0_1, %c0_2] : memref<1x128xf32, #tpu.memory_space<vmem>>, vector<1x128xf32>
    %2 = vector.broadcast %1 : vector<1x128xf32> to vector<8x128xf32>
    %3 = arith.mulf %0, %2 : vector<8x128xf32>
    %c0_3 = arith.constant 0 : index
    %c0_4 = arith.constant 0 : index
    %4 = vector.load %arg3[%c0_3, %c0_4] : memref<1x128xf32, #tpu.memory_space<vmem>>, vector<1x128xf32>
    %5 = vector.broadcast %4 : vector<1x128xf32> to vector<8x128xf32>
    %6 = arith.addf %3, %5 : vector<8x128xf32>
    %c0_5 = arith.constant 0 : index
    %c0_6 = arith.constant 0 : index
    %7 = vector.load %arg4[%c0_5, %c0_6] : memref<8x128xf32, #tpu.memory_space<vmem>>, vector<8x128xf32>
    tpu.vector_store %arg4[%c0_5, %c0_6], %6 {strides = array<i32>} : memref<8x128xf32, #tpu.memory_space<vmem>>, vector<8x128xf32>,
    return
  }
  func.func @transform_0(%arg0: i32) -> (i32, i32) {
    %c0_i32 = arith.constant 0 : i32
    %c0_i32_0 = arith.constant 0 : i32
    return %arg0, %c0_i32 : i32, i32
  }
  func.func @transform_1(%arg0: i32) -> (i32, i32) {
    %c0_i32 = arith.constant 0 : i32
    %c0_i32_0 = arith.constant 0 : i32
    %c0_i32_1 = arith.constant 0 : i32
    return %c0_i32, %c0_i32_0 : i32, i32
  }
  func.func @transform_2(%arg0: i32) -> (i32, i32) {
    %c0_i32 = arith.constant 0 : i32
    %c0_i32_0 = arith.constant 0 : i32
    %c0_i32_1 = arith.constant 0 : i32
    return %c0_i32, %c0_i32_0 : i32, i32
  }
  func.func @transform_3(%arg0: i32) -> (i32, i32) {
    %c0_i32 = arith.constant 0 : i32
    %c0_i32_0 = arith.constant 0 : i32
    return %arg0, %c0_i32 : i32, i32
  }
}

module attributes {stable_mosaic.version = 11 : i64} {
  func.func @_mm_kernel(%arg0: i32, %arg1: i32, %arg2: i32, %arg3: i32, %arg4: memref<1x16x256xbf16, #tpu.memory_space<vmem>>, %arg5: memref<1x256x128xbf16, #tpu.memory_space<vmem>>, %arg6: memref<1x1x128xf32, #tpu.memory_space<vmem>>, %arg7: memref<1x16x128xf32, #tpu.memory_space<vmem>>, %arg8: memref<16x128xf32, #tpu.memory_space<vmem>>) attributes {dimension_semantics = [#tpu.dimension_semantics<parallel>, #tpu.dimension_semantics<parallel>, #tpu.dimension_semantics<parallel>, #tpu.dimension_semantics<arbitrary>], iteration_bounds = array<i64: 1, 1, 1, 1>, scalar_prefetch = 0 : i64, scratch_operands = 1 : i64, tpu.core_type = #tpu.core_type<tc>, window_params = [{transform_indices = @transform_0, window_bounds = array<i64: 1, 16, 256>}, {transform_indices = @transform_1, window_bounds = array<i64: 1, 256, 128>}, {transform_indices = @transform_2, window_bounds = array<i64: 1, 1, 128>}, {transform_indices = @transform_3, window_bounds = array<i64: 1, 16, 128>}]} {
    %c0_i32 = arith.constant 0 : i32
    %0 = arith.cmpi eq, %arg3, %c0_i32 : i32
    %1 = arith.extui %0 : i1 to i32
    %c0_i32_0 = arith.constant 0 : i32
    %2 = arith.cmpi ne, %1, %c0_i32_0 : i32
    scf.if %2 {
      %cst_12 = arith.constant 0.000000e+00 : f32
      %14 = vector.broadcast %cst_12 : f32 to vector<16x128xf32>
      %c0_13 = arith.constant 0 : index
      %c0_14 = arith.constant 0 : index
      %15 = vector.load %arg8[%c0_13, %c0_14] : memref<16x128xf32, #tpu.memory_space<vmem>>, vector<16x128xf32>
      tpu.vector_store %arg8[%c0_13, %c0_14], %14 {strides = array<i32>} : memref<16x128xf32, #tpu.memory_space<vmem>>, vector<16x128xf32>,
    } else {
    }
    %c0 = arith.constant 0 : index
    %c0_1 = arith.constant 0 : index
    %3 = vector.load %arg8[%c0, %c0_1] : memref<16x128xf32, #tpu.memory_space<vmem>>, vector<16x128xf32>
    %c0_2 = arith.constant 0 : index
    %c0_3 = arith.constant 0 : index
    %c0_4 = arith.constant 0 : index
    %4 = vector.load %arg4[%c0_2, %c0_3, %c0_4] : memref<1x16x256xbf16, #tpu.memory_space<vmem>>, vector<1x16x256xbf16>
    %5 = vector.shape_cast %4 : vector<1x16x256xbf16> to vector<16x256xbf16>
    %c0_5 = arith.constant 0 : index
    %c0_6 = arith.constant 0 : index
    %c0_7 = arith.constant 0 : index
    %6 = vector.load %arg5[%c0_5, %c0_6, %c0_7] : memref<1x256x128xbf16, #tpu.memory_space<vmem>>, vector<1x256x128xbf16>
    %7 = vector.shape_cast %6 : vector<1x256x128xbf16> to vector<256x128xbf16>
    %cst = arith.constant dense<0.000000e+00> : vector<16x128xf32>
    %8 = tpu.matmul %5, %7, %cst {dimension_numbers = #tpu.dot_dimension_numbers<[1], [0], [0], [1], [0, 0, 1, 1], [], []>} : vector<16x256xbf16>, vector<256x128xbf16>, vector<16x128xf32> -> vector<16x128xf32>
    %9 = arith.addf %3, %8 : vector<16x128xf32>
    %c0_8 = arith.constant 0 : index
    %c0_9 = arith.constant 0 : index
    %10 = vector.load %arg8[%c0_8, %c0_9] : memref<16x128xf32, #tpu.memory_space<vmem>>, vector<16x128xf32>
    tpu.vector_store %arg8[%c0_8, %c0_9], %9 {strides = array<i32>} : memref<16x128xf32, #tpu.memory_space<vmem>>, vector<16x128xf32>,
    %c0_i32_10 = arith.constant 0 : i32
    %11 = arith.cmpi eq, %arg3, %c0_i32_10 : i32
    %12 = arith.extui %11 : i1 to i32
    %c0_i32_11 = arith.constant 0 : i32
    %13 = arith.cmpi ne, %12, %c0_i32_11 : i32
    scf.if %13 {
      %c0_12 = arith.constant 0 : index
      %c0_13 = arith.constant 0 : index
      %14 = vector.load %arg8[%c0_12, %c0_13] : memref<16x128xf32, #tpu.memory_space<vmem>>, vector<16x128xf32>
      %c0_14 = arith.constant 0 : index
      %c0_15 = arith.constant 0 : index
      %c0_16 = arith.constant 0 : index
      %15 = vector.load %arg6[%c0_14, %c0_15, %c0_16] : memref<1x1x128xf32, #tpu.memory_space<vmem>>, vector<1x1x128xf32>
      %16 = vector.shape_cast %15 : vector<1x1x128xf32> to vector<1x128xf32>
      %17 = vector.broadcast %16 : vector<1x128xf32> to vector<16x128xf32>
      %18 = arith.addf %14, %17 : vector<16x128xf32>
      %c0_17 = arith.constant 0 : index
      %c0_18 = arith.constant 0 : index
      %c0_19 = arith.constant 0 : index
      %19 = vector.load %arg7[%c0_17, %c0_18, %c0_19] : memref<1x16x128xf32, #tpu.memory_space<vmem>>, vector<1x16x128xf32>
      %20 = vector.shape_cast %19 : vector<1x16x128xf32> to vector<16x128xf32>
      %21 = vector.shape_cast %18 : vector<16x128xf32> to vector<1x16x128xf32>
      tpu.vector_store %arg7[%c0_17, %c0_18, %c0_19], %21 {strides = array<i32>} : memref<1x16x128xf32, #tpu.memory_space<vmem>>, vector<1x16x128xf32>,
    } else {
    }
    return
  }
  func.func @transform_0(%arg0: i32, %arg1: i32, %arg2: i32, %arg3: i32) -> (i32, i32, i32) {
    %c0_i32 = arith.constant 0 : i32
    return %arg0, %arg1, %arg3 : i32, i32, i32
  }
  func.func @transform_1(%arg0: i32, %arg1: i32, %arg2: i32, %arg3: i32) -> (i32, i32, i32) {
    %c0_i32 = arith.constant 0 : i32
    return %arg0, %arg3, %arg2 : i32, i32, i32
  }
  func.func @transform_2(%arg0: i32, %arg1: i32, %arg2: i32, %arg3: i32) -> (i32, i32, i32) {
    %c0_i32 = arith.constant 0 : i32
    %c0_i32_0 = arith.constant 0 : i32
    return %arg0, %c0_i32, %arg2 : i32, i32, i32
  }
  func.func @transform_3(%arg0: i32, %arg1: i32, %arg2: i32, %arg3: i32) -> (i32, i32, i32) {
    %c0_i32 = arith.constant 0 : i32
    return %arg0, %arg1, %arg2 : i32, i32, i32
  }
}

module attributes {stable_mosaic.version = 11 : i64} {
  func.func @_bn_stats_kernel(%arg0: i32, %arg1: memref<8x128xf32, #tpu.memory_space<vmem>>, %arg2: memref<2x128xf32, #tpu.memory_space<vmem>>) attributes {dimension_semantics = [#tpu.dimension_semantics<arbitrary>], iteration_bounds = array<i64: 1>, scalar_prefetch = 0 : i64, scratch_operands = 0 : i64, tpu.core_type = #tpu.core_type<tc>, window_params = [{transform_indices = @transform_0, window_bounds = array<i64: 8, 128>}, {pipeline_mode = #tpu.pipeline_mode<synchronous>, transform_indices = @transform_1, window_bounds = array<i64: 2, 128>}]} {
    %c0_i32 = arith.constant 0 : i32
    %0 = arith.cmpi eq, %arg0, %c0_i32 : i32
    %1 = arith.extui %0 : i1 to i32
    %c0_i32_0 = arith.constant 0 : i32
    %2 = arith.cmpi ne, %1, %c0_i32_0 : i32
    scf.if %2 {
      %cst_7 = arith.constant 0.000000e+00 : f32
      %13 = vector.broadcast %cst_7 : f32 to vector<2x128xf32>
      %c0_8 = arith.constant 0 : index
      %c0_9 = arith.constant 0 : index
      %14 = vector.load %arg2[%c0_8, %c0_9] : memref<2x128xf32, #tpu.memory_space<vmem>>, vector<2x128xf32>
      tpu.vector_store %arg2[%c0_8, %c0_9], %13 {strides = array<i32>} : memref<2x128xf32, #tpu.memory_space<vmem>>, vector<2x128xf32>,
    } else {
    }
    %c0 = arith.constant 0 : index
    %c0_1 = arith.constant 0 : index
    %3 = vector.load %arg1[%c0, %c0_1] : memref<8x128xf32, #tpu.memory_space<vmem>>, vector<8x128xf32>
    %cst = arith.constant dense<0.000000e+00> : vector<128xf32>
    %4 = vector.multi_reduction <add>, %3, %cst [0] : vector<8x128xf32> to vector<128xf32>
    %5 = vector.shape_cast %4 : vector<128xf32> to vector<1x128xf32>
    %6 = arith.mulf %3, %3 : vector<8x128xf32>
    %cst_2 = arith.constant dense<0.000000e+00> : vector<128xf32>
    %7 = vector.multi_reduction <add>, %6, %cst_2 [0] : vector<8x128xf32> to vector<128xf32>
    %8 = vector.shape_cast %7 : vector<128xf32> to vector<1x128xf32>
    %c0_3 = arith.constant 0 : index
    %c0_4 = arith.constant 0 : index
    %9 = vector.load %arg2[%c0_3, %c0_4] : memref<2x128xf32, #tpu.memory_space<vmem>>, vector<2x128xf32>
    %10 = tpu.concatenate %5, %8 in 0 : vector<1x128xf32>, vector<1x128xf32> -> vector<2x128xf32>
    %11 = arith.addf %9, %10 : vector<2x128xf32>
    %c0_5 = arith.constant 0 : index
    %c0_6 = arith.constant 0 : index
    %12 = vector.load %arg2[%c0_5, %c0_6] : memref<2x128xf32, #tpu.memory_space<vmem>>, vector<2x128xf32>
    tpu.vector_store %arg2[%c0_5, %c0_6], %11 {strides = array<i32>} : memref<2x128xf32, #tpu.memory_space<vmem>>, vector<2x128xf32>,
    return
  }
  func.func @transform_0(%arg0: i32) -> (i32, i32) {
    %c0_i32 = arith.constant 0 : i32
    %c0_i32_0 = arith.constant 0 : i32
    return %arg0, %c0_i32 : i32, i32
  }
  func.func @transform_1(%arg0: i32) -> (i32, i32) {
    %c0_i32 = arith.constant 0 : i32
    %c0_i32_0 = arith.constant 0 : i32
    %c0_i32_1 = arith.constant 0 : i32
    return %c0_i32, %c0_i32_0 : i32, i32
  }
}

module attributes {stable_mosaic.version = 11 : i64} {
  func.func @_mm_kernel(%arg0: i32, %arg1: i32, %arg2: i32, %arg3: i32, %arg4: memref<1x16x128xbf16, #tpu.memory_space<vmem>>, %arg5: memref<1x128x128xbf16, #tpu.memory_space<vmem>>, %arg6: memref<1x1x128xf32, #tpu.memory_space<vmem>>, %arg7: memref<1x16x128xf32, #tpu.memory_space<vmem>>, %arg8: memref<16x128xf32, #tpu.memory_space<vmem>>) attributes {dimension_semantics = [#tpu.dimension_semantics<parallel>, #tpu.dimension_semantics<parallel>, #tpu.dimension_semantics<parallel>, #tpu.dimension_semantics<arbitrary>], iteration_bounds = array<i64: 4, 1, 1, 1>, scalar_prefetch = 0 : i64, scratch_operands = 1 : i64, tpu.core_type = #tpu.core_type<tc>, window_params = [{transform_indices = @transform_0, window_bounds = array<i64: 1, 16, 128>}, {transform_indices = @transform_1, window_bounds = array<i64: 1, 128, 128>}, {transform_indices = @transform_2, window_bounds = array<i64: 1, 1, 128>}, {transform_indices = @transform_3, window_bounds = array<i64: 1, 16, 128>}]} {
    %c0_i32 = arith.constant 0 : i32
    %0 = arith.cmpi eq, %arg3, %c0_i32 : i32
    %1 = arith.extui %0 : i1 to i32
    %c0_i32_0 = arith.constant 0 : i32
    %2 = arith.cmpi ne, %1, %c0_i32_0 : i32
    scf.if %2 {
      %cst_12 = arith.constant 0.000000e+00 : f32
      %14 = vector.broadcast %cst_12 : f32 to vector<16x128xf32>
      %c0_13 = arith.constant 0 : index
      %c0_14 = arith.constant 0 : index
      %15 = vector.load %arg8[%c0_13, %c0_14] : memref<16x128xf32, #tpu.memory_space<vmem>>, vector<16x128xf32>
      tpu.vector_store %arg8[%c0_13, %c0_14], %14 {strides = array<i32>} : memref<16x128xf32, #tpu.memory_space<vmem>>, vector<16x128xf32>,
    } else {
    }
    %c0 = arith.constant 0 : index
    %c0_1 = arith.constant 0 : index
    %3 = vector.load %arg8[%c0, %c0_1] : memref<16x128xf32, #tpu.memory_space<vmem>>, vector<16x128xf32>
    %c0_2 = arith.constant 0 : index
    %c0_3 = arith.constant 0 : index
    %c0_4 = arith.constant 0 : index
    %4 = vector.load %arg4[%c0_2, %c0_3, %c0_4] : memref<1x16x128xbf16, #tpu.memory_space<vmem>>, vector<1x16x128xbf16>
    %5 = vector.shape_cast %4 : vector<1x16x128xbf16> to vector<16x128xbf16>
    %c0_5 = arith.constant 0 : index
    %c0_6 = arith.constant 0 : index
    %c0_7 = arith.constant 0 : index
    %6 = vector.load %arg5[%c0_5, %c0_6, %c0_7] : memref<1x128x128xbf16, #tpu.memory_space<vmem>>, vector<1x128x128xbf16>
    %7 = vector.shape_cast %6 : vector<1x128x128xbf16> to vector<128x128xbf16>
    %cst = arith.constant dense<0.000000e+00> : vector<16x128xf32>
    %8 = tpu.matmul %5, %7, %cst {dimension_numbers = #tpu.dot_dimension_numbers<[1], [0], [0], [1], [0, 0, 1, 1], [], []>} : vector<16x128xbf16>, vector<128x128xbf16>, vector<16x128xf32> -> vector<16x128xf32>
    %9 = arith.addf %3, %8 : vector<16x128xf32>
    %c0_8 = arith.constant 0 : index
    %c0_9 = arith.constant 0 : index
    %10 = vector.load %arg8[%c0_8, %c0_9] : memref<16x128xf32, #tpu.memory_space<vmem>>, vector<16x128xf32>
    tpu.vector_store %arg8[%c0_8, %c0_9], %9 {strides = array<i32>} : memref<16x128xf32, #tpu.memory_space<vmem>>, vector<16x128xf32>,
    %c0_i32_10 = arith.constant 0 : i32
    %11 = arith.cmpi eq, %arg3, %c0_i32_10 : i32
    %12 = arith.extui %11 : i1 to i32
    %c0_i32_11 = arith.constant 0 : i32
    %13 = arith.cmpi ne, %12, %c0_i32_11 : i32
    scf.if %13 {
      %c0_12 = arith.constant 0 : index
      %c0_13 = arith.constant 0 : index
      %14 = vector.load %arg8[%c0_12, %c0_13] : memref<16x128xf32, #tpu.memory_space<vmem>>, vector<16x128xf32>
      %c0_14 = arith.constant 0 : index
      %c0_15 = arith.constant 0 : index
      %c0_16 = arith.constant 0 : index
      %15 = vector.load %arg6[%c0_14, %c0_15, %c0_16] : memref<1x1x128xf32, #tpu.memory_space<vmem>>, vector<1x1x128xf32>
      %16 = vector.shape_cast %15 : vector<1x1x128xf32> to vector<1x128xf32>
      %17 = vector.broadcast %16 : vector<1x128xf32> to vector<16x128xf32>
      %18 = arith.addf %14, %17 : vector<16x128xf32>
      %c0_17 = arith.constant 0 : index
      %c0_18 = arith.constant 0 : index
      %c0_19 = arith.constant 0 : index
      %19 = vector.load %arg7[%c0_17, %c0_18, %c0_19] : memref<1x16x128xf32, #tpu.memory_space<vmem>>, vector<1x16x128xf32>
      %20 = vector.shape_cast %19 : vector<1x16x128xf32> to vector<16x128xf32>
      %21 = vector.shape_cast %18 : vector<16x128xf32> to vector<1x16x128xf32>
      tpu.vector_store %arg7[%c0_17, %c0_18, %c0_19], %21 {strides = array<i32>} : memref<1x16x128xf32, #tpu.memory_space<vmem>>, vector<1x16x128xf32>,
    } else {
    }
    return
  }
  func.func @transform_0(%arg0: i32, %arg1: i32, %arg2: i32, %arg3: i32) -> (i32, i32, i32) {
    %c0_i32 = arith.constant 0 : i32
    return %arg0, %arg1, %arg3 : i32, i32, i32
  }
  func.func @transform_1(%arg0: i32, %arg1: i32, %arg2: i32, %arg3: i32) -> (i32, i32, i32) {
    %c0_i32 = arith.constant 0 : i32
    return %arg0, %arg3, %arg2 : i32, i32, i32
  }
  func.func @transform_2(%arg0: i32, %arg1: i32, %arg2: i32, %arg3: i32) -> (i32, i32, i32) {
    %c0_i32 = arith.constant 0 : i32
    %c0_i32_0 = arith.constant 0 : i32
    return %arg0, %c0_i32, %arg2 : i32, i32, i32
  }
  func.func @transform_3(%arg0: i32, %arg1: i32, %arg2: i32, %arg3: i32) -> (i32, i32, i32) {
    %c0_i32 = arith.constant 0 : i32
    return %arg0, %arg1, %arg2 : i32, i32, i32
  }
}

module attributes {stable_mosaic.version = 11 : i64} {
  func.func @_mm_kernel(%arg0: i32, %arg1: i32, %arg2: i32, %arg3: i32, %arg4: memref<1x16x512xbf16, #tpu.memory_space<vmem>>, %arg5: memref<1x512x128xbf16, #tpu.memory_space<vmem>>, %arg6: memref<1x1x128xf32, #tpu.memory_space<vmem>>, %arg7: memref<1x16x128xf32, #tpu.memory_space<vmem>>, %arg8: memref<16x128xf32, #tpu.memory_space<vmem>>) attributes {dimension_semantics = [#tpu.dimension_semantics<parallel>, #tpu.dimension_semantics<parallel>, #tpu.dimension_semantics<parallel>, #tpu.dimension_semantics<arbitrary>], iteration_bounds = array<i64: 1, 1, 1, 1>, scalar_prefetch = 0 : i64, scratch_operands = 1 : i64, tpu.core_type = #tpu.core_type<tc>, window_params = [{transform_indices = @transform_0, window_bounds = array<i64: 1, 16, 512>}, {transform_indices = @transform_1, window_bounds = array<i64: 1, 512, 128>}, {transform_indices = @transform_2, window_bounds = array<i64: 1, 1, 128>}, {transform_indices = @transform_3, window_bounds = array<i64: 1, 16, 128>}]} {
    %c0_i32 = arith.constant 0 : i32
    %0 = arith.cmpi eq, %arg3, %c0_i32 : i32
    %1 = arith.extui %0 : i1 to i32
    %c0_i32_0 = arith.constant 0 : i32
    %2 = arith.cmpi ne, %1, %c0_i32_0 : i32
    scf.if %2 {
      %cst_12 = arith.constant 0.000000e+00 : f32
      %14 = vector.broadcast %cst_12 : f32 to vector<16x128xf32>
      %c0_13 = arith.constant 0 : index
      %c0_14 = arith.constant 0 : index
      %15 = vector.load %arg8[%c0_13, %c0_14] : memref<16x128xf32, #tpu.memory_space<vmem>>, vector<16x128xf32>
      tpu.vector_store %arg8[%c0_13, %c0_14], %14 {strides = array<i32>} : memref<16x128xf32, #tpu.memory_space<vmem>>, vector<16x128xf32>,
    } else {
    }
    %c0 = arith.constant 0 : index
    %c0_1 = arith.constant 0 : index
    %3 = vector.load %arg8[%c0, %c0_1] : memref<16x128xf32, #tpu.memory_space<vmem>>, vector<16x128xf32>
    %c0_2 = arith.constant 0 : index
    %c0_3 = arith.constant 0 : index
    %c0_4 = arith.constant 0 : index
    %4 = vector.load %arg4[%c0_2, %c0_3, %c0_4] : memref<1x16x512xbf16, #tpu.memory_space<vmem>>, vector<1x16x512xbf16>
    %5 = vector.shape_cast %4 : vector<1x16x512xbf16> to vector<16x512xbf16>
    %c0_5 = arith.constant 0 : index
    %c0_6 = arith.constant 0 : index
    %c0_7 = arith.constant 0 : index
    %6 = vector.load %arg5[%c0_5, %c0_6, %c0_7] : memref<1x512x128xbf16, #tpu.memory_space<vmem>>, vector<1x512x128xbf16>
    %7 = vector.shape_cast %6 : vector<1x512x128xbf16> to vector<512x128xbf16>
    %cst = arith.constant dense<0.000000e+00> : vector<16x128xf32>
    %8 = tpu.matmul %5, %7, %cst {dimension_numbers = #tpu.dot_dimension_numbers<[1], [0], [0], [1], [0, 0, 1, 1], [], []>} : vector<16x512xbf16>, vector<512x128xbf16>, vector<16x128xf32> -> vector<16x128xf32>
    %9 = arith.addf %3, %8 : vector<16x128xf32>
    %c0_8 = arith.constant 0 : index
    %c0_9 = arith.constant 0 : index
    %10 = vector.load %arg8[%c0_8, %c0_9] : memref<16x128xf32, #tpu.memory_space<vmem>>, vector<16x128xf32>
    tpu.vector_store %arg8[%c0_8, %c0_9], %9 {strides = array<i32>} : memref<16x128xf32, #tpu.memory_space<vmem>>, vector<16x128xf32>,
    %c0_i32_10 = arith.constant 0 : i32
    %11 = arith.cmpi eq, %arg3, %c0_i32_10 : i32
    %12 = arith.extui %11 : i1 to i32
    %c0_i32_11 = arith.constant 0 : i32
    %13 = arith.cmpi ne, %12, %c0_i32_11 : i32
    scf.if %13 {
      %c0_12 = arith.constant 0 : index
      %c0_13 = arith.constant 0 : index
      %14 = vector.load %arg8[%c0_12, %c0_13] : memref<16x128xf32, #tpu.memory_space<vmem>>, vector<16x128xf32>
      %c0_14 = arith.constant 0 : index
      %c0_15 = arith.constant 0 : index
      %c0_16 = arith.constant 0 : index
      %15 = vector.load %arg6[%c0_14, %c0_15, %c0_16] : memref<1x1x128xf32, #tpu.memory_space<vmem>>, vector<1x1x128xf32>
      %16 = vector.shape_cast %15 : vector<1x1x128xf32> to vector<1x128xf32>
      %17 = vector.broadcast %16 : vector<1x128xf32> to vector<16x128xf32>
      %18 = arith.addf %14, %17 : vector<16x128xf32>
      %c0_17 = arith.constant 0 : index
      %c0_18 = arith.constant 0 : index
      %c0_19 = arith.constant 0 : index
      %19 = vector.load %arg7[%c0_17, %c0_18, %c0_19] : memref<1x16x128xf32, #tpu.memory_space<vmem>>, vector<1x16x128xf32>
      %20 = vector.shape_cast %19 : vector<1x16x128xf32> to vector<16x128xf32>
      %21 = vector.shape_cast %18 : vector<16x128xf32> to vector<1x16x128xf32>
      tpu.vector_store %arg7[%c0_17, %c0_18, %c0_19], %21 {strides = array<i32>} : memref<1x16x128xf32, #tpu.memory_space<vmem>>, vector<1x16x128xf32>,
    } else {
    }
    return
  }
  func.func @transform_0(%arg0: i32, %arg1: i32, %arg2: i32, %arg3: i32) -> (i32, i32, i32) {
    %c0_i32 = arith.constant 0 : i32
    return %arg0, %arg1, %arg3 : i32, i32, i32
  }
  func.func @transform_1(%arg0: i32, %arg1: i32, %arg2: i32, %arg3: i32) -> (i32, i32, i32) {
    %c0_i32 = arith.constant 0 : i32
    return %arg0, %arg3, %arg2 : i32, i32, i32
  }
  func.func @transform_2(%arg0: i32, %arg1: i32, %arg2: i32, %arg3: i32) -> (i32, i32, i32) {
    %c0_i32 = arith.constant 0 : i32
    %c0_i32_0 = arith.constant 0 : i32
    return %arg0, %c0_i32, %arg2 : i32, i32, i32
  }
  func.func @transform_3(%arg0: i32, %arg1: i32, %arg2: i32, %arg3: i32) -> (i32, i32, i32) {
    %c0_i32 = arith.constant 0 : i32
    return %arg0, %arg1, %arg2 : i32, i32, i32
  }
}

module attributes {stable_mosaic.version = 11 : i64} {
  func.func @_mm_kernel(%arg0: i32, %arg1: i32, %arg2: i32, %arg3: i32, %arg4: memref<1x16x256xbf16, #tpu.memory_space<vmem>>, %arg5: memref<1x256x128xbf16, #tpu.memory_space<vmem>>, %arg6: memref<1x1x128xf32, #tpu.memory_space<vmem>>, %arg7: memref<1x16x128xf32, #tpu.memory_space<vmem>>, %arg8: memref<16x128xf32, #tpu.memory_space<vmem>>) attributes {dimension_semantics = [#tpu.dimension_semantics<parallel>, #tpu.dimension_semantics<parallel>, #tpu.dimension_semantics<parallel>, #tpu.dimension_semantics<arbitrary>], iteration_bounds = array<i64: 4, 1, 1, 1>, scalar_prefetch = 0 : i64, scratch_operands = 1 : i64, tpu.core_type = #tpu.core_type<tc>, window_params = [{transform_indices = @transform_0, window_bounds = array<i64: 1, 16, 256>}, {transform_indices = @transform_1, window_bounds = array<i64: 1, 256, 128>}, {transform_indices = @transform_2, window_bounds = array<i64: 1, 1, 128>}, {transform_indices = @transform_3, window_bounds = array<i64: 1, 16, 128>}]} {
    %c0_i32 = arith.constant 0 : i32
    %0 = arith.cmpi eq, %arg3, %c0_i32 : i32
    %1 = arith.extui %0 : i1 to i32
    %c0_i32_0 = arith.constant 0 : i32
    %2 = arith.cmpi ne, %1, %c0_i32_0 : i32
    scf.if %2 {
      %cst_12 = arith.constant 0.000000e+00 : f32
      %14 = vector.broadcast %cst_12 : f32 to vector<16x128xf32>
      %c0_13 = arith.constant 0 : index
      %c0_14 = arith.constant 0 : index
      %15 = vector.load %arg8[%c0_13, %c0_14] : memref<16x128xf32, #tpu.memory_space<vmem>>, vector<16x128xf32>
      tpu.vector_store %arg8[%c0_13, %c0_14], %14 {strides = array<i32>} : memref<16x128xf32, #tpu.memory_space<vmem>>, vector<16x128xf32>,
    } else {
    }
    %c0 = arith.constant 0 : index
    %c0_1 = arith.constant 0 : index
    %3 = vector.load %arg8[%c0, %c0_1] : memref<16x128xf32, #tpu.memory_space<vmem>>, vector<16x128xf32>
    %c0_2 = arith.constant 0 : index
    %c0_3 = arith.constant 0 : index
    %c0_4 = arith.constant 0 : index
    %4 = vector.load %arg4[%c0_2, %c0_3, %c0_4] : memref<1x16x256xbf16, #tpu.memory_space<vmem>>, vector<1x16x256xbf16>
    %5 = vector.shape_cast %4 : vector<1x16x256xbf16> to vector<16x256xbf16>
    %c0_5 = arith.constant 0 : index
    %c0_6 = arith.constant 0 : index
    %c0_7 = arith.constant 0 : index
    %6 = vector.load %arg5[%c0_5, %c0_6, %c0_7] : memref<1x256x128xbf16, #tpu.memory_space<vmem>>, vector<1x256x128xbf16>
    %7 = vector.shape_cast %6 : vector<1x256x128xbf16> to vector<256x128xbf16>
    %cst = arith.constant dense<0.000000e+00> : vector<16x128xf32>
    %8 = tpu.matmul %5, %7, %cst {dimension_numbers = #tpu.dot_dimension_numbers<[1], [0], [0], [1], [0, 0, 1, 1], [], []>} : vector<16x256xbf16>, vector<256x128xbf16>, vector<16x128xf32> -> vector<16x128xf32>
    %9 = arith.addf %3, %8 : vector<16x128xf32>
    %c0_8 = arith.constant 0 : index
    %c0_9 = arith.constant 0 : index
    %10 = vector.load %arg8[%c0_8, %c0_9] : memref<16x128xf32, #tpu.memory_space<vmem>>, vector<16x128xf32>
    tpu.vector_store %arg8[%c0_8, %c0_9], %9 {strides = array<i32>} : memref<16x128xf32, #tpu.memory_space<vmem>>, vector<16x128xf32>,
    %c0_i32_10 = arith.constant 0 : i32
    %11 = arith.cmpi eq, %arg3, %c0_i32_10 : i32
    %12 = arith.extui %11 : i1 to i32
    %c0_i32_11 = arith.constant 0 : i32
    %13 = arith.cmpi ne, %12, %c0_i32_11 : i32
    scf.if %13 {
      %c0_12 = arith.constant 0 : index
      %c0_13 = arith.constant 0 : index
      %14 = vector.load %arg8[%c0_12, %c0_13] : memref<16x128xf32, #tpu.memory_space<vmem>>, vector<16x128xf32>
      %c0_14 = arith.constant 0 : index
      %c0_15 = arith.constant 0 : index
      %c0_16 = arith.constant 0 : index
      %15 = vector.load %arg6[%c0_14, %c0_15, %c0_16] : memref<1x1x128xf32, #tpu.memory_space<vmem>>, vector<1x1x128xf32>
      %16 = vector.shape_cast %15 : vector<1x1x128xf32> to vector<1x128xf32>
      %17 = vector.broadcast %16 : vector<1x128xf32> to vector<16x128xf32>
      %18 = arith.addf %14, %17 : vector<16x128xf32>
      %c0_17 = arith.constant 0 : index
      %c0_18 = arith.constant 0 : index
      %c0_19 = arith.constant 0 : index
      %19 = vector.load %arg7[%c0_17, %c0_18, %c0_19] : memref<1x16x128xf32, #tpu.memory_space<vmem>>, vector<1x16x128xf32>
      %20 = vector.shape_cast %19 : vector<1x16x128xf32> to vector<16x128xf32>
      %21 = vector.shape_cast %18 : vector<16x128xf32> to vector<1x16x128xf32>
      tpu.vector_store %arg7[%c0_17, %c0_18, %c0_19], %21 {strides = array<i32>} : memref<1x16x128xf32, #tpu.memory_space<vmem>>, vector<1x16x128xf32>,
    } else {
    }
    return
  }
  func.func @transform_0(%arg0: i32, %arg1: i32, %arg2: i32, %arg3: i32) -> (i32, i32, i32) {
    %c0_i32 = arith.constant 0 : i32
    return %arg0, %arg1, %arg3 : i32, i32, i32
  }
  func.func @transform_1(%arg0: i32, %arg1: i32, %arg2: i32, %arg3: i32) -> (i32, i32, i32) {
    %c0_i32 = arith.constant 0 : i32
    return %arg0, %arg3, %arg2 : i32, i32, i32
  }
  func.func @transform_2(%arg0: i32, %arg1: i32, %arg2: i32, %arg3: i32) -> (i32, i32, i32) {
    %c0_i32 = arith.constant 0 : i32
    %c0_i32_0 = arith.constant 0 : i32
    return %arg0, %c0_i32, %arg2 : i32, i32, i32
  }
  func.func @transform_3(%arg0: i32, %arg1: i32, %arg2: i32, %arg3: i32) -> (i32, i32, i32) {
    %c0_i32 = arith.constant 0 : i32
    return %arg0, %arg1, %arg2 : i32, i32, i32
  }
}

module attributes {stable_mosaic.version = 11 : i64} {
  func.func @_mm_kernel(%arg0: i32, %arg1: i32, %arg2: i32, %arg3: i32, %arg4: memref<1x32x128xbf16, #tpu.memory_space<vmem>>, %arg5: memref<1x128x128xbf16, #tpu.memory_space<vmem>>, %arg6: memref<1x1x128xf32, #tpu.memory_space<vmem>>, %arg7: memref<1x32x128xf32, #tpu.memory_space<vmem>>, %arg8: memref<32x128xf32, #tpu.memory_space<vmem>>) attributes {dimension_semantics = [#tpu.dimension_semantics<parallel>, #tpu.dimension_semantics<parallel>, #tpu.dimension_semantics<parallel>, #tpu.dimension_semantics<arbitrary>], iteration_bounds = array<i64: 4, 1, 1, 1>, scalar_prefetch = 0 : i64, scratch_operands = 1 : i64, tpu.core_type = #tpu.core_type<tc>, window_params = [{transform_indices = @transform_0, window_bounds = array<i64: 1, 32, 128>}, {transform_indices = @transform_1, window_bounds = array<i64: 1, 128, 128>}, {transform_indices = @transform_2, window_bounds = array<i64: 1, 1, 128>}, {transform_indices = @transform_3, window_bounds = array<i64: 1, 32, 128>}]} {
    %c0_i32 = arith.constant 0 : i32
    %0 = arith.cmpi eq, %arg3, %c0_i32 : i32
    %1 = arith.extui %0 : i1 to i32
    %c0_i32_0 = arith.constant 0 : i32
    %2 = arith.cmpi ne, %1, %c0_i32_0 : i32
    scf.if %2 {
      %cst_12 = arith.constant 0.000000e+00 : f32
      %14 = vector.broadcast %cst_12 : f32 to vector<32x128xf32>
      %c0_13 = arith.constant 0 : index
      %c0_14 = arith.constant 0 : index
      %15 = vector.load %arg8[%c0_13, %c0_14] : memref<32x128xf32, #tpu.memory_space<vmem>>, vector<32x128xf32>
      tpu.vector_store %arg8[%c0_13, %c0_14], %14 {strides = array<i32>} : memref<32x128xf32, #tpu.memory_space<vmem>>, vector<32x128xf32>,
    } else {
    }
    %c0 = arith.constant 0 : index
    %c0_1 = arith.constant 0 : index
    %3 = vector.load %arg8[%c0, %c0_1] : memref<32x128xf32, #tpu.memory_space<vmem>>, vector<32x128xf32>
    %c0_2 = arith.constant 0 : index
    %c0_3 = arith.constant 0 : index
    %c0_4 = arith.constant 0 : index
    %4 = vector.load %arg4[%c0_2, %c0_3, %c0_4] : memref<1x32x128xbf16, #tpu.memory_space<vmem>>, vector<1x32x128xbf16>
    %5 = vector.shape_cast %4 : vector<1x32x128xbf16> to vector<32x128xbf16>
    %c0_5 = arith.constant 0 : index
    %c0_6 = arith.constant 0 : index
    %c0_7 = arith.constant 0 : index
    %6 = vector.load %arg5[%c0_5, %c0_6, %c0_7] : memref<1x128x128xbf16, #tpu.memory_space<vmem>>, vector<1x128x128xbf16>
    %7 = vector.shape_cast %6 : vector<1x128x128xbf16> to vector<128x128xbf16>
    %cst = arith.constant dense<0.000000e+00> : vector<32x128xf32>
    %8 = tpu.matmul %5, %7, %cst {dimension_numbers = #tpu.dot_dimension_numbers<[1], [0], [0], [1], [0, 0, 1, 1], [], []>} : vector<32x128xbf16>, vector<128x128xbf16>, vector<32x128xf32> -> vector<32x128xf32>
    %9 = arith.addf %3, %8 : vector<32x128xf32>
    %c0_8 = arith.constant 0 : index
    %c0_9 = arith.constant 0 : index
    %10 = vector.load %arg8[%c0_8, %c0_9] : memref<32x128xf32, #tpu.memory_space<vmem>>, vector<32x128xf32>
    tpu.vector_store %arg8[%c0_8, %c0_9], %9 {strides = array<i32>} : memref<32x128xf32, #tpu.memory_space<vmem>>, vector<32x128xf32>,
    %c0_i32_10 = arith.constant 0 : i32
    %11 = arith.cmpi eq, %arg3, %c0_i32_10 : i32
    %12 = arith.extui %11 : i1 to i32
    %c0_i32_11 = arith.constant 0 : i32
    %13 = arith.cmpi ne, %12, %c0_i32_11 : i32
    scf.if %13 {
      %c0_12 = arith.constant 0 : index
      %c0_13 = arith.constant 0 : index
      %14 = vector.load %arg8[%c0_12, %c0_13] : memref<32x128xf32, #tpu.memory_space<vmem>>, vector<32x128xf32>
      %c0_14 = arith.constant 0 : index
      %c0_15 = arith.constant 0 : index
      %c0_16 = arith.constant 0 : index
      %15 = vector.load %arg6[%c0_14, %c0_15, %c0_16] : memref<1x1x128xf32, #tpu.memory_space<vmem>>, vector<1x1x128xf32>
      %16 = vector.shape_cast %15 : vector<1x1x128xf32> to vector<1x128xf32>
      %17 = vector.broadcast %16 : vector<1x128xf32> to vector<32x128xf32>
      %18 = arith.addf %14, %17 : vector<32x128xf32>
      %c0_17 = arith.constant 0 : index
      %c0_18 = arith.constant 0 : index
      %c0_19 = arith.constant 0 : index
      %19 = vector.load %arg7[%c0_17, %c0_18, %c0_19] : memref<1x32x128xf32, #tpu.memory_space<vmem>>, vector<1x32x128xf32>
      %20 = vector.shape_cast %19 : vector<1x32x128xf32> to vector<32x128xf32>
      %21 = vector.shape_cast %18 : vector<32x128xf32> to vector<1x32x128xf32>
      tpu.vector_store %arg7[%c0_17, %c0_18, %c0_19], %21 {strides = array<i32>} : memref<1x32x128xf32, #tpu.memory_space<vmem>>, vector<1x32x128xf32>,
    } else {
    }
    return
  }
  func.func @transform_0(%arg0: i32, %arg1: i32, %arg2: i32, %arg3: i32) -> (i32, i32, i32) {
    %c0_i32 = arith.constant 0 : i32
    return %arg0, %arg1, %arg3 : i32, i32, i32
  }
  func.func @transform_1(%arg0: i32, %arg1: i32, %arg2: i32, %arg3: i32) -> (i32, i32, i32) {
    %c0_i32 = arith.constant 0 : i32
    return %arg0, %arg3, %arg2 : i32, i32, i32
  }
  func.func @transform_2(%arg0: i32, %arg1: i32, %arg2: i32, %arg3: i32) -> (i32, i32, i32) {
    %c0_i32 = arith.constant 0 : i32
    %c0_i32_0 = arith.constant 0 : i32
    return %arg0, %c0_i32, %arg2 : i32, i32, i32
  }
  func.func @transform_3(%arg0: i32, %arg1: i32, %arg2: i32, %arg3: i32) -> (i32, i32, i32) {
    %c0_i32 = arith.constant 0 : i32
    return %arg0, %arg1, %arg2 : i32, i32, i32
  }
}

module attributes {stable_mosaic.version = 11 : i64} {
  func.func @_mm_kernel(%arg0: i32, %arg1: i32, %arg2: i32, %arg3: i32, %arg4: memref<1x128x128xbf16, #tpu.memory_space<vmem>>, %arg5: memref<1x128x128xbf16, #tpu.memory_space<vmem>>, %arg6: memref<1x1x128xf32, #tpu.memory_space<vmem>>, %arg7: memref<1x128x128xf32, #tpu.memory_space<vmem>>, %arg8: memref<128x128xf32, #tpu.memory_space<vmem>>) attributes {dimension_semantics = [#tpu.dimension_semantics<parallel>, #tpu.dimension_semantics<parallel>, #tpu.dimension_semantics<parallel>, #tpu.dimension_semantics<arbitrary>], iteration_bounds = array<i64: 4, 1, 1, 1>, scalar_prefetch = 0 : i64, scratch_operands = 1 : i64, tpu.core_type = #tpu.core_type<tc>, window_params = [{transform_indices = @transform_0, window_bounds = array<i64: 1, 128, 128>}, {transform_indices = @transform_1, window_bounds = array<i64: 1, 128, 128>}, {transform_indices = @transform_2, window_bounds = array<i64: 1, 1, 128>}, {transform_indices = @transform_3, window_bounds = array<i64: 1, 128, 128>}]} {
    %c0_i32 = arith.constant 0 : i32
    %0 = arith.cmpi eq, %arg3, %c0_i32 : i32
    %1 = arith.extui %0 : i1 to i32
    %c0_i32_0 = arith.constant 0 : i32
    %2 = arith.cmpi ne, %1, %c0_i32_0 : i32
    scf.if %2 {
      %cst_12 = arith.constant 0.000000e+00 : f32
      %14 = vector.broadcast %cst_12 : f32 to vector<128x128xf32>
      %c0_13 = arith.constant 0 : index
      %c0_14 = arith.constant 0 : index
      %15 = vector.load %arg8[%c0_13, %c0_14] : memref<128x128xf32, #tpu.memory_space<vmem>>, vector<128x128xf32>
      tpu.vector_store %arg8[%c0_13, %c0_14], %14 {strides = array<i32>} : memref<128x128xf32, #tpu.memory_space<vmem>>, vector<128x128xf32>,
    } else {
    }
    %c0 = arith.constant 0 : index
    %c0_1 = arith.constant 0 : index
    %3 = vector.load %arg8[%c0, %c0_1] : memref<128x128xf32, #tpu.memory_space<vmem>>, vector<128x128xf32>
    %c0_2 = arith.constant 0 : index
    %c0_3 = arith.constant 0 : index
    %c0_4 = arith.constant 0 : index
    %4 = vector.load %arg4[%c0_2, %c0_3, %c0_4] : memref<1x128x128xbf16, #tpu.memory_space<vmem>>, vector<1x128x128xbf16>
    %5 = vector.shape_cast %4 : vector<1x128x128xbf16> to vector<128x128xbf16>
    %c0_5 = arith.constant 0 : index
    %c0_6 = arith.constant 0 : index
    %c0_7 = arith.constant 0 : index
    %6 = vector.load %arg5[%c0_5, %c0_6, %c0_7] : memref<1x128x128xbf16, #tpu.memory_space<vmem>>, vector<1x128x128xbf16>
    %7 = vector.shape_cast %6 : vector<1x128x128xbf16> to vector<128x128xbf16>
    %cst = arith.constant dense<0.000000e+00> : vector<128x128xf32>
    %8 = tpu.matmul %5, %7, %cst {dimension_numbers = #tpu.dot_dimension_numbers<[1], [0], [0], [1], [0, 0, 1, 1], [], []>} : vector<128x128xbf16>, vector<128x128xbf16>, vector<128x128xf32> -> vector<128x128xf32>
    %9 = arith.addf %3, %8 : vector<128x128xf32>
    %c0_8 = arith.constant 0 : index
    %c0_9 = arith.constant 0 : index
    %10 = vector.load %arg8[%c0_8, %c0_9] : memref<128x128xf32, #tpu.memory_space<vmem>>, vector<128x128xf32>
    tpu.vector_store %arg8[%c0_8, %c0_9], %9 {strides = array<i32>} : memref<128x128xf32, #tpu.memory_space<vmem>>, vector<128x128xf32>,
    %c0_i32_10 = arith.constant 0 : i32
    %11 = arith.cmpi eq, %arg3, %c0_i32_10 : i32
    %12 = arith.extui %11 : i1 to i32
    %c0_i32_11 = arith.constant 0 : i32
    %13 = arith.cmpi ne, %12, %c0_i32_11 : i32
    scf.if %13 {
      %c0_12 = arith.constant 0 : index
      %c0_13 = arith.constant 0 : index
      %14 = vector.load %arg8[%c0_12, %c0_13] : memref<128x128xf32, #tpu.memory_space<vmem>>, vector<128x128xf32>
      %c0_14 = arith.constant 0 : index
      %c0_15 = arith.constant 0 : index
      %c0_16 = arith.constant 0 : index
      %15 = vector.load %arg6[%c0_14, %c0_15, %c0_16] : memref<1x1x128xf32, #tpu.memory_space<vmem>>, vector<1x1x128xf32>
      %16 = vector.shape_cast %15 : vector<1x1x128xf32> to vector<1x128xf32>
      %17 = vector.broadcast %16 : vector<1x128xf32> to vector<128x128xf32>
      %18 = arith.addf %14, %17 : vector<128x128xf32>
      %c0_17 = arith.constant 0 : index
      %c0_18 = arith.constant 0 : index
      %c0_19 = arith.constant 0 : index
      %19 = vector.load %arg7[%c0_17, %c0_18, %c0_19] : memref<1x128x128xf32, #tpu.memory_space<vmem>>, vector<1x128x128xf32>
      %20 = vector.shape_cast %19 : vector<1x128x128xf32> to vector<128x128xf32>
      %21 = vector.shape_cast %18 : vector<128x128xf32> to vector<1x128x128xf32>
      tpu.vector_store %arg7[%c0_17, %c0_18, %c0_19], %21 {strides = array<i32>} : memref<1x128x128xf32, #tpu.memory_space<vmem>>, vector<1x128x128xf32>,
    } else {
    }
    return
  }
  func.func @transform_0(%arg0: i32, %arg1: i32, %arg2: i32, %arg3: i32) -> (i32, i32, i32) {
    %c0_i32 = arith.constant 0 : i32
    return %arg0, %arg1, %arg3 : i32, i32, i32
  }
  func.func @transform_1(%arg0: i32, %arg1: i32, %arg2: i32, %arg3: i32) -> (i32, i32, i32) {
    %c0_i32 = arith.constant 0 : i32
    return %arg0, %arg3, %arg2 : i32, i32, i32
  }
  func.func @transform_2(%arg0: i32, %arg1: i32, %arg2: i32, %arg3: i32) -> (i32, i32, i32) {
    %c0_i32 = arith.constant 0 : i32
    %c0_i32_0 = arith.constant 0 : i32
    return %arg0, %c0_i32, %arg2 : i32, i32, i32
  }
  func.func @transform_3(%arg0: i32, %arg1: i32, %arg2: i32, %arg3: i32) -> (i32, i32, i32) {
    %c0_i32 = arith.constant 0 : i32
    return %arg0, %arg1, %arg2 : i32, i32, i32
  }
}

module attributes {stable_mosaic.version = 11 : i64} {
  func.func @_bn_stats_kernel(%arg0: i32, %arg1: memref<512x128xf32, #tpu.memory_space<vmem>>, %arg2: memref<2x128xf32, #tpu.memory_space<vmem>>) attributes {dimension_semantics = [#tpu.dimension_semantics<arbitrary>], iteration_bounds = array<i64: 1>, scalar_prefetch = 0 : i64, scratch_operands = 0 : i64, tpu.core_type = #tpu.core_type<tc>, window_params = [{transform_indices = @transform_0, window_bounds = array<i64: 512, 128>}, {pipeline_mode = #tpu.pipeline_mode<synchronous>, transform_indices = @transform_1, window_bounds = array<i64: 2, 128>}]} {
    %c0_i32 = arith.constant 0 : i32
    %0 = arith.cmpi eq, %arg0, %c0_i32 : i32
    %1 = arith.extui %0 : i1 to i32
    %c0_i32_0 = arith.constant 0 : i32
    %2 = arith.cmpi ne, %1, %c0_i32_0 : i32
    scf.if %2 {
      %cst_7 = arith.constant 0.000000e+00 : f32
      %13 = vector.broadcast %cst_7 : f32 to vector<2x128xf32>
      %c0_8 = arith.constant 0 : index
      %c0_9 = arith.constant 0 : index
      %14 = vector.load %arg2[%c0_8, %c0_9] : memref<2x128xf32, #tpu.memory_space<vmem>>, vector<2x128xf32>
      tpu.vector_store %arg2[%c0_8, %c0_9], %13 {strides = array<i32>} : memref<2x128xf32, #tpu.memory_space<vmem>>, vector<2x128xf32>,
    } else {
    }
    %c0 = arith.constant 0 : index
    %c0_1 = arith.constant 0 : index
    %3 = vector.load %arg1[%c0, %c0_1] : memref<512x128xf32, #tpu.memory_space<vmem>>, vector<512x128xf32>
    %cst = arith.constant dense<0.000000e+00> : vector<128xf32>
    %4 = vector.multi_reduction <add>, %3, %cst [0] : vector<512x128xf32> to vector<128xf32>
    %5 = vector.shape_cast %4 : vector<128xf32> to vector<1x128xf32>
    %6 = arith.mulf %3, %3 : vector<512x128xf32>
    %cst_2 = arith.constant dense<0.000000e+00> : vector<128xf32>
    %7 = vector.multi_reduction <add>, %6, %cst_2 [0] : vector<512x128xf32> to vector<128xf32>
    %8 = vector.shape_cast %7 : vector<128xf32> to vector<1x128xf32>
    %c0_3 = arith.constant 0 : index
    %c0_4 = arith.constant 0 : index
    %9 = vector.load %arg2[%c0_3, %c0_4] : memref<2x128xf32, #tpu.memory_space<vmem>>, vector<2x128xf32>
    %10 = tpu.concatenate %5, %8 in 0 : vector<1x128xf32>, vector<1x128xf32> -> vector<2x128xf32>
    %11 = arith.addf %9, %10 : vector<2x128xf32>
    %c0_5 = arith.constant 0 : index
    %c0_6 = arith.constant 0 : index
    %12 = vector.load %arg2[%c0_5, %c0_6] : memref<2x128xf32, #tpu.memory_space<vmem>>, vector<2x128xf32>
    tpu.vector_store %arg2[%c0_5, %c0_6], %11 {strides = array<i32>} : memref<2x128xf32, #tpu.memory_space<vmem>>, vector<2x128xf32>,
    return
  }
  func.func @transform_0(%arg0: i32) -> (i32, i32) {
    %c0_i32 = arith.constant 0 : i32
    %c0_i32_0 = arith.constant 0 : i32
    return %arg0, %c0_i32 : i32, i32
  }
  func.func @transform_1(%arg0: i32) -> (i32, i32) {
    %c0_i32 = arith.constant 0 : i32
    %c0_i32_0 = arith.constant 0 : i32
    %c0_i32_1 = arith.constant 0 : i32
    return %c0_i32, %c0_i32_0 : i32, i32
  }
}

module attributes {stable_mosaic.version = 11 : i64} {
  func.func @_bn_apply_kernel(%arg0: i32, %arg1: memref<512x128xf32, #tpu.memory_space<vmem>>, %arg2: memref<1x128xf32, #tpu.memory_space<vmem>>, %arg3: memref<1x128xf32, #tpu.memory_space<vmem>>, %arg4: memref<512x128xf32, #tpu.memory_space<vmem>>) attributes {dimension_semantics = [#tpu.dimension_semantics<parallel>], iteration_bounds = array<i64: 1>, scalar_prefetch = 0 : i64, scratch_operands = 0 : i64, tpu.core_type = #tpu.core_type<tc>, window_params = [{transform_indices = @transform_0, window_bounds = array<i64: 512, 128>}, {pipeline_mode = #tpu.pipeline_mode<synchronous>, transform_indices = @transform_1, window_bounds = array<i64: 1, 128>}, {pipeline_mode = #tpu.pipeline_mode<synchronous>, transform_indices = @transform_2, window_bounds = array<i64: 1, 128>}, {transform_indices = @transform_3, window_bounds = array<i64: 512, 128>}]} {
    %c0 = arith.constant 0 : index
    %c0_0 = arith.constant 0 : index
    %0 = vector.load %arg1[%c0, %c0_0] : memref<512x128xf32, #tpu.memory_space<vmem>>, vector<512x128xf32>
    %c0_1 = arith.constant 0 : index
    %c0_2 = arith.constant 0 : index
    %1 = vector.load %arg2[%c0_1, %c0_2] : memref<1x128xf32, #tpu.memory_space<vmem>>, vector<1x128xf32>
    %2 = vector.broadcast %1 : vector<1x128xf32> to vector<512x128xf32>
    %3 = arith.mulf %0, %2 : vector<512x128xf32>
    %c0_3 = arith.constant 0 : index
    %c0_4 = arith.constant 0 : index
    %4 = vector.load %arg3[%c0_3, %c0_4] : memref<1x128xf32, #tpu.memory_space<vmem>>, vector<1x128xf32>
    %5 = vector.broadcast %4 : vector<1x128xf32> to vector<512x128xf32>
    %6 = arith.addf %3, %5 : vector<512x128xf32>
    %c0_5 = arith.constant 0 : index
    %c0_6 = arith.constant 0 : index
    %7 = vector.load %arg4[%c0_5, %c0_6] : memref<512x128xf32, #tpu.memory_space<vmem>>, vector<512x128xf32>
    tpu.vector_store %arg4[%c0_5, %c0_6], %6 {strides = array<i32>} : memref<512x128xf32, #tpu.memory_space<vmem>>, vector<512x128xf32>,
    return
  }
  func.func @transform_0(%arg0: i32) -> (i32, i32) {
    %c0_i32 = arith.constant 0 : i32
    %c0_i32_0 = arith.constant 0 : i32
    return %arg0, %c0_i32 : i32, i32
  }
  func.func @transform_1(%arg0: i32) -> (i32, i32) {
    %c0_i32 = arith.constant 0 : i32
    %c0_i32_0 = arith.constant 0 : i32
    %c0_i32_1 = arith.constant 0 : i32
    return %c0_i32, %c0_i32_0 : i32, i32
  }
  func.func @transform_2(%arg0: i32) -> (i32, i32) {
    %c0_i32 = arith.constant 0 : i32
    %c0_i32_0 = arith.constant 0 : i32
    %c0_i32_1 = arith.constant 0 : i32
    return %c0_i32, %c0_i32_0 : i32, i32
  }
  func.func @transform_3(%arg0: i32) -> (i32, i32) {
    %c0_i32 = arith.constant 0 : i32
    %c0_i32_0 = arith.constant 0 : i32
    return %arg0, %c0_i32 : i32, i32
  }
}

module attributes {stable_mosaic.version = 11 : i64} {
  func.func @_mm_kernel(%arg0: i32, %arg1: i32, %arg2: i32, %arg3: i32, %arg4: memref<1x512x128xbf16, #tpu.memory_space<vmem>>, %arg5: memref<1x128x128xbf16, #tpu.memory_space<vmem>>, %arg6: memref<1x1x128xf32, #tpu.memory_space<vmem>>, %arg7: memref<1x512x128xf32, #tpu.memory_space<vmem>>, %arg8: memref<512x128xf32, #tpu.memory_space<vmem>>) attributes {dimension_semantics = [#tpu.dimension_semantics<parallel>, #tpu.dimension_semantics<parallel>, #tpu.dimension_semantics<parallel>, #tpu.dimension_semantics<arbitrary>], iteration_bounds = array<i64: 4, 1, 1, 1>, scalar_prefetch = 0 : i64, scratch_operands = 1 : i64, tpu.core_type = #tpu.core_type<tc>, window_params = [{transform_indices = @transform_0, window_bounds = array<i64: 1, 512, 128>}, {transform_indices = @transform_1, window_bounds = array<i64: 1, 128, 128>}, {transform_indices = @transform_2, window_bounds = array<i64: 1, 1, 128>}, {transform_indices = @transform_3, window_bounds = array<i64: 1, 512, 128>}]} {
    %c0_i32 = arith.constant 0 : i32
    %0 = arith.cmpi eq, %arg3, %c0_i32 : i32
    %1 = arith.extui %0 : i1 to i32
    %c0_i32_0 = arith.constant 0 : i32
    %2 = arith.cmpi ne, %1, %c0_i32_0 : i32
    scf.if %2 {
      %cst_12 = arith.constant 0.000000e+00 : f32
      %14 = vector.broadcast %cst_12 : f32 to vector<512x128xf32>
      %c0_13 = arith.constant 0 : index
      %c0_14 = arith.constant 0 : index
      %15 = vector.load %arg8[%c0_13, %c0_14] : memref<512x128xf32, #tpu.memory_space<vmem>>, vector<512x128xf32>
      tpu.vector_store %arg8[%c0_13, %c0_14], %14 {strides = array<i32>} : memref<512x128xf32, #tpu.memory_space<vmem>>, vector<512x128xf32>,
    } else {
    }
    %c0 = arith.constant 0 : index
    %c0_1 = arith.constant 0 : index
    %3 = vector.load %arg8[%c0, %c0_1] : memref<512x128xf32, #tpu.memory_space<vmem>>, vector<512x128xf32>
    %c0_2 = arith.constant 0 : index
    %c0_3 = arith.constant 0 : index
    %c0_4 = arith.constant 0 : index
    %4 = vector.load %arg4[%c0_2, %c0_3, %c0_4] : memref<1x512x128xbf16, #tpu.memory_space<vmem>>, vector<1x512x128xbf16>
    %5 = vector.shape_cast %4 : vector<1x512x128xbf16> to vector<512x128xbf16>
    %c0_5 = arith.constant 0 : index
    %c0_6 = arith.constant 0 : index
    %c0_7 = arith.constant 0 : index
    %6 = vector.load %arg5[%c0_5, %c0_6, %c0_7] : memref<1x128x128xbf16, #tpu.memory_space<vmem>>, vector<1x128x128xbf16>
    %7 = vector.shape_cast %6 : vector<1x128x128xbf16> to vector<128x128xbf16>
    %cst = arith.constant dense<0.000000e+00> : vector<512x128xf32>
    %8 = tpu.matmul %5, %7, %cst {dimension_numbers = #tpu.dot_dimension_numbers<[1], [0], [0], [1], [0, 0, 1, 1], [], []>} : vector<512x128xbf16>, vector<128x128xbf16>, vector<512x128xf32> -> vector<512x128xf32>
    %9 = arith.addf %3, %8 : vector<512x128xf32>
    %c0_8 = arith.constant 0 : index
    %c0_9 = arith.constant 0 : index
    %10 = vector.load %arg8[%c0_8, %c0_9] : memref<512x128xf32, #tpu.memory_space<vmem>>, vector<512x128xf32>
    tpu.vector_store %arg8[%c0_8, %c0_9], %9 {strides = array<i32>} : memref<512x128xf32, #tpu.memory_space<vmem>>, vector<512x128xf32>,
    %c0_i32_10 = arith.constant 0 : i32
    %11 = arith.cmpi eq, %arg3, %c0_i32_10 : i32
    %12 = arith.extui %11 : i1 to i32
    %c0_i32_11 = arith.constant 0 : i32
    %13 = arith.cmpi ne, %12, %c0_i32_11 : i32
    scf.if %13 {
      %c0_12 = arith.constant 0 : index
      %c0_13 = arith.constant 0 : index
      %14 = vector.load %arg8[%c0_12, %c0_13] : memref<512x128xf32, #tpu.memory_space<vmem>>, vector<512x128xf32>
      %c0_14 = arith.constant 0 : index
      %c0_15 = arith.constant 0 : index
      %c0_16 = arith.constant 0 : index
      %15 = vector.load %arg6[%c0_14, %c0_15, %c0_16] : memref<1x1x128xf32, #tpu.memory_space<vmem>>, vector<1x1x128xf32>
      %16 = vector.shape_cast %15 : vector<1x1x128xf32> to vector<1x128xf32>
      %17 = vector.broadcast %16 : vector<1x128xf32> to vector<512x128xf32>
      %18 = arith.addf %14, %17 : vector<512x128xf32>
      %c0_17 = arith.constant 0 : index
      %c0_18 = arith.constant 0 : index
      %c0_19 = arith.constant 0 : index
      %19 = vector.load %arg7[%c0_17, %c0_18, %c0_19] : memref<1x512x128xf32, #tpu.memory_space<vmem>>, vector<1x512x128xf32>
      %20 = vector.shape_cast %19 : vector<1x512x128xf32> to vector<512x128xf32>
      %21 = vector.shape_cast %18 : vector<512x128xf32> to vector<1x512x128xf32>
      tpu.vector_store %arg7[%c0_17, %c0_18, %c0_19], %21 {strides = array<i32>} : memref<1x512x128xf32, #tpu.memory_space<vmem>>, vector<1x512x128xf32>,
    } else {
    }
    return
  }
  func.func @transform_0(%arg0: i32, %arg1: i32, %arg2: i32, %arg3: i32) -> (i32, i32, i32) {
    %c0_i32 = arith.constant 0 : i32
    return %arg0, %arg1, %arg3 : i32, i32, i32
  }
  func.func @transform_1(%arg0: i32, %arg1: i32, %arg2: i32, %arg3: i32) -> (i32, i32, i32) {
    %c0_i32 = arith.constant 0 : i32
    return %arg0, %arg3, %arg2 : i32, i32, i32
  }
  func.func @transform_2(%arg0: i32, %arg1: i32, %arg2: i32, %arg3: i32) -> (i32, i32, i32) {
    %c0_i32 = arith.constant 0 : i32
    %c0_i32_0 = arith.constant 0 : i32
    return %arg0, %c0_i32, %arg2 : i32, i32, i32
  }
  func.func @transform_3(%arg0: i32, %arg1: i32, %arg2: i32, %arg3: i32) -> (i32, i32, i32) {
    %c0_i32 = arith.constant 0 : i32
    return %arg0, %arg1, %arg2 : i32, i32, i32
  }
}

</mosaic_0001>

<llo_original>
// kernel: unet_forward.24
$region0: #{unet_forward.24}
  #allocation0 [shape = 'u32[]', space=smem, size = 0x4, offset = 0x4, fixed_abs, tag = 'smem constant byte address 0x4 - core index']
  #allocation1 [shape = 'u32[72,128]{1,0:T(1,128)}', space=vmem, size = 0x9000, scoped, tag = 'internal scratch']
  #allocation2 [shape = 'f32[512,128]{1,0:T(8,128)}', space=vmem, size = 0x40000, scoped, tag = 'scratch operand']
  %s0 = inlined_call_operand.vmem [shape: bf16[1,512,128], index: 0, kind: input, shape index: {}]
  %s1 = inlined_call_operand.vmem [shape: bf16[1,128,128], index: 1, kind: input, shape index: {}]
  %s2 = inlined_call_operand.vmem [shape: f32[1,1,128], index: 2, kind: input, shape index: {}]
  %s3 = inlined_call_operand.vmem [shape: f32[1,512,128], index: 3, kind: output, shape index: {}]
  %s4 = sld [smem:[#allocation0]]
  $region30: #{unet_forward.24} parent=0
    _
  %s6 = ssub.s32 1, %s4
  %s7 = scalar_select 0, %s6, %s4
  // Predicated region
  $region2: #{unet_forward.24} parent=0 // pred_check
    _
  $region3: #{unet_forward.24} parent=0 // pred_check_branch
    %9 = sbr.rel (0) target = $region5
  $region4: #{unet_forward.24} parent=0 // pred_region
    _
  $region5: #{unet_forward.24} parent=0 // pred_fallthru
    _
  // Predicated region
  $region6: #{unet_forward.24} parent=0 // pred_check
    _
  $region7: #{unet_forward.24} parent=0 // pred_check_branch
    %11 = sbr.rel (0) target = $region9
  $region8: #{unet_forward.24} parent=0 // pred_region
    _
  $region9: #{unet_forward.24} parent=0 // pred_fallthru
    _
  // Predicated region
  $region10: #{unet_forward.24} parent=0 // pred_check
    _
  $region11: #{unet_forward.24} parent=0 // pred_check_branch
    %13 = sbr.rel (0) target = $region13
  $region12: #{unet_forward.24} parent=0 // pred_region
    _
  $region13: #{unet_forward.24} parent=0 // pred_fallthru
    _
  %p14 = scmp.eq.s32.totalorder 0, 0
  // Predicated region
  $region14: #{unet_forward.24} parent=0 // pred_check
    %p15 = pneg %p14
  $region15: #{unet_forward.24} parent=0 // pred_check_branch
    %17 = sbr.rel (%p15) target = $region17
  $region16: #{unet_forward.24} parent=0 // pred_region
    %18 = vst [vmem:[#allocation2] sm:$0xff] 0.0
    %19 = vst [vmem:[#allocation2 + $0x8] sm:$0xff] 0.0
    %20 = vst [vmem:[#allocation2 + $0x10] sm:$0xff] 0.0
    %21 = vst [vmem:[#allocation2 + $0x18] sm:$0xff] 0.0
    %22 = vst [vmem:[#allocation2 + $0x20] sm:$0xff] 0.0
    %23 = vst [vmem:[#allocation2 + $0x28] sm:$0xff] 0.0
    %24 = vst [vmem:[#allocation2 + $0x30] sm:$0xff] 0.0
    %25 = vst [vmem:[#allocation2 + $0x38] sm:$0xff] 0.0
    %26 = vst [vmem:[#allocation2 + $0x40] sm:$0xff] 0.0
    %27 = vst [vmem:[#allocation2 + $0x48] sm:$0xff] 0.0
    %28 = vst [vmem:[#allocation2 + $0x50] sm:$0xff] 0.0
    %29 = vst [vmem:[#allocation2 + $0x58] sm:$0xff] 0.0
    %30 = vst [vmem:[#allocation2 + $0x60] sm:$0xff] 0.0
    %31 = vst [vmem:[#allocation2 + $0x68] sm:$0xff] 0.0
    %32 = vst [vmem:[#allocation2 + $0x70] sm:$0xff] 0.0
    %33 = vst [vmem:[#allocation2 + $0x78] sm:$0xff] 0.0
    %34 = vst [vmem:[#allocation2 + $0x80] sm:$0xff] 0.0
    %35 = vst [vmem:[#allocation2 + $0x88] sm:$0xff] 0.0
    %36 = vst [vmem:[#allocation2 + $0x90] sm:$0xff] 0.0
    %37 = vst [vmem:[#allocation2 + $0x98] sm:$0xff] 0.0
    %38 = vst [vmem:[#allocation2 + $0xa0] sm:$0xff] 0.0
    %39 = vst [vmem:[#allocation2 + $0xa8] sm:$0xff] 0.0
    %40 = vst [vmem:[#allocation2 + $0xb0] sm:$0xff] 0.0
    %41 = vst [vmem:[#allocation2 + $0xb8] sm:$0xff] 0.0
    %42 = vst [vmem:[#allocation2 + $0xc0] sm:$0xff] 0.0
    %43 = vst [vmem:[#allocation2 + $0xc8] sm:$0xff] 0.0
    %44 = vst [vmem:[#allocation2 + $0xd0] sm:$0xff] 0.0
    %45 = vst [vmem:[#allocation2 + $0xd8] sm:$0xff] 0.0
    %46 = vst [vmem:[#allocation2 + $0xe0] sm:$0xff] 0.0
    %47 = vst [vmem:[#allocation2 + $0xe8] sm:$0xff] 0.0
    %48 = vst [vmem:[#allocation2 + $0xf0] sm:$0xff] 0.0
    %49 = vst [vmem:[#allocation2 + $0xf8] sm:$0xff] 0.0
    %50 = vst [vmem:[#allocation2 + $0x100] sm:$0xff] 0.0
    %51 = vst [vmem:[#allocation2 + $0x108] sm:$0xff] 0.0
    %52 = vst [vmem:[#allocation2 + $0x110] sm:$0xff] 0.0
    %53 = vst [vmem:[#allocation2 + $0x118] sm:$0xff] 0.0
    %54 = vst [vmem:[#allocation2 + $0x120] sm:$0xff] 0.0
    %55 = vst [vmem:[#allocation2 + $0x128] sm:$0xff] 0.0
    %56 = vst [vmem:[#allocation2 + $0x130] sm:$0xff] 0.0
    %57 = vst [vmem:[#allocation2 + $0x138] sm:$0xff] 0.0
    %58 = vst [vmem:[#allocation2 + $0x140] sm:$0xff] 0.0
    %59 = vst [vmem:[#allocation2 + $0x148] sm:$0xff] 0.0
    %60 = vst [vmem:[#allocation2 + $0x150] sm:$0xff] 0.0
    %61 = vst [vmem:[#allocation2 + $0x158] sm:$0xff] 0.0
    %62 = vst [vmem:[#allocation2 + $0x160] sm:$0xff] 0.0
    %63 = vst [vmem:[#allocation2 + $0x168] sm:$0xff] 0.0
    %64 = vst [vmem:[#allocation2 + $0x170] sm:$0xff] 0.0
    %65 = vst [vmem:[#allocation2 + $0x178] sm:$0xff] 0.0
    %66 = vst [vmem:[#allocation2 + $0x180] sm:$0xff] 0.0
    %67 = vst [vmem:[#allocation2 + $0x188] sm:$0xff] 0.0
    %68 = vst [vmem:[#allocation2 + $0x190] sm:$0xff] 0.0
    %69 = vst [vmem:[#allocation2 + $0x198] sm:$0xff] 0.0
    %70 = vst [vmem:[#allocation2 + $0x1a0] sm:$0xff] 0.0
    %71 = vst [vmem:[#allocation2 + $0x1a8] sm:$0xff] 0.0
    %72 = vst [vmem:[#allocation2 + $0x1b0] sm:$0xff] 0.0
    %73 = vst [vmem:[#allocation2 + $0x1b8] sm:$0xff] 0.0
    %74 = vst [vmem:[#allocation2 + $0x1c0] sm:$0xff] 0.0
    %75 = vst [vmem:[#allocation2 + $0x1c8] sm:$0xff] 0.0
    %76 = vst [vmem:[#allocation2 + $0x1d0] sm:$0xff] 0.0
    %77 = vst [vmem:[#allocation2 + $0x1d8] sm:$0xff] 0.0
    %78 = vst [vmem:[#allocation2 + $0x1e0] sm:$0xff] 0.0
    %79 = vst [vmem:[#allocation2 + $0x1e8] sm:$0xff] 0.0
    %80 = vst [vmem:[#allocation2 + $0x1f0] sm:$0xff] 0.0
    %81 = vst [vmem:[#allocation2 + $0x1f8] sm:$0xff] 0.0
  $region17: #{unet_forward.24} parent=0 // pred_fallthru
    _
  %v82 = vld [vmem:[#allocation2] sm:$0xff]
  %v83 = vld [vmem:[#allocation2 + $0x8] sm:$0xff]
  %v84 = vld [vmem:[#allocation2 + $0x10] sm:$0xff]
  %v85 = vld [vmem:[#allocation2 + $0x18] sm:$0xff]
  %v86 = vld [vmem:[#allocation2 + $0x20] sm:$0xff]
  %v87 = vld [vmem:[#allocation2 + $0x28] sm:$0xff]
  %v88 = vld [vmem:[#allocation2 + $0x30] sm:$0xff]
  %v89 = vld [vmem:[#allocation2 + $0x38] sm:$0xff]
  %v90 = vld [vmem:[#allocation2 + $0x40] sm:$0xff]
  %v91 = vld [vmem:[#allocation2 + $0x48] sm:$0xff]
  %v92 = vld [vmem:[#allocation2 + $0x50] sm:$0xff]
  %v93 = vld [vmem:[#allocation2 + $0x58] sm:$0xff]
  %v94 = vld [vmem:[#allocation2 + $0x60] sm:$0xff]
  %v95 = vld [vmem:[#allocation2 + $0x68] sm:$0xff]
  %v96 = vld [vmem:[#allocation2 + $0x70] sm:$0xff]
  %v97 = vld [vmem:[#allocation2 + $0x78] sm:$0xff]
  %v98 = vld [vmem:[#allocation2 + $0x80] sm:$0xff]
  %v99 = vld [vmem:[#allocation2 + $0x88] sm:$0xff]
  %v100 = vld [vmem:[#allocation2 + $0x90] sm:$0xff]
  %v101 = vld [vmem:[#allocation2 + $0x98] sm:$0xff]
  %v102 = vld [vmem:[#allocation2 + $0xa0] sm:$0xff]
  %v103 = vld [vmem:[#allocation2 + $0xa8] sm:$0xff]
  %v104 = vld [vmem:[#allocation2 + $0xb0] sm:$0xff]
  %v105 = vld [vmem:[#allocation2 + $0xb8] sm:$0xff]
  %v106 = vld [vmem:[#allocation2 + $0xc0] sm:$0xff]
  %v107 = vld [vmem:[#allocation2 + $0xc8] sm:$0xff]
  %v108 = vld [vmem:[#allocation2 + $0xd0] sm:$0xff]
  %v109 = vld [vmem:[#allocation2 + $0xd8] sm:$0xff]
  %v110 = vld [vmem:[#allocation2 + $0xe0] sm:$0xff]
  %v111 = vld [vmem:[#allocation2 + $0xe8] sm:$0xff]
  %v112 = vld [vmem:[#allocation2 + $0xf0] sm:$0xff]
  %v113 = vld [vmem:[#allocation2 + $0xf8] sm:$0xff]
  %v114 = vld [vmem:[#allocation2 + $0x100] sm:$0xff]
  %v115 = vld [vmem:[#allocation2 + $0x108] sm:$0xff]
  %v116 = vld [vmem:[#allocation2 + $0x110] sm:$0xff]
  %v117 = vld [vmem:[#allocation2 + $0x118] sm:$0xff]
  %v118 = vld [vmem:[#allocation2 + $0x120] sm:$0xff]
  %v119 = vld [vmem:[#allocation2 + $0x128] sm:$0xff]
  %v120 = vld [vmem:[#allocation2 + $0x130] sm:$0xff]
  %v121 = vld [vmem:[#allocation2 + $0x138] sm:$0xff]
  %v122 = vld [vmem:[#allocation2 + $0x140] sm:$0xff]
  %v123 = vld [vmem:[#allocation2 + $0x148] sm:$0xff]
  %v124 = vld [vmem:[#allocation2 + $0x150] sm:$0xff]
  %v125 = vld [vmem:[#allocation2 + $0x158] sm:$0xff]
  %v126 = vld [vmem:[#allocation2 + $0x160] sm:$0xff]
  %v127 = vld [vmem:[#allocation2 + $0x168] sm:$0xff]
  %v128 = vld [vmem:[#allocation2 + $0x170] sm:$0xff]
  %v129 = vld [vmem:[#allocation2 + $0x178] sm:$0xff]
  %v130 = vld [vmem:[#allocation2 + $0x180] sm:$0xff]
  %v131 = vld [vmem:[#allocation2 + $0x188] sm:$0xff]
  %v132 = vld [vmem:[#allocation2 + $0x190] sm:$0xff]
  %v133 = vld [vmem:[#allocation2 + $0x198] sm:$0xff]
  %v134 = vld [vmem:[#allocation2 + $0x1a0] sm:$0xff]
  %v135 = vld [vmem:[#allocation2 + $0x1a8] sm:$0xff]
  %v136 = vld [vmem:[#allocation2 + $0x1b0] sm:$0xff]
  %v137 = vld [vmem:[#allocation2 + $0x1b8] sm:$0xff]
  %v138 = vld [vmem:[#allocation2 + $0x1c0] sm:$0xff]
  %v139 = vld [vmem:[#allocation2 + $0x1c8] sm:$0xff]
  %v140 = vld [vmem:[#allocation2 + $0x1d0] sm:$0xff]
  %v141 = vld [vmem:[#allocation2 + $0x1d8] sm:$0xff]
  %v142 = vld [vmem:[#allocation2 + $0x1e0] sm:$0xff]
  %v143 = vld [vmem:[#allocation2 + $0x1e8] sm:$0xff]
  %v144 = vld [vmem:[#allocation2 + $0x1f0] sm:$0xff]
  %v145 = vld [vmem:[#allocation2 + $0x1f8] sm:$0xff]
  %v146 = vld [vmem:[%s0] sm:$0xf]
  %v147 = vld [vmem:[%s0 + $0x4] sm:$0xf]
  %v148 = vld [vmem:[%s0 + $0x8] sm:$0xf]
  %v149 = vld [vmem:[%s0 + $0xc] sm:$0xf]
  %v150 = vld [vmem:[%s0 + $0x10] sm:$0xf]
  %v151 = vld [vmem:[%s0 + $0x14] sm:$0xf]
  %v152 = vld [vmem:[%s0 + $0x18] sm:$0xf]
  %v153 = vld [vmem:[%s0 + $0x1c] sm:$0xf]
  %v154 = vld [vmem:[%s0 + $0x20] sm:$0xf]
  %v155 = vld [vmem:[%s0 + $0x24] sm:$0xf]
  %v156 = vld [vmem:[%s0 + $0x28] sm:$0xf]
  %v157 = vld [vmem:[%s0 + $0x2c] sm:$0xf]
  %v158 = vld [vmem:[%s0 + $0x30] sm:$0xf]
  %v159 = vld [vmem:[%s0 + $0x34] sm:$0xf]
  %v160 = vld [vmem:[%s0 + $0x38] sm:$0xf]
  %v161 = vld [vmem:[%s0 + $0x3c] sm:$0xf]
  %v162 = vld [vmem:[%s0 + $0x40] sm:$0xf]
  %v163 = vld [vmem:[%s0 + $0x44] sm:$0xf]
  %v164 = vld [vmem:[%s0 + $0x48] sm:$0xf]
  %v165 = vld [vmem:[%s0 + $0x4c] sm:$0xf]
  %v166 = vld [vmem:[%s0 + $0x50] sm:$0xf]
  %v167 = vld [vmem:[%s0 + $0x54] sm:$0xf]
  %v168 = vld [vmem:[%s0 + $0x58] sm:$0xf]
  %v169 = vld [vmem:[%s0 + $0x5c] sm:$0xf]
  %v170 = vld [vmem:[%s0 + $0x60] sm:$0xf]
  %v171 = vld [vmem:[%s0 + $0x64] sm:$0xf]
  %v172 = vld [vmem:[%s0 + $0x68] sm:$0xf]
  %v173 = vld [vmem:[%s0 + $0x6c] sm:$0xf]
  %v174 = vld [vmem:[%s0 + $0x70] sm:$0xf]
  %v175 = vld [vmem:[%s0 + $0x74] sm:$0xf]
  %v176 = vld [vmem:[%s0 + $0x78] sm:$0xf]
  %v177 = vld [vmem:[%s0 + $0x7c] sm:$0xf]
  %v178 = vld [vmem:[%s0 + $0x80] sm:$0xf]
  %v179 = vld [vmem:[%s0 + $0x84] sm:$0xf]
  %v180 = vld [vmem:[%s0 + $0x88] sm:$0xf]
  %v181 = vld [vmem:[%s0 + $0x8c] sm:$0xf]
  %v182 = vld [vmem:[%s0 + $0x90] sm:$0xf]
  %v183 = vld [vmem:[%s0 + $0x94] sm:$0xf]
  %v184 = vld [vmem:[%s0 + $0x98] sm:$0xf]
  %v185 = vld [vmem:[%s0 + $0x9c] sm:$0xf]
  %v186 = vld [vmem:[%s0 + $0xa0] sm:$0xf]
  %v187 = vld [vmem:[%s0 + $0xa4] sm:$0xf]
  %v188 = vld [vmem:[%s0 + $0xa8] sm:$0xf]
  %v189 = vld [vmem:[%s0 + $0xac] sm:$0xf]
  %v190 = vld [vmem:[%s0 + $0xb0] sm:$0xf]
  %v191 = vld [vmem:[%s0 + $0xb4] sm:$0xf]
  %v192 = vld [vmem:[%s0 + $0xb8] sm:$0xf]
  %v193 = vld [vmem:[%s0 + $0xbc] sm:$0xf]
  %v194 = vld [vmem:[%s0 + $0xc0] sm:$0xf]
  %v195 = vld [vmem:[%s0 + $0xc4] sm:$0xf]
  %v196 = vld [vmem:[%s0 + $0xc8] sm:$0xf]
  %v197 = vld [vmem:[%s0 + $0xcc] sm:$0xf]
  %v198 = vld [vmem:[%s0 + $0xd0] sm:$0xf]
  %v199 = vld [vmem:[%s0 + $0xd4] sm:$0xf]
  %v200 = vld [vmem:[%s0 + $0xd8] sm:$0xf]
  %v201 = vld [vmem:[%s0 + $0xdc] sm:$0xf]
  %v202 = vld [vmem:[%s0 + $0xe0] sm:$0xf]
  %v203 = vld [vmem:[%s0 + $0xe4] sm:$0xf]
  %v204 = vld [vmem:[%s0 + $0xe8] sm:$0xf]
  %v205 = vld [vmem:[%s0 + $0xec] sm:$0xf]
  %v206 = vld [vmem:[%s0 + $0xf0] sm:$0xf]
  %v207 = vld [vmem:[%s0 + $0xf4] sm:$0xf]
  %v208 = vld [vmem:[%s0 + $0xf8] sm:$0xf]
  %v209 = vld [vmem:[%s0 + $0xfc] sm:$0xf]
  %v210 = vld [vmem:[%s1] sm:$0xf]
  %v211 = vld [vmem:[%s1 + $0x4] sm:$0xf]
  %v212 = vld [vmem:[%s1 + $0x8] sm:$0xf]
  %v213 = vld [vmem:[%s1 + $0xc] sm:$0xf]
  %v214 = vld [vmem:[%s1 + $0x10] sm:$0xf]
  %v215 = vld [vmem:[%s1 + $0x14] sm:$0xf]
  %v216 = vld [vmem:[%s1 + $0x18] sm:$0xf]
  %v217 = vld [vmem:[%s1 + $0x1c] sm:$0xf]
  %v218 = vld [vmem:[%s1 + $0x20] sm:$0xf]
  %v219 = vld [vmem:[%s1 + $0x24] sm:$0xf]
  %v220 = vld [vmem:[%s1 + $0x28] sm:$0xf]
  %v221 = vld [vmem:[%s1 + $0x2c] sm:$0xf]
  %v222 = vld [vmem:[%s1 + $0x30] sm:$0xf]
  %v223 = vld [vmem:[%s1 + $0x34] sm:$0xf]
  %v224 = vld [vmem:[%s1 + $0x38] sm:$0xf]
  %v225 = vld [vmem:[%s1 + $0x3c] sm:$0xf]
  %v290 = vunpack.c.l.b16 %v146
  %v291 = vunpack.c.l.b16 %v147
  %v292 = vunpack.c.l.b16 %v148
  %v293 = vunpack.c.l.b16 %v149
  %v294 = vunpack.c.l.b16 %v150
  %v295 = vunpack.c.l.b16 %v151
  %v296 = vunpack.c.l.b16 %v152
  %v297 = vunpack.c.l.b16 %v153
  %v298 = vunpack.c.l.b16 %v154
  %v299 = vunpack.c.l.b16 %v155
  %v300 = vunpack.c.l.b16 %v156
  %v301 = vunpack.c.l.b16 %v157
  %v302 = vunpack.c.l.b16 %v158
  %v303 = vunpack.c.l.b16 %v159
  %v304 = vunpack.c.l.b16 %v160
  %v305 = vunpack.c.l.b16 %v161
  %v306 = vunpack.c.l.b16 %v162
  %v307 = vunpack.c.l.b16 %v163
  %v308 = vunpack.c.l.b16 %v164
  %v309 = vunpack.c.l.b16 %v165
  %v310 = vunpack.c.l.b16 %v166
  %v311 = vunpack.c.l.b16 %v167
  %v312 = vunpack.c.l.b16 %v168
  %v313 = vunpack.c.l.b16 %v169
  %v314 = vunpack.c.l.b16 %v170
  %v315 = vunpack.c.l.b16 %v171
  %v316 = vunpack.c.l.b16 %v172
  %v317 = vunpack.c.l.b16 %v173
  %v318 = vunpack.c.l.b16 %v174
  %v319 = vunpack.c.l.b16 %v175
  %v320 = vunpack.c.l.b16 %v176
  %v321 = vunpack.c.l.b16 %v177
  %v322 = vunpack.c.l.b16 %v178
  %v323 = vunpack.c.l.b16 %v179
  %v324 = vunpack.c.l.b16 %v180
  %v325 = vunpack.c.l.b16 %v181
  %v326 = vunpack.c.l.b16 %v182
  %v327 = vunpack.c.l.b16 %v183
  %v328 = vunpack.c.l.b16 %v184
  %v329 = vunpack.c.l.b16 %v185
  %v330 = vunpack.c.l.b16 %v186
  %v331 = vunpack.c.l.b16 %v187
  %v332 = vunpack.c.l.b16 %v188
  %v333 = vunpack.c.l.b16 %v189
  %v334 = vunpack.c.l.b16 %v190
  %v335 = vunpack.c.l.b16 %v191
  %v336 = vunpack.c.l.b16 %v192
  %v337 = vunpack.c.l.b16 %v193
  %v338 = vunpack.c.l.b16 %v194
  %v339 = vunpack.c.l.b16 %v195
  %v340 = vunpack.c.l.b16 %v196
  %v341 = vunpack.c.l.b16 %v197
  %v342 = vunpack.c.l.b16 %v198
  %v343 = vunpack.c.l.b16 %v199
  %v344 = vunpack.c.l.b16 %v200
  %v345 = vunpack.c.l.b16 %v201
  %v346 = vunpack.c.l.b16 %v202
  %v347 = vunpack.c.l.b16 %v203
  %v348 = vunpack.c.l.b16 %v204
  %v349 = vunpack.c.l.b16 %v205
  %v350 = vunpack.c.l.b16 %v206
  %v351 = vunpack.c.l.b16 %v207
  %v352 = vunpack.c.l.b16 %v208
  %v353 = vunpack.c.l.b16 %v209
  %v354 = vpack.c.b16 %v291, %v290
  %v355 = vpack.c.b16 %v293, %v292
  %v356 = vpack.c.b16 %v295, %v294
  %v357 = vpack.c.b16 %v297, %v296
  %v358 = vpack.c.b16 %v299, %v298
  %v359 = vpack.c.b16 %v301, %v300
  %v360 = vpack.c.b16 %v303, %v302
  %v361 = vpack.c.b16 %v305, %v304
  %v362 = vpack.c.b16 %v307, %v306
  %v363 = vpack.c.b16 %v309, %v308
  %v364 = vpack.c.b16 %v311, %v310
  %v365 = vpack.c.b16 %v313, %v312
  %v366 = vpack.c.b16 %v315, %v314
  %v367 = vpack.c.b16 %v317, %v316
  %v368 = vpack.c.b16 %v319, %v318
  %v369 = vpack.c.b16 %v321, %v320
  %v370 = vpack.c.b16 %v323, %v322
  %v371 = vpack.c.b16 %v325, %v324
  %v372 = vpack.c.b16 %v327, %v326
  %v373 = vpack.c.b16 %v329, %v328
  %v374 = vpack.c.b16 %v331, %v330
  %v375 = vpack.c.b16 %v333, %v332
  %v376 = vpack.c.b16 %v335, %v334
  %v377 = vpack.c.b16 %v337, %v336
  %v378 = vpack.c.b16 %v339, %v338
  %v379 = vpack.c.b16 %v341, %v340
  %v380 = vpack.c.b16 %v343, %v342
  %v381 = vpack.c.b16 %v345, %v344
  %v382 = vpack.c.b16 %v347, %v346
  %v383 = vpack.c.b16 %v349, %v348
  %v384 = vpack.c.b16 %v351, %v350
  %v385 = vpack.c.b16 %v353, %v352
  %v434 = vunpack.c.l.b16 %v210
  %v435 = vunpack.c.l.b16 %v211
  %v436 = vunpack.c.l.b16 %v212
  %v437 = vunpack.c.l.b16 %v213
  %v438 = vunpack.c.l.b16 %v214
  %v439 = vunpack.c.l.b16 %v215
  %v440 = vunpack.c.l.b16 %v216
  %v441 = vunpack.c.l.b16 %v217
  %v442 = vunpack.c.l.b16 %v218
  %v443 = vunpack.c.l.b16 %v219
  %v444 = vunpack.c.l.b16 %v220
  %v445 = vunpack.c.l.b16 %v221
  %v446 = vunpack.c.l.b16 %v222
  %v447 = vunpack.c.l.b16 %v223
  %v448 = vunpack.c.l.b16 %v224
  %v449 = vunpack.c.l.b16 %v225
  %v450 = vpack.c.b16 %v435, %v434
  %v451 = vpack.c.b16 %v437, %v436
  %v452 = vpack.c.b16 %v439, %v438
  %v453 = vpack.c.b16 %v441, %v440
  %v454 = vpack.c.b16 %v443, %v442
  %v455 = vpack.c.b16 %v445, %v444
  %v456 = vpack.c.b16 %v447, %v446
  %v457 = vpack.c.b16 %v449, %v448
  %466 = vmatpush.bf16.msra.mxu0 %v457
  %467 = vmatpush.bf16.msra.mxu0 %v456
  %468 = vmatpush.bf16.msra.mxu0 %v455
  %469 = vmatpush.bf16.msra.mxu0 %v454
  %470 = vmatpush.bf16.msra.mxu0 %v453
  %471 = vmatpush.bf16.msra.mxu0 %v452
  %472 = vmatpush.bf16.msra.mxu0 %v451
  %473 = vmatpush.bf16.msra.mxu0 %v450
  %474 = vmatmul.bf16.gmra.mxu0 %v354
  %v475 = vpop.f32.mrf.mxu0
  %v476 = vadd.f32 0.0, %v475
  %v477 = vpop.f32.mrf.mxu0
  %v478 = vadd.f32 0.0, %v477
  %479 = vmatmul.bf16.gmra.mxu0 %v355
  %v480 = vpop.f32.mrf.mxu0
  %v481 = vadd.f32 0.0, %v480
  %v482 = vpop.f32.mrf.mxu0
  %v483 = vadd.f32 0.0, %v482
  %484 = vmatmul.bf16.gmra.mxu0 %v356
  %v485 = vpop.f32.mrf.mxu0
  %v486 = vadd.f32 0.0, %v485
  %v487 = vpop.f32.mrf.mxu0
  %v488 = vadd.f32 0.0, %v487
  %489 = vmatmul.bf16.gmra.mxu0 %v357
  %v490 = vpop.f32.mrf.mxu0
  %v491 = vadd.f32 0.0, %v490
  %v492 = vpop.f32.mrf.mxu0
  %v493 = vadd.f32 0.0, %v492
  %494 = vmatmul.bf16.gmra.mxu0 %v358
  %v495 = vpop.f32.mrf.mxu0
  %v496 = vadd.f32 0.0, %v495
  %v497 = vpop.f32.mrf.mxu0
  %v498 = vadd.f32 0.0, %v497
  %499 = vmatmul.bf16.gmra.mxu0 %v359
  %v500 = vpop.f32.mrf.mxu0
  %v501 = vadd.f32 0.0, %v500
  %v502 = vpop.f32.mrf.mxu0
  %v503 = vadd.f32 0.0, %v502
  %504 = vmatmul.bf16.gmra.mxu0 %v360
  %v505 = vpop.f32.mrf.mxu0
  %v506 = vadd.f32 0.0, %v505
  %v507 = vpop.f32.mrf.mxu0
  %v508 = vadd.f32 0.0, %v507
  %509 = vmatmul.bf16.gmra.mxu0 %v361
  %v510 = vpop.f32.mrf.mxu0
  %v511 = vadd.f32 0.0, %v510
  %v512 = vpop.f32.mrf.mxu0
  %v513 = vadd.f32 0.0, %v512
  %514 = vmatmul.bf16.gmra.mxu0 %v362
  %v515 = vpop.f32.mrf.mxu0
  %v516 = vadd.f32 0.0, %v515
  %v517 = vpop.f32.mrf.mxu0
  %v518 = vadd.f32 0.0, %v517
  %519 = vmatmul.bf16.gmra.mxu0 %v363
  %v520 = vpop.f32.mrf.mxu0
  %v521 = vadd.f32 0.0, %v520
  %v522 = vpop.f32.mrf.mxu0
  %v523 = vadd.f32 0.0, %v522
  %524 = vmatmul.bf16.gmra.mxu0 %v364
  %v525 = vpop.f32.mrf.mxu0
  %v526 = vadd.f32 0.0, %v525
  %v527 = vpop.f32.mrf.mxu0
  %v528 = vadd.f32 0.0, %v527
  %529 = vmatmul.bf16.gmra.mxu0 %v365
  %v530 = vpop.f32.mrf.mxu0
  %v531 = vadd.f32 0.0, %v530
  %v532 = vpop.f32.mrf.mxu0
  %v533 = vadd.f32 0.0, %v532
  %534 = vmatmul.bf16.gmra.mxu0 %v366
  %v535 = vpop.f32.mrf.mxu0
  %v536 = vadd.f32 0.0, %v535
  %v537 = vpop.f32.mrf.mxu0
  %v538 = vadd.f32 0.0, %v537
  %539 = vmatmul.bf16.gmra.mxu0 %v367
  %v540 = vpop.f32.mrf.mxu0
  %v541 = vadd.f32 0.0, %v540
  %v542 = vpop.f32.mrf.mxu0
  %v543 = vadd.f32 0.0, %v542
  %544 = vmatmul.bf16.gmra.mxu0 %v368
  %v545 = vpop.f32.mrf.mxu0
  %v546 = vadd.f32 0.0, %v545
  %v547 = vpop.f32.mrf.mxu0
  %v548 = vadd.f32 0.0, %v547
  %549 = vmatmul.bf16.gmra.mxu0 %v369
  %v550 = vpop.f32.mrf.mxu0
  %v551 = vadd.f32 0.0, %v550
  %v552 = vpop.f32.mrf.mxu0
  %v553 = vadd.f32 0.0, %v552
  %554 = vmatmul.bf16.gmra.mxu0 %v370
  %v555 = vpop.f32.mrf.mxu0
  %v556 = vadd.f32 0.0, %v555
  %v557 = vpop.f32.mrf.mxu0
  %v558 = vadd.f32 0.0, %v557
  %559 = vmatmul.bf16.gmra.mxu0 %v371
  %v560 = vpop.f32.mrf.mxu0
  %v561 = vadd.f32 0.0, %v560
  %v562 = vpop.f32.mrf.mxu0
  %v563 = vadd.f32 0.0, %v562
  %564 = vmatmul.bf16.gmra.mxu0 %v372
  %v565 = vpop.f32.mrf.mxu0
  %v566 = vadd.f32 0.0, %v565
  %v567 = vpop.f32.mrf.mxu0
  %v568 = vadd.f32 0.0, %v567
  %569 = vmatmul.bf16.gmra.mxu0 %v373
  %v570 = vpop.f32.mrf.mxu0
  %v571 = vadd.f32 0.0, %v570
  %v572 = vpop.f32.mrf.mxu0
  %v573 = vadd.f32 0.0, %v572
  %574 = vmatmul.bf16.gmra.mxu0 %v374
  %v575 = vpop.f32.mrf.mxu0
  %v576 = vadd.f32 0.0, %v575
  %v577 = vpop.f32.mrf.mxu0
  %v578 = vadd.f32 0.0, %v577
  %579 = vmatmul.bf16.gmra.mxu0 %v375
  %v580 = vpop.f32.mrf.mxu0
  %v581 = vadd.f32 0.0, %v580
  %v582 = vpop.f32.mrf.mxu0
  %v583 = vadd.f32 0.0, %v582
  %584 = vmatmul.bf16.gmra.mxu0 %v376
  %v585 = vpop.f32.mrf.mxu0
  %v586 = vadd.f32 0.0, %v585
  %v587 = vpop.f32.mrf.mxu0
  %v588 = vadd.f32 0.0, %v587
  %589 = vmatmul.bf16.gmra.mxu0 %v377
  %v590 = vpop.f32.mrf.mxu0
  %v591 = vadd.f32 0.0, %v590
  %v592 = vpop.f32.mrf.mxu0
  %v593 = vadd.f32 0.0, %v592
  %594 = vmatmul.bf16.gmra.mxu0 %v378
  %v595 = vpop.f32.mrf.mxu0
  %v596 = vadd.f32 0.0, %v595
  %v597 = vpop.f32.mrf.mxu0
  %v598 = vadd.f32 0.0, %v597
  %599 = vmatmul.bf16.gmra.mxu0 %v379
  %v600 = vpop.f32.mrf.mxu0
  %v601 = vadd.f32 0.0, %v600
  %v602 = vpop.f32.mrf.mxu0
  %v603 = vadd.f32 0.0, %v602
  %604 = vmatmul.bf16.gmra.mxu0 %v380
  %v605 = vpop.f32.mrf.mxu0
  %v606 = vadd.f32 0.0, %v605
  %v607 = vpop.f32.mrf.mxu0
  %v608 = vadd.f32 0.0, %v607
  %609 = vmatmul.bf16.gmra.mxu0 %v381
  %v610 = vpop.f32.mrf.mxu0
  %v611 = vadd.f32 0.0, %v610
  %v612 = vpop.f32.mrf.mxu0
  %v613 = vadd.f32 0.0, %v612
  %614 = vmatmul.bf16.gmra.mxu0 %v382
  %v615 = vpop.f32.mrf.mxu0
  %v616 = vadd.f32 0.0, %v615
  %v617 = vpop.f32.mrf.mxu0
  %v618 = vadd.f32 0.0, %v617
  %619 = vmatmul.bf16.gmra.mxu0 %v383
  %v620 = vpop.f32.mrf.mxu0
  %v621 = vadd.f32 0.0, %v620
  %v622 = vpop.f32.mrf.mxu0
  %v623 = vadd.f32 0.0, %v622
  %624 = vmatmul.bf16.gmra.mxu0 %v384
  %v625 = vpop.f32.mrf.mxu0
  %v626 = vadd.f32 0.0, %v625
  %v627 = vpop.f32.mrf.mxu0
  %v628 = vadd.f32 0.0, %v627
  %629 = vmatmul.bf16.gmra.mxu0 %v385
  %v630 = vpop.f32.mrf.mxu0
  %v631 = vadd.f32 0.0, %v630
  %v632 = vpop.f32.mrf.mxu0
  %v633 = vadd.f32 0.0, %v632
  %634 = vdwg.mxu0
  %v635 = vadd.f32 %v82, %v476
  %v636 = vadd.f32 %v83, %v478
  %v637 = vadd.f32 %v84, %v481
  %v638 = vadd.f32 %v85, %v483
  %v639 = vadd.f32 %v86, %v486
  %v640 = vadd.f32 %v87, %v488
  %v641 = vadd.f32 %v88, %v491
  %v642 = vadd.f32 %v89, %v493
  %v643 = vadd.f32 %v90, %v496
  %v644 = vadd.f32 %v91, %v498
  %v645 = vadd.f32 %v92, %v501
  %v646 = vadd.f32 %v93, %v503
  %v647 = vadd.f32 %v94, %v506
  %v648 = vadd.f32 %v95, %v508
  %v649 = vadd.f32 %v96, %v511
  %v650 = vadd.f32 %v97, %v513
  %v651 = vadd.f32 %v98, %v516
  %v652 = vadd.f32 %v99, %v518
  %v653 = vadd.f32 %v100, %v521
  %v654 = vadd.f32 %v101, %v523
  %v655 = vadd.f32 %v102, %v526
  %v656 = vadd.f32 %v103, %v528
  %v657 = vadd.f32 %v104, %v531
  %v658 = vadd.f32 %v105, %v533
  %v659 = vadd.f32 %v106, %v536
  %v660 = vadd.f32 %v107, %v538
  %v661 = vadd.f32 %v108, %v541
  %v662 = vadd.f32 %v109, %v543
  %v663 = vadd.f32 %v110, %v546
  %v664 = vadd.f32 %v111, %v548
  %v665 = vadd.f32 %v112, %v551
  %v666 = vadd.f32 %v113, %v553
  %v667 = vadd.f32 %v114, %v556
  %v668 = vadd.f32 %v115, %v558
  %v669 = vadd.f32 %v116, %v561
  %v670 = vadd.f32 %v117, %v563
  %v671 = vadd.f32 %v118, %v566
  %v672 = vadd.f32 %v119, %v568
  %v673 = vadd.f32 %v120, %v571
  %v674 = vadd.f32 %v121, %v573
  %v675 = vadd.f32 %v122, %v576
  %v676 = vadd.f32 %v123, %v578
  %v677 = vadd.f32 %v124, %v581
  %v678 = vadd.f32 %v125, %v583
  %v679 = vadd.f32 %v126, %v586
  %v680 = vadd.f32 %v127, %v588
  %v681 = vadd.f32 %v128, %v591
  %v682 = vadd.f32 %v129, %v593
  %v683 = vadd.f32 %v130, %v596
  %v684 = vadd.f32 %v131, %v598
  %v685 = vadd.f32 %v132, %v601
  %v686 = vadd.f32 %v133, %v603
  %v687 = vadd.f32 %v134, %v606
  %v688 = vadd.f32 %v135, %v608
  %v689 = vadd.f32 %v136, %v611
  %v690 = vadd.f32 %v137, %v613
  %v691 = vadd.f32 %v138, %v616
  %v692 = vadd.f32 %v139, %v618
  %v693 = vadd.f32 %v140, %v621
  %v694 = vadd.f32 %v141, %v623
  %v695 = vadd.f32 %v142, %v626
  %v696 = vadd.f32 %v143, %v628
  %v697 = vadd.f32 %v144, %v631
  %v698 = vadd.f32 %v145, %v633
  %699 = vst [vmem:[#allocation2] sm:$0xff] %v635
  %700 = vst [vmem:[#allocation2 + $0x8] sm:$0xff] %v636
  %701 = vst [vmem:[#allocation2 + $0x10] sm:$0xff] %v637
  %702 = vst [vmem:[#allocation2 + $0x18] sm:$0xff] %v638
  %703 = vst [vmem:[#allocation2 + $0x20] sm:$0xff] %v639
  %704 = vst [vmem:[#allocation2 + $0x28] sm:$0xff] %v640
  %705 = vst [vmem:[#allocation2 + $0x30] sm:$0xff] %v641
  %706 = vst [vmem:[#allocation2 + $0x38] sm:$0xff] %v642
  %707 = vst [vmem:[#allocation2 + $0x40] sm:$0xff] %v643
  %708 = vst [vmem:[#allocation2 + $0x48] sm:$0xff] %v644
  %709 = vst [vmem:[#allocation2 + $0x50] sm:$0xff] %v645
  %710 = vst [vmem:[#allocation2 + $0x58] sm:$0xff] %v646
  %711 = vst [vmem:[#allocation2 + $0x60] sm:$0xff] %v647
  %712 = vst [vmem:[#allocation2 + $0x68] sm:$0xff] %v648
  %713 = vst [vmem:[#allocation2 + $0x70] sm:$0xff] %v649
  %714 = vst [vmem:[#allocation2 + $0x78] sm:$0xff] %v650
  %715 = vst [vmem:[#allocation2 + $0x80] sm:$0xff] %v651
  %716 = vst [vmem:[#allocation2 + $0x88] sm:$0xff] %v652
  %717 = vst [vmem:[#allocation2 + $0x90] sm:$0xff] %v653
  %718 = vst [vmem:[#allocation2 + $0x98] sm:$0xff] %v654
  %719 = vst [vmem:[#allocation2 + $0xa0] sm:$0xff] %v655
  %720 = vst [vmem:[#allocation2 + $0xa8] sm:$0xff] %v656
  %721 = vst [vmem:[#allocation2 + $0xb0] sm:$0xff] %v657
  %722 = vst [vmem:[#allocation2 + $0xb8] sm:$0xff] %v658
  %723 = vst [vmem:[#allocation2 + $0xc0] sm:$0xff] %v659
  %724 = vst [vmem:[#allocation2 + $0xc8] sm:$0xff] %v660
  %725 = vst [vmem:[#allocation2 + $0xd0] sm:$0xff] %v661
  %726 = vst [vmem:[#allocation2 + $0xd8] sm:$0xff] %v662
  %727 = vst [vmem:[#allocation2 + $0xe0] sm:$0xff] %v663
  %728 = vst [vmem:[#allocation2 + $0xe8] sm:$0xff] %v664
  %729 = vst [vmem:[#allocation2 + $0xf0] sm:$0xff] %v665
  %730 = vst [vmem:[#allocation2 + $0xf8] sm:$0xff] %v666
  %731 = vst [vmem:[#allocation2 + $0x100] sm:$0xff] %v667
  %732 = vst [vmem:[#allocation2 + $0x108] sm:$0xff] %v668
  %733 = vst [vmem:[#allocation2 + $0x110] sm:$0xff] %v669
  %734 = vst [vmem:[#allocation2 + $0x118] sm:$0xff] %v670
  %735 = vst [vmem:[#allocation2 + $0x120] sm:$0xff] %v671
  %736 = vst [vmem:[#allocation2 + $0x128] sm:$0xff] %v672
  %737 = vst [vmem:[#allocation2 + $0x130] sm:$0xff] %v673
  %738 = vst [vmem:[#allocation2 + $0x138] sm:$0xff] %v674
  %739 = vst [vmem:[#allocation2 + $0x140] sm:$0xff] %v675
  %740 = vst [vmem:[#allocation2 + $0x148] sm:$0xff] %v676
  %741 = vst [vmem:[#allocation2 + $0x150] sm:$0xff] %v677
  %742 = vst [vmem:[#allocation2 + $0x158] sm:$0xff] %v678
  %743 = vst [vmem:[#allocation2 + $0x160] sm:$0xff] %v679
  %744 = vst [vmem:[#allocation2 + $0x168] sm:$0xff] %v680
  %745 = vst [vmem:[#allocation2 + $0x170] sm:$0xff] %v681
  %746 = vst [vmem:[#allocation2 + $0x178] sm:$0xff] %v682
  %747 = vst [vmem:[#allocation2 + $0x180] sm:$0xff] %v683
  %748 = vst [vmem:[#allocation2 + $0x188] sm:$0xff] %v684
  %749 = vst [vmem:[#allocation2 + $0x190] sm:$0xff] %v685
  %750 = vst [vmem:[#allocation2 + $0x198] sm:$0xff] %v686
  %751 = vst [vmem:[#allocation2 + $0x1a0] sm:$0xff] %v687
  %752 = vst [vmem:[#allocation2 + $0x1a8] sm:$0xff] %v688
  %753 = vst [vmem:[#allocation2 + $0x1b0] sm:$0xff] %v689
  %754 = vst [vmem:[#allocation2 + $0x1b8] sm:$0xff] %v690
  %755 = vst [vmem:[#allocation2 + $0x1c0] sm:$0xff] %v691
  %756 = vst [vmem:[#allocation2 + $0x1c8] sm:$0xff] %v692
  %757 = vst [vmem:[#allocation2 + $0x1d0] sm:$0xff] %v693
  %758 = vst [vmem:[#allocation2 + $0x1d8] sm:$0xff] %v694
  %759 = vst [vmem:[#allocation2 + $0x1e0] sm:$0xff] %v695
  %760 = vst [vmem:[#allocation2 + $0x1e8] sm:$0xff] %v696
  %761 = vst [vmem:[#allocation2 + $0x1f0] sm:$0xff] %v697
  %762 = vst [vmem:[#allocation2 + $0x1f8] sm:$0xff] %v698
  // Predicated region
  $region18: #{unet_forward.24} parent=0 // pred_check
    %p763 = pneg %p14
  $region19: #{unet_forward.24} parent=0 // pred_check_branch
    %765 = sbr.rel (%p763) target = $region21
  $region20: #{unet_forward.24} parent=0 // pred_region
    %v766 = vld [vmem:[#allocation2] sm:$0xff]
    %v767 = vld [vmem:[#allocation2 + $0x8] sm:$0xff]
    %v768 = vld [vmem:[#allocation2 + $0x10] sm:$0xff]
    %v769 = vld [vmem:[#allocation2 + $0x18] sm:$0xff]
    %v770 = vld [vmem:[#allocation2 + $0x20] sm:$0xff]
    %v771 = vld [vmem:[#allocation2 + $0x28] sm:$0xff]
    %v772 = vld [vmem:[#allocation2 + $0x30] sm:$0xff]
    %v773 = vld [vmem:[#allocation2 + $0x38] sm:$0xff]
    %v774 = vld [vmem:[#allocation2 + $0x40] sm:$0xff]
    %v775 = vld [vmem:[#allocation2 + $0x48] sm:$0xff]
    %v776 = vld [vmem:[#allocation2 + $0x50] sm:$0xff]
    %v777 = vld [vmem:[#allocation2 + $0x58] sm:$0xff]
    %v778 = vld [vmem:[#allocation2 + $0x60] sm:$0xff]
    %v779 = vld [vmem:[#allocation2 + $0x68] sm:$0xff]
    %v780 = vld [vmem:[#allocation2 + $0x70] sm:$0xff]
    %v781 = vld [vmem:[#allocation2 + $0x78] sm:$0xff]
    %v782 = vld [vmem:[#allocation2 + $0x80] sm:$0xff]
    %v783 = vld [vmem:[#allocation2 + $0x88] sm:$0xff]
    %v784 = vld [vmem:[#allocation2 + $0x90] sm:$0xff]
    %v785 = vld [vmem:[#allocation2 + $0x98] sm:$0xff]
    %v786 = vld [vmem:[#allocation2 + $0xa0] sm:$0xff]
    %v787 = vld [vmem:[#allocation2 + $0xa8] sm:$0xff]
    %v788 = vld [vmem:[#allocation2 + $0xb0] sm:$0xff]
    %v789 = vld [vmem:[#allocation2 + $0xb8] sm:$0xff]
    %v790 = vld [vmem:[#allocation2 + $0xc0] sm:$0xff]
    %v791 = vld [vmem:[#allocation2 + $0xc8] sm:$0xff]
    %v792 = vld [vmem:[#allocation2 + $0xd0] sm:$0xff]
    %v793 = vld [vmem:[#allocation2 + $0xd8] sm:$0xff]
    %v794 = vld [vmem:[#allocation2 + $0xe0] sm:$0xff]
    %v795 = vld [vmem:[#allocation2 + $0xe8] sm:$0xff]
    %v796 = vld [vmem:[#allocation2 + $0xf0] sm:$0xff]
    %v797 = vld [vmem:[#allocation2 + $0xf8] sm:$0xff]
    %v798 = vld [vmem:[#allocation2 + $0x100] sm:$0xff]
    %v799 = vld [vmem:[#allocation2 + $0x108] sm:$0xff]
    %v800 = vld [vmem:[#allocation2 + $0x110] sm:$0xff]
    %v801 = vld [vmem:[#allocation2 + $0x118] sm:$0xff]
    %v802 = vld [vmem:[#allocation2 + $0x120] sm:$0xff]
    %v803 = vld [vmem:[#allocation2 + $0x128] sm:$0xff]
    %v804 = vld [vmem:[#allocation2 + $0x130] sm:$0xff]
    %v805 = vld [vmem:[#allocation2 + $0x138] sm:$0xff]
    %v806 = vld [vmem:[#allocation2 + $0x140] sm:$0xff]
    %v807 = vld [vmem:[#allocation2 + $0x148] sm:$0xff]
    %v808 = vld [vmem:[#allocation2 + $0x150] sm:$0xff]
    %v809 = vld [vmem:[#allocation2 + $0x158] sm:$0xff]
    %v810 = vld [vmem:[#allocation2 + $0x160] sm:$0xff]
    %v811 = vld [vmem:[#allocation2 + $0x168] sm:$0xff]
    %v812 = vld [vmem:[#allocation2 + $0x170] sm:$0xff]
    %v813 = vld [vmem:[#allocation2 + $0x178] sm:$0xff]
    %v814 = vld [vmem:[#allocation2 + $0x180] sm:$0xff]
    %v815 = vld [vmem:[#allocation2 + $0x188] sm:$0xff]
    %v816 = vld [vmem:[#allocation2 + $0x190] sm:$0xff]
    %v817 = vld [vmem:[#allocation2 + $0x198] sm:$0xff]
    %v818 = vld [vmem:[#allocation2 + $0x1a0] sm:$0xff]
    %v819 = vld [vmem:[#allocation2 + $0x1a8] sm:$0xff]
    %v820 = vld [vmem:[#allocation2 + $0x1b0] sm:$0xff]
    %v821 = vld [vmem:[#allocation2 + $0x1b8] sm:$0xff]
    %v822 = vld [vmem:[#allocation2 + $0x1c0] sm:$0xff]
    %v823 = vld [vmem:[#allocation2 + $0x1c8] sm:$0xff]
    %v824 = vld [vmem:[#allocation2 + $0x1d0] sm:$0xff]
    %v825 = vld [vmem:[#allocation2 + $0x1d8] sm:$0xff]
    %v826 = vld [vmem:[#allocation2 + $0x1e0] sm:$0xff]
    %v827 = vld [vmem:[#allocation2 + $0x1e8] sm:$0xff]
    %v828 = vld [vmem:[#allocation2 + $0x1f0] sm:$0xff]
    %v829 = vld [vmem:[#allocation2 + $0x1f8] sm:$0xff]
    %v830 = vld [vmem:[%s2] sm:$0x1]
    %v832 = vperm.slane %v830, 0
    %v834 = vadd.f32 %v766, %v832
    %v835 = vadd.f32 %v767, %v832
    %v836 = vadd.f32 %v768, %v832
    %v837 = vadd.f32 %v769, %v832
    %v838 = vadd.f32 %v770, %v832
    %v839 = vadd.f32 %v771, %v832
    %v840 = vadd.f32 %v772, %v832
    %v841 = vadd.f32 %v773, %v832
    %v842 = vadd.f32 %v774, %v832
    %v843 = vadd.f32 %v775, %v832
    %v844 = vadd.f32 %v776, %v832
    %v845 = vadd.f32 %v777, %v832
    %v846 = vadd.f32 %v778, %v832
    %v847 = vadd.f32 %v779, %v832
    %v848 = vadd.f32 %v780, %v832
    %v849 = vadd.f32 %v781, %v832
    %v850 = vadd.f32 %v782, %v832
    %v851 = vadd.f32 %v783, %v832
    %v852 = vadd.f32 %v784, %v832
    %v853 = vadd.f32 %v785, %v832
    %v854 = vadd.f32 %v786, %v832
    %v855 = vadd.f32 %v787, %v832
    %v856 = vadd.f32 %v788, %v832
    %v857 = vadd.f32 %v789, %v832
    %v858 = vadd.f32 %v790, %v832
    %v859 = vadd.f32 %v791, %v832
    %v860 = vadd.f32 %v792, %v832
    %v861 = vadd.f32 %v793, %v832
    %v862 = vadd.f32 %v794, %v832
    %v863 = vadd.f32 %v795, %v832
    %v864 = vadd.f32 %v796, %v832
    %v865 = vadd.f32 %v797, %v832
    %v866 = vadd.f32 %v798, %v832
    %v867 = vadd.f32 %v799, %v832
    %v868 = vadd.f32 %v800, %v832
    %v869 = vadd.f32 %v801, %v832
    %v870 = vadd.f32 %v802, %v832
    %v871 = vadd.f32 %v803, %v832
    %v872 = vadd.f32 %v804, %v832
    %v873 = vadd.f32 %v805, %v832
    %v874 = vadd.f32 %v806, %v832
    %v875 = vadd.f32 %v807, %v832
    %v876 = vadd.f32 %v808, %v832
    %v877 = vadd.f32 %v809, %v832
    %v878 = vadd.f32 %v810, %v832
    %v879 = vadd.f32 %v811, %v832
    %v880 = vadd.f32 %v812, %v832
    %v881 = vadd.f32 %v813, %v832
    %v882 = vadd.f32 %v814, %v832
    %v883 = vadd.f32 %v815, %v832
    %v884 = vadd.f32 %v816, %v832
    %v885 = vadd.f32 %v817, %v832
    %v886 = vadd.f32 %v818, %v832
    %v887 = vadd.f32 %v819, %v832
    %v888 = vadd.f32 %v820, %v832
    %v889 = vadd.f32 %v821, %v832
    %v890 = vadd.f32 %v822, %v832
    %v891 = vadd.f32 %v823, %v832
    %v892 = vadd.f32 %v824, %v832
    %v893 = vadd.f32 %v825, %v832
    %v894 = vadd.f32 %v826, %v832
    %v895 = vadd.f32 %v827, %v832
    %v896 = vadd.f32 %v828, %v832
    %v897 = vadd.f32 %v829, %v832
    %898 = vst [vmem:[%s3] sm:$0xff] %v834
    %899 = vst [vmem:[%s3 + $0x8] sm:$0xff] %v835
    %900 = vst [vmem:[%s3 + $0x10] sm:$0xff] %v836
    %901 = vst [vmem:[%s3 + $0x18] sm:$0xff] %v837
    %902 = vst [vmem:[%s3 + $0x20] sm:$0xff] %v838
    %903 = vst [vmem:[%s3 + $0x28] sm:$0xff] %v839
    %904 = vst [vmem:[%s3 + $0x30] sm:$0xff] %v840
    %905 = vst [vmem:[%s3 + $0x38] sm:$0xff] %v841
    %906 = vst [vmem:[%s3 + $0x40] sm:$0xff] %v842
    %907 = vst [vmem:[%s3 + $0x48] sm:$0xff] %v843
    %908 = vst [vmem:[%s3 + $0x50] sm:$0xff] %v844
    %909 = vst [vmem:[%s3 + $0x58] sm:$0xff] %v845
    %910 = vst [vmem:[%s3 + $0x60] sm:$0xff] %v846
    %911 = vst [vmem:[%s3 + $0x68] sm:$0xff] %v847
    %912 = vst [vmem:[%s3 + $0x70] sm:$0xff] %v848
    %913 = vst [vmem:[%s3 + $0x78] sm:$0xff] %v849
    %914 = vst [vmem:[%s3 + $0x80] sm:$0xff] %v850
    %915 = vst [vmem:[%s3 + $0x88] sm:$0xff] %v851
    %916 = vst [vmem:[%s3 + $0x90] sm:$0xff] %v852
    %917 = vst [vmem:[%s3 + $0x98] sm:$0xff] %v853
    %918 = vst [vmem:[%s3 + $0xa0] sm:$0xff] %v854
    %919 = vst [vmem:[%s3 + $0xa8] sm:$0xff] %v855
    %920 = vst [vmem:[%s3 + $0xb0] sm:$0xff] %v856
    %921 = vst [vmem:[%s3 + $0xb8] sm:$0xff] %v857
    %922 = vst [vmem:[%s3 + $0xc0] sm:$0xff] %v858
    %923 = vst [vmem:[%s3 + $0xc8] sm:$0xff] %v859
    %924 = vst [vmem:[%s3 + $0xd0] sm:$0xff] %v860
    %925 = vst [vmem:[%s3 + $0xd8] sm:$0xff] %v861
    %926 = vst [vmem:[%s3 + $0xe0] sm:$0xff] %v862
    %927 = vst [vmem:[%s3 + $0xe8] sm:$0xff] %v863
    %928 = vst [vmem:[%s3 + $0xf0] sm:$0xff] %v864
    %929 = vst [vmem:[%s3 + $0xf8] sm:$0xff] %v865
    %930 = vst [vmem:[%s3 + $0x100] sm:$0xff] %v866
    %931 = vst [vmem:[%s3 + $0x108] sm:$0xff] %v867
    %932 = vst [vmem:[%s3 + $0x110] sm:$0xff] %v868
    %933 = vst [vmem:[%s3 + $0x118] sm:$0xff] %v869
    %934 = vst [vmem:[%s3 + $0x120] sm:$0xff] %v870
    %935 = vst [vmem:[%s3 + $0x128] sm:$0xff] %v871
    %936 = vst [vmem:[%s3 + $0x130] sm:$0xff] %v872
    %937 = vst [vmem:[%s3 + $0x138] sm:$0xff] %v873
    %938 = vst [vmem:[%s3 + $0x140] sm:$0xff] %v874
    %939 = vst [vmem:[%s3 + $0x148] sm:$0xff] %v875
    %940 = vst [vmem:[%s3 + $0x150] sm:$0xff] %v876
    %941 = vst [vmem:[%s3 + $0x158] sm:$0xff] %v877
    %942 = vst [vmem:[%s3 + $0x160] sm:$0xff] %v878
    %943 = vst [vmem:[%s3 + $0x168] sm:$0xff] %v879
    %944 = vst [vmem:[%s3 + $0x170] sm:$0xff] %v880
    %945 = vst [vmem:[%s3 + $0x178] sm:$0xff] %v881
    %946 = vst [vmem:[%s3 + $0x180] sm:$0xff] %v882
    %947 = vst [vmem:[%s3 + $0x188] sm:$0xff] %v883
    %948 = vst [vmem:[%s3 + $0x190] sm:$0xff] %v884
    %949 = vst [vmem:[%s3 + $0x198] sm:$0xff] %v885
    %950 = vst [vmem:[%s3 + $0x1a0] sm:$0xff] %v886
    %951 = vst [vmem:[%s3 + $0x1a8] sm:$0xff] %v887
    %952 = vst [vmem:[%s3 + $0x1b0] sm:$0xff] %v888
    %953 = vst [vmem:[%s3 + $0x1b8] sm:$0xff] %v889
    %954 = vst [vmem:[%s3 + $0x1c0] sm:$0xff] %v890
    %955 = vst [vmem:[%s3 + $0x1c8] sm:$0xff] %v891
    %956 = vst [vmem:[%s3 + $0x1d0] sm:$0xff] %v892
    %957 = vst [vmem:[%s3 + $0x1d8] sm:$0xff] %v893
    %958 = vst [vmem:[%s3 + $0x1e0] sm:$0xff] %v894
    %959 = vst [vmem:[%s3 + $0x1e8] sm:$0xff] %v895
    %960 = vst [vmem:[%s3 + $0x1f0] sm:$0xff] %v896
    %961 = vst [vmem:[%s3 + $0x1f8] sm:$0xff] %v897
  $region21: #{unet_forward.24} parent=0 // pred_fallthru
    _
  // Predicated region
  $region22: #{unet_forward.24} parent=0 // pred_check
    _
  $region23: #{unet_forward.24} parent=0 // pred_check_branch
    %963 = sbr.rel (0) target = $region25
  $region24: #{unet_forward.24} parent=0 // pred_region
    _
  $region25: #{unet_forward.24} parent=0 // pred_fallthru
    _
  // Predicated region
  $region26: #{unet_forward.24} parent=0 // pred_check
    _
  $region27: #{unet_forward.24} parent=0 // pred_check_branch
    %965 = sbr.rel (0) target = $region29
  $region28: #{unet_forward.24} parent=0 // pred_region
    _
  $region29: #{unet_forward.24} parent=0 // pred_fallthru
    _

// kernel: unet_forward.26
$region0: #{unet_forward.26}
  #allocation0 [shape = 'u32[]', space=smem, size = 0x4, offset = 0x4, fixed_abs, tag = 'smem constant byte address 0x4 - core index']
  #allocation1 [shape = 'u32[72,128]{1,0:T(1,128)}', space=vmem, size = 0x9000, scoped, tag = 'internal scratch']
  %s0 = inlined_call_operand.vmem [shape: f32[128,128], index: 0, kind: input, shape index: {}]
  %s1 = inlined_call_operand.vmem [shape: f32[2,128], index: 1, kind: output, shape index: {}]
  %s2 = sld [smem:[#allocation0]]
  $region18: #{unet_forward.26} parent=0
    _
  %s4 = ssub.s32 1, %s2
  %s5 = scalar_select 0, %s4, %s2
  // Predicated region
  $region2: #{unet_forward.26} parent=0 // pred_check
    _
  $region3: #{unet_forward.26} parent=0 // pred_check_branch
    %7 = sbr.rel (0) target = $region5
  $region4: #{unet_forward.26} parent=0 // pred_region
    _
  $region5: #{unet_forward.26} parent=0 // pred_fallthru
    _
  %p8 = scmp.eq.s32.totalorder 0, 0
  // Predicated region
  $region6: #{unet_forward.26} parent=0 // pred_check
    %p9 = pneg %p8
  $region7: #{unet_forward.26} parent=0 // pred_check_branch
    %11 = sbr.rel (%p9) target = $region9
  $region8: #{unet_forward.26} parent=0 // pred_region
    %12 = vst [vmem:[%s1] sm:$0x3] 0.0
  $region9: #{unet_forward.26} parent=0 // pred_fallthru
    _
  %v13 = vld [vmem:[%s0] sm:$0xff]
  %v14 = vld [vmem:[%s0 + $0x8] sm:$0xff]
  %v15 = vld [vmem:[%s0 + $0x10] sm:$0xff]
  %v16 = vld [vmem:[%s0 + $0x18] sm:$0xff]
  %v17 = vld [vmem:[%s0 + $0x20] sm:$0xff]
  %v18 = vld [vmem:[%s0 + $0x28] sm:$0xff]
  %v19 = vld [vmem:[%s0 + $0x30] sm:$0xff]
  %v20 = vld [vmem:[%s0 + $0x38] sm:$0xff]
  %v21 = vld [vmem:[%s0 + $0x40] sm:$0xff]
  %v22 = vld [vmem:[%s0 + $0x48] sm:$0xff]
  %v23 = vld [vmem:[%s0 + $0x50] sm:$0xff]
  %v24 = vld [vmem:[%s0 + $0x58] sm:$0xff]
  %v25 = vld [vmem:[%s0 + $0x60] sm:$0xff]
  %v26 = vld [vmem:[%s0 + $0x68] sm:$0xff]
  %v27 = vld [vmem:[%s0 + $0x70] sm:$0xff]
  %v28 = vld [vmem:[%s0 + $0x78] sm:$0xff]
  %v29 = vadd.f32 %v13, %v14
  %v30 = vadd.f32 %v29, %v15
  %v31 = vadd.f32 %v30, %v16
  %v32 = vadd.f32 %v31, %v17
  %v33 = vadd.f32 %v32, %v18
  %v34 = vadd.f32 %v33, %v19
  %v35 = vadd.f32 %v34, %v20
  %v36 = vadd.f32 %v35, %v21
  %v37 = vadd.f32 %v36, %v22
  %v38 = vadd.f32 %v37, %v23
  %v39 = vadd.f32 %v38, %v24
  %v40 = vadd.f32 %v39, %v25
  %v41 = vadd.f32 %v40, %v26
  %v42 = vadd.f32 %v41, %v27
  %v43 = vadd.f32 %v42, %v28
  %v44 = vrot.slane %v43, 4
  %v45 = vadd.f32 %v43, %v44
  %v46 = vrot.slane %v45, 2
  %v47 = vadd.f32 %v45, %v46
  %v48 = vrot.slane %v47, 1
  %v49 = vadd.f32 %v47, %v48
  %v50 = vmul.f32 %v13, %v13
  %v51 = vmul.f32 %v14, %v14
  %v52 = vmul.f32 %v15, %v15
  %v53 = vmul.f32 %v16, %v16
  %v54 = vmul.f32 %v17, %v17
  %v55 = vmul.f32 %v18, %v18
  %v56 = vmul.f32 %v19, %v19
  %v57 = vmul.f32 %v20, %v20
  %v58 = vmul.f32 %v21, %v21
  %v59 = vmul.f32 %v22, %v22
  %v60 = vmul.f32 %v23, %v23
  %v61 = vmul.f32 %v24, %v24
  %v62 = vmul.f32 %v25, %v25
  %v63 = vmul.f32 %v26, %v26
  %v64 = vmul.f32 %v27, %v27
  %v65 = vmul.f32 %v28, %v28
  %v66 = vadd.f32 %v50, %v51
  %v67 = vadd.f32 %v66, %v52
  %v68 = vadd.f32 %v67, %v53
  %v69 = vadd.f32 %v68, %v54
  %v70 = vadd.f32 %v69, %v55
  %v71 = vadd.f32 %v70, %v56
  %v72 = vadd.f32 %v71, %v57
  %v73 = vadd.f32 %v72, %v58
  %v74 = vadd.f32 %v73, %v59
  %v75 = vadd.f32 %v74, %v60
  %v76 = vadd.f32 %v75, %v61
  %v77 = vadd.f32 %v76, %v62
  %v78 = vadd.f32 %v77, %v63
  %v79 = vadd.f32 %v78, %v64
  %v80 = vadd.f32 %v79, %v65
  %v81 = vrot.slane %v80, 4
  %v82 = vadd.f32 %v80, %v81
  %v83 = vrot.slane %v82, 2
  %v84 = vadd.f32 %v82, %v83
  %v85 = vrot.slane %v84, 1
  %v86 = vadd.f32 %v84, %v85
  %v87 = vld [vmem:[%s1] sm:$0x3]
  %vm88 = vcmask 1040384
  %v89 = vsel %vm88, %v49, %v86
  %v90 = vadd.f32 %v87, %v89
  %91 = vst [vmem:[%s1] sm:$0x3] %v90
  // Predicated region
  $region10: #{unet_forward.26} parent=0 // pred_check
    _
  $region11: #{unet_forward.26} parent=0 // pred_check_branch
    %93 = sbr.rel (0) target = $region13
  $region12: #{unet_forward.26} parent=0 // pred_region
    _
  $region13: #{unet_forward.26} parent=0 // pred_fallthru
    _
  // Predicated region
  $region14: #{unet_forward.26} parent=0 // pred_check
    _
  $region15: #{unet_forward.26} parent=0 // pred_check_branch
    %95 = sbr.rel (0) target = $region17
  $region16: #{unet_forward.26} parent=0 // pred_region
    _
  $region17: #{unet_forward.26} parent=0 // pred_fallthru
    _

// kernel: unet_forward.25
$region0: #{unet_forward.25}
  #allocation0 [shape = 'u32[]', space=smem, size = 0x4, offset = 0x4, fixed_abs, tag = 'smem constant byte address 0x4 - core index']
  #allocation1 [shape = 'u32[72,128]{1,0:T(1,128)}', space=vmem, size = 0x9000, scoped, tag = 'internal scratch']
  #allocation2 [shape = 'f32[128,128]{1,0:T(8,128)}', space=vmem, size = 0x10000, scoped, tag = 'scratch operand']
  %s0 = inlined_call_operand.vmem [shape: bf16[1,128,128], index: 0, kind: input, shape index: {}]
  %s1 = inlined_call_operand.vmem [shape: bf16[1,128,128], index: 1, kind: input, shape index: {}]
  %s2 = inlined_call_operand.vmem [shape: f32[1,1,128], index: 2, kind: input, shape index: {}]
  %s3 = inlined_call_operand.vmem [shape: f32[1,128,128], index: 3, kind: output, shape index: {}]
  %s4 = sld [smem:[#allocation0]]
  $region30: #{unet_forward.25} parent=0
    _
  %s6 = ssub.s32 1, %s4
  %s7 = scalar_select 0, %s6, %s4
  // Predicated region
  $region2: #{unet_forward.25} parent=0 // pred_check
    _
  $region3: #{unet_forward.25} parent=0 // pred_check_branch
    %9 = sbr.rel (0) target = $region5
  $region4: #{unet_forward.25} parent=0 // pred_region
    _
  $region5: #{unet_forward.25} parent=0 // pred_fallthru
    _
  // Predicated region
  $region6: #{unet_forward.25} parent=0 // pred_check
    _
  $region7: #{unet_forward.25} parent=0 // pred_check_branch
    %11 = sbr.rel (0) target = $region9
  $region8: #{unet_forward.25} parent=0 // pred_region
    _
  $region9: #{unet_forward.25} parent=0 // pred_fallthru
    _
  // Predicated region
  $region10: #{unet_forward.25} parent=0 // pred_check
    _
  $region11: #{unet_forward.25} parent=0 // pred_check_branch
    %13 = sbr.rel (0) target = $region13
  $region12: #{unet_forward.25} parent=0 // pred_region
    _
  $region13: #{unet_forward.25} parent=0 // pred_fallthru
    _
  %p14 = scmp.eq.s32.totalorder 0, 0
  // Predicated region
  $region14: #{unet_forward.25} parent=0 // pred_check
    %p15 = pneg %p14
  $region15: #{unet_forward.25} parent=0 // pred_check_branch
    %17 = sbr.rel (%p15) target = $region17
  $region16: #{unet_forward.25} parent=0 // pred_region
    %18 = vst [vmem:[#allocation2] sm:$0xff] 0.0
    %19 = vst [vmem:[#allocation2 + $0x8] sm:$0xff] 0.0
    %20 = vst [vmem:[#allocation2 + $0x10] sm:$0xff] 0.0
    %21 = vst [vmem:[#allocation2 + $0x18] sm:$0xff] 0.0
    %22 = vst [vmem:[#allocation2 + $0x20] sm:$0xff] 0.0
    %23 = vst [vmem:[#allocation2 + $0x28] sm:$0xff] 0.0
    %24 = vst [vmem:[#allocation2 + $0x30] sm:$0xff] 0.0
    %25 = vst [vmem:[#allocation2 + $0x38] sm:$0xff] 0.0
    %26 = vst [vmem:[#allocation2 + $0x40] sm:$0xff] 0.0
    %27 = vst [vmem:[#allocation2 + $0x48] sm:$0xff] 0.0
    %28 = vst [vmem:[#allocation2 + $0x50] sm:$0xff] 0.0
    %29 = vst [vmem:[#allocation2 + $0x58] sm:$0xff] 0.0
    %30 = vst [vmem:[#allocation2 + $0x60] sm:$0xff] 0.0
    %31 = vst [vmem:[#allocation2 + $0x68] sm:$0xff] 0.0
    %32 = vst [vmem:[#allocation2 + $0x70] sm:$0xff] 0.0
    %33 = vst [vmem:[#allocation2 + $0x78] sm:$0xff] 0.0
  $region17: #{unet_forward.25} parent=0 // pred_fallthru
    _
  %v34 = vld [vmem:[#allocation2] sm:$0xff]
  %v35 = vld [vmem:[#allocation2 + $0x8] sm:$0xff]
  %v36 = vld [vmem:[#allocation2 + $0x10] sm:$0xff]
  %v37 = vld [vmem:[#allocation2 + $0x18] sm:$0xff]
  %v38 = vld [vmem:[#allocation2 + $0x20] sm:$0xff]
  %v39 = vld [vmem:[#allocation2 + $0x28] sm:$0xff]
  %v40 = vld [vmem:[#allocation2 + $0x30] sm:$0xff]
  %v41 = vld [vmem:[#allocation2 + $0x38] sm:$0xff]
  %v42 = vld [vmem:[#allocation2 + $0x40] sm:$0xff]
  %v43 = vld [vmem:[#allocation2 + $0x48] sm:$0xff]
  %v44 = vld [vmem:[#allocation2 + $0x50] sm:$0xff]
  %v45 = vld [vmem:[#allocation2 + $0x58] sm:$0xff]
  %v46 = vld [vmem:[#allocation2 + $0x60] sm:$0xff]
  %v47 = vld [vmem:[#allocation2 + $0x68] sm:$0xff]
  %v48 = vld [vmem:[#allocation2 + $0x70] sm:$0xff]
  %v49 = vld [vmem:[#allocation2 + $0x78] sm:$0xff]
  %v50 = vld [vmem:[%s0] sm:$0xf]
  %v51 = vld [vmem:[%s0 + $0x4] sm:$0xf]
  %v52 = vld [vmem:[%s0 + $0x8] sm:$0xf]
  %v53 = vld [vmem:[%s0 + $0xc] sm:$0xf]
  %v54 = vld [vmem:[%s0 + $0x10] sm:$0xf]
  %v55 = vld [vmem:[%s0 + $0x14] sm:$0xf]
  %v56 = vld [vmem:[%s0 + $0x18] sm:$0xf]
  %v57 = vld [vmem:[%s0 + $0x1c] sm:$0xf]
  %v58 = vld [vmem:[%s0 + $0x20] sm:$0xf]
  %v59 = vld [vmem:[%s0 + $0x24] sm:$0xf]
  %v60 = vld [vmem:[%s0 + $0x28] sm:$0xf]
  %v61 = vld [vmem:[%s0 + $0x2c] sm:$0xf]
  %v62 = vld [vmem:[%s0 + $0x30] sm:$0xf]
  %v63 = vld [vmem:[%s0 + $0x34] sm:$0xf]
  %v64 = vld [vmem:[%s0 + $0x38] sm:$0xf]
  %v65 = vld [vmem:[%s0 + $0x3c] sm:$0xf]
  %v66 = vld [vmem:[%s1] sm:$0xf]
  %v67 = vld [vmem:[%s1 + $0x4] sm:$0xf]
  %v68 = vld [vmem:[%s1 + $0x8] sm:$0xf]
  %v69 = vld [vmem:[%s1 + $0xc] sm:$0xf]
  %v70 = vld [vmem:[%s1 + $0x10] sm:$0xf]
  %v71 = vld [vmem:[%s1 + $0x14] sm:$0xf]
  %v72 = vld [vmem:[%s1 + $0x18] sm:$0xf]
  %v73 = vld [vmem:[%s1 + $0x1c] sm:$0xf]
  %v74 = vld [vmem:[%s1 + $0x20] sm:$0xf]
  %v75 = vld [vmem:[%s1 + $0x24] sm:$0xf]
  %v76 = vld [vmem:[%s1 + $0x28] sm:$0xf]
  %v77 = vld [vmem:[%s1 + $0x2c] sm:$0xf]
  %v78 = vld [vmem:[%s1 + $0x30] sm:$0xf]
  %v79 = vld [vmem:[%s1 + $0x34] sm:$0xf]
  %v80 = vld [vmem:[%s1 + $0x38] sm:$0xf]
  %v81 = vld [vmem:[%s1 + $0x3c] sm:$0xf]
  %v98 = vunpack.c.l.b16 %v50
  %v99 = vunpack.c.l.b16 %v51
  %v100 = vunpack.c.l.b16 %v52
  %v101 = vunpack.c.l.b16 %v53
  %v102 = vunpack.c.l.b16 %v54
  %v103 = vunpack.c.l.b16 %v55
  %v104 = vunpack.c.l.b16 %v56
  %v105 = vunpack.c.l.b16 %v57
  %v106 = vunpack.c.l.b16 %v58
  %v107 = vunpack.c.l.b16 %v59
  %v108 = vunpack.c.l.b16 %v60
  %v109 = vunpack.c.l.b16 %v61
  %v110 = vunpack.c.l.b16 %v62
  %v111 = vunpack.c.l.b16 %v63
  %v112 = vunpack.c.l.b16 %v64
  %v113 = vunpack.c.l.b16 %v65
  %v114 = vpack.c.b16 %v99, %v98
  %v115 = vpack.c.b16 %v101, %v100
  %v116 = vpack.c.b16 %v103, %v102
  %v117 = vpack.c.b16 %v105, %v104
  %v118 = vpack.c.b16 %v107, %v106
  %v119 = vpack.c.b16 %v109, %v108
  %v120 = vpack.c.b16 %v111, %v110
  %v121 = vpack.c.b16 %v113, %v112
  %v146 = vunpack.c.l.b16 %v66
  %v147 = vunpack.c.l.b16 %v67
  %v148 = vunpack.c.l.b16 %v68
  %v149 = vunpack.c.l.b16 %v69
  %v150 = vunpack.c.l.b16 %v70
  %v151 = vunpack.c.l.b16 %v71
  %v152 = vunpack.c.l.b16 %v72
  %v153 = vunpack.c.l.b16 %v73
  %v154 = vunpack.c.l.b16 %v74
  %v155 = vunpack.c.l.b16 %v75
  %v156 = vunpack.c.l.b16 %v76
  %v157 = vunpack.c.l.b16 %v77
  %v158 = vunpack.c.l.b16 %v78
  %v159 = vunpack.c.l.b16 %v79
  %v160 = vunpack.c.l.b16 %v80
  %v161 = vunpack.c.l.b16 %v81
  %v162 = vpack.c.b16 %v147, %v146
  %v163 = vpack.c.b16 %v149, %v148
  %v164 = vpack.c.b16 %v151, %v150
  %v165 = vpack.c.b16 %v153, %v152
  %v166 = vpack.c.b16 %v155, %v154
  %v167 = vpack.c.b16 %v157, %v156
  %v168 = vpack.c.b16 %v159, %v158
  %v169 = vpack.c.b16 %v161, %v160
  %178 = vmatpush.bf16.msra.mxu0 %v169
  %179 = vmatpush.bf16.msra.mxu0 %v168
  %180 = vmatpush.bf16.msra.mxu0 %v167
  %181 = vmatpush.bf16.msra.mxu0 %v166
  %182 = vmatpush.bf16.msra.mxu0 %v165
  %183 = vmatpush.bf16.msra.mxu0 %v164
  %184 = vmatpush.bf16.msra.mxu0 %v163
  %185 = vmatpush.bf16.msra.mxu0 %v162
  %186 = vmatmul.bf16.gmra.mxu0 %v114
  %v187 = vpop.f32.mrf.mxu0
  %v188 = vadd.f32 0.0, %v187
  %v189 = vpop.f32.mrf.mxu0
  %v190 = vadd.f32 0.0, %v189
  %191 = vmatmul.bf16.gmra.mxu0 %v115
  %v192 = vpop.f32.mrf.mxu0
  %v193 = vadd.f32 0.0, %v192
  %v194 = vpop.f32.mrf.mxu0
  %v195 = vadd.f32 0.0, %v194
  %196 = vmatmul.bf16.gmra.mxu0 %v116
  %v197 = vpop.f32.mrf.mxu0
  %v198 = vadd.f32 0.0, %v197
  %v199 = vpop.f32.mrf.mxu0
  %v200 = vadd.f32 0.0, %v199
  %201 = vmatmul.bf16.gmra.mxu0 %v117
  %v202 = vpop.f32.mrf.mxu0
  %v203 = vadd.f32 0.0, %v202
  %v204 = vpop.f32.mrf.mxu0
  %v205 = vadd.f32 0.0, %v204
  %206 = vmatmul.bf16.gmra.mxu0 %v118
  %v207 = vpop.f32.mrf.mxu0
  %v208 = vadd.f32 0.0, %v207
  %v209 = vpop.f32.mrf.mxu0
  %v210 = vadd.f32 0.0, %v209
  %211 = vmatmul.bf16.gmra.mxu0 %v119
  %v212 = vpop.f32.mrf.mxu0
  %v213 = vadd.f32 0.0, %v212
  %v214 = vpop.f32.mrf.mxu0
  %v215 = vadd.f32 0.0, %v214
  %216 = vmatmul.bf16.gmra.mxu0 %v120
  %v217 = vpop.f32.mrf.mxu0
  %v218 = vadd.f32 0.0, %v217
  %v219 = vpop.f32.mrf.mxu0
  %v220 = vadd.f32 0.0, %v219
  %221 = vmatmul.bf16.gmra.mxu0 %v121
  %v222 = vpop.f32.mrf.mxu0
  %v223 = vadd.f32 0.0, %v222
  %v224 = vpop.f32.mrf.mxu0
  %v225 = vadd.f32 0.0, %v224
  %226 = vdwg.mxu0
  %v227 = vadd.f32 %v34, %v188
  %v228 = vadd.f32 %v35, %v190
  %v229 = vadd.f32 %v36, %v193
  %v230 = vadd.f32 %v37, %v195
  %v231 = vadd.f32 %v38, %v198
  %v232 = vadd.f32 %v39, %v200
  %v233 = vadd.f32 %v40, %v203
  %v234 = vadd.f32 %v41, %v205
  %v235 = vadd.f32 %v42, %v208
  %v236 = vadd.f32 %v43, %v210
  %v237 = vadd.f32 %v44, %v213
  %v238 = vadd.f32 %v45, %v215
  %v239 = vadd.f32 %v46, %v218
  %v240 = vadd.f32 %v47, %v220
  %v241 = vadd.f32 %v48, %v223
  %v242 = vadd.f32 %v49, %v225
  %243 = vst [vmem:[#allocation2] sm:$0xff] %v227
  %244 = vst [vmem:[#allocation2 + $0x8] sm:$0xff] %v228
  %245 = vst [vmem:[#allocation2 + $0x10] sm:$0xff] %v229
  %246 = vst [vmem:[#allocation2 + $0x18] sm:$0xff] %v230
  %247 = vst [vmem:[#allocation2 + $0x20] sm:$0xff] %v231
  %248 = vst [vmem:[#allocation2 + $0x28] sm:$0xff] %v232
  %249 = vst [vmem:[#allocation2 + $0x30] sm:$0xff] %v233
  %250 = vst [vmem:[#allocation2 + $0x38] sm:$0xff] %v234
  %251 = vst [vmem:[#allocation2 + $0x40] sm:$0xff] %v235
  %252 = vst [vmem:[#allocation2 + $0x48] sm:$0xff] %v236
  %253 = vst [vmem:[#allocation2 + $0x50] sm:$0xff] %v237
  %254 = vst [vmem:[#allocation2 + $0x58] sm:$0xff] %v238
  %255 = vst [vmem:[#allocation2 + $0x60] sm:$0xff] %v239
  %256 = vst [vmem:[#allocation2 + $0x68] sm:$0xff] %v240
  %257 = vst [vmem:[#allocation2 + $0x70] sm:$0xff] %v241
  %258 = vst [vmem:[#allocation2 + $0x78] sm:$0xff] %v242
  // Predicated region
  $region18: #{unet_forward.25} parent=0 // pred_check
    %p259 = pneg %p14
  $region19: #{unet_forward.25} parent=0 // pred_check_branch
    %261 = sbr.rel (%p259) target = $region21
  $region20: #{unet_forward.25} parent=0 // pred_region
    %v262 = vld [vmem:[#allocation2] sm:$0xff]
    %v263 = vld [vmem:[#allocation2 + $0x8] sm:$0xff]
    %v264 = vld [vmem:[#allocation2 + $0x10] sm:$0xff]
    %v265 = vld [vmem:[#allocation2 + $0x18] sm:$0xff]
    %v266 = vld [vmem:[#allocation2 + $0x20] sm:$0xff]
    %v267 = vld [vmem:[#allocation2 + $0x28] sm:$0xff]
    %v268 = vld [vmem:[#allocation2 + $0x30] sm:$0xff]
    %v269 = vld [vmem:[#allocation2 + $0x38] sm:$0xff]
    %v270 = vld [vmem:[#allocation2 + $0x40] sm:$0xff]
    %v271 = vld [vmem:[#allocation2 + $0x48] sm:$0xff]
    %v272 = vld [vmem:[#allocation2 + $0x50] sm:$0xff]
    %v273 = vld [vmem:[#allocation2 + $0x58] sm:$0xff]
    %v274 = vld [vmem:[#allocation2 + $0x60] sm:$0xff]
    %v275 = vld [vmem:[#allocation2 + $0x68] sm:$0xff]
    %v276 = vld [vmem:[#allocation2 + $0x70] sm:$0xff]
    %v277 = vld [vmem:[#allocation2 + $0x78] sm:$0xff]
    %v278 = vld [vmem:[%s2] sm:$0x1]
    %v280 = vperm.slane %v278, 0
    %v282 = vadd.f32 %v262, %v280
    %v283 = vadd.f32 %v263, %v280
    %v284 = vadd.f32 %v264, %v280
    %v285 = vadd.f32 %v265, %v280
    %v286 = vadd.f32 %v266, %v280
    %v287 = vadd.f32 %v267, %v280
    %v288 = vadd.f32 %v268, %v280
    %v289 = vadd.f32 %v269, %v280
    %v290 = vadd.f32 %v270, %v280
    %v291 = vadd.f32 %v271, %v280
    %v292 = vadd.f32 %v272, %v280
    %v293 = vadd.f32 %v273, %v280
    %v294 = vadd.f32 %v274, %v280
    %v295 = vadd.f32 %v275, %v280
    %v296 = vadd.f32 %v276, %v280
    %v297 = vadd.f32 %v277, %v280
    %298 = vst [vmem:[%s3] sm:$0xff] %v282
    %299 = vst [vmem:[%s3 + $0x8] sm:$0xff] %v283
    %300 = vst [vmem:[%s3 + $0x10] sm:$0xff] %v284
    %301 = vst [vmem:[%s3 + $0x18] sm:$0xff] %v285
    %302 = vst [vmem:[%s3 + $0x20] sm:$0xff] %v286
    %303 = vst [vmem:[%s3 + $0x28] sm:$0xff] %v287
    %304 = vst [vmem:[%s3 + $0x30] sm:$0xff] %v288
    %305 = vst [vmem:[%s3 + $0x38] sm:$0xff] %v289
    %306 = vst [vmem:[%s3 + $0x40] sm:$0xff] %v290
    %307 = vst [vmem:[%s3 + $0x48] sm:$0xff] %v291
    %308 = vst [vmem:[%s3 + $0x50] sm:$0xff] %v292
    %309 = vst [vmem:[%s3 + $0x58] sm:$0xff] %v293
    %310 = vst [vmem:[%s3 + $0x60] sm:$0xff] %v294
    %311 = vst [vmem:[%s3 + $0x68] sm:$0xff] %v295
    %312 = vst [vmem:[%s3 + $0x70] sm:$0xff] %v296
    %313 = vst [vmem:[%s3 + $0x78] sm:$0xff] %v297
  $region21: #{unet_forward.25} parent=0 // pred_fallthru
    _
  // Predicated region
  $region22: #{unet_forward.25} parent=0 // pred_check
    _
  $region23: #{unet_forward.25} parent=0 // pred_check_branch
    %315 = sbr.rel (0) target = $region25
  $region24: #{unet_forward.25} parent=0 // pred_region
    _
  $region25: #{unet_forward.25} parent=0 // pred_fallthru
    _
  // Predicated region
  $region26: #{unet_forward.25} parent=0 // pred_check
    _
  $region27: #{unet_forward.25} parent=0 // pred_check_branch
    %317 = sbr.rel (0) target = $region29
  $region28: #{unet_forward.25} parent=0 // pred_region
    _
  $region29: #{unet_forward.25} parent=0 // pred_fallthru
    _

// kernel: unet_forward.27
$region0: #{unet_forward.27}
  #allocation0 [shape = 'u32[]', space=smem, size = 0x4, offset = 0x4, fixed_abs, tag = 'smem constant byte address 0x4 - core index']
  #allocation1 [shape = 'u32[72,128]{1,0:T(1,128)}', space=vmem, size = 0x9000, scoped, tag = 'internal scratch']
  %s0 = inlined_call_operand.vmem [shape: f32[128,128], index: 0, kind: input, shape index: {}]
  %s1 = inlined_call_operand.vmem [shape: f32[1,128], index: 1, kind: input, shape index: {}]
  %s2 = inlined_call_operand.vmem [shape: f32[1,128], index: 2, kind: input, shape index: {}]
  %s3 = inlined_call_operand.vmem [shape: f32[128,128], index: 3, kind: output, shape index: {}]
  %s4 = sld [smem:[#allocation0]]
  $region22: #{unet_forward.27} parent=0
    _
  %s6 = ssub.s32 1, %s4
  %s7 = scalar_select 0, %s6, %s4
  // Predicated region
  $region2: #{unet_forward.27} parent=0 // pred_check
    _
  $region3: #{unet_forward.27} parent=0 // pred_check_branch
    %9 = sbr.rel (0) target = $region5
  $region4: #{unet_forward.27} parent=0 // pred_region
    _
  $region5: #{unet_forward.27} parent=0 // pred_fallthru
    _
  // Predicated region
  $region6: #{unet_forward.27} parent=0 // pred_check
    _
  $region7: #{unet_forward.27} parent=0 // pred_check_branch
    %11 = sbr.rel (0) target = $region9
  $region8: #{unet_forward.27} parent=0 // pred_region
    _
  $region9: #{unet_forward.27} parent=0 // pred_fallthru
    _
  // Predicated region
  $region10: #{unet_forward.27} parent=0 // pred_check
    _
  $region11: #{unet_forward.27} parent=0 // pred_check_branch
    %13 = sbr.rel (0) target = $region13
  $region12: #{unet_forward.27} parent=0 // pred_region
    _
  $region13: #{unet_forward.27} parent=0 // pred_fallthru
    _
  %v14 = vld [vmem:[%s0] sm:$0xff]
  %v15 = vld [vmem:[%s0 + $0x8] sm:$0xff]
  %v16 = vld [vmem:[%s0 + $0x10] sm:$0xff]
  %v17 = vld [vmem:[%s0 + $0x18] sm:$0xff]
  %v18 = vld [vmem:[%s0 + $0x20] sm:$0xff]
  %v19 = vld [vmem:[%s0 + $0x28] sm:$0xff]
  %v20 = vld [vmem:[%s0 + $0x30] sm:$0xff]
  %v21 = vld [vmem:[%s0 + $0x38] sm:$0xff]
  %v22 = vld [vmem:[%s0 + $0x40] sm:$0xff]
  %v23 = vld [vmem:[%s0 + $0x48] sm:$0xff]
  %v24 = vld [vmem:[%s0 + $0x50] sm:$0xff]
  %v25 = vld [vmem:[%s0 + $0x58] sm:$0xff]
  %v26 = vld [vmem:[%s0 + $0x60] sm:$0xff]
  %v27 = vld [vmem:[%s0 + $0x68] sm:$0xff]
  %v28 = vld [vmem:[%s0 + $0x70] sm:$0xff]
  %v29 = vld [vmem:[%s0 + $0x78] sm:$0xff]
  %v30 = vld [vmem:[%s1] sm:$0x1]
  %v32 = vperm.slane %v30, 0
  %v34 = vmul.f32 %v14, %v32
  %v35 = vmul.f32 %v15, %v32
  %v36 = vmul.f32 %v16, %v32
  %v37 = vmul.f32 %v17, %v32
  %v38 = vmul.f32 %v18, %v32
  %v39 = vmul.f32 %v19, %v32
  %v40 = vmul.f32 %v20, %v32
  %v41 = vmul.f32 %v21, %v32
  %v42 = vmul.f32 %v22, %v32
  %v43 = vmul.f32 %v23, %v32
  %v44 = vmul.f32 %v24, %v32
  %v45 = vmul.f32 %v25, %v32
  %v46 = vmul.f32 %v26, %v32
  %v47 = vmul.f32 %v27, %v32
  %v48 = vmul.f32 %v28, %v32
  %v49 = vmul.f32 %v29, %v32
  %v50 = vld [vmem:[%s2] sm:$0x1]
  %v52 = vperm.slane %v50, 0
  %v54 = vadd.f32 %v34, %v52
  %v55 = vadd.f32 %v35, %v52
  %v56 = vadd.f32 %v36, %v52
  %v57 = vadd.f32 %v37, %v52
  %v58 = vadd.f32 %v38, %v52
  %v59 = vadd.f32 %v39, %v52
  %v60 = vadd.f32 %v40, %v52
  %v61 = vadd.f32 %v41, %v52
  %v62 = vadd.f32 %v42, %v52
  %v63 = vadd.f32 %v43, %v52
  %v64 = vadd.f32 %v44, %v52
  %v65 = vadd.f32 %v45, %v52
  %v66 = vadd.f32 %v46, %v52
  %v67 = vadd.f32 %v47, %v52
  %v68 = vadd.f32 %v48, %v52
  %v69 = vadd.f32 %v49, %v52
  %70 = vst [vmem:[%s3] sm:$0xff] %v54
  %71 = vst [vmem:[%s3 + $0x8] sm:$0xff] %v55
  %72 = vst [vmem:[%s3 + $0x10] sm:$0xff] %v56
  %73 = vst [vmem:[%s3 + $0x18] sm:$0xff] %v57
  %74 = vst [vmem:[%s3 + $0x20] sm:$0xff] %v58
  %75 = vst [vmem:[%s3 + $0x28] sm:$0xff] %v59
  %76 = vst [vmem:[%s3 + $0x30] sm:$0xff] %v60
  %77 = vst [vmem:[%s3 + $0x38] sm:$0xff] %v61
  %78 = vst [vmem:[%s3 + $0x40] sm:$0xff] %v62
  %79 = vst [vmem:[%s3 + $0x48] sm:$0xff] %v63
  %80 = vst [vmem:[%s3 + $0x50] sm:$0xff] %v64
  %81 = vst [vmem:[%s3 + $0x58] sm:$0xff] %v65
  %82 = vst [vmem:[%s3 + $0x60] sm:$0xff] %v66
  %83 = vst [vmem:[%s3 + $0x68] sm:$0xff] %v67
  %84 = vst [vmem:[%s3 + $0x70] sm:$0xff] %v68
  %85 = vst [vmem:[%s3 + $0x78] sm:$0xff] %v69
  // Predicated region
  $region14: #{unet_forward.27} parent=0 // pred_check
    _
  $region15: #{unet_forward.27} parent=0 // pred_check_branch
    %87 = sbr.rel (0) target = $region17
  $region16: #{unet_forward.27} parent=0 // pred_region
    _
  $region17: #{unet_forward.27} parent=0 // pred_fallthru
    _
  // Predicated region
  $region18: #{unet_forward.27} parent=0 // pred_check
    _
  $region19: #{unet_forward.27} parent=0 // pred_check_branch
    %89 = sbr.rel (0) target = $region21
  $region20: #{unet_forward.27} parent=0 // pred_region
    _
  $region21: #{unet_forward.27} parent=0 // pred_fallthru
    _

// kernel: unet_forward.28
$region0: #{unet_forward.28}
  #allocation0 [shape = 'u32[]', space=smem, size = 0x4, offset = 0x4, fixed_abs, tag = 'smem constant byte address 0x4 - core index']
  #allocation1 [shape = 'u32[72,128]{1,0:T(1,128)}', space=vmem, size = 0x9000, scoped, tag = 'internal scratch']
  #allocation2 [shape = 'f32[32,128]{1,0:T(8,128)}', space=vmem, size = 0x4000, scoped, tag = 'scratch operand']
  %s0 = inlined_call_operand.vmem [shape: bf16[1,32,128], index: 0, kind: input, shape index: {}]
  %s1 = inlined_call_operand.vmem [shape: bf16[1,128,128], index: 1, kind: input, shape index: {}]
  %s2 = inlined_call_operand.vmem [shape: f32[1,1,128], index: 2, kind: input, shape index: {}]
  %s3 = inlined_call_operand.vmem [shape: f32[1,32,128], index: 3, kind: output, shape index: {}]
  %s4 = sld [smem:[#allocation0]]
  $region30: #{unet_forward.28} parent=0
    _
  %s6 = ssub.s32 1, %s4
  %s7 = scalar_select 0, %s6, %s4
  // Predicated region
  $region2: #{unet_forward.28} parent=0 // pred_check
    _
  $region3: #{unet_forward.28} parent=0 // pred_check_branch
    %9 = sbr.rel (0) target = $region5
  $region4: #{unet_forward.28} parent=0 // pred_region
    _
  $region5: #{unet_forward.28} parent=0 // pred_fallthru
    _
  // Predicated region
  $region6: #{unet_forward.28} parent=0 // pred_check
    _
  $region7: #{unet_forward.28} parent=0 // pred_check_branch
    %11 = sbr.rel (0) target = $region9
  $region8: #{unet_forward.28} parent=0 // pred_region
    _
  $region9: #{unet_forward.28} parent=0 // pred_fallthru
    _
  // Predicated region
  $region10: #{unet_forward.28} parent=0 // pred_check
    _
  $region11: #{unet_forward.28} parent=0 // pred_check_branch
    %13 = sbr.rel (0) target = $region13
  $region12: #{unet_forward.28} parent=0 // pred_region
    _
  $region13: #{unet_forward.28} parent=0 // pred_fallthru
    _
  %p14 = scmp.eq.s32.totalorder 0, 0
  // Predicated region
  $region14: #{unet_forward.28} parent=0 // pred_check
    %p15 = pneg %p14
  $region15: #{unet_forward.28} parent=0 // pred_check_branch
    %17 = sbr.rel (%p15) target = $region17
  $region16: #{unet_forward.28} parent=0 // pred_region
    %18 = vst [vmem:[#allocation2] sm:$0xff] 0.0
    %19 = vst [vmem:[#allocation2 + $0x8] sm:$0xff] 0.0
    %20 = vst [vmem:[#allocation2 + $0x10] sm:$0xff] 0.0
    %21 = vst [vmem:[#allocation2 + $0x18] sm:$0xff] 0.0
  $region17: #{unet_forward.28} parent=0 // pred_fallthru
    _
  %v22 = vld [vmem:[#allocation2] sm:$0xff]
  %v23 = vld [vmem:[#allocation2 + $0x8] sm:$0xff]
  %v24 = vld [vmem:[#allocation2 + $0x10] sm:$0xff]
  %v25 = vld [vmem:[#allocation2 + $0x18] sm:$0xff]
  %v26 = vld [vmem:[%s0] sm:$0xf]
  %v27 = vld [vmem:[%s0 + $0x4] sm:$0xf]
  %v28 = vld [vmem:[%s0 + $0x8] sm:$0xf]
  %v29 = vld [vmem:[%s0 + $0xc] sm:$0xf]
  %v30 = vld [vmem:[%s1] sm:$0xf]
  %v31 = vld [vmem:[%s1 + $0x4] sm:$0xf]
  %v32 = vld [vmem:[%s1 + $0x8] sm:$0xf]
  %v33 = vld [vmem:[%s1 + $0xc] sm:$0xf]
  %v34 = vld [vmem:[%s1 + $0x10] sm:$0xf]
  %v35 = vld [vmem:[%s1 + $0x14] sm:$0xf]
  %v36 = vld [vmem:[%s1 + $0x18] sm:$0xf]
  %v37 = vld [vmem:[%s1 + $0x1c] sm:$0xf]
  %v38 = vld [vmem:[%s1 + $0x20] sm:$0xf]
  %v39 = vld [vmem:[%s1 + $0x24] sm:$0xf]
  %v40 = vld [vmem:[%s1 + $0x28] sm:$0xf]
  %v41 = vld [vmem:[%s1 + $0x2c] sm:$0xf]
  %v42 = vld [vmem:[%s1 + $0x30] sm:$0xf]
  %v43 = vld [vmem:[%s1 + $0x34] sm:$0xf]
  %v44 = vld [vmem:[%s1 + $0x38] sm:$0xf]
  %v45 = vld [vmem:[%s1 + $0x3c] sm:$0xf]
  %v50 = vunpack.c.l.b16 %v26
  %v51 = vunpack.c.l.b16 %v27
  %v52 = vunpack.c.l.b16 %v28
  %v53 = vunpack.c.l.b16 %v29
  %v54 = vpack.c.b16 %v51, %v50
  %v55 = vpack.c.b16 %v53, %v52
  %v74 = vunpack.c.l.b16 %v30
  %v75 = vunpack.c.l.b16 %v31
  %v76 = vunpack.c.l.b16 %v32
  %v77 = vunpack.c.l.b16 %v33
  %v78 = vunpack.c.l.b16 %v34
  %v79 = vunpack.c.l.b16 %v35
  %v80 = vunpack.c.l.b16 %v36
  %v81 = vunpack.c.l.b16 %v37
  %v82 = vunpack.c.l.b16 %v38
  %v83 = vunpack.c.l.b16 %v39
  %v84 = vunpack.c.l.b16 %v40
  %v85 = vunpack.c.l.b16 %v41
  %v86 = vunpack.c.l.b16 %v42
  %v87 = vunpack.c.l.b16 %v43
  %v88 = vunpack.c.l.b16 %v44
  %v89 = vunpack.c.l.b16 %v45
  %v90 = vpack.c.b16 %v75, %v74
  %v91 = vpack.c.b16 %v77, %v76
  %v92 = vpack.c.b16 %v79, %v78
  %v93 = vpack.c.b16 %v81, %v80
  %v94 = vpack.c.b16 %v83, %v82
  %v95 = vpack.c.b16 %v85, %v84
  %v96 = vpack.c.b16 %v87, %v86
  %v97 = vpack.c.b16 %v89, %v88
  %106 = vmatpush.bf16.msra.mxu0 %v97
  %107 = vmatpush.bf16.msra.mxu0 %v96
  %108 = vmatpush.bf16.msra.mxu0 %v95
  %109 = vmatpush.bf16.msra.mxu0 %v94
  %110 = vmatpush.bf16.msra.mxu0 %v93
  %111 = vmatpush.bf16.msra.mxu0 %v92
  %112 = vmatpush.bf16.msra.mxu0 %v91
  %113 = vmatpush.bf16.msra.mxu0 %v90
  %114 = vmatmul.bf16.gmra.mxu0 %v54
  %v115 = vpop.f32.mrf.mxu0
  %v116 = vadd.f32 0.0, %v115
  %v117 = vpop.f32.mrf.mxu0
  %v118 = vadd.f32 0.0, %v117
  %119 = vmatmul.bf16.gmra.mxu0 %v55
  %v120 = vpop.f32.mrf.mxu0
  %v121 = vadd.f32 0.0, %v120
  %v122 = vpop.f32.mrf.mxu0
  %v123 = vadd.f32 0.0, %v122
  %124 = vdwg.mxu0
  %v125 = vadd.f32 %v22, %v116
  %v126 = vadd.f32 %v23, %v118
  %v127 = vadd.f32 %v24, %v121
  %v128 = vadd.f32 %v25, %v123
  %129 = vst [vmem:[#allocation2] sm:$0xff] %v125
  %130 = vst [vmem:[#allocation2 + $0x8] sm:$0xff] %v126
  %131 = vst [vmem:[#allocation2 + $0x10] sm:$0xff] %v127
  %132 = vst [vmem:[#allocation2 + $0x18] sm:$0xff] %v128
  // Predicated region
  $region18: #{unet_forward.28} parent=0 // pred_check
    %p133 = pneg %p14
  $region19: #{unet_forward.28} parent=0 // pred_check_branch
    %135 = sbr.rel (%p133) target = $region21
  $region20: #{unet_forward.28} parent=0 // pred_region
    %v136 = vld [vmem:[#allocation2] sm:$0xff]
    %v137 = vld [vmem:[#allocation2 + $0x8] sm:$0xff]
    %v138 = vld [vmem:[#allocation2 + $0x10] sm:$0xff]
    %v139 = vld [vmem:[#allocation2 + $0x18] sm:$0xff]
    %v140 = vld [vmem:[%s2] sm:$0x1]
    %v142 = vperm.slane %v140, 0
    %v144 = vadd.f32 %v136, %v142
    %v145 = vadd.f32 %v137, %v142
    %v146 = vadd.f32 %v138, %v142
    %v147 = vadd.f32 %v139, %v142
    %148 = vst [vmem:[%s3] sm:$0xff] %v144
    %149 = vst [vmem:[%s3 + $0x8] sm:$0xff] %v145
    %150 = vst [vmem:[%s3 + $0x10] sm:$0xff] %v146
    %151 = vst [vmem:[%s3 + $0x18] sm:$0xff] %v147
  $region21: #{unet_forward.28} parent=0 // pred_fallthru
    _
  // Predicated region
  $region22: #{unet_forward.28} parent=0 // pred_check
    _
  $region23: #{unet_forward.28} parent=0 // pred_check_branch
    %153 = sbr.rel (0) target = $region25
  $region24: #{unet_forward.28} parent=0 // pred_region
    _
  $region25: #{unet_forward.28} parent=0 // pred_fallthru
    _
  // Predicated region
  $region26: #{unet_forward.28} parent=0 // pred_check
    _
  $region27: #{unet_forward.28} parent=0 // pred_check_branch
    %155 = sbr.rel (0) target = $region29
  $region28: #{unet_forward.28} parent=0 // pred_region
    _
  $region29: #{unet_forward.28} parent=0 // pred_fallthru
    _

// kernel: unet_forward.29
$region0: #{unet_forward.29}
  #allocation0 [shape = 'u32[]', space=smem, size = 0x4, offset = 0x4, fixed_abs, tag = 'smem constant byte address 0x4 - core index']
  #allocation1 [shape = 'u32[72,128]{1,0:T(1,128)}', space=vmem, size = 0x9000, scoped, tag = 'internal scratch']
  %s0 = inlined_call_operand.vmem [shape: f32[32,128], index: 0, kind: input, shape index: {}]
  %s1 = inlined_call_operand.vmem [shape: f32[2,128], index: 1, kind: output, shape index: {}]
  %s2 = sld [smem:[#allocation0]]
  $region18: #{unet_forward.29} parent=0
    _
  %s4 = ssub.s32 1, %s2
  %s5 = scalar_select 0, %s4, %s2
  // Predicated region
  $region2: #{unet_forward.29} parent=0 // pred_check
    _
  $region3: #{unet_forward.29} parent=0 // pred_check_branch
    %7 = sbr.rel (0) target = $region5
  $region4: #{unet_forward.29} parent=0 // pred_region
    _
  $region5: #{unet_forward.29} parent=0 // pred_fallthru
    _
  %p8 = scmp.eq.s32.totalorder 0, 0
  // Predicated region
  $region6: #{unet_forward.29} parent=0 // pred_check
    %p9 = pneg %p8
  $region7: #{unet_forward.29} parent=0 // pred_check_branch
    %11 = sbr.rel (%p9) target = $region9
  $region8: #{unet_forward.29} parent=0 // pred_region
    %12 = vst [vmem:[%s1] sm:$0x3] 0.0
  $region9: #{unet_forward.29} parent=0 // pred_fallthru
    _
  %v13 = vld [vmem:[%s0] sm:$0xff]
  %v14 = vld [vmem:[%s0 + $0x8] sm:$0xff]
  %v15 = vld [vmem:[%s0 + $0x10] sm:$0xff]
  %v16 = vld [vmem:[%s0 + $0x18] sm:$0xff]
  %v17 = vadd.f32 %v13, %v14
  %v18 = vadd.f32 %v17, %v15
  %v19 = vadd.f32 %v18, %v16
  %v20 = vrot.slane %v19, 4
  %v21 = vadd.f32 %v19, %v20
  %v22 = vrot.slane %v21, 2
  %v23 = vadd.f32 %v21, %v22
  %v24 = vrot.slane %v23, 1
  %v25 = vadd.f32 %v23, %v24
  %v26 = vmul.f32 %v13, %v13
  %v27 = vmul.f32 %v14, %v14
  %v28 = vmul.f32 %v15, %v15
  %v29 = vmul.f32 %v16, %v16
  %v30 = vadd.f32 %v26, %v27
  %v31 = vadd.f32 %v30, %v28
  %v32 = vadd.f32 %v31, %v29
  %v33 = vrot.slane %v32, 4
  %v34 = vadd.f32 %v32, %v33
  %v35 = vrot.slane %v34, 2
  %v36 = vadd.f32 %v34, %v35
  %v37 = vrot.slane %v36, 1
  %v38 = vadd.f32 %v36, %v37
  %v39 = vld [vmem:[%s1] sm:$0x3]
  %vm40 = vcmask 1040384
  %v41 = vsel %vm40, %v25, %v38
  %v42 = vadd.f32 %v39, %v41
  %43 = vst [vmem:[%s1] sm:$0x3] %v42
  // Predicated region
  $region10: #{unet_forward.29} parent=0 // pred_check
    _
  $region11: #{unet_forward.29} parent=0 // pred_check_branch
    %45 = sbr.rel (0) target = $region13
  $region12: #{unet_forward.29} parent=0 // pred_region
    _
  $region13: #{unet_forward.29} parent=0 // pred_fallthru
    _
  // Predicated region
  $region14: #{unet_forward.29} parent=0 // pred_check
    _
  $region15: #{unet_forward.29} parent=0 // pred_check_branch
    %47 = sbr.rel (0) target = $region17
  $region16: #{unet_forward.29} parent=0 // pred_region
    _
  $region17: #{unet_forward.29} parent=0 // pred_fallthru
    _

// kernel: unet_forward.30
$region0: #{unet_forward.30}
  #allocation0 [shape = 'u32[]', space=smem, size = 0x4, offset = 0x4, fixed_abs, tag = 'smem constant byte address 0x4 - core index']
  #allocation1 [shape = 'u32[72,128]{1,0:T(1,128)}', space=vmem, size = 0x9000, scoped, tag = 'internal scratch']
  %s0 = inlined_call_operand.vmem [shape: f32[32,128], index: 0, kind: input, shape index: {}]
  %s1 = inlined_call_operand.vmem [shape: f32[1,128], index: 1, kind: input, shape index: {}]
  %s2 = inlined_call_operand.vmem [shape: f32[1,128], index: 2, kind: input, shape index: {}]
  %s3 = inlined_call_operand.vmem [shape: f32[32,128], index: 3, kind: output, shape index: {}]
  %s4 = sld [smem:[#allocation0]]
  $region22: #{unet_forward.30} parent=0
    _
  %s6 = ssub.s32 1, %s4
  %s7 = scalar_select 0, %s6, %s4
  // Predicated region
  $region2: #{unet_forward.30} parent=0 // pred_check
    _
  $region3: #{unet_forward.30} parent=0 // pred_check_branch
    %9 = sbr.rel (0) target = $region5
  $region4: #{unet_forward.30} parent=0 // pred_region
    _
  $region5: #{unet_forward.30} parent=0 // pred_fallthru
    _
  // Predicated region
  $region6: #{unet_forward.30} parent=0 // pred_check
    _
  $region7: #{unet_forward.30} parent=0 // pred_check_branch
    %11 = sbr.rel (0) target = $region9
  $region8: #{unet_forward.30} parent=0 // pred_region
    _
  $region9: #{unet_forward.30} parent=0 // pred_fallthru
    _
  // Predicated region
  $region10: #{unet_forward.30} parent=0 // pred_check
    _
  $region11: #{unet_forward.30} parent=0 // pred_check_branch
    %13 = sbr.rel (0) target = $region13
  $region12: #{unet_forward.30} parent=0 // pred_region
    _
  $region13: #{unet_forward.30} parent=0 // pred_fallthru
    _
  %v14 = vld [vmem:[%s0] sm:$0xff]
  %v15 = vld [vmem:[%s0 + $0x8] sm:$0xff]
  %v16 = vld [vmem:[%s0 + $0x10] sm:$0xff]
  %v17 = vld [vmem:[%s0 + $0x18] sm:$0xff]
  %v18 = vld [vmem:[%s1] sm:$0x1]
  %v20 = vperm.slane %v18, 0
  %v22 = vmul.f32 %v14, %v20
  %v23 = vmul.f32 %v15, %v20
  %v24 = vmul.f32 %v16, %v20
  %v25 = vmul.f32 %v17, %v20
  %v26 = vld [vmem:[%s2] sm:$0x1]
  %v28 = vperm.slane %v26, 0
  %v30 = vadd.f32 %v22, %v28
  %v31 = vadd.f32 %v23, %v28
  %v32 = vadd.f32 %v24, %v28
  %v33 = vadd.f32 %v25, %v28
  %34 = vst [vmem:[%s3] sm:$0xff] %v30
  %35 = vst [vmem:[%s3 + $0x8] sm:$0xff] %v31
  %36 = vst [vmem:[%s3 + $0x10] sm:$0xff] %v32
  %37 = vst [vmem:[%s3 + $0x18] sm:$0xff] %v33
  // Predicated region
  $region14: #{unet_forward.30} parent=0 // pred_check
    _
  $region15: #{unet_forward.30} parent=0 // pred_check_branch
    %39 = sbr.rel (0) target = $region17
  $region16: #{unet_forward.30} parent=0 // pred_region
    _
  $region17: #{unet_forward.30} parent=0 // pred_fallthru
    _
  // Predicated region
  $region18: #{unet_forward.30} parent=0 // pred_check
    _
  $region19: #{unet_forward.30} parent=0 // pred_check_branch
    %41 = sbr.rel (0) target = $region21
  $region20: #{unet_forward.30} parent=0 // pred_region
    _
  $region21: #{unet_forward.30} parent=0 // pred_fallthru
    _

// kernel: unet_forward.33
$region0: #{unet_forward.33}
  #allocation0 [shape = 'u32[]', space=smem, size = 0x4, offset = 0x4, fixed_abs, tag = 'smem constant byte address 0x4 - core index']
  #allocation1 [shape = 'u32[72,128]{1,0:T(1,128)}', space=vmem, size = 0x9000, scoped, tag = 'internal scratch']
  %s0 = inlined_call_operand.vmem [shape: f32[8,128], index: 0, kind: input, shape index: {}]
  %s1 = inlined_call_operand.vmem [shape: f32[1,128], index: 1, kind: input, shape index: {}]
  %s2 = inlined_call_operand.vmem [shape: f32[1,128], index: 2, kind: input, shape index: {}]
  %s3 = inlined_call_operand.vmem [shape: f32[8,128], index: 3, kind: output, shape index: {}]
  %s4 = sld [smem:[#allocation0]]
  $region22: #{unet_forward.33} parent=0
    _
  %s6 = ssub.s32 1, %s4
  %s7 = scalar_select 0, %s6, %s4
  // Predicated region
  $region2: #{unet_forward.33} parent=0 // pred_check
    _
  $region3: #{unet_forward.33} parent=0 // pred_check_branch
    %9 = sbr.rel (0) target = $region5
  $region4: #{unet_forward.33} parent=0 // pred_region
    _
  $region5: #{unet_forward.33} parent=0 // pred_fallthru
    _
  // Predicated region
  $region6: #{unet_forward.33} parent=0 // pred_check
    _
  $region7: #{unet_forward.33} parent=0 // pred_check_branch
    %11 = sbr.rel (0) target = $region9
  $region8: #{unet_forward.33} parent=0 // pred_region
    _
  $region9: #{unet_forward.33} parent=0 // pred_fallthru
    _
  // Predicated region
  $region10: #{unet_forward.33} parent=0 // pred_check
    _
  $region11: #{unet_forward.33} parent=0 // pred_check_branch
    %13 = sbr.rel (0) target = $region13
  $region12: #{unet_forward.33} parent=0 // pred_region
    _
  $region13: #{unet_forward.33} parent=0 // pred_fallthru
    _
  %v14 = vld [vmem:[%s0] sm:$0xff]
  %v15 = vld [vmem:[%s1] sm:$0x1]
  %v17 = vperm.slane %v15, 0
  %v19 = vmul.f32 %v14, %v17
  %v20 = vld [vmem:[%s2] sm:$0x1]
  %v22 = vperm.slane %v20, 0
  %v24 = vadd.f32 %v19, %v22
  %25 = vst [vmem:[%s3] sm:$0xff] %v24
  // Predicated region
  $region14: #{unet_forward.33} parent=0 // pred_check
    _
  $region15: #{unet_forward.33} parent=0 // pred_check_branch
    %27 = sbr.rel (0) target = $region17
  $region16: #{unet_forward.33} parent=0 // pred_region
    _
  $region17: #{unet_forward.33} parent=0 // pred_fallthru
    _
  // Predicated region
  $region18: #{unet_forward.33} parent=0 // pred_check
    _
  $region19: #{unet_forward.33} parent=0 // pred_check_branch
    %29 = sbr.rel (0) target = $region21
  $region20: #{unet_forward.33} parent=0 // pred_region
    _
  $region21: #{unet_forward.33} parent=0 // pred_fallthru
    _

// kernel: unet_forward.31
$region0: #{unet_forward.31}
  #allocation0 [shape = 'u32[]', space=smem, size = 0x4, offset = 0x4, fixed_abs, tag = 'smem constant byte address 0x4 - core index']
  #allocation1 [shape = 'u32[72,128]{1,0:T(1,128)}', space=vmem, size = 0x9000, scoped, tag = 'internal scratch']
  #allocation2 [shape = 'f32[16,128]{1,0:T(8,128)}', space=vmem, size = 0x2000, scoped, tag = 'scratch operand']
  %s0 = inlined_call_operand.vmem [shape: bf16[1,16,256], index: 0, kind: input, shape index: {}]
  %s1 = inlined_call_operand.vmem [shape: bf16[1,256,128], index: 1, kind: input, shape index: {}]
  %s2 = inlined_call_operand.vmem [shape: f32[1,1,128], index: 2, kind: input, shape index: {}]
  %s3 = inlined_call_operand.vmem [shape: f32[1,16,128], index: 3, kind: output, shape index: {}]
  %s4 = sld [smem:[#allocation0]]
  $region30: #{unet_forward.31} parent=0
    _
  %s6 = ssub.s32 1, %s4
  %s7 = scalar_select 0, %s6, %s4
  // Predicated region
  $region2: #{unet_forward.31} parent=0 // pred_check
    _
  $region3: #{unet_forward.31} parent=0 // pred_check_branch
    %9 = sbr.rel (0) target = $region5
  $region4: #{unet_forward.31} parent=0 // pred_region
    _
  $region5: #{unet_forward.31} parent=0 // pred_fallthru
    _
  // Predicated region
  $region6: #{unet_forward.31} parent=0 // pred_check
    _
  $region7: #{unet_forward.31} parent=0 // pred_check_branch
    %11 = sbr.rel (0) target = $region9
  $region8: #{unet_forward.31} parent=0 // pred_region
    _
  $region9: #{unet_forward.31} parent=0 // pred_fallthru
    _
  // Predicated region
  $region10: #{unet_forward.31} parent=0 // pred_check
    _
  $region11: #{unet_forward.31} parent=0 // pred_check_branch
    %13 = sbr.rel (0) target = $region13
  $region12: #{unet_forward.31} parent=0 // pred_region
    _
  $region13: #{unet_forward.31} parent=0 // pred_fallthru
    _
  %p14 = scmp.eq.s32.totalorder 0, 0
  // Predicated region
  $region14: #{unet_forward.31} parent=0 // pred_check
    %p15 = pneg %p14
  $region15: #{unet_forward.31} parent=0 // pred_check_branch
    %17 = sbr.rel (%p15) target = $region17
  $region16: #{unet_forward.31} parent=0 // pred_region
    %18 = vst [vmem:[#allocation2] sm:$0xff] 0.0
    %19 = vst [vmem:[#allocation2 + $0x8] sm:$0xff] 0.0
  $region17: #{unet_forward.31} parent=0 // pred_fallthru
    _
  %v20 = vld [vmem:[#allocation2] sm:$0xff]
  %v21 = vld [vmem:[#allocation2 + $0x8] sm:$0xff]
  %v22 = vld [vmem:[%s0] sm:$0xff]
  %v23 = vld [vmem:[%s0 + $0x8] sm:$0xff]
  %v24 = vld [vmem:[%s1] sm:$0xf]
  %v25 = vld [vmem:[%s1 + $0x4] sm:$0xf]
  %v26 = vld [vmem:[%s1 + $0x8] sm:$0xf]
  %v27 = vld [vmem:[%s1 + $0xc] sm:$0xf]
  %v28 = vld [vmem:[%s1 + $0x10] sm:$0xf]
  %v29 = vld [vmem:[%s1 + $0x14] sm:$0xf]
  %v30 = vld [vmem:[%s1 + $0x18] sm:$0xf]
  %v31 = vld [vmem:[%s1 + $0x1c] sm:$0xf]
  %v32 = vld [vmem:[%s1 + $0x20] sm:$0xf]
  %v33 = vld [vmem:[%s1 + $0x24] sm:$0xf]
  %v34 = vld [vmem:[%s1 + $0x28] sm:$0xf]
  %v35 = vld [vmem:[%s1 + $0x2c] sm:$0xf]
  %v36 = vld [vmem:[%s1 + $0x30] sm:$0xf]
  %v37 = vld [vmem:[%s1 + $0x34] sm:$0xf]
  %v38 = vld [vmem:[%s1 + $0x38] sm:$0xf]
  %v39 = vld [vmem:[%s1 + $0x3c] sm:$0xf]
  %v40 = vld [vmem:[%s1 + $0x40] sm:$0xf]
  %v41 = vld [vmem:[%s1 + $0x44] sm:$0xf]
  %v42 = vld [vmem:[%s1 + $0x48] sm:$0xf]
  %v43 = vld [vmem:[%s1 + $0x4c] sm:$0xf]
  %v44 = vld [vmem:[%s1 + $0x50] sm:$0xf]
  %v45 = vld [vmem:[%s1 + $0x54] sm:$0xf]
  %v46 = vld [vmem:[%s1 + $0x58] sm:$0xf]
  %v47 = vld [vmem:[%s1 + $0x5c] sm:$0xf]
  %v48 = vld [vmem:[%s1 + $0x60] sm:$0xf]
  %v49 = vld [vmem:[%s1 + $0x64] sm:$0xf]
  %v50 = vld [vmem:[%s1 + $0x68] sm:$0xf]
  %v51 = vld [vmem:[%s1 + $0x6c] sm:$0xf]
  %v52 = vld [vmem:[%s1 + $0x70] sm:$0xf]
  %v53 = vld [vmem:[%s1 + $0x74] sm:$0xf]
  %v54 = vld [vmem:[%s1 + $0x78] sm:$0xf]
  %v55 = vld [vmem:[%s1 + $0x7c] sm:$0xf]
  %v58 = vunpack.c.l.b16 %v22
  %v59 = vunpack.c.h.b16 %v22
  %v60 = vunpack.c.l.b16 %v23
  %v61 = vunpack.c.h.b16 %v23
  %v62 = vpack.c.b16 %v60, %v58
  %v63 = vpack.c.b16 %v61, %v59
  %v98 = vunpack.c.l.b16 %v24
  %v99 = vunpack.c.l.b16 %v25
  %v100 = vunpack.c.l.b16 %v26
  %v101 = vunpack.c.l.b16 %v27
  %v102 = vunpack.c.l.b16 %v28
  %v103 = vunpack.c.l.b16 %v29
  %v104 = vunpack.c.l.b16 %v30
  %v105 = vunpack.c.l.b16 %v31
  %v106 = vunpack.c.l.b16 %v32
  %v107 = vunpack.c.l.b16 %v33
  %v108 = vunpack.c.l.b16 %v34
  %v109 = vunpack.c.l.b16 %v35
  %v110 = vunpack.c.l.b16 %v36
  %v111 = vunpack.c.l.b16 %v37
  %v112 = vunpack.c.l.b16 %v38
  %v113 = vunpack.c.l.b16 %v39
  %v114 = vunpack.c.l.b16 %v40
  %v115 = vunpack.c.l.b16 %v41
  %v116 = vunpack.c.l.b16 %v42
  %v117 = vunpack.c.l.b16 %v43
  %v118 = vunpack.c.l.b16 %v44
  %v119 = vunpack.c.l.b16 %v45
  %v120 = vunpack.c.l.b16 %v46
  %v121 = vunpack.c.l.b16 %v47
  %v122 = vunpack.c.l.b16 %v48
  %v123 = vunpack.c.l.b16 %v49
  %v124 = vunpack.c.l.b16 %v50
  %v125 = vunpack.c.l.b16 %v51
  %v126 = vunpack.c.l.b16 %v52
  %v127 = vunpack.c.l.b16 %v53
  %v128 = vunpack.c.l.b16 %v54
  %v129 = vunpack.c.l.b16 %v55
  %v130 = vpack.c.b16 %v99, %v98
  %v131 = vpack.c.b16 %v101, %v100
  %v132 = vpack.c.b16 %v103, %v102
  %v133 = vpack.c.b16 %v105, %v104
  %v134 = vpack.c.b16 %v107, %v106
  %v135 = vpack.c.b16 %v109, %v108
  %v136 = vpack.c.b16 %v111, %v110
  %v137 = vpack.c.b16 %v113, %v112
  %v138 = vpack.c.b16 %v115, %v114
  %v139 = vpack.c.b16 %v117, %v116
  %v140 = vpack.c.b16 %v119, %v118
  %v141 = vpack.c.b16 %v121, %v120
  %v142 = vpack.c.b16 %v123, %v122
  %v143 = vpack.c.b16 %v125, %v124
  %v144 = vpack.c.b16 %v127, %v126
  %v145 = vpack.c.b16 %v129, %v128
  %162 = vmatpush.bf16.msra.mxu0 %v137
  %163 = vmatpush.bf16.msra.mxu0 %v136
  %164 = vmatpush.bf16.msra.mxu0 %v135
  %165 = vmatpush.bf16.msra.mxu0 %v134
  %166 = vmatpush.bf16.msra.mxu0 %v133
  %167 = vmatpush.bf16.msra.mxu0 %v132
  %168 = vmatpush.bf16.msra.mxu0 %v131
  %169 = vmatpush.bf16.msra.mxu0 %v130
  %170 = vmatmul.bf16.gmra.mxu0 %v62
  %v171 = vpop.f32.mrf.mxu0
  %v172 = vadd.f32 0.0, %v171
  %v173 = vpop.f32.mrf.mxu0
  %v174 = vadd.f32 0.0, %v173
  %175 = vdwg.mxu0
  %176 = vmatpush.bf16.msra.mxu0 %v145
  %177 = vmatpush.bf16.msra.mxu0 %v144
  %178 = vmatpush.bf16.msra.mxu0 %v143
  %179 = vmatpush.bf16.msra.mxu0 %v142
  %180 = vmatpush.bf16.msra.mxu0 %v141
  %181 = vmatpush.bf16.msra.mxu0 %v140
  %182 = vmatpush.bf16.msra.mxu0 %v139
  %183 = vmatpush.bf16.msra.mxu0 %v138
  %184 = vmatmul.bf16.gmra.mxu0 %v63
  %v185 = vpop.f32.mrf.mxu0
  %v186 = vadd.f32 %v172, %v185
  %v187 = vpop.f32.mrf.mxu0
  %v188 = vadd.f32 %v174, %v187
  %189 = vdwg.mxu0
  %v190 = vadd.f32 %v20, %v186
  %v191 = vadd.f32 %v21, %v188
  %192 = vst [vmem:[#allocation2] sm:$0xff] %v190
  %193 = vst [vmem:[#allocation2 + $0x8] sm:$0xff] %v191
  // Predicated region
  $region18: #{unet_forward.31} parent=0 // pred_check
    %p194 = pneg %p14
  $region19: #{unet_forward.31} parent=0 // pred_check_branch
    %196 = sbr.rel (%p194) target = $region21
  $region20: #{unet_forward.31} parent=0 // pred_region
    %v197 = vld [vmem:[#allocation2] sm:$0xff]
    %v198 = vld [vmem:[#allocation2 + $0x8] sm:$0xff]
    %v199 = vld [vmem:[%s2] sm:$0x1]
    %v201 = vperm.slane %v199, 0
    %v203 = vadd.f32 %v197, %v201
    %v204 = vadd.f32 %v198, %v201
    %205 = vst [vmem:[%s3] sm:$0xff] %v203
    %206 = vst [vmem:[%s3 + $0x8] sm:$0xff] %v204
  $region21: #{unet_forward.31} parent=0 // pred_fallthru
    _
  // Predicated region
  $region22: #{unet_forward.31} parent=0 // pred_check
    _
  $region23: #{unet_forward.31} parent=0 // pred_check_branch
    %208 = sbr.rel (0) target = $region25
  $region24: #{unet_forward.31} parent=0 // pred_region
    _
  $region25: #{unet_forward.31} parent=0 // pred_fallthru
    _
  // Predicated region
  $region26: #{unet_forward.31} parent=0 // pred_check
    _
  $region27: #{unet_forward.31} parent=0 // pred_check_branch
    %210 = sbr.rel (0) target = $region29
  $region28: #{unet_forward.31} parent=0 // pred_region
    _
  $region29: #{unet_forward.31} parent=0 // pred_fallthru
    _

// kernel: unet_forward.32
$region0: #{unet_forward.32}
  #allocation0 [shape = 'u32[]', space=smem, size = 0x4, offset = 0x4, fixed_abs, tag = 'smem constant byte address 0x4 - core index']
  #allocation1 [shape = 'u32[72,128]{1,0:T(1,128)}', space=vmem, size = 0x9000, scoped, tag = 'internal scratch']
  %s0 = inlined_call_operand.vmem [shape: f32[8,128], index: 0, kind: input, shape index: {}]
  %s1 = inlined_call_operand.vmem [shape: f32[2,128], index: 1, kind: output, shape index: {}]
  %s2 = sld [smem:[#allocation0]]
  $region18: #{unet_forward.32} parent=0
    _
  %s4 = ssub.s32 1, %s2
  %s5 = scalar_select 0, %s4, %s2
  // Predicated region
  $region2: #{unet_forward.32} parent=0 // pred_check
    _
  $region3: #{unet_forward.32} parent=0 // pred_check_branch
    %7 = sbr.rel (0) target = $region5
  $region4: #{unet_forward.32} parent=0 // pred_region
    _
  $region5: #{unet_forward.32} parent=0 // pred_fallthru
    _
  %p8 = scmp.eq.s32.totalorder 0, 0
  // Predicated region
  $region6: #{unet_forward.32} parent=0 // pred_check
    %p9 = pneg %p8
  $region7: #{unet_forward.32} parent=0 // pred_check_branch
    %11 = sbr.rel (%p9) target = $region9
  $region8: #{unet_forward.32} parent=0 // pred_region
    %12 = vst [vmem:[%s1] sm:$0x3] 0.0
  $region9: #{unet_forward.32} parent=0 // pred_fallthru
    _
  %v13 = vld [vmem:[%s0] sm:$0xff]
  %v14 = vrot.slane %v13, 4
  %v15 = vadd.f32 %v13, %v14
  %v16 = vrot.slane %v15, 2
  %v17 = vadd.f32 %v15, %v16
  %v18 = vrot.slane %v17, 1
  %v19 = vadd.f32 %v17, %v18
  %v20 = vmul.f32 %v13, %v13
  %v21 = vrot.slane %v20, 4
  %v22 = vadd.f32 %v20, %v21
  %v23 = vrot.slane %v22, 2
  %v24 = vadd.f32 %v22, %v23
  %v25 = vrot.slane %v24, 1
  %v26 = vadd.f32 %v24, %v25
  %v27 = vld [vmem:[%s1] sm:$0x3]
  %vm28 = vcmask 1040384
  %v29 = vsel %vm28, %v19, %v26
  %v30 = vadd.f32 %v27, %v29
  %31 = vst [vmem:[%s1] sm:$0x3] %v30
  // Predicated region
  $region10: #{unet_forward.32} parent=0 // pred_check
    _
  $region11: #{unet_forward.32} parent=0 // pred_check_branch
    %33 = sbr.rel (0) target = $region13
  $region12: #{unet_forward.32} parent=0 // pred_region
    _
  $region13: #{unet_forward.32} parent=0 // pred_fallthru
    _
  // Predicated region
  $region14: #{unet_forward.32} parent=0 // pred_check
    _
  $region15: #{unet_forward.32} parent=0 // pred_check_branch
    %35 = sbr.rel (0) target = $region17
  $region16: #{unet_forward.32} parent=0 // pred_region
    _
  $region17: #{unet_forward.32} parent=0 // pred_fallthru
    _

// kernel: unet_forward.35
$region0: #{unet_forward.35}
  #allocation0 [shape = 'u32[]', space=smem, size = 0x4, offset = 0x4, fixed_abs, tag = 'smem constant byte address 0x4 - core index']
  #allocation1 [shape = 'u32[72,128]{1,0:T(1,128)}', space=vmem, size = 0x9000, scoped, tag = 'internal scratch']
  #allocation2 [shape = 'f32[16,128]{1,0:T(8,128)}', space=vmem, size = 0x2000, scoped, tag = 'scratch operand']
  %s0 = inlined_call_operand.vmem [shape: bf16[4,16,128], index: 0, kind: input, shape index: {}]
  %s1 = inlined_call_operand.vmem [shape: bf16[4,128,128], index: 1, kind: input, shape index: {}]
  %s2 = inlined_call_operand.vmem [shape: f32[4,1,128], index: 2, kind: input, shape index: {}]
  %s3 = inlined_call_operand.vmem [shape: f32[4,16,128], index: 3, kind: output, shape index: {}]
  %s4 = sld [smem:[#allocation0]]
  $region53: #{unet_forward.35} parent=0
    _
  %s6 = ssub.s32 1, %s4
  %s7 = scalar_select 0, %s6, %s4
  loop: start=0, step=1, limit=6
  $region2: #{unet_forward.35} parent=0 // loop_pre_header
    _
  $region3: #{unet_forward.35} parent=0 // loop_header
    %s9 = sphi 0, %s13
    %p10 = scmp.ge.s32.totalorder %s9, 6
    %s16 = sphi 0, %s42
    %s17 = sphi 0, %s38
    %s18 = sphi 0, %s34
    %s19 = sphi 0, %s30
    %s20 = sphi 0, %s16
    %s21 = sphi 0, %s17
    %s22 = sphi 0, %s18
    %s23 = sphi 0, %s19
    %s24 = sphi 0, %s20
    %s25 = sphi 0, %s21
    %s26 = sphi 0, %s22
    %s27 = sphi 0, %s23
    %s49 = sphi 0, %s51
    %s52 = sphi 0, %s49
    %s53 = sphi 0, %s52
    %s69 = sphi 0, %s53
    %s79 = sphi 0, %s81
    %s82 = sphi 0, %s79
    %s83 = sphi 0, %s82
    %s99 = sphi 0, %s83
    %s107 = sphi 0, %s109
    %s110 = sphi 0, %s107
    %s111 = sphi 0, %s110
    %s127 = sphi 0, %s111
    %s137 = sphi 0, %s139
    %s140 = sphi 0, %s137
    %s141 = sphi 0, %s140
    %s157 = sphi 0, %s141
  $region4: #{unet_forward.35} parent=0 // loop_header_branch
    %12 = sbr.rel (%p10) target = $region8
  $region5: #{unet_forward.35} parent=0 // loop_body
    %s14 = ssub.s32 %s9, 1
    %s15 = ssub.s32 %s9, 2
    %s28 = sadd.s32 1, %s19
    %p29 = scmp.ge.s32.totalorder %s28, 1
    %s30 = scalar_select %p29, 0, %s28
    %s31 = sadd.s32 1, %s18
    %s32 = scalar_select %p29, %s31, %s18
    %p33 = scmp.ge.s32.totalorder %s32, 1
    %s34 = scalar_select %p33, 0, %s32
    %s35 = sadd.s32 1, %s17
    %s36 = scalar_select %p33, %s35, %s17
    %p37 = scmp.ge.s32.totalorder %s36, 1
    %s38 = scalar_select %p37, 0, %s36
    %s39 = sadd.s32 1, %s16
    %s40 = scalar_select %p37, %s39, %s16
    %p41 = scmp.ge.s32.totalorder %s40, 4
    %s42 = scalar_select %p41, 0, %s40
    %s43 = ssub.s32 %s16, %s42
    %s44 = ssub.s32 %s17, %s38
    %s45 = sor.u32 %s43, %s44
    %s46 = ssub.s32 %s19, %s30
    %s47 = sor.u32 %s45, %s46
    %p48 = scmp.eq.s32.totalorder %s47, 0
    %s50 = sadd.s32 %s49, 1
    %s51 = scalar_select %p48, %s49, %s50
    %p54 = pneg %p48
    %p55 = scmp.eq.s32.totalorder %s9, 3
    %p56 = por %p54, %p55
    %p57 = scmp.ne.s32.totalorder %s49, %s52
    %p58 = scmp.eq.s32.totalorder %s9, 0
    %p59 = por %p57, %p58
    %p60 = scmp.ne.s32.totalorder %s49, %s52
    %p61 = scmp.eq.s32.totalorder %s14, 3
    %p62 = por %p60, %p61
    %p63 = scmp.ne.s32.totalorder %s52, %s53
    %p64 = scmp.eq.s32.totalorder %s14, 0
    %p65 = por %p63, %p64
    %p66 = scmp.ne.s32.totalorder %s52, %s53
    %p67 = scmp.eq.s32.totalorder %s15, 3
    %p68 = por %p66, %p67
    %p70 = scmp.ne.s32.totalorder %s53, %s69
    %p71 = scmp.eq.s32.totalorder %s15, 0
    %p72 = por %p70, %p71
    %s73 = ssub.s32 %s16, %s42
    %s74 = ssub.s32 %s19, %s30
    %s75 = sor.u32 %s73, %s74
    %s76 = ssub.s32 %s18, %s34
    %s77 = sor.u32 %s75, %s76
    %p78 = scmp.eq.s32.totalorder %s77, 0
    %s80 = sadd.s32 %s79, 1
    %s81 = scalar_select %p78, %s79, %s80
    %p84 = pneg %p78
    %p85 = scmp.eq.s32.totalorder %s9, 3
    %p86 = por %p84, %p85
    %p87 = scmp.ne.s32.totalorder %s79, %s82
    %p88 = scmp.eq.s32.totalorder %s9, 0
    %p89 = por %p87, %p88
    %p90 = scmp.ne.s32.totalorder %s79, %s82
    %p91 = scmp.eq.s32.totalorder %s14, 3
    %p92 = por %p90, %p91
    %p93 = scmp.ne.s32.totalorder %s82, %s83
    %p94 = scmp.eq.s32.totalorder %s14, 0
    %p95 = por %p93, %p94
    %p96 = scmp.ne.s32.totalorder %s82, %s83
    %p97 = scmp.eq.s32.totalorder %s15, 3
    %p98 = por %p96, %p97
    %p100 = scmp.ne.s32.totalorder %s83, %s99
    %p101 = scmp.eq.s32.totalorder %s15, 0
    %p102 = por %p100, %p101
    %s103 = ssub.s32 %s16, %s42
    %s104 = ssub.s32 %s18, %s34
    %s105 = sor.u32 %s103, %s104
    %p106 = scmp.eq.s32.totalorder %s105, 0
    %s108 = sadd.s32 %s107, 1
    %s109 = scalar_select %p106, %s107, %s108
    %p112 = pneg %p106
    %p113 = scmp.eq.s32.totalorder %s9, 3
    %p114 = por %p112, %p113
    %p115 = scmp.ne.s32.totalorder %s107, %s110
    %p116 = scmp.eq.s32.totalorder %s9, 0
    %p117 = por %p115, %p116
    %p118 = scmp.ne.s32.totalorder %s107, %s110
    %p119 = scmp.eq.s32.totalorder %s14, 3
    %p120 = por %p118, %p119
    %p121 = scmp.ne.s32.totalorder %s110, %s111
    %p122 = scmp.eq.s32.totalorder %s14, 0
    %p123 = por %p121, %p122
    %p124 = scmp.ne.s32.totalorder %s110, %s111
    %p125 = scmp.eq.s32.totalorder %s15, 3
    %p126 = por %p124, %p125
    %p128 = scmp.ne.s32.totalorder %s111, %s127
    %p129 = scmp.eq.s32.totalorder %s15, 0
    %p130 = por %p128, %p129
    %s131 = ssub.s32 %s16, %s42
    %s132 = ssub.s32 %s17, %s38
    %s133 = sor.u32 %s131, %s132
    %s134 = ssub.s32 %s18, %s34
    %s135 = sor.u32 %s133, %s134
    %p136 = scmp.eq.s32.totalorder %s135, 0
    %s138 = sadd.s32 %s137, 1
    %s139 = scalar_select %p136, %s137, %s138
    %p142 = pneg %p136
    %p143 = scmp.eq.s32.totalorder %s9, 3
    %p144 = por %p142, %p143
    %p145 = scmp.ne.s32.totalorder %s137, %s140
    %p146 = scmp.eq.s32.totalorder %s9, 0
    %p147 = por %p145, %p146
    %p148 = scmp.ne.s32.totalorder %s137, %s140
    %p149 = scmp.eq.s32.totalorder %s14, 3
    %p150 = por %p148, %p149
    %p151 = scmp.ne.s32.totalorder %s140, %s141
    %p152 = scmp.eq.s32.totalorder %s14, 0
    %p153 = por %p151, %p152
    %p154 = scmp.ne.s32.totalorder %s140, %s141
    %p155 = scmp.eq.s32.totalorder %s15, 3
    %p156 = por %p154, %p155
    %p158 = scmp.ne.s32.totalorder %s141, %s157
    %p159 = scmp.eq.s32.totalorder %s15, 0
    %p160 = por %p158, %p159
    %p161 = scmp.le.s32.totalorder 1, %s9
    %p162 = scmp.lt.s32.totalorder %s9, 5
    %p163 = pnand %p161, %p162
    %p164 = pneg %p163
    // Predicated region
    $region9: #{unet_forward.35} parent=5 // pred_check
      _
    $region10: #{unet_forward.35} parent=5 // pred_check_branch
      %166 = sbr.rel (%p163) target = $region12
    $region11: #{unet_forward.35} parent=5 // pred_region
      %s167 = ssub.s32 %s9, 1
    $region12: #{unet_forward.35} parent=5 // pred_fallthru
      _
    %p168 = scmp.lt.s32.totalorder %s9, 4
    // Predicated region
    $region13: #{unet_forward.35} parent=5 // pred_check
      %p169 = pneg %p168
    $region14: #{unet_forward.35} parent=5 // pred_check_branch
      %171 = sbr.rel (%p169) target = $region16
    $region15: #{unet_forward.35} parent=5 // pred_region
      // Predicated region
      $region17: #{unet_forward.35} parent=15 // pred_check
        %p172 = pneg %p59
      $region18: #{unet_forward.35} parent=15 // pred_check_branch
        %174 = sbr.rel (%p172) target = $region20
      $region19: #{unet_forward.35} parent=15 // pred_region
        %s175 = smul.u32 2, %s17
        %p176 = scmp.lt.s32.totalorder %s16, 3
        %s177 = scalar_select %p176, %s16, 3
        %p178 = scmp.lt.s32.totalorder %s175, 1
        %s179 = scalar_select %p178, %s175, 1
        %p180 = scmp.lt.s32.totalorder %s19, 0
        %s181 = scalar_select %p180, %s19, 0
        %s182 = sadd.s32 %s181, %s179
        %s183 = smul.addr %s177, 2
        %s184 = sadd.s32 %s182, %s183
        %s185 = smul.addr %s184, 4
        %s186 = scalar_lea.vmem %s0, %s185
        %s187 = smul.u32 2, %s17
      $region20: #{unet_forward.35} parent=15 // pred_fallthru
        _
      // Predicated region
      $region21: #{unet_forward.35} parent=15 // pred_check
        %p188 = pneg %p89
      $region22: #{unet_forward.35} parent=15 // pred_check_branch
        %190 = sbr.rel (%p188) target = $region24
      $region23: #{unet_forward.35} parent=15 // pred_region
        %s191 = smul.u32 16, %s19
        %p192 = scmp.lt.s32.totalorder %s16, 3
        %s193 = scalar_select %p192, %s16, 3
        %p194 = scmp.lt.s32.totalorder %s191, 15
        %s195 = scalar_select %p194, %s191, 15
        %p196 = scmp.lt.s32.totalorder %s18, 0
        %s197 = scalar_select %p196, %s18, 0
        %s198 = sadd.s32 %s197, %s195
        %s199 = smul.addr %s193, 16
        %s200 = sadd.s32 %s198, %s199
        %s201 = smul.addr %s200, 4
        %s202 = scalar_lea.vmem %s1, %s201
        %s203 = smul.u32 16, %s19
      $region24: #{unet_forward.35} parent=15 // pred_fallthru
        _
      // Predicated region
      $region25: #{unet_forward.35} parent=15 // pred_check
        %p204 = pneg %p117
      $region26: #{unet_forward.35} parent=15 // pred_check_branch
        %206 = sbr.rel (%p204) target = $region28
      $region27: #{unet_forward.35} parent=15 // pred_region
        %p207 = scmp.lt.s32.totalorder %s16, 3
        %s208 = scalar_select %p207, %s16, 3
        %p209 = scmp.lt.s32.totalorder %s18, 0
        %s210 = scalar_select %p209, %s18, 0
        %s211 = sadd.s32 %s210, %s208
        %s212 = scalar_lea.vmem %s2, %s211
      $region28: #{unet_forward.35} parent=15 // pred_fallthru
        _
    $region16: #{unet_forward.35} parent=5 // pred_fallthru
      _
    %p213 = scmp.le.s32.totalorder 1, %s9
    %p214 = scmp.lt.s32.totalorder %s9, 5
    %p215 = pnand %p213, %p214
    %p216 = pneg %p215
    // Predicated region
    $region29: #{unet_forward.35} parent=5 // pred_check
      _
    $region30: #{unet_forward.35} parent=5 // pred_check_branch
      %218 = sbr.rel (%p215) target = $region32
    $region31: #{unet_forward.35} parent=5 // pred_region
      %s219 = ssub.s32 %s9, 1
      %s220 = smul.u32 2, %s21
      %p221 = scmp.lt.s32.totalorder %s20, 3
      %s222 = scalar_select %p221, %s20, 3
      %p223 = scmp.lt.s32.totalorder %s220, 1
      %s224 = scalar_select %p223, %s220, 1
      %p225 = scmp.lt.s32.totalorder %s23, 0
      %s226 = scalar_select %p225, %s23, 0
      %s227 = sadd.s32 %s226, %s224
      %s228 = smul.addr %s222, 2
      %s229 = sadd.s32 %s227, %s228
      %s230 = smul.addr %s229, 4
      %s231 = scalar_lea.vmem %s0, %s230
      %p232 = pneg %p65
      %p233 = pneg %p62
      %s234 = smul.u32 16, %s23
      %p235 = scmp.lt.s32.totalorder %s20, 3
      %s236 = scalar_select %p235, %s20, 3
      %p237 = scmp.lt.s32.totalorder %s234, 15
      %s238 = scalar_select %p237, %s234, 15
      %p239 = scmp.lt.s32.totalorder %s22, 0
      %s240 = scalar_select %p239, %s22, 0
      %s241 = sadd.s32 %s240, %s238
      %s242 = smul.addr %s236, 16
      %s243 = sadd.s32 %s241, %s242
      %s244 = smul.addr %s243, 4
      %s245 = scalar_lea.vmem %s1, %s244
      %p246 = pneg %p95
      %p247 = pneg %p92
      %p248 = scmp.lt.s32.totalorder %s20, 3
      %s249 = scalar_select %p248, %s20, 3
      %p250 = scmp.lt.s32.totalorder %s22, 0
      %s251 = scalar_select %p250, %s22, 0
      %s252 = sadd.s32 %s251, %s249
      %s253 = scalar_lea.vmem %s2, %s252
      %p254 = pneg %p123
      %p255 = pneg %p120
      %p256 = pneg %p153
      %p257 = pneg %p150
      %s258 = smul.u32 2, %s21
      %p259 = scmp.lt.s32.totalorder %s20, 3
      %s260 = scalar_select %p259, %s20, 3
      %p261 = scmp.lt.s32.totalorder %s258, 1
      %s262 = scalar_select %p261, %s258, 1
      %p263 = scmp.lt.s32.totalorder %s22, 0
      %s264 = scalar_select %p263, %s22, 0
      %s265 = sadd.s32 %s264, %s262
      %s266 = smul.addr %s260, 2
      %s267 = sadd.s32 %s265, %s266
      %s268 = smul.addr %s267, 8
      %s269 = scalar_lea.vmem %s3, %s268
      %s270 = smul.u32 2, %s21
      %p271 = scmp.lt.s32.totalorder %s20, 3
      %s272 = scalar_select %p271, %s20, 3
      %p273 = scmp.lt.s32.totalorder %s270, 1
      %s274 = scalar_select %p273, %s270, 1
      %p275 = scmp.lt.s32.totalorder %s23, 0
      %s276 = scalar_select %p275, %s23, 0
      %s277 = sadd.s32 %s276, %s274
      %s278 = smul.addr %s272, 2
      %s279 = sadd.s32 %s277, %s278
      %s280 = smul.addr %s279, 4
      %s281 = scalar_lea.vmem %s0, %s280
      %s282 = smul.u32 2, %s21
      %s283 = smul.u32 16, %s23
      %p284 = scmp.lt.s32.totalorder %s20, 3
      %s285 = scalar_select %p284, %s20, 3
      %p286 = scmp.lt.s32.totalorder %s283, 15
      %s287 = scalar_select %p286, %s283, 15
      %p288 = scmp.lt.s32.totalorder %s22, 0
      %s289 = scalar_select %p288, %s22, 0
      %s290 = sadd.s32 %s289, %s287
      %s291 = smul.addr %s285, 16
      %s292 = sadd.s32 %s290, %s291
      %s293 = smul.addr %s292, 4
      %s294 = scalar_lea.vmem %s1, %s293
      %s295 = smul.u32 16, %s23
      %p296 = scmp.lt.s32.totalorder %s20, 3
      %s297 = scalar_select %p296, %s20, 3
      %p298 = scmp.lt.s32.totalorder %s22, 0
      %s299 = scalar_select %p298, %s22, 0
      %s300 = sadd.s32 %s299, %s297
      %s301 = scalar_lea.vmem %s2, %s300
      %s302 = smul.u32 2, %s21
      %p303 = scmp.lt.s32.totalorder %s20, 3
      %s304 = scalar_select %p303, %s20, 3
      %p305 = scmp.lt.s32.totalorder %s302, 1
      %s306 = scalar_select %p305, %s302, 1
      %p307 = scmp.lt.s32.totalorder %s22, 0
      %s308 = scalar_select %p307, %s22, 0
      %s309 = sadd.s32 %s308, %s306
      %s310 = smul.addr %s304, 2
      %s311 = sadd.s32 %s309, %s310
      %s312 = smul.addr %s311, 8
      %s313 = scalar_lea.vmem %s3, %s312
      %s314 = smul.u32 2, %s21
      %p315 = scmp.eq.s32.totalorder %s23, 0
      // Predicated region
      $region33: #{unet_forward.35} parent=31 // pred_check
        %p316 = pneg %p315
      $region34: #{unet_forward.35} parent=31 // pred_check_branch
        %318 = sbr.rel (%p316) target = $region36
      $region35: #{unet_forward.35} parent=31 // pred_region
        %319 = vst [vmem:[#allocation2] sm:$0xff] 0.0
        %320 = vst [vmem:[#allocation2 + $0x8] sm:$0xff] 0.0
      $region36: #{unet_forward.35} parent=31 // pred_fallthru
        _
      %v321 = vld [vmem:[#allocation2] sm:$0xff]
      %v322 = vld [vmem:[#allocation2 + $0x8] sm:$0xff]
      %v323 = vld [vmem:[%s281] sm:$0xf]
      %v324 = vld [vmem:[%s281 + $0x4] sm:$0xf]
      %v325 = vld [vmem:[%s294] sm:$0xf]
      %v326 = vld [vmem:[%s294 + $0x4] sm:$0xf]
      %v327 = vld [vmem:[%s294 + $0x8] sm:$0xf]
      %v328 = vld [vmem:[%s294 + $0xc] sm:$0xf]
      %v329 = vld [vmem:[%s294 + $0x10] sm:$0xf]
      %v330 = vld [vmem:[%s294 + $0x14] sm:$0xf]
      %v331 = vld [vmem:[%s294 + $0x18] sm:$0xf]
      %v332 = vld [vmem:[%s294 + $0x1c] sm:$0xf]
      %v333 = vld [vmem:[%s294 + $0x20] sm:$0xf]
      %v334 = vld [vmem:[%s294 + $0x24] sm:$0xf]
      %v335 = vld [vmem:[%s294 + $0x28] sm:$0xf]
      %v336 = vld [vmem:[%s294 + $0x2c] sm:$0xf]
      %v337 = vld [vmem:[%s294 + $0x30] sm:$0xf]
      %v338 = vld [vmem:[%s294 + $0x34] sm:$0xf]
      %v339 = vld [vmem:[%s294 + $0x38] sm:$0xf]
      %v340 = vld [vmem:[%s294 + $0x3c] sm:$0xf]
      %v343 = vunpack.c.l.b16 %v323
      %v344 = vunpack.c.l.b16 %v324
      %v345 = vpack.c.b16 %v344, %v343
      %v363 = vunpack.c.l.b16 %v325
      %v364 = vunpack.c.l.b16 %v326
      %v365 = vunpack.c.l.b16 %v327
      %v366 = vunpack.c.l.b16 %v328
      %v367 = vunpack.c.l.b16 %v329
      %v368 = vunpack.c.l.b16 %v330
      %v369 = vunpack.c.l.b16 %v331
      %v370 = vunpack.c.l.b16 %v332
      %v371 = vunpack.c.l.b16 %v333
      %v372 = vunpack.c.l.b16 %v334
      %v373 = vunpack.c.l.b16 %v335
      %v374 = vunpack.c.l.b16 %v336
      %v375 = vunpack.c.l.b16 %v337
      %v376 = vunpack.c.l.b16 %v338
      %v377 = vunpack.c.l.b16 %v339
      %v378 = vunpack.c.l.b16 %v340
      %v379 = vpack.c.b16 %v364, %v363
      %v380 = vpack.c.b16 %v366, %v365
      %v381 = vpack.c.b16 %v368, %v367
      %v382 = vpack.c.b16 %v370, %v369
      %v383 = vpack.c.b16 %v372, %v371
      %v384 = vpack.c.b16 %v374, %v373
      %v385 = vpack.c.b16 %v376, %v375
      %v386 = vpack.c.b16 %v378, %v377
      %395 = vmatpush.bf16.msra.mxu0 %v386
      %396 = vmatpush.bf16.msra.mxu0 %v385
      %397 = vmatpush.bf16.msra.mxu0 %v384
      %398 = vmatpush.bf16.msra.mxu0 %v383
      %399 = vmatpush.bf16.msra.mxu0 %v382
      %400 = vmatpush.bf16.msra.mxu0 %v381
      %401 = vmatpush.bf16.msra.mxu0 %v380
      %402 = vmatpush.bf16.msra.mxu0 %v379
      %403 = vmatmul.bf16.gmra.mxu0 %v345
      %v404 = vpop.f32.mrf.mxu0
      %v405 = vadd.f32 0.0, %v404
      %v406 = vpop.f32.mrf.mxu0
      %v407 = vadd.f32 0.0, %v406
      %408 = vdwg.mxu0
      %v409 = vadd.f32 %v321, %v405
      %v410 = vadd.f32 %v322, %v407
      %411 = vst [vmem:[#allocation2] sm:$0xff] %v409
      %412 = vst [vmem:[#allocation2 + $0x8] sm:$0xff] %v410
      // Predicated region
      $region37: #{unet_forward.35} parent=31 // pred_check
        %p413 = pneg %p315
      $region38: #{unet_forward.35} parent=31 // pred_check_branch
        %415 = sbr.rel (%p413) target = $region40
      $region39: #{unet_forward.35} parent=31 // pred_region
        %v416 = vld [vmem:[#allocation2] sm:$0xff]
        %v417 = vld [vmem:[#allocation2 + $0x8] sm:$0xff]
        %v418 = vld [vmem:[%s301] sm:$0x1]
        %v420 = vperm.slane %v418, 0
        %v422 = vadd.f32 %v416, %v420
        %v423 = vadd.f32 %v417, %v420
        %424 = vst [vmem:[%s313] sm:$0xff] %v422
        %425 = vst [vmem:[%s313 + $0x8] sm:$0xff] %v423
      $region40: #{unet_forward.35} parent=31 // pred_fallthru
        _
      %s426 = smul.u32 2, %s21
      %p427 = scmp.lt.s32.totalorder %s20, 3
      %s428 = scalar_select %p427, %s20, 3
      %p429 = scmp.lt.s32.totalorder %s426, 1
      %s430 = scalar_select %p429, %s426, 1
      %p431 = scmp.lt.s32.totalorder %s22, 0
      %s432 = scalar_select %p431, %s22, 0
      %s433 = sadd.s32 %s432, %s430
      %s434 = smul.addr %s428, 2
      %s435 = sadd.s32 %s433, %s434
      %s436 = smul.addr %s435, 8
      %s437 = scalar_lea.vmem %s3, %s436
      // Predicated region
      $region41: #{unet_forward.35} parent=31 // pred_check
        %p438 = pneg %p150
      $region42: #{unet_forward.35} parent=31 // pred_check_branch
        %440 = sbr.rel (%p438) target = $region44
      $region43: #{unet_forward.35} parent=31 // pred_region
        %s441 = smul.u32 2, %s21
      $region44: #{unet_forward.35} parent=31 // pred_fallthru
        _
    $region32: #{unet_forward.35} parent=5 // pred_fallthru
      _
    %p442 = scmp.le.s32.totalorder 2, %s9
    // Predicated region
    $region45: #{unet_forward.35} parent=5 // pred_check
      %p443 = pneg %p442
    $region46: #{unet_forward.35} parent=5 // pred_check_branch
      %445 = sbr.rel (%p443) target = $region48
    $region47: #{unet_forward.35} parent=5 // pred_region
      %s446 = ssub.s32 %s9, 2
      // Predicated region
      $region49: #{unet_forward.35} parent=47 // pred_check
        %p447 = pneg %p156
      $region50: #{unet_forward.35} parent=47 // pred_check_branch
        %449 = sbr.rel (%p447) target = $region52
      $region51: #{unet_forward.35} parent=47 // pred_region
        %s450 = smul.u32 2, %s25
        %p451 = scmp.lt.s32.totalorder %s24, 3
        %s452 = scalar_select %p451, %s24, 3
        %p453 = scmp.lt.s32.totalorder %s450, 1
        %s454 = scalar_select %p453, %s450, 1
        %p455 = scmp.lt.s32.totalorder %s26, 0
        %s456 = scalar_select %p455, %s26, 0
        %s457 = sadd.s32 %s456, %s454
        %s458 = smul.addr %s452, 2
        %s459 = sadd.s32 %s457, %s458
        %s460 = smul.addr %s459, 8
        %s461 = scalar_lea.vmem %s3, %s460
      $region52: #{unet_forward.35} parent=47 // pred_fallthru
        _
    $region48: #{unet_forward.35} parent=5 // pred_fallthru
      _
  $region6: #{unet_forward.35} parent=0 // loop_footer
    %s13 = sadd.s32 1, %s9
  $region7: #{unet_forward.35} parent=0 // loop_footer_branch
    %8 = sbr.rel target = $region3
  $region8: #{unet_forward.35} parent=0 // loop_exit
    _

// kernel: unet_forward.34
$region0: #{unet_forward.34}
  #allocation0 [shape = 'u32[]', space=smem, size = 0x4, offset = 0x4, fixed_abs, tag = 'smem constant byte address 0x4 - core index']
  #allocation1 [shape = 'u32[72,128]{1,0:T(1,128)}', space=vmem, size = 0x9000, scoped, tag = 'internal scratch']
  #allocation2 [shape = 'f32[16,128]{1,0:T(8,128)}', space=vmem, size = 0x2000, scoped, tag = 'scratch operand']
  %s0 = inlined_call_operand.vmem [shape: bf16[1,16,512], index: 0, kind: input, shape index: {}]
  %s1 = inlined_call_operand.vmem [shape: bf16[1,512,128], index: 1, kind: input, shape index: {}]
  %s2 = inlined_call_operand.vmem [shape: f32[1,1,128], index: 2, kind: input, shape index: {}]
  %s3 = inlined_call_operand.vmem [shape: f32[1,16,128], index: 3, kind: output, shape index: {}]
  %s4 = sld [smem:[#allocation0]]
  $region30: #{unet_forward.34} parent=0
    _
  %s6 = ssub.s32 1, %s4
  %s7 = scalar_select 0, %s6, %s4
  // Predicated region
  $region2: #{unet_forward.34} parent=0 // pred_check
    _
  $region3: #{unet_forward.34} parent=0 // pred_check_branch
    %9 = sbr.rel (0) target = $region5
  $region4: #{unet_forward.34} parent=0 // pred_region
    _
  $region5: #{unet_forward.34} parent=0 // pred_fallthru
    _
  // Predicated region
  $region6: #{unet_forward.34} parent=0 // pred_check
    _
  $region7: #{unet_forward.34} parent=0 // pred_check_branch
    %11 = sbr.rel (0) target = $region9
  $region8: #{unet_forward.34} parent=0 // pred_region
    _
  $region9: #{unet_forward.34} parent=0 // pred_fallthru
    _
  // Predicated region
  $region10: #{unet_forward.34} parent=0 // pred_check
    _
  $region11: #{unet_forward.34} parent=0 // pred_check_branch
    %13 = sbr.rel (0) target = $region13
  $region12: #{unet_forward.34} parent=0 // pred_region
    _
  $region13: #{unet_forward.34} parent=0 // pred_fallthru
    _
  %p14 = scmp.eq.s32.totalorder 0, 0
  // Predicated region
  $region14: #{unet_forward.34} parent=0 // pred_check
    %p15 = pneg %p14
  $region15: #{unet_forward.34} parent=0 // pred_check_branch
    %17 = sbr.rel (%p15) target = $region17
  $region16: #{unet_forward.34} parent=0 // pred_region
    %18 = vst [vmem:[#allocation2] sm:$0xff] 0.0
    %19 = vst [vmem:[#allocation2 + $0x8] sm:$0xff] 0.0
  $region17: #{unet_forward.34} parent=0 // pred_fallthru
    _
  %v20 = vld [vmem:[#allocation2] sm:$0xff]
  %v21 = vld [vmem:[#allocation2 + $0x8] sm:$0xff]
  %v22 = vld [vmem:[%s0] sm:$0xff]
  %v23 = vld [vmem:[%s0 + $0x8] sm:$0xff]
  %v24 = vld [vmem:[%s0 + $0x10] sm:$0xff]
  %v25 = vld [vmem:[%s0 + $0x18] sm:$0xff]
  %v26 = vld [vmem:[%s1] sm:$0xf]
  %v27 = vld [vmem:[%s1 + $0x4] sm:$0xf]
  %v28 = vld [vmem:[%s1 + $0x8] sm:$0xf]
  %v29 = vld [vmem:[%s1 + $0xc] sm:$0xf]
  %v30 = vld [vmem:[%s1 + $0x10] sm:$0xf]
  %v31 = vld [vmem:[%s1 + $0x14] sm:$0xf]
  %v32 = vld [vmem:[%s1 + $0x18] sm:$0xf]
  %v33 = vld [vmem:[%s1 + $0x1c] sm:$0xf]
  %v34 = vld [vmem:[%s1 + $0x20] sm:$0xf]
  %v35 = vld [vmem:[%s1 + $0x24] sm:$0xf]
  %v36 = vld [vmem:[%s1 + $0x28] sm:$0xf]
  %v37 = vld [vmem:[%s1 + $0x2c] sm:$0xf]
  %v38 = vld [vmem:[%s1 + $0x30] sm:$0xf]
  %v39 = vld [vmem:[%s1 + $0x34] sm:$0xf]
  %v40 = vld [vmem:[%s1 + $0x38] sm:$0xf]
  %v41 = vld [vmem:[%s1 + $0x3c] sm:$0xf]
  %v42 = vld [vmem:[%s1 + $0x40] sm:$0xf]
  %v43 = vld [vmem:[%s1 + $0x44] sm:$0xf]
  %v44 = vld [vmem:[%s1 + $0x48] sm:$0xf]
  %v45 = vld [vmem:[%s1 + $0x4c] sm:$0xf]
  %v46 = vld [vmem:[%s1 + $0x50] sm:$0xf]
  %v47 = vld [vmem:[%s1 + $0x54] sm:$0xf]
  %v48 = vld [vmem:[%s1 + $0x58] sm:$0xf]
  %v49 = vld [vmem:[%s1 + $0x5c] sm:$0xf]
  %v50 = vld [vmem:[%s1 + $0x60] sm:$0xf]
  %v51 = vld [vmem:[%s1 + $0x64] sm:$0xf]
  %v52 = vld [vmem:[%s1 + $0x68] sm:$0xf]
  %v53 = vld [vmem:[%s1 + $0x6c] sm:$0xf]
  %v54 = vld [vmem:[%s1 + $0x70] sm:$0xf]
  %v55 = vld [vmem:[%s1 + $0x74] sm:$0xf]
  %v56 = vld [vmem:[%s1 + $0x78] sm:$0xf]
  %v57 = vld [vmem:[%s1 + $0x7c] sm:$0xf]
  %v58 = vld [vmem:[%s1 + $0x80] sm:$0xf]
  %v59 = vld [vmem:[%s1 + $0x84] sm:$0xf]
  %v60 = vld [vmem:[%s1 + $0x88] sm:$0xf]
  %v61 = vld [vmem:[%s1 + $0x8c] sm:$0xf]
  %v62 = vld [vmem:[%s1 + $0x90] sm:$0xf]
  %v63 = vld [vmem:[%s1 + $0x94] sm:$0xf]
  %v64 = vld [vmem:[%s1 + $0x98] sm:$0xf]
  %v65 = vld [vmem:[%s1 + $0x9c] sm:$0xf]
  %v66 = vld [vmem:[%s1 + $0xa0] sm:$0xf]
  %v67 = vld [vmem:[%s1 + $0xa4] sm:$0xf]
  %v68 = vld [vmem:[%s1 + $0xa8] sm:$0xf]
  %v69 = vld [vmem:[%s1 + $0xac] sm:$0xf]
  %v70 = vld [vmem:[%s1 + $0xb0] sm:$0xf]
  %v71 = vld [vmem:[%s1 + $0xb4] sm:$0xf]
  %v72 = vld [vmem:[%s1 + $0xb8] sm:$0xf]
  %v73 = vld [vmem:[%s1 + $0xbc] sm:$0xf]
  %v74 = vld [vmem:[%s1 + $0xc0] sm:$0xf]
  %v75 = vld [vmem:[%s1 + $0xc4] sm:$0xf]
  %v76 = vld [vmem:[%s1 + $0xc8] sm:$0xf]
  %v77 = vld [vmem:[%s1 + $0xcc] sm:$0xf]
  %v78 = vld [vmem:[%s1 + $0xd0] sm:$0xf]
  %v79 = vld [vmem:[%s1 + $0xd4] sm:$0xf]
  %v80 = vld [vmem:[%s1 + $0xd8] sm:$0xf]
  %v81 = vld [vmem:[%s1 + $0xdc] sm:$0xf]
  %v82 = vld [vmem:[%s1 + $0xe0] sm:$0xf]
  %v83 = vld [vmem:[%s1 + $0xe4] sm:$0xf]
  %v84 = vld [vmem:[%s1 + $0xe8] sm:$0xf]
  %v85 = vld [vmem:[%s1 + $0xec] sm:$0xf]
  %v86 = vld [vmem:[%s1 + $0xf0] sm:$0xf]
  %v87 = vld [vmem:[%s1 + $0xf4] sm:$0xf]
  %v88 = vld [vmem:[%s1 + $0xf8] sm:$0xf]
  %v89 = vld [vmem:[%s1 + $0xfc] sm:$0xf]
  %v94 = vunpack.c.l.b16 %v22
  %v95 = vunpack.c.h.b16 %v22
  %v96 = vunpack.c.l.b16 %v23
  %v97 = vunpack.c.h.b16 %v23
  %v98 = vunpack.c.l.b16 %v24
  %v99 = vunpack.c.h.b16 %v24
  %v100 = vunpack.c.l.b16 %v25
  %v101 = vunpack.c.h.b16 %v25
  %v102 = vpack.c.b16 %v98, %v94
  %v103 = vpack.c.b16 %v99, %v95
  %v104 = vpack.c.b16 %v100, %v96
  %v105 = vpack.c.b16 %v101, %v97
  %v174 = vunpack.c.l.b16 %v26
  %v175 = vunpack.c.l.b16 %v27
  %v176 = vunpack.c.l.b16 %v28
  %v177 = vunpack.c.l.b16 %v29
  %v178 = vunpack.c.l.b16 %v30
  %v179 = vunpack.c.l.b16 %v31
  %v180 = vunpack.c.l.b16 %v32
  %v181 = vunpack.c.l.b16 %v33
  %v182 = vunpack.c.l.b16 %v34
  %v183 = vunpack.c.l.b16 %v35
  %v184 = vunpack.c.l.b16 %v36
  %v185 = vunpack.c.l.b16 %v37
  %v186 = vunpack.c.l.b16 %v38
  %v187 = vunpack.c.l.b16 %v39
  %v188 = vunpack.c.l.b16 %v40
  %v189 = vunpack.c.l.b16 %v41
  %v190 = vunpack.c.l.b16 %v42
  %v191 = vunpack.c.l.b16 %v43
  %v192 = vunpack.c.l.b16 %v44
  %v193 = vunpack.c.l.b16 %v45
  %v194 = vunpack.c.l.b16 %v46
  %v195 = vunpack.c.l.b16 %v47
  %v196 = vunpack.c.l.b16 %v48
  %v197 = vunpack.c.l.b16 %v49
  %v198 = vunpack.c.l.b16 %v50
  %v199 = vunpack.c.l.b16 %v51
  %v200 = vunpack.c.l.b16 %v52
  %v201 = vunpack.c.l.b16 %v53
  %v202 = vunpack.c.l.b16 %v54
  %v203 = vunpack.c.l.b16 %v55
  %v204 = vunpack.c.l.b16 %v56
  %v205 = vunpack.c.l.b16 %v57
  %v206 = vunpack.c.l.b16 %v58
  %v207 = vunpack.c.l.b16 %v59
  %v208 = vunpack.c.l.b16 %v60
  %v209 = vunpack.c.l.b16 %v61
  %v210 = vunpack.c.l.b16 %v62
  %v211 = vunpack.c.l.b16 %v63
  %v212 = vunpack.c.l.b16 %v64
  %v213 = vunpack.c.l.b16 %v65
  %v214 = vunpack.c.l.b16 %v66
  %v215 = vunpack.c.l.b16 %v67
  %v216 = vunpack.c.l.b16 %v68
  %v217 = vunpack.c.l.b16 %v69
  %v218 = vunpack.c.l.b16 %v70
  %v219 = vunpack.c.l.b16 %v71
  %v220 = vunpack.c.l.b16 %v72
  %v221 = vunpack.c.l.b16 %v73
  %v222 = vunpack.c.l.b16 %v74
  %v223 = vunpack.c.l.b16 %v75
  %v224 = vunpack.c.l.b16 %v76
  %v225 = vunpack.c.l.b16 %v77
  %v226 = vunpack.c.l.b16 %v78
  %v227 = vunpack.c.l.b16 %v79
  %v228 = vunpack.c.l.b16 %v80
  %v229 = vunpack.c.l.b16 %v81
  %v230 = vunpack.c.l.b16 %v82
  %v231 = vunpack.c.l.b16 %v83
  %v232 = vunpack.c.l.b16 %v84
  %v233 = vunpack.c.l.b16 %v85
  %v234 = vunpack.c.l.b16 %v86
  %v235 = vunpack.c.l.b16 %v87
  %v236 = vunpack.c.l.b16 %v88
  %v237 = vunpack.c.l.b16 %v89
  %v238 = vpack.c.b16 %v175, %v174
  %v239 = vpack.c.b16 %v177, %v176
  %v240 = vpack.c.b16 %v179, %v178
  %v241 = vpack.c.b16 %v181, %v180
  %v242 = vpack.c.b16 %v183, %v182
  %v243 = vpack.c.b16 %v185, %v184
  %v244 = vpack.c.b16 %v187, %v186
  %v245 = vpack.c.b16 %v189, %v188
  %v246 = vpack.c.b16 %v191, %v190
  %v247 = vpack.c.b16 %v193, %v192
  %v248 = vpack.c.b16 %v195, %v194
  %v249 = vpack.c.b16 %v197, %v196
  %v250 = vpack.c.b16 %v199, %v198
  %v251 = vpack.c.b16 %v201, %v200
  %v252 = vpack.c.b16 %v203, %v202
  %v253 = vpack.c.b16 %v205, %v204
  %v254 = vpack.c.b16 %v207, %v206
  %v255 = vpack.c.b16 %v209, %v208
  %v256 = vpack.c.b16 %v211, %v210
  %v257 = vpack.c.b16 %v213, %v212
  %v258 = vpack.c.b16 %v215, %v214
  %v259 = vpack.c.b16 %v217, %v216
  %v260 = vpack.c.b16 %v219, %v218
  %v261 = vpack.c.b16 %v221, %v220
  %v262 = vpack.c.b16 %v223, %v222
  %v263 = vpack.c.b16 %v225, %v224
  %v264 = vpack.c.b16 %v227, %v226
  %v265 = vpack.c.b16 %v229, %v228
  %v266 = vpack.c.b16 %v231, %v230
  %v267 = vpack.c.b16 %v233, %v232
  %v268 = vpack.c.b16 %v235, %v234
  %v269 = vpack.c.b16 %v237, %v236
  %302 = vmatpush.bf16.msra.mxu0 %v245
  %303 = vmatpush.bf16.msra.mxu0 %v244
  %304 = vmatpush.bf16.msra.mxu0 %v243
  %305 = vmatpush.bf16.msra.mxu0 %v242
  %306 = vmatpush.bf16.msra.mxu0 %v241
  %307 = vmatpush.bf16.msra.mxu0 %v240
  %308 = vmatpush.bf16.msra.mxu0 %v239
  %309 = vmatpush.bf16.msra.mxu0 %v238
  %310 = vmatmul.bf16.gmra.mxu0 %v102
  %v311 = vpop.f32.mrf.mxu0
  %v312 = vadd.f32 0.0, %v311
  %v313 = vpop.f32.mrf.mxu0
  %v314 = vadd.f32 0.0, %v313
  %315 = vdwg.mxu0
  %316 = vmatpush.bf16.msra.mxu0 %v253
  %317 = vmatpush.bf16.msra.mxu0 %v252
  %318 = vmatpush.bf16.msra.mxu0 %v251
  %319 = vmatpush.bf16.msra.mxu0 %v250
  %320 = vmatpush.bf16.msra.mxu0 %v249
  %321 = vmatpush.bf16.msra.mxu0 %v248
  %322 = vmatpush.bf16.msra.mxu0 %v247
  %323 = vmatpush.bf16.msra.mxu0 %v246
  %324 = vmatmul.bf16.gmra.mxu0 %v103
  %v325 = vpop.f32.mrf.mxu0
  %v326 = vadd.f32 %v312, %v325
  %v327 = vpop.f32.mrf.mxu0
  %v328 = vadd.f32 %v314, %v327
  %329 = vdwg.mxu0
  %330 = vmatpush.bf16.msra.mxu0 %v261
  %331 = vmatpush.bf16.msra.mxu0 %v260
  %332 = vmatpush.bf16.msra.mxu0 %v259
  %333 = vmatpush.bf16.msra.mxu0 %v258
  %334 = vmatpush.bf16.msra.mxu0 %v257
  %335 = vmatpush.bf16.msra.mxu0 %v256
  %336 = vmatpush.bf16.msra.mxu0 %v255
  %337 = vmatpush.bf16.msra.mxu0 %v254
  %338 = vmatmul.bf16.gmra.mxu0 %v104
  %v339 = vpop.f32.mrf.mxu0
  %v340 = vadd.f32 %v326, %v339
  %v341 = vpop.f32.mrf.mxu0
  %v342 = vadd.f32 %v328, %v341
  %343 = vdwg.mxu0
  %344 = vmatpush.bf16.msra.mxu0 %v269
  %345 = vmatpush.bf16.msra.mxu0 %v268
  %346 = vmatpush.bf16.msra.mxu0 %v267
  %347 = vmatpush.bf16.msra.mxu0 %v266
  %348 = vmatpush.bf16.msra.mxu0 %v265
  %349 = vmatpush.bf16.msra.mxu0 %v264
  %350 = vmatpush.bf16.msra.mxu0 %v263
  %351 = vmatpush.bf16.msra.mxu0 %v262
  %352 = vmatmul.bf16.gmra.mxu0 %v105
  %v353 = vpop.f32.mrf.mxu0
  %v354 = vadd.f32 %v340, %v353
  %v355 = vpop.f32.mrf.mxu0
  %v356 = vadd.f32 %v342, %v355
  %357 = vdwg.mxu0
  %v358 = vadd.f32 %v20, %v354
  %v359 = vadd.f32 %v21, %v356
  %360 = vst [vmem:[#allocation2] sm:$0xff] %v358
  %361 = vst [vmem:[#allocation2 + $0x8] sm:$0xff] %v359
  // Predicated region
  $region18: #{unet_forward.34} parent=0 // pred_check
    %p362 = pneg %p14
  $region19: #{unet_forward.34} parent=0 // pred_check_branch
    %364 = sbr.rel (%p362) target = $region21
  $region20: #{unet_forward.34} parent=0 // pred_region
    %v365 = vld [vmem:[#allocation2] sm:$0xff]
    %v366 = vld [vmem:[#allocation2 + $0x8] sm:$0xff]
    %v367 = vld [vmem:[%s2] sm:$0x1]
    %v369 = vperm.slane %v367, 0
    %v371 = vadd.f32 %v365, %v369
    %v372 = vadd.f32 %v366, %v369
    %373 = vst [vmem:[%s3] sm:$0xff] %v371
    %374 = vst [vmem:[%s3 + $0x8] sm:$0xff] %v372
  $region21: #{unet_forward.34} parent=0 // pred_fallthru
    _
  // Predicated region
  $region22: #{unet_forward.34} parent=0 // pred_check
    _
  $region23: #{unet_forward.34} parent=0 // pred_check_branch
    %376 = sbr.rel (0) target = $region25
  $region24: #{unet_forward.34} parent=0 // pred_region
    _
  $region25: #{unet_forward.34} parent=0 // pred_fallthru
    _
  // Predicated region
  $region26: #{unet_forward.34} parent=0 // pred_check
    _
  $region27: #{unet_forward.34} parent=0 // pred_check_branch
    %378 = sbr.rel (0) target = $region29
  $region28: #{unet_forward.34} parent=0 // pred_region
    _
  $region29: #{unet_forward.34} parent=0 // pred_fallthru
    _

// kernel: unet_forward.38
$region0: #{unet_forward.38}
  #allocation0 [shape = 'u32[]', space=smem, size = 0x4, offset = 0x4, fixed_abs, tag = 'smem constant byte address 0x4 - core index']
  #allocation1 [shape = 'u32[72,128]{1,0:T(1,128)}', space=vmem, size = 0x9000, scoped, tag = 'internal scratch']
  #allocation2 [shape = 'f32[16,128]{1,0:T(8,128)}', space=vmem, size = 0x2000, scoped, tag = 'scratch operand']
  %s0 = inlined_call_operand.vmem [shape: bf16[4,16,256], index: 0, kind: input, shape index: {}]
  %s1 = inlined_call_operand.vmem [shape: bf16[4,256,128], index: 1, kind: input, shape index: {}]
  %s2 = inlined_call_operand.vmem [shape: f32[4,1,128], index: 2, kind: input, shape index: {}]
  %s3 = inlined_call_operand.vmem [shape: f32[4,16,128], index: 3, kind: output, shape index: {}]
  %s4 = sld [smem:[#allocation0]]
  $region53: #{unet_forward.38} parent=0
    _
  %s6 = ssub.s32 1, %s4
  %s7 = scalar_select 0, %s6, %s4
  loop: start=0, step=1, limit=6
  $region2: #{unet_forward.38} parent=0 // loop_pre_header
    _
  $region3: #{unet_forward.38} parent=0 // loop_header
    %s9 = sphi 0, %s13
    %p10 = scmp.ge.s32.totalorder %s9, 6
    %s16 = sphi 0, %s42
    %s17 = sphi 0, %s38
    %s18 = sphi 0, %s34
    %s19 = sphi 0, %s30
    %s20 = sphi 0, %s16
    %s21 = sphi 0, %s17
    %s22 = sphi 0, %s18
    %s23 = sphi 0, %s19
    %s24 = sphi 0, %s20
    %s25 = sphi 0, %s21
    %s26 = sphi 0, %s22
    %s27 = sphi 0, %s23
    %s49 = sphi 0, %s51
    %s52 = sphi 0, %s49
    %s53 = sphi 0, %s52
    %s69 = sphi 0, %s53
    %s79 = sphi 0, %s81
    %s82 = sphi 0, %s79
    %s83 = sphi 0, %s82
    %s99 = sphi 0, %s83
    %s107 = sphi 0, %s109
    %s110 = sphi 0, %s107
    %s111 = sphi 0, %s110
    %s127 = sphi 0, %s111
    %s137 = sphi 0, %s139
    %s140 = sphi 0, %s137
    %s141 = sphi 0, %s140
    %s157 = sphi 0, %s141
  $region4: #{unet_forward.38} parent=0 // loop_header_branch
    %12 = sbr.rel (%p10) target = $region8
  $region5: #{unet_forward.38} parent=0 // loop_body
    %s14 = ssub.s32 %s9, 1
    %s15 = ssub.s32 %s9, 2
    %s28 = sadd.s32 1, %s19
    %p29 = scmp.ge.s32.totalorder %s28, 1
    %s30 = scalar_select %p29, 0, %s28
    %s31 = sadd.s32 1, %s18
    %s32 = scalar_select %p29, %s31, %s18
    %p33 = scmp.ge.s32.totalorder %s32, 1
    %s34 = scalar_select %p33, 0, %s32
    %s35 = sadd.s32 1, %s17
    %s36 = scalar_select %p33, %s35, %s17
    %p37 = scmp.ge.s32.totalorder %s36, 1
    %s38 = scalar_select %p37, 0, %s36
    %s39 = sadd.s32 1, %s16
    %s40 = scalar_select %p37, %s39, %s16
    %p41 = scmp.ge.s32.totalorder %s40, 4
    %s42 = scalar_select %p41, 0, %s40
    %s43 = ssub.s32 %s16, %s42
    %s44 = ssub.s32 %s17, %s38
    %s45 = sor.u32 %s43, %s44
    %s46 = ssub.s32 %s19, %s30
    %s47 = sor.u32 %s45, %s46
    %p48 = scmp.eq.s32.totalorder %s47, 0
    %s50 = sadd.s32 %s49, 1
    %s51 = scalar_select %p48, %s49, %s50
    %p54 = pneg %p48
    %p55 = scmp.eq.s32.totalorder %s9, 3
    %p56 = por %p54, %p55
    %p57 = scmp.ne.s32.totalorder %s49, %s52
    %p58 = scmp.eq.s32.totalorder %s9, 0
    %p59 = por %p57, %p58
    %p60 = scmp.ne.s32.totalorder %s49, %s52
    %p61 = scmp.eq.s32.totalorder %s14, 3
    %p62 = por %p60, %p61
    %p63 = scmp.ne.s32.totalorder %s52, %s53
    %p64 = scmp.eq.s32.totalorder %s14, 0
    %p65 = por %p63, %p64
    %p66 = scmp.ne.s32.totalorder %s52, %s53
    %p67 = scmp.eq.s32.totalorder %s15, 3
    %p68 = por %p66, %p67
    %p70 = scmp.ne.s32.totalorder %s53, %s69
    %p71 = scmp.eq.s32.totalorder %s15, 0
    %p72 = por %p70, %p71
    %s73 = ssub.s32 %s16, %s42
    %s74 = ssub.s32 %s19, %s30
    %s75 = sor.u32 %s73, %s74
    %s76 = ssub.s32 %s18, %s34
    %s77 = sor.u32 %s75, %s76
    %p78 = scmp.eq.s32.totalorder %s77, 0
    %s80 = sadd.s32 %s79, 1
    %s81 = scalar_select %p78, %s79, %s80
    %p84 = pneg %p78
    %p85 = scmp.eq.s32.totalorder %s9, 3
    %p86 = por %p84, %p85
    %p87 = scmp.ne.s32.totalorder %s79, %s82
    %p88 = scmp.eq.s32.totalorder %s9, 0
    %p89 = por %p87, %p88
    %p90 = scmp.ne.s32.totalorder %s79, %s82
    %p91 = scmp.eq.s32.totalorder %s14, 3
    %p92 = por %p90, %p91
    %p93 = scmp.ne.s32.totalorder %s82, %s83
    %p94 = scmp.eq.s32.totalorder %s14, 0
    %p95 = por %p93, %p94
    %p96 = scmp.ne.s32.totalorder %s82, %s83
    %p97 = scmp.eq.s32.totalorder %s15, 3
    %p98 = por %p96, %p97
    %p100 = scmp.ne.s32.totalorder %s83, %s99
    %p101 = scmp.eq.s32.totalorder %s15, 0
    %p102 = por %p100, %p101
    %s103 = ssub.s32 %s16, %s42
    %s104 = ssub.s32 %s18, %s34
    %s105 = sor.u32 %s103, %s104
    %p106 = scmp.eq.s32.totalorder %s105, 0
    %s108 = sadd.s32 %s107, 1
    %s109 = scalar_select %p106, %s107, %s108
    %p112 = pneg %p106
    %p113 = scmp.eq.s32.totalorder %s9, 3
    %p114 = por %p112, %p113
    %p115 = scmp.ne.s32.totalorder %s107, %s110
    %p116 = scmp.eq.s32.totalorder %s9, 0
    %p117 = por %p115, %p116
    %p118 = scmp.ne.s32.totalorder %s107, %s110
    %p119 = scmp.eq.s32.totalorder %s14, 3
    %p120 = por %p118, %p119
    %p121 = scmp.ne.s32.totalorder %s110, %s111
    %p122 = scmp.eq.s32.totalorder %s14, 0
    %p123 = por %p121, %p122
    %p124 = scmp.ne.s32.totalorder %s110, %s111
    %p125 = scmp.eq.s32.totalorder %s15, 3
    %p126 = por %p124, %p125
    %p128 = scmp.ne.s32.totalorder %s111, %s127
    %p129 = scmp.eq.s32.totalorder %s15, 0
    %p130 = por %p128, %p129
    %s131 = ssub.s32 %s16, %s42
    %s132 = ssub.s32 %s17, %s38
    %s133 = sor.u32 %s131, %s132
    %s134 = ssub.s32 %s18, %s34
    %s135 = sor.u32 %s133, %s134
    %p136 = scmp.eq.s32.totalorder %s135, 0
    %s138 = sadd.s32 %s137, 1
    %s139 = scalar_select %p136, %s137, %s138
    %p142 = pneg %p136
    %p143 = scmp.eq.s32.totalorder %s9, 3
    %p144 = por %p142, %p143
    %p145 = scmp.ne.s32.totalorder %s137, %s140
    %p146 = scmp.eq.s32.totalorder %s9, 0
    %p147 = por %p145, %p146
    %p148 = scmp.ne.s32.totalorder %s137, %s140
    %p149 = scmp.eq.s32.totalorder %s14, 3
    %p150 = por %p148, %p149
    %p151 = scmp.ne.s32.totalorder %s140, %s141
    %p152 = scmp.eq.s32.totalorder %s14, 0
    %p153 = por %p151, %p152
    %p154 = scmp.ne.s32.totalorder %s140, %s141
    %p155 = scmp.eq.s32.totalorder %s15, 3
    %p156 = por %p154, %p155
    %p158 = scmp.ne.s32.totalorder %s141, %s157
    %p159 = scmp.eq.s32.totalorder %s15, 0
    %p160 = por %p158, %p159
    %p161 = scmp.le.s32.totalorder 1, %s9
    %p162 = scmp.lt.s32.totalorder %s9, 5
    %p163 = pnand %p161, %p162
    %p164 = pneg %p163
    // Predicated region
    $region9: #{unet_forward.38} parent=5 // pred_check
      _
    $region10: #{unet_forward.38} parent=5 // pred_check_branch
      %166 = sbr.rel (%p163) target = $region12
    $region11: #{unet_forward.38} parent=5 // pred_region
      %s167 = ssub.s32 %s9, 1
    $region12: #{unet_forward.38} parent=5 // pred_fallthru
      _
    %p168 = scmp.lt.s32.totalorder %s9, 4
    // Predicated region
    $region13: #{unet_forward.38} parent=5 // pred_check
      %p169 = pneg %p168
    $region14: #{unet_forward.38} parent=5 // pred_check_branch
      %171 = sbr.rel (%p169) target = $region16
    $region15: #{unet_forward.38} parent=5 // pred_region
      // Predicated region
      $region17: #{unet_forward.38} parent=15 // pred_check
        %p172 = pneg %p59
      $region18: #{unet_forward.38} parent=15 // pred_check_branch
        %174 = sbr.rel (%p172) target = $region20
      $region19: #{unet_forward.38} parent=15 // pred_region
        %s175 = smul.u32 2, %s17
        %s176 = smul.u32 2, %s19
        %p177 = scmp.lt.s32.totalorder %s16, 3
        %s178 = scalar_select %p177, %s16, 3
        %p179 = scmp.lt.s32.totalorder %s175, 1
        %s180 = scalar_select %p179, %s175, 1
        %p181 = scmp.lt.s32.totalorder %s176, 1
        %s182 = scalar_select %p181, %s176, 1
        %s183 = smul.addr %s180, 2
        %s184 = sadd.s32 %s182, %s183
        %s185 = smul.addr %s178, 4
        %s186 = sadd.s32 %s184, %s185
        %s187 = smul.addr %s186, 4
        %s188 = scalar_lea.vmem %s0, %s187
        %s189 = smul.u32 2, %s17
        %s190 = smul.u32 2, %s19
      $region20: #{unet_forward.38} parent=15 // pred_fallthru
        _
      // Predicated region
      $region21: #{unet_forward.38} parent=15 // pred_check
        %p191 = pneg %p89
      $region22: #{unet_forward.38} parent=15 // pred_check_branch
        %193 = sbr.rel (%p191) target = $region24
      $region23: #{unet_forward.38} parent=15 // pred_region
        %s194 = smul.u32 32, %s19
        %p195 = scmp.lt.s32.totalorder %s16, 3
        %s196 = scalar_select %p195, %s16, 3
        %p197 = scmp.lt.s32.totalorder %s194, 31
        %s198 = scalar_select %p197, %s194, 31
        %p199 = scmp.lt.s32.totalorder %s18, 0
        %s200 = scalar_select %p199, %s18, 0
        %s201 = sadd.s32 %s200, %s198
        %s202 = smul.addr %s196, 32
        %s203 = sadd.s32 %s201, %s202
        %s204 = smul.addr %s203, 4
        %s205 = scalar_lea.vmem %s1, %s204
        %s206 = smul.u32 32, %s19
      $region24: #{unet_forward.38} parent=15 // pred_fallthru
        _
      // Predicated region
      $region25: #{unet_forward.38} parent=15 // pred_check
        %p207 = pneg %p117
      $region26: #{unet_forward.38} parent=15 // pred_check_branch
        %209 = sbr.rel (%p207) target = $region28
      $region27: #{unet_forward.38} parent=15 // pred_region
        %p210 = scmp.lt.s32.totalorder %s16, 3
        %s211 = scalar_select %p210, %s16, 3
        %p212 = scmp.lt.s32.totalorder %s18, 0
        %s213 = scalar_select %p212, %s18, 0
        %s214 = sadd.s32 %s213, %s211
        %s215 = scalar_lea.vmem %s2, %s214
      $region28: #{unet_forward.38} parent=15 // pred_fallthru
        _
    $region16: #{unet_forward.38} parent=5 // pred_fallthru
      _
    %p216 = scmp.le.s32.totalorder 1, %s9
    %p217 = scmp.lt.s32.totalorder %s9, 5
    %p218 = pnand %p216, %p217
    %p219 = pneg %p218
    // Predicated region
    $region29: #{unet_forward.38} parent=5 // pred_check
      _
    $region30: #{unet_forward.38} parent=5 // pred_check_branch
      %221 = sbr.rel (%p218) target = $region32
    $region31: #{unet_forward.38} parent=5 // pred_region
      %s222 = ssub.s32 %s9, 1
      %s223 = smul.u32 2, %s21
      %s224 = smul.u32 2, %s23
      %p225 = scmp.lt.s32.totalorder %s20, 3
      %s226 = scalar_select %p225, %s20, 3
      %p227 = scmp.lt.s32.totalorder %s223, 1
      %s228 = scalar_select %p227, %s223, 1
      %p229 = scmp.lt.s32.totalorder %s224, 1
      %s230 = scalar_select %p229, %s224, 1
      %s231 = smul.addr %s228, 2
      %s232 = sadd.s32 %s230, %s231
      %s233 = smul.addr %s226, 4
      %s234 = sadd.s32 %s232, %s233
      %s235 = smul.addr %s234, 4
      %s236 = scalar_lea.vmem %s0, %s235
      %p237 = pneg %p65
      %p238 = pneg %p62
      %s239 = smul.u32 32, %s23
      %p240 = scmp.lt.s32.totalorder %s20, 3
      %s241 = scalar_select %p240, %s20, 3
      %p242 = scmp.lt.s32.totalorder %s239, 31
      %s243 = scalar_select %p242, %s239, 31
      %p244 = scmp.lt.s32.totalorder %s22, 0
      %s245 = scalar_select %p244, %s22, 0
      %s246 = sadd.s32 %s245, %s243
      %s247 = smul.addr %s241, 32
      %s248 = sadd.s32 %s246, %s247
      %s249 = smul.addr %s248, 4
      %s250 = scalar_lea.vmem %s1, %s249
      %p251 = pneg %p95
      %p252 = pneg %p92
      %p253 = scmp.lt.s32.totalorder %s20, 3
      %s254 = scalar_select %p253, %s20, 3
      %p255 = scmp.lt.s32.totalorder %s22, 0
      %s256 = scalar_select %p255, %s22, 0
      %s257 = sadd.s32 %s256, %s254
      %s258 = scalar_lea.vmem %s2, %s257
      %p259 = pneg %p123
      %p260 = pneg %p120
      %p261 = pneg %p153
      %p262 = pneg %p150
      %s263 = smul.u32 2, %s21
      %p264 = scmp.lt.s32.totalorder %s20, 3
      %s265 = scalar_select %p264, %s20, 3
      %p266 = scmp.lt.s32.totalorder %s263, 1
      %s267 = scalar_select %p266, %s263, 1
      %p268 = scmp.lt.s32.totalorder %s22, 0
      %s269 = scalar_select %p268, %s22, 0
      %s270 = sadd.s32 %s269, %s267
      %s271 = smul.addr %s265, 2
      %s272 = sadd.s32 %s270, %s271
      %s273 = smul.addr %s272, 8
      %s274 = scalar_lea.vmem %s3, %s273
      %s275 = smul.u32 2, %s21
      %s276 = smul.u32 2, %s23
      %p277 = scmp.lt.s32.totalorder %s20, 3
      %s278 = scalar_select %p277, %s20, 3
      %p279 = scmp.lt.s32.totalorder %s275, 1
      %s280 = scalar_select %p279, %s275, 1
      %p281 = scmp.lt.s32.totalorder %s276, 1
      %s282 = scalar_select %p281, %s276, 1
      %s283 = smul.addr %s280, 2
      %s284 = sadd.s32 %s282, %s283
      %s285 = smul.addr %s278, 4
      %s286 = sadd.s32 %s284, %s285
      %s287 = smul.addr %s286, 4
      %s288 = scalar_lea.vmem %s0, %s287
      %s289 = smul.u32 2, %s21
      %s290 = smul.u32 2, %s23
      %s291 = smul.u32 32, %s23
      %p292 = scmp.lt.s32.totalorder %s20, 3
      %s293 = scalar_select %p292, %s20, 3
      %p294 = scmp.lt.s32.totalorder %s291, 31
      %s295 = scalar_select %p294, %s291, 31
      %p296 = scmp.lt.s32.totalorder %s22, 0
      %s297 = scalar_select %p296, %s22, 0
      %s298 = sadd.s32 %s297, %s295
      %s299 = smul.addr %s293, 32
      %s300 = sadd.s32 %s298, %s299
      %s301 = smul.addr %s300, 4
      %s302 = scalar_lea.vmem %s1, %s301
      %s303 = smul.u32 32, %s23
      %p304 = scmp.lt.s32.totalorder %s20, 3
      %s305 = scalar_select %p304, %s20, 3
      %p306 = scmp.lt.s32.totalorder %s22, 0
      %s307 = scalar_select %p306, %s22, 0
      %s308 = sadd.s32 %s307, %s305
      %s309 = scalar_lea.vmem %s2, %s308
      %s310 = smul.u32 2, %s21
      %p311 = scmp.lt.s32.totalorder %s20, 3
      %s312 = scalar_select %p311, %s20, 3
      %p313 = scmp.lt.s32.totalorder %s310, 1
      %s314 = scalar_select %p313, %s310, 1
      %p315 = scmp.lt.s32.totalorder %s22, 0
      %s316 = scalar_select %p315, %s22, 0
      %s317 = sadd.s32 %s316, %s314
      %s318 = smul.addr %s312, 2
      %s319 = sadd.s32 %s317, %s318
      %s320 = smul.addr %s319, 8
      %s321 = scalar_lea.vmem %s3, %s320
      %s322 = smul.u32 2, %s21
      %p323 = scmp.eq.s32.totalorder %s23, 0
      // Predicated region
      $region33: #{unet_forward.38} parent=31 // pred_check
        %p324 = pneg %p323
      $region34: #{unet_forward.38} parent=31 // pred_check_branch
        %326 = sbr.rel (%p324) target = $region36
      $region35: #{unet_forward.38} parent=31 // pred_region
        %327 = vst [vmem:[#allocation2] sm:$0xff] 0.0
        %328 = vst [vmem:[#allocation2 + $0x8] sm:$0xff] 0.0
      $region36: #{unet_forward.38} parent=31 // pred_fallthru
        _
      %v329 = vld [vmem:[#allocation2] sm:$0xff]
      %v330 = vld [vmem:[#allocation2 + $0x8] sm:$0xff]
      %v331 = vld [vmem:[%s288] sm:$0xff]
      %v332 = vld [vmem:[%s288 + $0x8] sm:$0xff]
      %v333 = vld [vmem:[%s302] sm:$0xf]
      %v334 = vld [vmem:[%s302 + $0x4] sm:$0xf]
      %v335 = vld [vmem:[%s302 + $0x8] sm:$0xf]
      %v336 = vld [vmem:[%s302 + $0xc] sm:$0xf]
      %v337 = vld [vmem:[%s302 + $0x10] sm:$0xf]
      %v338 = vld [vmem:[%s302 + $0x14] sm:$0xf]
      %v339 = vld [vmem:[%s302 + $0x18] sm:$0xf]
      %v340 = vld [vmem:[%s302 + $0x1c] sm:$0xf]
      %v341 = vld [vmem:[%s302 + $0x20] sm:$0xf]
      %v342 = vld [vmem:[%s302 + $0x24] sm:$0xf]
      %v343 = vld [vmem:[%s302 + $0x28] sm:$0xf]
      %v344 = vld [vmem:[%s302 + $0x2c] sm:$0xf]
      %v345 = vld [vmem:[%s302 + $0x30] sm:$0xf]
      %v346 = vld [vmem:[%s302 + $0x34] sm:$0xf]
      %v347 = vld [vmem:[%s302 + $0x38] sm:$0xf]
      %v348 = vld [vmem:[%s302 + $0x3c] sm:$0xf]
      %v349 = vld [vmem:[%s302 + $0x40] sm:$0xf]
      %v350 = vld [vmem:[%s302 + $0x44] sm:$0xf]
      %v351 = vld [vmem:[%s302 + $0x48] sm:$0xf]
      %v352 = vld [vmem:[%s302 + $0x4c] sm:$0xf]
      %v353 = vld [vmem:[%s302 + $0x50] sm:$0xf]
      %v354 = vld [vmem:[%s302 + $0x54] sm:$0xf]
      %v355 = vld [vmem:[%s302 + $0x58] sm:$0xf]
      %v356 = vld [vmem:[%s302 + $0x5c] sm:$0xf]
      %v357 = vld [vmem:[%s302 + $0x60] sm:$0xf]
      %v358 = vld [vmem:[%s302 + $0x64] sm:$0xf]
      %v359 = vld [vmem:[%s302 + $0x68] sm:$0xf]
      %v360 = vld [vmem:[%s302 + $0x6c] sm:$0xf]
      %v361 = vld [vmem:[%s302 + $0x70] sm:$0xf]
      %v362 = vld [vmem:[%s302 + $0x74] sm:$0xf]
      %v363 = vld [vmem:[%s302 + $0x78] sm:$0xf]
      %v364 = vld [vmem:[%s302 + $0x7c] sm:$0xf]
      %v367 = vunpack.c.l.b16 %v331
      %v368 = vunpack.c.h.b16 %v331
      %v369 = vunpack.c.l.b16 %v332
      %v370 = vunpack.c.h.b16 %v332
      %v371 = vpack.c.b16 %v369, %v367
      %v372 = vpack.c.b16 %v370, %v368
      %v407 = vunpack.c.l.b16 %v333
      %v408 = vunpack.c.l.b16 %v334
      %v409 = vunpack.c.l.b16 %v335
      %v410 = vunpack.c.l.b16 %v336
      %v411 = vunpack.c.l.b16 %v337
      %v412 = vunpack.c.l.b16 %v338
      %v413 = vunpack.c.l.b16 %v339
      %v414 = vunpack.c.l.b16 %v340
      %v415 = vunpack.c.l.b16 %v341
      %v416 = vunpack.c.l.b16 %v342
      %v417 = vunpack.c.l.b16 %v343
      %v418 = vunpack.c.l.b16 %v344
      %v419 = vunpack.c.l.b16 %v345
      %v420 = vunpack.c.l.b16 %v346
      %v421 = vunpack.c.l.b16 %v347
      %v422 = vunpack.c.l.b16 %v348
      %v423 = vunpack.c.l.b16 %v349
      %v424 = vunpack.c.l.b16 %v350
      %v425 = vunpack.c.l.b16 %v351
      %v426 = vunpack.c.l.b16 %v352
      %v427 = vunpack.c.l.b16 %v353
      %v428 = vunpack.c.l.b16 %v354
      %v429 = vunpack.c.l.b16 %v355
      %v430 = vunpack.c.l.b16 %v356
      %v431 = vunpack.c.l.b16 %v357
      %v432 = vunpack.c.l.b16 %v358
      %v433 = vunpack.c.l.b16 %v359
      %v434 = vunpack.c.l.b16 %v360
      %v435 = vunpack.c.l.b16 %v361
      %v436 = vunpack.c.l.b16 %v362
      %v437 = vunpack.c.l.b16 %v363
      %v438 = vunpack.c.l.b16 %v364
      %v439 = vpack.c.b16 %v408, %v407
      %v440 = vpack.c.b16 %v410, %v409
      %v441 = vpack.c.b16 %v412, %v411
      %v442 = vpack.c.b16 %v414, %v413
      %v443 = vpack.c.b16 %v416, %v415
      %v444 = vpack.c.b16 %v418, %v417
      %v445 = vpack.c.b16 %v420, %v419
      %v446 = vpack.c.b16 %v422, %v421
      %v447 = vpack.c.b16 %v424, %v423
      %v448 = vpack.c.b16 %v426, %v425
      %v449 = vpack.c.b16 %v428, %v427
      %v450 = vpack.c.b16 %v430, %v429
      %v451 = vpack.c.b16 %v432, %v431
      %v452 = vpack.c.b16 %v434, %v433
      %v453 = vpack.c.b16 %v436, %v435
      %v454 = vpack.c.b16 %v438, %v437
      %471 = vmatpush.bf16.msra.mxu0 %v446
      %472 = vmatpush.bf16.msra.mxu0 %v445
      %473 = vmatpush.bf16.msra.mxu0 %v444
      %474 = vmatpush.bf16.msra.mxu0 %v443
      %475 = vmatpush.bf16.msra.mxu0 %v442
      %476 = vmatpush.bf16.msra.mxu0 %v441
      %477 = vmatpush.bf16.msra.mxu0 %v440
      %478 = vmatpush.bf16.msra.mxu0 %v439
      %479 = vmatmul.bf16.gmra.mxu0 %v371
      %v480 = vpop.f32.mrf.mxu0
      %v481 = vadd.f32 0.0, %v480
      %v482 = vpop.f32.mrf.mxu0
      %v483 = vadd.f32 0.0, %v482
      %484 = vdwg.mxu0
      %485 = vmatpush.bf16.msra.mxu0 %v454
      %486 = vmatpush.bf16.msra.mxu0 %v453
      %487 = vmatpush.bf16.msra.mxu0 %v452
      %488 = vmatpush.bf16.msra.mxu0 %v451
      %489 = vmatpush.bf16.msra.mxu0 %v450
      %490 = vmatpush.bf16.msra.mxu0 %v449
      %491 = vmatpush.bf16.msra.mxu0 %v448
      %492 = vmatpush.bf16.msra.mxu0 %v447
      %493 = vmatmul.bf16.gmra.mxu0 %v372
      %v494 = vpop.f32.mrf.mxu0
      %v495 = vadd.f32 %v481, %v494
      %v496 = vpop.f32.mrf.mxu0
      %v497 = vadd.f32 %v483, %v496
      %498 = vdwg.mxu0
      %v499 = vadd.f32 %v329, %v495
      %v500 = vadd.f32 %v330, %v497
      %501 = vst [vmem:[#allocation2] sm:$0xff] %v499
      %502 = vst [vmem:[#allocation2 + $0x8] sm:$0xff] %v500
      // Predicated region
      $region37: #{unet_forward.38} parent=31 // pred_check
        %p503 = pneg %p323
      $region38: #{unet_forward.38} parent=31 // pred_check_branch
        %505 = sbr.rel (%p503) target = $region40
      $region39: #{unet_forward.38} parent=31 // pred_region
        %v506 = vld [vmem:[#allocation2] sm:$0xff]
        %v507 = vld [vmem:[#allocation2 + $0x8] sm:$0xff]
        %v508 = vld [vmem:[%s309] sm:$0x1]
        %v510 = vperm.slane %v508, 0
        %v512 = vadd.f32 %v506, %v510
        %v513 = vadd.f32 %v507, %v510
        %514 = vst [vmem:[%s321] sm:$0xff] %v512
        %515 = vst [vmem:[%s321 + $0x8] sm:$0xff] %v513
      $region40: #{unet_forward.38} parent=31 // pred_fallthru
        _
      %s516 = smul.u32 2, %s21
      %p517 = scmp.lt.s32.totalorder %s20, 3
      %s518 = scalar_select %p517, %s20, 3
      %p519 = scmp.lt.s32.totalorder %s516, 1
      %s520 = scalar_select %p519, %s516, 1
      %p521 = scmp.lt.s32.totalorder %s22, 0
      %s522 = scalar_select %p521, %s22, 0
      %s523 = sadd.s32 %s522, %s520
      %s524 = smul.addr %s518, 2
      %s525 = sadd.s32 %s523, %s524
      %s526 = smul.addr %s525, 8
      %s527 = scalar_lea.vmem %s3, %s526
      // Predicated region
      $region41: #{unet_forward.38} parent=31 // pred_check
        %p528 = pneg %p150
      $region42: #{unet_forward.38} parent=31 // pred_check_branch
        %530 = sbr.rel (%p528) target = $region44
      $region43: #{unet_forward.38} parent=31 // pred_region
        %s531 = smul.u32 2, %s21
      $region44: #{unet_forward.38} parent=31 // pred_fallthru
        _
    $region32: #{unet_forward.38} parent=5 // pred_fallthru
      _
    %p532 = scmp.le.s32.totalorder 2, %s9
    // Predicated region
    $region45: #{unet_forward.38} parent=5 // pred_check
      %p533 = pneg %p532
    $region46: #{unet_forward.38} parent=5 // pred_check_branch
      %535 = sbr.rel (%p533) target = $region48
    $region47: #{unet_forward.38} parent=5 // pred_region
      %s536 = ssub.s32 %s9, 2
      // Predicated region
      $region49: #{unet_forward.38} parent=47 // pred_check
        %p537 = pneg %p156
      $region50: #{unet_forward.38} parent=47 // pred_check_branch
        %539 = sbr.rel (%p537) target = $region52
      $region51: #{unet_forward.38} parent=47 // pred_region
        %s540 = smul.u32 2, %s25
        %p541 = scmp.lt.s32.totalorder %s24, 3
        %s542 = scalar_select %p541, %s24, 3
        %p543 = scmp.lt.s32.totalorder %s540, 1
        %s544 = scalar_select %p543, %s540, 1
        %p545 = scmp.lt.s32.totalorder %s26, 0
        %s546 = scalar_select %p545, %s26, 0
        %s547 = sadd.s32 %s546, %s544
        %s548 = smul.addr %s542, 2
        %s549 = sadd.s32 %s547, %s548
        %s550 = smul.addr %s549, 8
        %s551 = scalar_lea.vmem %s3, %s550
      $region52: #{unet_forward.38} parent=47 // pred_fallthru
        _
    $region48: #{unet_forward.38} parent=5 // pred_fallthru
      _
  $region6: #{unet_forward.38} parent=0 // loop_footer
    %s13 = sadd.s32 1, %s9
  $region7: #{unet_forward.38} parent=0 // loop_footer_branch
    %8 = sbr.rel target = $region3
  $region8: #{unet_forward.38} parent=0 // loop_exit
    _

// kernel: unet_forward.41
$region0: #{unet_forward.41}
  #allocation0 [shape = 'u32[]', space=smem, size = 0x4, offset = 0x4, fixed_abs, tag = 'smem constant byte address 0x4 - core index']
  #allocation1 [shape = 'u32[72,128]{1,0:T(1,128)}', space=vmem, size = 0x9000, scoped, tag = 'internal scratch']
  #allocation2 [shape = 'f32[32,128]{1,0:T(8,128)}', space=vmem, size = 0x4000, scoped, tag = 'scratch operand']
  %s0 = inlined_call_operand.vmem [shape: bf16[4,32,128], index: 0, kind: input, shape index: {}]
  %s1 = inlined_call_operand.vmem [shape: bf16[4,128,128], index: 1, kind: input, shape index: {}]
  %s2 = inlined_call_operand.vmem [shape: f32[4,1,128], index: 2, kind: input, shape index: {}]
  %s3 = inlined_call_operand.vmem [shape: f32[4,32,128], index: 3, kind: output, shape index: {}]
  %s4 = sld [smem:[#allocation0]]
  $region53: #{unet_forward.41} parent=0
    _
  %s6 = ssub.s32 1, %s4
  %s7 = scalar_select 0, %s6, %s4
  loop: start=0, step=1, limit=6
  $region2: #{unet_forward.41} parent=0 // loop_pre_header
    _
  $region3: #{unet_forward.41} parent=0 // loop_header
    %s9 = sphi 0, %s13
    %p10 = scmp.ge.s32.totalorder %s9, 6
    %s16 = sphi 0, %s42
    %s17 = sphi 0, %s38
    %s18 = sphi 0, %s34
    %s19 = sphi 0, %s30
    %s20 = sphi 0, %s16
    %s21 = sphi 0, %s17
    %s22 = sphi 0, %s18
    %s23 = sphi 0, %s19
    %s24 = sphi 0, %s20
    %s25 = sphi 0, %s21
    %s26 = sphi 0, %s22
    %s27 = sphi 0, %s23
    %s49 = sphi 0, %s51
    %s52 = sphi 0, %s49
    %s53 = sphi 0, %s52
    %s69 = sphi 0, %s53
    %s79 = sphi 0, %s81
    %s82 = sphi 0, %s79
    %s83 = sphi 0, %s82
    %s99 = sphi 0, %s83
    %s107 = sphi 0, %s109
    %s110 = sphi 0, %s107
    %s111 = sphi 0, %s110
    %s127 = sphi 0, %s111
    %s137 = sphi 0, %s139
    %s140 = sphi 0, %s137
    %s141 = sphi 0, %s140
    %s157 = sphi 0, %s141
  $region4: #{unet_forward.41} parent=0 // loop_header_branch
    %12 = sbr.rel (%p10) target = $region8
  $region5: #{unet_forward.41} parent=0 // loop_body
    %s14 = ssub.s32 %s9, 1
    %s15 = ssub.s32 %s9, 2
    %s28 = sadd.s32 1, %s19
    %p29 = scmp.ge.s32.totalorder %s28, 1
    %s30 = scalar_select %p29, 0, %s28
    %s31 = sadd.s32 1, %s18
    %s32 = scalar_select %p29, %s31, %s18
    %p33 = scmp.ge.s32.totalorder %s32, 1
    %s34 = scalar_select %p33, 0, %s32
    %s35 = sadd.s32 1, %s17
    %s36 = scalar_select %p33, %s35, %s17
    %p37 = scmp.ge.s32.totalorder %s36, 1
    %s38 = scalar_select %p37, 0, %s36
    %s39 = sadd.s32 1, %s16
    %s40 = scalar_select %p37, %s39, %s16
    %p41 = scmp.ge.s32.totalorder %s40, 4
    %s42 = scalar_select %p41, 0, %s40
    %s43 = ssub.s32 %s16, %s42
    %s44 = ssub.s32 %s17, %s38
    %s45 = sor.u32 %s43, %s44
    %s46 = ssub.s32 %s19, %s30
    %s47 = sor.u32 %s45, %s46
    %p48 = scmp.eq.s32.totalorder %s47, 0
    %s50 = sadd.s32 %s49, 1
    %s51 = scalar_select %p48, %s49, %s50
    %p54 = pneg %p48
    %p55 = scmp.eq.s32.totalorder %s9, 3
    %p56 = por %p54, %p55
    %p57 = scmp.ne.s32.totalorder %s49, %s52
    %p58 = scmp.eq.s32.totalorder %s9, 0
    %p59 = por %p57, %p58
    %p60 = scmp.ne.s32.totalorder %s49, %s52
    %p61 = scmp.eq.s32.totalorder %s14, 3
    %p62 = por %p60, %p61
    %p63 = scmp.ne.s32.totalorder %s52, %s53
    %p64 = scmp.eq.s32.totalorder %s14, 0
    %p65 = por %p63, %p64
    %p66 = scmp.ne.s32.totalorder %s52, %s53
    %p67 = scmp.eq.s32.totalorder %s15, 3
    %p68 = por %p66, %p67
    %p70 = scmp.ne.s32.totalorder %s53, %s69
    %p71 = scmp.eq.s32.totalorder %s15, 0
    %p72 = por %p70, %p71
    %s73 = ssub.s32 %s16, %s42
    %s74 = ssub.s32 %s19, %s30
    %s75 = sor.u32 %s73, %s74
    %s76 = ssub.s32 %s18, %s34
    %s77 = sor.u32 %s75, %s76
    %p78 = scmp.eq.s32.totalorder %s77, 0
    %s80 = sadd.s32 %s79, 1
    %s81 = scalar_select %p78, %s79, %s80
    %p84 = pneg %p78
    %p85 = scmp.eq.s32.totalorder %s9, 3
    %p86 = por %p84, %p85
    %p87 = scmp.ne.s32.totalorder %s79, %s82
    %p88 = scmp.eq.s32.totalorder %s9, 0
    %p89 = por %p87, %p88
    %p90 = scmp.ne.s32.totalorder %s79, %s82
    %p91 = scmp.eq.s32.totalorder %s14, 3
    %p92 = por %p90, %p91
    %p93 = scmp.ne.s32.totalorder %s82, %s83
    %p94 = scmp.eq.s32.totalorder %s14, 0
    %p95 = por %p93, %p94
    %p96 = scmp.ne.s32.totalorder %s82, %s83
    %p97 = scmp.eq.s32.totalorder %s15, 3
    %p98 = por %p96, %p97
    %p100 = scmp.ne.s32.totalorder %s83, %s99
    %p101 = scmp.eq.s32.totalorder %s15, 0
    %p102 = por %p100, %p101
    %s103 = ssub.s32 %s16, %s42
    %s104 = ssub.s32 %s18, %s34
    %s105 = sor.u32 %s103, %s104
    %p106 = scmp.eq.s32.totalorder %s105, 0
    %s108 = sadd.s32 %s107, 1
    %s109 = scalar_select %p106, %s107, %s108
    %p112 = pneg %p106
    %p113 = scmp.eq.s32.totalorder %s9, 3
    %p114 = por %p112, %p113
    %p115 = scmp.ne.s32.totalorder %s107, %s110
    %p116 = scmp.eq.s32.totalorder %s9, 0
    %p117 = por %p115, %p116
    %p118 = scmp.ne.s32.totalorder %s107, %s110
    %p119 = scmp.eq.s32.totalorder %s14, 3
    %p120 = por %p118, %p119
    %p121 = scmp.ne.s32.totalorder %s110, %s111
    %p122 = scmp.eq.s32.totalorder %s14, 0
    %p123 = por %p121, %p122
    %p124 = scmp.ne.s32.totalorder %s110, %s111
    %p125 = scmp.eq.s32.totalorder %s15, 3
    %p126 = por %p124, %p125
    %p128 = scmp.ne.s32.totalorder %s111, %s127
    %p129 = scmp.eq.s32.totalorder %s15, 0
    %p130 = por %p128, %p129
    %s131 = ssub.s32 %s16, %s42
    %s132 = ssub.s32 %s17, %s38
    %s133 = sor.u32 %s131, %s132
    %s134 = ssub.s32 %s18, %s34
    %s135 = sor.u32 %s133, %s134
    %p136 = scmp.eq.s32.totalorder %s135, 0
    %s138 = sadd.s32 %s137, 1
    %s139 = scalar_select %p136, %s137, %s138
    %p142 = pneg %p136
    %p143 = scmp.eq.s32.totalorder %s9, 3
    %p144 = por %p142, %p143
    %p145 = scmp.ne.s32.totalorder %s137, %s140
    %p146 = scmp.eq.s32.totalorder %s9, 0
    %p147 = por %p145, %p146
    %p148 = scmp.ne.s32.totalorder %s137, %s140
    %p149 = scmp.eq.s32.totalorder %s14, 3
    %p150 = por %p148, %p149
    %p151 = scmp.ne.s32.totalorder %s140, %s141
    %p152 = scmp.eq.s32.totalorder %s14, 0
    %p153 = por %p151, %p152
    %p154 = scmp.ne.s32.totalorder %s140, %s141
    %p155 = scmp.eq.s32.totalorder %s15, 3
    %p156 = por %p154, %p155
    %p158 = scmp.ne.s32.totalorder %s141, %s157
    %p159 = scmp.eq.s32.totalorder %s15, 0
    %p160 = por %p158, %p159
    %p161 = scmp.le.s32.totalorder 1, %s9
    %p162 = scmp.lt.s32.totalorder %s9, 5
    %p163 = pnand %p161, %p162
    %p164 = pneg %p163
    // Predicated region
    $region9: #{unet_forward.41} parent=5 // pred_check
      _
    $region10: #{unet_forward.41} parent=5 // pred_check_branch
      %166 = sbr.rel (%p163) target = $region12
    $region11: #{unet_forward.41} parent=5 // pred_region
      %s167 = ssub.s32 %s9, 1
    $region12: #{unet_forward.41} parent=5 // pred_fallthru
      _
    %p168 = scmp.lt.s32.totalorder %s9, 4
    // Predicated region
    $region13: #{unet_forward.41} parent=5 // pred_check
      %p169 = pneg %p168
    $region14: #{unet_forward.41} parent=5 // pred_check_branch
      %171 = sbr.rel (%p169) target = $region16
    $region15: #{unet_forward.41} parent=5 // pred_region
      // Predicated region
      $region17: #{unet_forward.41} parent=15 // pred_check
        %p172 = pneg %p59
      $region18: #{unet_forward.41} parent=15 // pred_check_branch
        %174 = sbr.rel (%p172) target = $region20
      $region19: #{unet_forward.41} parent=15 // pred_region
        %s175 = smul.u32 4, %s17
        %p176 = scmp.lt.s32.totalorder %s16, 3
        %s177 = scalar_select %p176, %s16, 3
        %p178 = scmp.lt.s32.totalorder %s175, 3
        %s179 = scalar_select %p178, %s175, 3
        %p180 = scmp.lt.s32.totalorder %s19, 0
        %s181 = scalar_select %p180, %s19, 0
        %s182 = sadd.s32 %s181, %s179
        %s183 = smul.addr %s177, 4
        %s184 = sadd.s32 %s182, %s183
        %s185 = smul.addr %s184, 4
        %s186 = scalar_lea.vmem %s0, %s185
        %s187 = smul.u32 4, %s17
      $region20: #{unet_forward.41} parent=15 // pred_fallthru
        _
      // Predicated region
      $region21: #{unet_forward.41} parent=15 // pred_check
        %p188 = pneg %p89
      $region22: #{unet_forward.41} parent=15 // pred_check_branch
        %190 = sbr.rel (%p188) target = $region24
      $region23: #{unet_forward.41} parent=15 // pred_region
        %s191 = smul.u32 16, %s19
        %p192 = scmp.lt.s32.totalorder %s16, 3
        %s193 = scalar_select %p192, %s16, 3
        %p194 = scmp.lt.s32.totalorder %s191, 15
        %s195 = scalar_select %p194, %s191, 15
        %p196 = scmp.lt.s32.totalorder %s18, 0
        %s197 = scalar_select %p196, %s18, 0
        %s198 = sadd.s32 %s197, %s195
        %s199 = smul.addr %s193, 16
        %s200 = sadd.s32 %s198, %s199
        %s201 = smul.addr %s200, 4
        %s202 = scalar_lea.vmem %s1, %s201
        %s203 = smul.u32 16, %s19
      $region24: #{unet_forward.41} parent=15 // pred_fallthru
        _
      // Predicated region
      $region25: #{unet_forward.41} parent=15 // pred_check
        %p204 = pneg %p117
      $region26: #{unet_forward.41} parent=15 // pred_check_branch
        %206 = sbr.rel (%p204) target = $region28
      $region27: #{unet_forward.41} parent=15 // pred_region
        %p207 = scmp.lt.s32.totalorder %s16, 3
        %s208 = scalar_select %p207, %s16, 3
        %p209 = scmp.lt.s32.totalorder %s18, 0
        %s210 = scalar_select %p209, %s18, 0
        %s211 = sadd.s32 %s210, %s208
        %s212 = scalar_lea.vmem %s2, %s211
      $region28: #{unet_forward.41} parent=15 // pred_fallthru
        _
    $region16: #{unet_forward.41} parent=5 // pred_fallthru
      _
    %p213 = scmp.le.s32.totalorder 1, %s9
    %p214 = scmp.lt.s32.totalorder %s9, 5
    %p215 = pnand %p213, %p214
    %p216 = pneg %p215
    // Predicated region
    $region29: #{unet_forward.41} parent=5 // pred_check
      _
    $region30: #{unet_forward.41} parent=5 // pred_check_branch
      %218 = sbr.rel (%p215) target = $region32
    $region31: #{unet_forward.41} parent=5 // pred_region
      %s219 = ssub.s32 %s9, 1
      %s220 = smul.u32 4, %s21
      %p221 = scmp.lt.s32.totalorder %s20, 3
      %s222 = scalar_select %p221, %s20, 3
      %p223 = scmp.lt.s32.totalorder %s220, 3
      %s224 = scalar_select %p223, %s220, 3
      %p225 = scmp.lt.s32.totalorder %s23, 0
      %s226 = scalar_select %p225, %s23, 0
      %s227 = sadd.s32 %s226, %s224
      %s228 = smul.addr %s222, 4
      %s229 = sadd.s32 %s227, %s228
      %s230 = smul.addr %s229, 4
      %s231 = scalar_lea.vmem %s0, %s230
      %p232 = pneg %p65
      %p233 = pneg %p62
      %s234 = smul.u32 16, %s23
      %p235 = scmp.lt.s32.totalorder %s20, 3
      %s236 = scalar_select %p235, %s20, 3
      %p237 = scmp.lt.s32.totalorder %s234, 15
      %s238 = scalar_select %p237, %s234, 15
      %p239 = scmp.lt.s32.totalorder %s22, 0
      %s240 = scalar_select %p239, %s22, 0
      %s241 = sadd.s32 %s240, %s238
      %s242 = smul.addr %s236, 16
      %s243 = sadd.s32 %s241, %s242
      %s244 = smul.addr %s243, 4
      %s245 = scalar_lea.vmem %s1, %s244
      %p246 = pneg %p95
      %p247 = pneg %p92
      %p248 = scmp.lt.s32.totalorder %s20, 3
      %s249 = scalar_select %p248, %s20, 3
      %p250 = scmp.lt.s32.totalorder %s22, 0
      %s251 = scalar_select %p250, %s22, 0
      %s252 = sadd.s32 %s251, %s249
      %s253 = scalar_lea.vmem %s2, %s252
      %p254 = pneg %p123
      %p255 = pneg %p120
      %p256 = pneg %p153
      %p257 = pneg %p150
      %s258 = smul.u32 4, %s21
      %p259 = scmp.lt.s32.totalorder %s20, 3
      %s260 = scalar_select %p259, %s20, 3
      %p261 = scmp.lt.s32.totalorder %s258, 3
      %s262 = scalar_select %p261, %s258, 3
      %p263 = scmp.lt.s32.totalorder %s22, 0
      %s264 = scalar_select %p263, %s22, 0
      %s265 = sadd.s32 %s264, %s262
      %s266 = smul.addr %s260, 4
      %s267 = sadd.s32 %s265, %s266
      %s268 = smul.addr %s267, 8
      %s269 = scalar_lea.vmem %s3, %s268
      %s270 = smul.u32 4, %s21
      %p271 = scmp.lt.s32.totalorder %s20, 3
      %s272 = scalar_select %p271, %s20, 3
      %p273 = scmp.lt.s32.totalorder %s270, 3
      %s274 = scalar_select %p273, %s270, 3
      %p275 = scmp.lt.s32.totalorder %s23, 0
      %s276 = scalar_select %p275, %s23, 0
      %s277 = sadd.s32 %s276, %s274
      %s278 = smul.addr %s272, 4
      %s279 = sadd.s32 %s277, %s278
      %s280 = smul.addr %s279, 4
      %s281 = scalar_lea.vmem %s0, %s280
      %s282 = smul.u32 4, %s21
      %s283 = smul.u32 16, %s23
      %p284 = scmp.lt.s32.totalorder %s20, 3
      %s285 = scalar_select %p284, %s20, 3
      %p286 = scmp.lt.s32.totalorder %s283, 15
      %s287 = scalar_select %p286, %s283, 15
      %p288 = scmp.lt.s32.totalorder %s22, 0
      %s289 = scalar_select %p288, %s22, 0
      %s290 = sadd.s32 %s289, %s287
      %s291 = smul.addr %s285, 16
      %s292 = sadd.s32 %s290, %s291
      %s293 = smul.addr %s292, 4
      %s294 = scalar_lea.vmem %s1, %s293
      %s295 = smul.u32 16, %s23
      %p296 = scmp.lt.s32.totalorder %s20, 3
      %s297 = scalar_select %p296, %s20, 3
      %p298 = scmp.lt.s32.totalorder %s22, 0
      %s299 = scalar_select %p298, %s22, 0
      %s300 = sadd.s32 %s299, %s297
      %s301 = scalar_lea.vmem %s2, %s300
      %s302 = smul.u32 4, %s21
      %p303 = scmp.lt.s32.totalorder %s20, 3
      %s304 = scalar_select %p303, %s20, 3
      %p305 = scmp.lt.s32.totalorder %s302, 3
      %s306 = scalar_select %p305, %s302, 3
      %p307 = scmp.lt.s32.totalorder %s22, 0
      %s308 = scalar_select %p307, %s22, 0
      %s309 = sadd.s32 %s308, %s306
      %s310 = smul.addr %s304, 4
      %s311 = sadd.s32 %s309, %s310
      %s312 = smul.addr %s311, 8
      %s313 = scalar_lea.vmem %s3, %s312
      %s314 = smul.u32 4, %s21
      %p315 = scmp.eq.s32.totalorder %s23, 0
      // Predicated region
      $region33: #{unet_forward.41} parent=31 // pred_check
        %p316 = pneg %p315
      $region34: #{unet_forward.41} parent=31 // pred_check_branch
        %318 = sbr.rel (%p316) target = $region36
      $region35: #{unet_forward.41} parent=31 // pred_region
        %319 = vst [vmem:[#allocation2] sm:$0xff] 0.0
        %320 = vst [vmem:[#allocation2 + $0x8] sm:$0xff] 0.0
        %321 = vst [vmem:[#allocation2 + $0x10] sm:$0xff] 0.0
        %322 = vst [vmem:[#allocation2 + $0x18] sm:$0xff] 0.0
      $region36: #{unet_forward.41} parent=31 // pred_fallthru
        _
      %v323 = vld [vmem:[#allocation2] sm:$0xff]
      %v324 = vld [vmem:[#allocation2 + $0x8] sm:$0xff]
      %v325 = vld [vmem:[#allocation2 + $0x10] sm:$0xff]
      %v326 = vld [vmem:[#allocation2 + $0x18] sm:$0xff]
      %v327 = vld [vmem:[%s281] sm:$0xf]
      %v328 = vld [vmem:[%s281 + $0x4] sm:$0xf]
      %v329 = vld [vmem:[%s281 + $0x8] sm:$0xf]
      %v330 = vld [vmem:[%s281 + $0xc] sm:$0xf]
      %v331 = vld [vmem:[%s294] sm:$0xf]
      %v332 = vld [vmem:[%s294 + $0x4] sm:$0xf]
      %v333 = vld [vmem:[%s294 + $0x8] sm:$0xf]
      %v334 = vld [vmem:[%s294 + $0xc] sm:$0xf]
      %v335 = vld [vmem:[%s294 + $0x10] sm:$0xf]
      %v336 = vld [vmem:[%s294 + $0x14] sm:$0xf]
      %v337 = vld [vmem:[%s294 + $0x18] sm:$0xf]
      %v338 = vld [vmem:[%s294 + $0x1c] sm:$0xf]
      %v339 = vld [vmem:[%s294 + $0x20] sm:$0xf]
      %v340 = vld [vmem:[%s294 + $0x24] sm:$0xf]
      %v341 = vld [vmem:[%s294 + $0x28] sm:$0xf]
      %v342 = vld [vmem:[%s294 + $0x2c] sm:$0xf]
      %v343 = vld [vmem:[%s294 + $0x30] sm:$0xf]
      %v344 = vld [vmem:[%s294 + $0x34] sm:$0xf]
      %v345 = vld [vmem:[%s294 + $0x38] sm:$0xf]
      %v346 = vld [vmem:[%s294 + $0x3c] sm:$0xf]
      %v351 = vunpack.c.l.b16 %v327
      %v352 = vunpack.c.l.b16 %v328
      %v353 = vunpack.c.l.b16 %v329
      %v354 = vunpack.c.l.b16 %v330
      %v355 = vpack.c.b16 %v352, %v351
      %v356 = vpack.c.b16 %v354, %v353
      %v375 = vunpack.c.l.b16 %v331
      %v376 = vunpack.c.l.b16 %v332
      %v377 = vunpack.c.l.b16 %v333
      %v378 = vunpack.c.l.b16 %v334
      %v379 = vunpack.c.l.b16 %v335
      %v380 = vunpack.c.l.b16 %v336
      %v381 = vunpack.c.l.b16 %v337
      %v382 = vunpack.c.l.b16 %v338
      %v383 = vunpack.c.l.b16 %v339
      %v384 = vunpack.c.l.b16 %v340
      %v385 = vunpack.c.l.b16 %v341
      %v386 = vunpack.c.l.b16 %v342
      %v387 = vunpack.c.l.b16 %v343
      %v388 = vunpack.c.l.b16 %v344
      %v389 = vunpack.c.l.b16 %v345
      %v390 = vunpack.c.l.b16 %v346
      %v391 = vpack.c.b16 %v376, %v375
      %v392 = vpack.c.b16 %v378, %v377
      %v393 = vpack.c.b16 %v380, %v379
      %v394 = vpack.c.b16 %v382, %v381
      %v395 = vpack.c.b16 %v384, %v383
      %v396 = vpack.c.b16 %v386, %v385
      %v397 = vpack.c.b16 %v388, %v387
      %v398 = vpack.c.b16 %v390, %v389
      %407 = vmatpush.bf16.msra.mxu0 %v398
      %408 = vmatpush.bf16.msra.mxu0 %v397
      %409 = vmatpush.bf16.msra.mxu0 %v396
      %410 = vmatpush.bf16.msra.mxu0 %v395
      %411 = vmatpush.bf16.msra.mxu0 %v394
      %412 = vmatpush.bf16.msra.mxu0 %v393
      %413 = vmatpush.bf16.msra.mxu0 %v392
      %414 = vmatpush.bf16.msra.mxu0 %v391
      %415 = vmatmul.bf16.gmra.mxu0 %v355
      %v416 = vpop.f32.mrf.mxu0
      %v417 = vadd.f32 0.0, %v416
      %v418 = vpop.f32.mrf.mxu0
      %v419 = vadd.f32 0.0, %v418
      %420 = vmatmul.bf16.gmra.mxu0 %v356
      %v421 = vpop.f32.mrf.mxu0
      %v422 = vadd.f32 0.0, %v421
      %v423 = vpop.f32.mrf.mxu0
      %v424 = vadd.f32 0.0, %v423
      %425 = vdwg.mxu0
      %v426 = vadd.f32 %v323, %v417
      %v427 = vadd.f32 %v324, %v419
      %v428 = vadd.f32 %v325, %v422
      %v429 = vadd.f32 %v326, %v424
      %430 = vst [vmem:[#allocation2] sm:$0xff] %v426
      %431 = vst [vmem:[#allocation2 + $0x8] sm:$0xff] %v427
      %432 = vst [vmem:[#allocation2 + $0x10] sm:$0xff] %v428
      %433 = vst [vmem:[#allocation2 + $0x18] sm:$0xff] %v429
      // Predicated region
      $region37: #{unet_forward.41} parent=31 // pred_check
        %p434 = pneg %p315
      $region38: #{unet_forward.41} parent=31 // pred_check_branch
        %436 = sbr.rel (%p434) target = $region40
      $region39: #{unet_forward.41} parent=31 // pred_region
        %v437 = vld [vmem:[#allocation2] sm:$0xff]
        %v438 = vld [vmem:[#allocation2 + $0x8] sm:$0xff]
        %v439 = vld [vmem:[#allocation2 + $0x10] sm:$0xff]
        %v440 = vld [vmem:[#allocation2 + $0x18] sm:$0xff]
        %v441 = vld [vmem:[%s301] sm:$0x1]
        %v443 = vperm.slane %v441, 0
        %v445 = vadd.f32 %v437, %v443
        %v446 = vadd.f32 %v438, %v443
        %v447 = vadd.f32 %v439, %v443
        %v448 = vadd.f32 %v440, %v443
        %449 = vst [vmem:[%s313] sm:$0xff] %v445
        %450 = vst [vmem:[%s313 + $0x8] sm:$0xff] %v446
        %451 = vst [vmem:[%s313 + $0x10] sm:$0xff] %v447
        %452 = vst [vmem:[%s313 + $0x18] sm:$0xff] %v448
      $region40: #{unet_forward.41} parent=31 // pred_fallthru
        _
      %s453 = smul.u32 4, %s21
      %p454 = scmp.lt.s32.totalorder %s20, 3
      %s455 = scalar_select %p454, %s20, 3
      %p456 = scmp.lt.s32.totalorder %s453, 3
      %s457 = scalar_select %p456, %s453, 3
      %p458 = scmp.lt.s32.totalorder %s22, 0
      %s459 = scalar_select %p458, %s22, 0
      %s460 = sadd.s32 %s459, %s457
      %s461 = smul.addr %s455, 4
      %s462 = sadd.s32 %s460, %s461
      %s463 = smul.addr %s462, 8
      %s464 = scalar_lea.vmem %s3, %s463
      // Predicated region
      $region41: #{unet_forward.41} parent=31 // pred_check
        %p465 = pneg %p150
      $region42: #{unet_forward.41} parent=31 // pred_check_branch
        %467 = sbr.rel (%p465) target = $region44
      $region43: #{unet_forward.41} parent=31 // pred_region
        %s468 = smul.u32 4, %s21
      $region44: #{unet_forward.41} parent=31 // pred_fallthru
        _
    $region32: #{unet_forward.41} parent=5 // pred_fallthru
      _
    %p469 = scmp.le.s32.totalorder 2, %s9
    // Predicated region
    $region45: #{unet_forward.41} parent=5 // pred_check
      %p470 = pneg %p469
    $region46: #{unet_forward.41} parent=5 // pred_check_branch
      %472 = sbr.rel (%p470) target = $region48
    $region47: #{unet_forward.41} parent=5 // pred_region
      %s473 = ssub.s32 %s9, 2
      // Predicated region
      $region49: #{unet_forward.41} parent=47 // pred_check
        %p474 = pneg %p156
      $region50: #{unet_forward.41} parent=47 // pred_check_branch
        %476 = sbr.rel (%p474) target = $region52
      $region51: #{unet_forward.41} parent=47 // pred_region
        %s477 = smul.u32 4, %s25
        %p478 = scmp.lt.s32.totalorder %s24, 3
        %s479 = scalar_select %p478, %s24, 3
        %p480 = scmp.lt.s32.totalorder %s477, 3
        %s481 = scalar_select %p480, %s477, 3
        %p482 = scmp.lt.s32.totalorder %s26, 0
        %s483 = scalar_select %p482, %s26, 0
        %s484 = sadd.s32 %s483, %s481
        %s485 = smul.addr %s479, 4
        %s486 = sadd.s32 %s484, %s485
        %s487 = smul.addr %s486, 8
        %s488 = scalar_lea.vmem %s3, %s487
      $region52: #{unet_forward.41} parent=47 // pred_fallthru
        _
    $region48: #{unet_forward.41} parent=5 // pred_fallthru
      _
  $region6: #{unet_forward.41} parent=0 // loop_footer
    %s13 = sadd.s32 1, %s9
  $region7: #{unet_forward.41} parent=0 // loop_footer_branch
    %8 = sbr.rel target = $region3
  $region8: #{unet_forward.41} parent=0 // loop_exit
    _

// kernel: unet_forward.44
$region0: #{unet_forward.44}
  #allocation0 [shape = 'u32[]', space=smem, size = 0x4, offset = 0x4, fixed_abs, tag = 'smem constant byte address 0x4 - core index']
  #allocation1 [shape = 'u32[72,128]{1,0:T(1,128)}', space=vmem, size = 0x9000, scoped, tag = 'internal scratch']
  #allocation2 [shape = 'f32[128,128]{1,0:T(8,128)}', space=vmem, size = 0x10000, scoped, tag = 'scratch operand']
  %s0 = inlined_call_operand.vmem [shape: bf16[4,128,128], index: 0, kind: input, shape index: {}]
  %s1 = inlined_call_operand.vmem [shape: bf16[4,128,128], index: 1, kind: input, shape index: {}]
  %s2 = inlined_call_operand.vmem [shape: f32[4,1,128], index: 2, kind: input, shape index: {}]
  %s3 = inlined_call_operand.vmem [shape: f32[4,128,128], index: 3, kind: output, shape index: {}]
  %s4 = sld [smem:[#allocation0]]
  $region53: #{unet_forward.44} parent=0
    _
  %s6 = ssub.s32 1, %s4
  %s7 = scalar_select 0, %s6, %s4
  loop: start=0, step=1, limit=6
  $region2: #{unet_forward.44} parent=0 // loop_pre_header
    _
  $region3: #{unet_forward.44} parent=0 // loop_header
    %s9 = sphi 0, %s13
    %p10 = scmp.ge.s32.totalorder %s9, 6
    %s16 = sphi 0, %s42
    %s17 = sphi 0, %s38
    %s18 = sphi 0, %s34
    %s19 = sphi 0, %s30
    %s20 = sphi 0, %s16
    %s21 = sphi 0, %s17
    %s22 = sphi 0, %s18
    %s23 = sphi 0, %s19
    %s24 = sphi 0, %s20
    %s25 = sphi 0, %s21
    %s26 = sphi 0, %s22
    %s27 = sphi 0, %s23
    %s49 = sphi 0, %s51
    %s52 = sphi 0, %s49
    %s53 = sphi 0, %s52
    %s69 = sphi 0, %s53
    %s79 = sphi 0, %s81
    %s82 = sphi 0, %s79
    %s83 = sphi 0, %s82
    %s99 = sphi 0, %s83
    %s107 = sphi 0, %s109
    %s110 = sphi 0, %s107
    %s111 = sphi 0, %s110
    %s127 = sphi 0, %s111
    %s137 = sphi 0, %s139
    %s140 = sphi 0, %s137
    %s141 = sphi 0, %s140
    %s157 = sphi 0, %s141
  $region4: #{unet_forward.44} parent=0 // loop_header_branch
    %12 = sbr.rel (%p10) target = $region8
  $region5: #{unet_forward.44} parent=0 // loop_body
    %s14 = ssub.s32 %s9, 1
    %s15 = ssub.s32 %s9, 2
    %s28 = sadd.s32 1, %s19
    %p29 = scmp.ge.s32.totalorder %s28, 1
    %s30 = scalar_select %p29, 0, %s28
    %s31 = sadd.s32 1, %s18
    %s32 = scalar_select %p29, %s31, %s18
    %p33 = scmp.ge.s32.totalorder %s32, 1
    %s34 = scalar_select %p33, 0, %s32
    %s35 = sadd.s32 1, %s17
    %s36 = scalar_select %p33, %s35, %s17
    %p37 = scmp.ge.s32.totalorder %s36, 1
    %s38 = scalar_select %p37, 0, %s36
    %s39 = sadd.s32 1, %s16
    %s40 = scalar_select %p37, %s39, %s16
    %p41 = scmp.ge.s32.totalorder %s40, 4
    %s42 = scalar_select %p41, 0, %s40
    %s43 = ssub.s32 %s16, %s42
    %s44 = ssub.s32 %s17, %s38
    %s45 = sor.u32 %s43, %s44
    %s46 = ssub.s32 %s19, %s30
    %s47 = sor.u32 %s45, %s46
    %p48 = scmp.eq.s32.totalorder %s47, 0
    %s50 = sadd.s32 %s49, 1
    %s51 = scalar_select %p48, %s49, %s50
    %p54 = pneg %p48
    %p55 = scmp.eq.s32.totalorder %s9, 3
    %p56 = por %p54, %p55
    %p57 = scmp.ne.s32.totalorder %s49, %s52
    %p58 = scmp.eq.s32.totalorder %s9, 0
    %p59 = por %p57, %p58
    %p60 = scmp.ne.s32.totalorder %s49, %s52
    %p61 = scmp.eq.s32.totalorder %s14, 3
    %p62 = por %p60, %p61
    %p63 = scmp.ne.s32.totalorder %s52, %s53
    %p64 = scmp.eq.s32.totalorder %s14, 0
    %p65 = por %p63, %p64
    %p66 = scmp.ne.s32.totalorder %s52, %s53
    %p67 = scmp.eq.s32.totalorder %s15, 3
    %p68 = por %p66, %p67
    %p70 = scmp.ne.s32.totalorder %s53, %s69
    %p71 = scmp.eq.s32.totalorder %s15, 0
    %p72 = por %p70, %p71
    %s73 = ssub.s32 %s16, %s42
    %s74 = ssub.s32 %s19, %s30
    %s75 = sor.u32 %s73, %s74
    %s76 = ssub.s32 %s18, %s34
    %s77 = sor.u32 %s75, %s76
    %p78 = scmp.eq.s32.totalorder %s77, 0
    %s80 = sadd.s32 %s79, 1
    %s81 = scalar_select %p78, %s79, %s80
    %p84 = pneg %p78
    %p85 = scmp.eq.s32.totalorder %s9, 3
    %p86 = por %p84, %p85
    %p87 = scmp.ne.s32.totalorder %s79, %s82
    %p88 = scmp.eq.s32.totalorder %s9, 0
    %p89 = por %p87, %p88
    %p90 = scmp.ne.s32.totalorder %s79, %s82
    %p91 = scmp.eq.s32.totalorder %s14, 3
    %p92 = por %p90, %p91
    %p93 = scmp.ne.s32.totalorder %s82, %s83
    %p94 = scmp.eq.s32.totalorder %s14, 0
    %p95 = por %p93, %p94
    %p96 = scmp.ne.s32.totalorder %s82, %s83
    %p97 = scmp.eq.s32.totalorder %s15, 3
    %p98 = por %p96, %p97
    %p100 = scmp.ne.s32.totalorder %s83, %s99
    %p101 = scmp.eq.s32.totalorder %s15, 0
    %p102 = por %p100, %p101
    %s103 = ssub.s32 %s16, %s42
    %s104 = ssub.s32 %s18, %s34
    %s105 = sor.u32 %s103, %s104
    %p106 = scmp.eq.s32.totalorder %s105, 0
    %s108 = sadd.s32 %s107, 1
    %s109 = scalar_select %p106, %s107, %s108
    %p112 = pneg %p106
    %p113 = scmp.eq.s32.totalorder %s9, 3
    %p114 = por %p112, %p113
    %p115 = scmp.ne.s32.totalorder %s107, %s110
    %p116 = scmp.eq.s32.totalorder %s9, 0
    %p117 = por %p115, %p116
    %p118 = scmp.ne.s32.totalorder %s107, %s110
    %p119 = scmp.eq.s32.totalorder %s14, 3
    %p120 = por %p118, %p119
    %p121 = scmp.ne.s32.totalorder %s110, %s111
    %p122 = scmp.eq.s32.totalorder %s14, 0
    %p123 = por %p121, %p122
    %p124 = scmp.ne.s32.totalorder %s110, %s111
    %p125 = scmp.eq.s32.totalorder %s15, 3
    %p126 = por %p124, %p125
    %p128 = scmp.ne.s32.totalorder %s111, %s127
    %p129 = scmp.eq.s32.totalorder %s15, 0
    %p130 = por %p128, %p129
    %s131 = ssub.s32 %s16, %s42
    %s132 = ssub.s32 %s17, %s38
    %s133 = sor.u32 %s131, %s132
    %s134 = ssub.s32 %s18, %s34
    %s135 = sor.u32 %s133, %s134
    %p136 = scmp.eq.s32.totalorder %s135, 0
    %s138 = sadd.s32 %s137, 1
    %s139 = scalar_select %p136, %s137, %s138
    %p142 = pneg %p136
    %p143 = scmp.eq.s32.totalorder %s9, 3
    %p144 = por %p142, %p143
    %p145 = scmp.ne.s32.totalorder %s137, %s140
    %p146 = scmp.eq.s32.totalorder %s9, 0
    %p147 = por %p145, %p146
    %p148 = scmp.ne.s32.totalorder %s137, %s140
    %p149 = scmp.eq.s32.totalorder %s14, 3
    %p150 = por %p148, %p149
    %p151 = scmp.ne.s32.totalorder %s140, %s141
    %p152 = scmp.eq.s32.totalorder %s14, 0
    %p153 = por %p151, %p152
    %p154 = scmp.ne.s32.totalorder %s140, %s141
    %p155 = scmp.eq.s32.totalorder %s15, 3
    %p156 = por %p154, %p155
    %p158 = scmp.ne.s32.totalorder %s141, %s157
    %p159 = scmp.eq.s32.totalorder %s15, 0
    %p160 = por %p158, %p159
    %p161 = scmp.le.s32.totalorder 1, %s9
    %p162 = scmp.lt.s32.totalorder %s9, 5
    %p163 = pnand %p161, %p162
    %p164 = pneg %p163
    // Predicated region
    $region9: #{unet_forward.44} parent=5 // pred_check
      _
    $region10: #{unet_forward.44} parent=5 // pred_check_branch
      %166 = sbr.rel (%p163) target = $region12
    $region11: #{unet_forward.44} parent=5 // pred_region
      %s167 = ssub.s32 %s9, 1
    $region12: #{unet_forward.44} parent=5 // pred_fallthru
      _
    %p168 = scmp.lt.s32.totalorder %s9, 4
    // Predicated region
    $region13: #{unet_forward.44} parent=5 // pred_check
      %p169 = pneg %p168
    $region14: #{unet_forward.44} parent=5 // pred_check_branch
      %171 = sbr.rel (%p169) target = $region16
    $region15: #{unet_forward.44} parent=5 // pred_region
      // Predicated region
      $region17: #{unet_forward.44} parent=15 // pred_check
        %p172 = pneg %p59
      $region18: #{unet_forward.44} parent=15 // pred_check_branch
        %174 = sbr.rel (%p172) target = $region20
      $region19: #{unet_forward.44} parent=15 // pred_region
        %s175 = smul.u32 16, %s17
        %p176 = scmp.lt.s32.totalorder %s16, 3
        %s177 = scalar_select %p176, %s16, 3
        %p178 = scmp.lt.s32.totalorder %s175, 15
        %s179 = scalar_select %p178, %s175, 15
        %p180 = scmp.lt.s32.totalorder %s19, 0
        %s181 = scalar_select %p180, %s19, 0
        %s182 = sadd.s32 %s181, %s179
        %s183 = smul.addr %s177, 16
        %s184 = sadd.s32 %s182, %s183
        %s185 = smul.addr %s184, 4
        %s186 = scalar_lea.vmem %s0, %s185
        %s187 = smul.u32 16, %s17
      $region20: #{unet_forward.44} parent=15 // pred_fallthru
        _
      // Predicated region
      $region21: #{unet_forward.44} parent=15 // pred_check
        %p188 = pneg %p89
      $region22: #{unet_forward.44} parent=15 // pred_check_branch
        %190 = sbr.rel (%p188) target = $region24
      $region23: #{unet_forward.44} parent=15 // pred_region
        %s191 = smul.u32 16, %s19
        %p192 = scmp.lt.s32.totalorder %s16, 3
        %s193 = scalar_select %p192, %s16, 3
        %p194 = scmp.lt.s32.totalorder %s191, 15
        %s195 = scalar_select %p194, %s191, 15
        %p196 = scmp.lt.s32.totalorder %s18, 0
        %s197 = scalar_select %p196, %s18, 0
        %s198 = sadd.s32 %s197, %s195
        %s199 = smul.addr %s193, 16
        %s200 = sadd.s32 %s198, %s199
        %s201 = smul.addr %s200, 4
        %s202 = scalar_lea.vmem %s1, %s201
        %s203 = smul.u32 16, %s19
      $region24: #{unet_forward.44} parent=15 // pred_fallthru
        _
      // Predicated region
      $region25: #{unet_forward.44} parent=15 // pred_check
        %p204 = pneg %p117
      $region26: #{unet_forward.44} parent=15 // pred_check_branch
        %206 = sbr.rel (%p204) target = $region28
      $region27: #{unet_forward.44} parent=15 // pred_region
        %p207 = scmp.lt.s32.totalorder %s16, 3
        %s208 = scalar_select %p207, %s16, 3
        %p209 = scmp.lt.s32.totalorder %s18, 0
        %s210 = scalar_select %p209, %s18, 0
        %s211 = sadd.s32 %s210, %s208
        %s212 = scalar_lea.vmem %s2, %s211
      $region28: #{unet_forward.44} parent=15 // pred_fallthru
        _
    $region16: #{unet_forward.44} parent=5 // pred_fallthru
      _
    %p213 = scmp.le.s32.totalorder 1, %s9
    %p214 = scmp.lt.s32.totalorder %s9, 5
    %p215 = pnand %p213, %p214
    %p216 = pneg %p215
    // Predicated region
    $region29: #{unet_forward.44} parent=5 // pred_check
      _
    $region30: #{unet_forward.44} parent=5 // pred_check_branch
      %218 = sbr.rel (%p215) target = $region32
    $region31: #{unet_forward.44} parent=5 // pred_region
      %s219 = ssub.s32 %s9, 1
      %s220 = smul.u32 16, %s21
      %p221 = scmp.lt.s32.totalorder %s20, 3
      %s222 = scalar_select %p221, %s20, 3
      %p223 = scmp.lt.s32.totalorder %s220, 15
      %s224 = scalar_select %p223, %s220, 15
      %p225 = scmp.lt.s32.totalorder %s23, 0
      %s226 = scalar_select %p225, %s23, 0
      %s227 = sadd.s32 %s226, %s224
      %s228 = smul.addr %s222, 16
      %s229 = sadd.s32 %s227, %s228
      %s230 = smul.addr %s229, 4
      %s231 = scalar_lea.vmem %s0, %s230
      %p232 = pneg %p65
      %p233 = pneg %p62
      %s234 = smul.u32 16, %s23
      %p235 = scmp.lt.s32.totalorder %s20, 3
      %s236 = scalar_select %p235, %s20, 3
      %p237 = scmp.lt.s32.totalorder %s234, 15
      %s238 = scalar_select %p237, %s234, 15
      %p239 = scmp.lt.s32.totalorder %s22, 0
      %s240 = scalar_select %p239, %s22, 0
      %s241 = sadd.s32 %s240, %s238
      %s242 = smul.addr %s236, 16
      %s243 = sadd.s32 %s241, %s242
      %s244 = smul.addr %s243, 4
      %s245 = scalar_lea.vmem %s1, %s244
      %p246 = pneg %p95
      %p247 = pneg %p92
      %p248 = scmp.lt.s32.totalorder %s20, 3
      %s249 = scalar_select %p248, %s20, 3
      %p250 = scmp.lt.s32.totalorder %s22, 0
      %s251 = scalar_select %p250, %s22, 0
      %s252 = sadd.s32 %s251, %s249
      %s253 = scalar_lea.vmem %s2, %s252
      %p254 = pneg %p123
      %p255 = pneg %p120
      %p256 = pneg %p153
      %p257 = pneg %p150
      %s258 = smul.u32 16, %s21
      %p259 = scmp.lt.s32.totalorder %s20, 3
      %s260 = scalar_select %p259, %s20, 3
      %p261 = scmp.lt.s32.totalorder %s258, 15
      %s262 = scalar_select %p261, %s258, 15
      %p263 = scmp.lt.s32.totalorder %s22, 0
      %s264 = scalar_select %p263, %s22, 0
      %s265 = sadd.s32 %s264, %s262
      %s266 = smul.addr %s260, 16
      %s267 = sadd.s32 %s265, %s266
      %s268 = smul.addr %s267, 8
      %s269 = scalar_lea.vmem %s3, %s268
      %s270 = smul.u32 16, %s21
      %p271 = scmp.lt.s32.totalorder %s20, 3
      %s272 = scalar_select %p271, %s20, 3
      %p273 = scmp.lt.s32.totalorder %s270, 15
      %s274 = scalar_select %p273, %s270, 15
      %p275 = scmp.lt.s32.totalorder %s23, 0
      %s276 = scalar_select %p275, %s23, 0
      %s277 = sadd.s32 %s276, %s274
      %s278 = smul.addr %s272, 16
      %s279 = sadd.s32 %s277, %s278
      %s280 = smul.addr %s279, 4
      %s281 = scalar_lea.vmem %s0, %s280
      %s282 = smul.u32 16, %s21
      %s283 = smul.u32 16, %s23
      %p284 = scmp.lt.s32.totalorder %s20, 3
      %s285 = scalar_select %p284, %s20, 3
      %p286 = scmp.lt.s32.totalorder %s283, 15
      %s287 = scalar_select %p286, %s283, 15
      %p288 = scmp.lt.s32.totalorder %s22, 0
      %s289 = scalar_select %p288, %s22, 0
      %s290 = sadd.s32 %s289, %s287
      %s291 = smul.addr %s285, 16
      %s292 = sadd.s32 %s290, %s291
      %s293 = smul.addr %s292, 4
      %s294 = scalar_lea.vmem %s1, %s293
      %s295 = smul.u32 16, %s23
      %p296 = scmp.lt.s32.totalorder %s20, 3
      %s297 = scalar_select %p296, %s20, 3
      %p298 = scmp.lt.s32.totalorder %s22, 0
      %s299 = scalar_select %p298, %s22, 0
      %s300 = sadd.s32 %s299, %s297
      %s301 = scalar_lea.vmem %s2, %s300
      %s302 = smul.u32 16, %s21
      %p303 = scmp.lt.s32.totalorder %s20, 3
      %s304 = scalar_select %p303, %s20, 3
      %p305 = scmp.lt.s32.totalorder %s302, 15
      %s306 = scalar_select %p305, %s302, 15
      %p307 = scmp.lt.s32.totalorder %s22, 0
      %s308 = scalar_select %p307, %s22, 0
      %s309 = sadd.s32 %s308, %s306
      %s310 = smul.addr %s304, 16
      %s311 = sadd.s32 %s309, %s310
      %s312 = smul.addr %s311, 8
      %s313 = scalar_lea.vmem %s3, %s312
      %s314 = smul.u32 16, %s21
      %p315 = scmp.eq.s32.totalorder %s23, 0
      // Predicated region
      $region33: #{unet_forward.44} parent=31 // pred_check
        %p316 = pneg %p315
      $region34: #{unet_forward.44} parent=31 // pred_check_branch
        %318 = sbr.rel (%p316) target = $region36
      $region35: #{unet_forward.44} parent=31 // pred_region
        %319 = vst [vmem:[#allocation2] sm:$0xff] 0.0
        %320 = vst [vmem:[#allocation2 + $0x8] sm:$0xff] 0.0
        %321 = vst [vmem:[#allocation2 + $0x10] sm:$0xff] 0.0
        %322 = vst [vmem:[#allocation2 + $0x18] sm:$0xff] 0.0
        %323 = vst [vmem:[#allocation2 + $0x20] sm:$0xff] 0.0
        %324 = vst [vmem:[#allocation2 + $0x28] sm:$0xff] 0.0
        %325 = vst [vmem:[#allocation2 + $0x30] sm:$0xff] 0.0
        %326 = vst [vmem:[#allocation2 + $0x38] sm:$0xff] 0.0
        %327 = vst [vmem:[#allocation2 + $0x40] sm:$0xff] 0.0
        %328 = vst [vmem:[#allocation2 + $0x48] sm:$0xff] 0.0
        %329 = vst [vmem:[#allocation2 + $0x50] sm:$0xff] 0.0
        %330 = vst [vmem:[#allocation2 + $0x58] sm:$0xff] 0.0
        %331 = vst [vmem:[#allocation2 + $0x60] sm:$0xff] 0.0
        %332 = vst [vmem:[#allocation2 + $0x68] sm:$0xff] 0.0
        %333 = vst [vmem:[#allocation2 + $0x70] sm:$0xff] 0.0
        %334 = vst [vmem:[#allocation2 + $0x78] sm:$0xff] 0.0
      $region36: #{unet_forward.44} parent=31 // pred_fallthru
        _
      %v335 = vld [vmem:[#allocation2] sm:$0xff]
      %v336 = vld [vmem:[#allocation2 + $0x8] sm:$0xff]
      %v337 = vld [vmem:[#allocation2 + $0x10] sm:$0xff]
      %v338 = vld [vmem:[#allocation2 + $0x18] sm:$0xff]
      %v339 = vld [vmem:[#allocation2 + $0x20] sm:$0xff]
      %v340 = vld [vmem:[#allocation2 + $0x28] sm:$0xff]
      %v341 = vld [vmem:[#allocation2 + $0x30] sm:$0xff]
      %v342 = vld [vmem:[#allocation2 + $0x38] sm:$0xff]
      %v343 = vld [vmem:[#allocation2 + $0x40] sm:$0xff]
      %v344 = vld [vmem:[#allocation2 + $0x48] sm:$0xff]
      %v345 = vld [vmem:[#allocation2 + $0x50] sm:$0xff]
      %v346 = vld [vmem:[#allocation2 + $0x58] sm:$0xff]
      %v347 = vld [vmem:[#allocation2 + $0x60] sm:$0xff]
      %v348 = vld [vmem:[#allocation2 + $0x68] sm:$0xff]
      %v349 = vld [vmem:[#allocation2 + $0x70] sm:$0xff]
      %v350 = vld [vmem:[#allocation2 + $0x78] sm:$0xff]
      %v351 = vld [vmem:[%s281] sm:$0xf]
      %v352 = vld [vmem:[%s281 + $0x4] sm:$0xf]
      %v353 = vld [vmem:[%s281 + $0x8] sm:$0xf]
      %v354 = vld [vmem:[%s281 + $0xc] sm:$0xf]
      %v355 = vld [vmem:[%s281 + $0x10] sm:$0xf]
      %v356 = vld [vmem:[%s281 + $0x14] sm:$0xf]
      %v357 = vld [vmem:[%s281 + $0x18] sm:$0xf]
      %v358 = vld [vmem:[%s281 + $0x1c] sm:$0xf]
      %v359 = vld [vmem:[%s281 + $0x20] sm:$0xf]
      %v360 = vld [vmem:[%s281 + $0x24] sm:$0xf]
      %v361 = vld [vmem:[%s281 + $0x28] sm:$0xf]
      %v362 = vld [vmem:[%s281 + $0x2c] sm:$0xf]
      %v363 = vld [vmem:[%s281 + $0x30] sm:$0xf]
      %v364 = vld [vmem:[%s281 + $0x34] sm:$0xf]
      %v365 = vld [vmem:[%s281 + $0x38] sm:$0xf]
      %v366 = vld [vmem:[%s281 + $0x3c] sm:$0xf]
      %v367 = vld [vmem:[%s294] sm:$0xf]
      %v368 = vld [vmem:[%s294 + $0x4] sm:$0xf]
      %v369 = vld [vmem:[%s294 + $0x8] sm:$0xf]
      %v370 = vld [vmem:[%s294 + $0xc] sm:$0xf]
      %v371 = vld [vmem:[%s294 + $0x10] sm:$0xf]
      %v372 = vld [vmem:[%s294 + $0x14] sm:$0xf]
      %v373 = vld [vmem:[%s294 + $0x18] sm:$0xf]
      %v374 = vld [vmem:[%s294 + $0x1c] sm:$0xf]
      %v375 = vld [vmem:[%s294 + $0x20] sm:$0xf]
      %v376 = vld [vmem:[%s294 + $0x24] sm:$0xf]
      %v377 = vld [vmem:[%s294 + $0x28] sm:$0xf]
      %v378 = vld [vmem:[%s294 + $0x2c] sm:$0xf]
      %v379 = vld [vmem:[%s294 + $0x30] sm:$0xf]
      %v380 = vld [vmem:[%s294 + $0x34] sm:$0xf]
      %v381 = vld [vmem:[%s294 + $0x38] sm:$0xf]
      %v382 = vld [vmem:[%s294 + $0x3c] sm:$0xf]
      %v399 = vunpack.c.l.b16 %v351
      %v400 = vunpack.c.l.b16 %v352
      %v401 = vunpack.c.l.b16 %v353
      %v402 = vunpack.c.l.b16 %v354
      %v403 = vunpack.c.l.b16 %v355
      %v404 = vunpack.c.l.b16 %v356
      %v405 = vunpack.c.l.b16 %v357
      %v406 = vunpack.c.l.b16 %v358
      %v407 = vunpack.c.l.b16 %v359
      %v408 = vunpack.c.l.b16 %v360
      %v409 = vunpack.c.l.b16 %v361
      %v410 = vunpack.c.l.b16 %v362
      %v411 = vunpack.c.l.b16 %v363
      %v412 = vunpack.c.l.b16 %v364
      %v413 = vunpack.c.l.b16 %v365
      %v414 = vunpack.c.l.b16 %v366
      %v415 = vpack.c.b16 %v400, %v399
      %v416 = vpack.c.b16 %v402, %v401
      %v417 = vpack.c.b16 %v404, %v403
      %v418 = vpack.c.b16 %v406, %v405
      %v419 = vpack.c.b16 %v408, %v407
      %v420 = vpack.c.b16 %v410, %v409
      %v421 = vpack.c.b16 %v412, %v411
      %v422 = vpack.c.b16 %v414, %v413
      %v447 = vunpack.c.l.b16 %v367
      %v448 = vunpack.c.l.b16 %v368
      %v449 = vunpack.c.l.b16 %v369
      %v450 = vunpack.c.l.b16 %v370
      %v451 = vunpack.c.l.b16 %v371
      %v452 = vunpack.c.l.b16 %v372
      %v453 = vunpack.c.l.b16 %v373
      %v454 = vunpack.c.l.b16 %v374
      %v455 = vunpack.c.l.b16 %v375
      %v456 = vunpack.c.l.b16 %v376
      %v457 = vunpack.c.l.b16 %v377
      %v458 = vunpack.c.l.b16 %v378
      %v459 = vunpack.c.l.b16 %v379
      %v460 = vunpack.c.l.b16 %v380
      %v461 = vunpack.c.l.b16 %v381
      %v462 = vunpack.c.l.b16 %v382
      %v463 = vpack.c.b16 %v448, %v447
      %v464 = vpack.c.b16 %v450, %v449
      %v465 = vpack.c.b16 %v452, %v451
      %v466 = vpack.c.b16 %v454, %v453
      %v467 = vpack.c.b16 %v456, %v455
      %v468 = vpack.c.b16 %v458, %v457
      %v469 = vpack.c.b16 %v460, %v459
      %v470 = vpack.c.b16 %v462, %v461
      %479 = vmatpush.bf16.msra.mxu0 %v470
      %480 = vmatpush.bf16.msra.mxu0 %v469
      %481 = vmatpush.bf16.msra.mxu0 %v468
      %482 = vmatpush.bf16.msra.mxu0 %v467
      %483 = vmatpush.bf16.msra.mxu0 %v466
      %484 = vmatpush.bf16.msra.mxu0 %v465
      %485 = vmatpush.bf16.msra.mxu0 %v464
      %486 = vmatpush.bf16.msra.mxu0 %v463
      %487 = vmatmul.bf16.gmra.mxu0 %v415
      %v488 = vpop.f32.mrf.mxu0
      %v489 = vadd.f32 0.0, %v488
      %v490 = vpop.f32.mrf.mxu0
      %v491 = vadd.f32 0.0, %v490
      %492 = vmatmul.bf16.gmra.mxu0 %v416
      %v493 = vpop.f32.mrf.mxu0
      %v494 = vadd.f32 0.0, %v493
      %v495 = vpop.f32.mrf.mxu0
      %v496 = vadd.f32 0.0, %v495
      %497 = vmatmul.bf16.gmra.mxu0 %v417
      %v498 = vpop.f32.mrf.mxu0
      %v499 = vadd.f32 0.0, %v498
      %v500 = vpop.f32.mrf.mxu0
      %v501 = vadd.f32 0.0, %v500
      %502 = vmatmul.bf16.gmra.mxu0 %v418
      %v503 = vpop.f32.mrf.mxu0
      %v504 = vadd.f32 0.0, %v503
      %v505 = vpop.f32.mrf.mxu0
      %v506 = vadd.f32 0.0, %v505
      %507 = vmatmul.bf16.gmra.mxu0 %v419
      %v508 = vpop.f32.mrf.mxu0
      %v509 = vadd.f32 0.0, %v508
      %v510 = vpop.f32.mrf.mxu0
      %v511 = vadd.f32 0.0, %v510
      %512 = vmatmul.bf16.gmra.mxu0 %v420
      %v513 = vpop.f32.mrf.mxu0
      %v514 = vadd.f32 0.0, %v513
      %v515 = vpop.f32.mrf.mxu0
      %v516 = vadd.f32 0.0, %v515
      %517 = vmatmul.bf16.gmra.mxu0 %v421
      %v518 = vpop.f32.mrf.mxu0
      %v519 = vadd.f32 0.0, %v518
      %v520 = vpop.f32.mrf.mxu0
      %v521 = vadd.f32 0.0, %v520
      %522 = vmatmul.bf16.gmra.mxu0 %v422
      %v523 = vpop.f32.mrf.mxu0
      %v524 = vadd.f32 0.0, %v523
      %v525 = vpop.f32.mrf.mxu0
      %v526 = vadd.f32 0.0, %v525
      %527 = vdwg.mxu0
      %v528 = vadd.f32 %v335, %v489
      %v529 = vadd.f32 %v336, %v491
      %v530 = vadd.f32 %v337, %v494
      %v531 = vadd.f32 %v338, %v496
      %v532 = vadd.f32 %v339, %v499
      %v533 = vadd.f32 %v340, %v501
      %v534 = vadd.f32 %v341, %v504
      %v535 = vadd.f32 %v342, %v506
      %v536 = vadd.f32 %v343, %v509
      %v537 = vadd.f32 %v344, %v511
      %v538 = vadd.f32 %v345, %v514
      %v539 = vadd.f32 %v346, %v516
      %v540 = vadd.f32 %v347, %v519
      %v541 = vadd.f32 %v348, %v521
      %v542 = vadd.f32 %v349, %v524
      %v543 = vadd.f32 %v350, %v526
      %544 = vst [vmem:[#allocation2] sm:$0xff] %v528
      %545 = vst [vmem:[#allocation2 + $0x8] sm:$0xff] %v529
      %546 = vst [vmem:[#allocation2 + $0x10] sm:$0xff] %v530
      %547 = vst [vmem:[#allocation2 + $0x18] sm:$0xff] %v531
      %548 = vst [vmem:[#allocation2 + $0x20] sm:$0xff] %v532
      %549 = vst [vmem:[#allocation2 + $0x28] sm:$0xff] %v533
      %550 = vst [vmem:[#allocation2 + $0x30] sm:$0xff] %v534
      %551 = vst [vmem:[#allocation2 + $0x38] sm:$0xff] %v535
      %552 = vst [vmem:[#allocation2 + $0x40] sm:$0xff] %v536
      %553 = vst [vmem:[#allocation2 + $0x48] sm:$0xff] %v537
      %554 = vst [vmem:[#allocation2 + $0x50] sm:$0xff] %v538
      %555 = vst [vmem:[#allocation2 + $0x58] sm:$0xff] %v539
      %556 = vst [vmem:[#allocation2 + $0x60] sm:$0xff] %v540
      %557 = vst [vmem:[#allocation2 + $0x68] sm:$0xff] %v541
      %558 = vst [vmem:[#allocation2 + $0x70] sm:$0xff] %v542
      %559 = vst [vmem:[#allocation2 + $0x78] sm:$0xff] %v543
      // Predicated region
      $region37: #{unet_forward.44} parent=31 // pred_check
        %p560 = pneg %p315
      $region38: #{unet_forward.44} parent=31 // pred_check_branch
        %562 = sbr.rel (%p560) target = $region40
      $region39: #{unet_forward.44} parent=31 // pred_region
        %v563 = vld [vmem:[#allocation2] sm:$0xff]
        %v564 = vld [vmem:[#allocation2 + $0x8] sm:$0xff]
        %v565 = vld [vmem:[#allocation2 + $0x10] sm:$0xff]
        %v566 = vld [vmem:[#allocation2 + $0x18] sm:$0xff]
        %v567 = vld [vmem:[#allocation2 + $0x20] sm:$0xff]
        %v568 = vld [vmem:[#allocation2 + $0x28] sm:$0xff]
        %v569 = vld [vmem:[#allocation2 + $0x30] sm:$0xff]
        %v570 = vld [vmem:[#allocation2 + $0x38] sm:$0xff]
        %v571 = vld [vmem:[#allocation2 + $0x40] sm:$0xff]
        %v572 = vld [vmem:[#allocation2 + $0x48] sm:$0xff]
        %v573 = vld [vmem:[#allocation2 + $0x50] sm:$0xff]
        %v574 = vld [vmem:[#allocation2 + $0x58] sm:$0xff]
        %v575 = vld [vmem:[#allocation2 + $0x60] sm:$0xff]
        %v576 = vld [vmem:[#allocation2 + $0x68] sm:$0xff]
        %v577 = vld [vmem:[#allocation2 + $0x70] sm:$0xff]
        %v578 = vld [vmem:[#allocation2 + $0x78] sm:$0xff]
        %v579 = vld [vmem:[%s301] sm:$0x1]
        %v581 = vperm.slane %v579, 0
        %v583 = vadd.f32 %v563, %v581
        %v584 = vadd.f32 %v564, %v581
        %v585 = vadd.f32 %v565, %v581
        %v586 = vadd.f32 %v566, %v581
        %v587 = vadd.f32 %v567, %v581
        %v588 = vadd.f32 %v568, %v581
        %v589 = vadd.f32 %v569, %v581
        %v590 = vadd.f32 %v570, %v581
        %v591 = vadd.f32 %v571, %v581
        %v592 = vadd.f32 %v572, %v581
        %v593 = vadd.f32 %v573, %v581
        %v594 = vadd.f32 %v574, %v581
        %v595 = vadd.f32 %v575, %v581
        %v596 = vadd.f32 %v576, %v581
        %v597 = vadd.f32 %v577, %v581
        %v598 = vadd.f32 %v578, %v581
        %599 = vst [vmem:[%s313] sm:$0xff] %v583
        %600 = vst [vmem:[%s313 + $0x8] sm:$0xff] %v584
        %601 = vst [vmem:[%s313 + $0x10] sm:$0xff] %v585
        %602 = vst [vmem:[%s313 + $0x18] sm:$0xff] %v586
        %603 = vst [vmem:[%s313 + $0x20] sm:$0xff] %v587
        %604 = vst [vmem:[%s313 + $0x28] sm:$0xff] %v588
        %605 = vst [vmem:[%s313 + $0x30] sm:$0xff] %v589
        %606 = vst [vmem:[%s313 + $0x38] sm:$0xff] %v590
        %607 = vst [vmem:[%s313 + $0x40] sm:$0xff] %v591
        %608 = vst [vmem:[%s313 + $0x48] sm:$0xff] %v592
        %609 = vst [vmem:[%s313 + $0x50] sm:$0xff] %v593
        %610 = vst [vmem:[%s313 + $0x58] sm:$0xff] %v594
        %611 = vst [vmem:[%s313 + $0x60] sm:$0xff] %v595
        %612 = vst [vmem:[%s313 + $0x68] sm:$0xff] %v596
        %613 = vst [vmem:[%s313 + $0x70] sm:$0xff] %v597
        %614 = vst [vmem:[%s313 + $0x78] sm:$0xff] %v598
      $region40: #{unet_forward.44} parent=31 // pred_fallthru
        _
      %s615 = smul.u32 16, %s21
      %p616 = scmp.lt.s32.totalorder %s20, 3
      %s617 = scalar_select %p616, %s20, 3
      %p618 = scmp.lt.s32.totalorder %s615, 15
      %s619 = scalar_select %p618, %s615, 15
      %p620 = scmp.lt.s32.totalorder %s22, 0
      %s621 = scalar_select %p620, %s22, 0
      %s622 = sadd.s32 %s621, %s619
      %s623 = smul.addr %s617, 16
      %s624 = sadd.s32 %s622, %s623
      %s625 = smul.addr %s624, 8
      %s626 = scalar_lea.vmem %s3, %s625
      // Predicated region
      $region41: #{unet_forward.44} parent=31 // pred_check
        %p627 = pneg %p150
      $region42: #{unet_forward.44} parent=31 // pred_check_branch
        %629 = sbr.rel (%p627) target = $region44
      $region43: #{unet_forward.44} parent=31 // pred_region
        %s630 = smul.u32 16, %s21
      $region44: #{unet_forward.44} parent=31 // pred_fallthru
        _
    $region32: #{unet_forward.44} parent=5 // pred_fallthru
      _
    %p631 = scmp.le.s32.totalorder 2, %s9
    // Predicated region
    $region45: #{unet_forward.44} parent=5 // pred_check
      %p632 = pneg %p631
    $region46: #{unet_forward.44} parent=5 // pred_check_branch
      %634 = sbr.rel (%p632) target = $region48
    $region47: #{unet_forward.44} parent=5 // pred_region
      %s635 = ssub.s32 %s9, 2
      // Predicated region
      $region49: #{unet_forward.44} parent=47 // pred_check
        %p636 = pneg %p156
      $region50: #{unet_forward.44} parent=47 // pred_check_branch
        %638 = sbr.rel (%p636) target = $region52
      $region51: #{unet_forward.44} parent=47 // pred_region
        %s639 = smul.u32 16, %s25
        %p640 = scmp.lt.s32.totalorder %s24, 3
        %s641 = scalar_select %p640, %s24, 3
        %p642 = scmp.lt.s32.totalorder %s639, 15
        %s643 = scalar_select %p642, %s639, 15
        %p644 = scmp.lt.s32.totalorder %s26, 0
        %s645 = scalar_select %p644, %s26, 0
        %s646 = sadd.s32 %s645, %s643
        %s647 = smul.addr %s641, 16
        %s648 = sadd.s32 %s646, %s647
        %s649 = smul.addr %s648, 8
        %s650 = scalar_lea.vmem %s3, %s649
      $region52: #{unet_forward.44} parent=47 // pred_fallthru
        _
    $region48: #{unet_forward.44} parent=5 // pred_fallthru
      _
  $region6: #{unet_forward.44} parent=0 // loop_footer
    %s13 = sadd.s32 1, %s9
  $region7: #{unet_forward.44} parent=0 // loop_footer_branch
    %8 = sbr.rel target = $region3
  $region8: #{unet_forward.44} parent=0 // loop_exit
    _

// kernel: unet_forward.45
$region0: #{unet_forward.45}
  #allocation0 [shape = 'u32[]', space=smem, size = 0x4, offset = 0x4, fixed_abs, tag = 'smem constant byte address 0x4 - core index']
  #allocation1 [shape = 'u32[72,128]{1,0:T(1,128)}', space=vmem, size = 0x9000, scoped, tag = 'internal scratch']
  %s0 = inlined_call_operand.vmem [shape: f32[512,128], index: 0, kind: input, shape index: {}]
  %s1 = inlined_call_operand.vmem [shape: f32[2,128], index: 1, kind: output, shape index: {}]
  %s2 = sld [smem:[#allocation0]]
  $region18: #{unet_forward.45} parent=0
    _
  %s4 = ssub.s32 1, %s2
  %s5 = scalar_select 0, %s4, %s2
  // Predicated region
  $region2: #{unet_forward.45} parent=0 // pred_check
    _
  $region3: #{unet_forward.45} parent=0 // pred_check_branch
    %7 = sbr.rel (0) target = $region5
  $region4: #{unet_forward.45} parent=0 // pred_region
    _
  $region5: #{unet_forward.45} parent=0 // pred_fallthru
    _
  %p8 = scmp.eq.s32.totalorder 0, 0
  // Predicated region
  $region6: #{unet_forward.45} parent=0 // pred_check
    %p9 = pneg %p8
  $region7: #{unet_forward.45} parent=0 // pred_check_branch
    %11 = sbr.rel (%p9) target = $region9
  $region8: #{unet_forward.45} parent=0 // pred_region
    %12 = vst [vmem:[%s1] sm:$0x3] 0.0
  $region9: #{unet_forward.45} parent=0 // pred_fallthru
    _
  %v13 = vld [vmem:[%s0] sm:$0xff]
  %v14 = vld [vmem:[%s0 + $0x8] sm:$0xff]
  %v15 = vld [vmem:[%s0 + $0x10] sm:$0xff]
  %v16 = vld [vmem:[%s0 + $0x18] sm:$0xff]
  %v17 = vld [vmem:[%s0 + $0x20] sm:$0xff]
  %v18 = vld [vmem:[%s0 + $0x28] sm:$0xff]
  %v19 = vld [vmem:[%s0 + $0x30] sm:$0xff]
  %v20 = vld [vmem:[%s0 + $0x38] sm:$0xff]
  %v21 = vld [vmem:[%s0 + $0x40] sm:$0xff]
  %v22 = vld [vmem:[%s0 + $0x48] sm:$0xff]
  %v23 = vld [vmem:[%s0 + $0x50] sm:$0xff]
  %v24 = vld [vmem:[%s0 + $0x58] sm:$0xff]
  %v25 = vld [vmem:[%s0 + $0x60] sm:$0xff]
  %v26 = vld [vmem:[%s0 + $0x68] sm:$0xff]
  %v27 = vld [vmem:[%s0 + $0x70] sm:$0xff]
  %v28 = vld [vmem:[%s0 + $0x78] sm:$0xff]
  %v29 = vld [vmem:[%s0 + $0x80] sm:$0xff]
  %v30 = vld [vmem:[%s0 + $0x88] sm:$0xff]
  %v31 = vld [vmem:[%s0 + $0x90] sm:$0xff]
  %v32 = vld [vmem:[%s0 + $0x98] sm:$0xff]
  %v33 = vld [vmem:[%s0 + $0xa0] sm:$0xff]
  %v34 = vld [vmem:[%s0 + $0xa8] sm:$0xff]
  %v35 = vld [vmem:[%s0 + $0xb0] sm:$0xff]
  %v36 = vld [vmem:[%s0 + $0xb8] sm:$0xff]
  %v37 = vld [vmem:[%s0 + $0xc0] sm:$0xff]
  %v38 = vld [vmem:[%s0 + $0xc8] sm:$0xff]
  %v39 = vld [vmem:[%s0 + $0xd0] sm:$0xff]
  %v40 = vld [vmem:[%s0 + $0xd8] sm:$0xff]
  %v41 = vld [vmem:[%s0 + $0xe0] sm:$0xff]
  %v42 = vld [vmem:[%s0 + $0xe8] sm:$0xff]
  %v43 = vld [vmem:[%s0 + $0xf0] sm:$0xff]
  %v44 = vld [vmem:[%s0 + $0xf8] sm:$0xff]
  %v45 = vld [vmem:[%s0 + $0x100] sm:$0xff]
  %v46 = vld [vmem:[%s0 + $0x108] sm:$0xff]
  %v47 = vld [vmem:[%s0 + $0x110] sm:$0xff]
  %v48 = vld [vmem:[%s0 + $0x118] sm:$0xff]
  %v49 = vld [vmem:[%s0 + $0x120] sm:$0xff]
  %v50 = vld [vmem:[%s0 + $0x128] sm:$0xff]
  %v51 = vld [vmem:[%s0 + $0x130] sm:$0xff]
  %v52 = vld [vmem:[%s0 + $0x138] sm:$0xff]
  %v53 = vld [vmem:[%s0 + $0x140] sm:$0xff]
  %v54 = vld [vmem:[%s0 + $0x148] sm:$0xff]
  %v55 = vld [vmem:[%s0 + $0x150] sm:$0xff]
  %v56 = vld [vmem:[%s0 + $0x158] sm:$0xff]
  %v57 = vld [vmem:[%s0 + $0x160] sm:$0xff]
  %v58 = vld [vmem:[%s0 + $0x168] sm:$0xff]
  %v59 = vld [vmem:[%s0 + $0x170] sm:$0xff]
  %v60 = vld [vmem:[%s0 + $0x178] sm:$0xff]
  %v61 = vld [vmem:[%s0 + $0x180] sm:$0xff]
  %v62 = vld [vmem:[%s0 + $0x188] sm:$0xff]
  %v63 = vld [vmem:[%s0 + $0x190] sm:$0xff]
  %v64 = vld [vmem:[%s0 + $0x198] sm:$0xff]
  %v65 = vld [vmem:[%s0 + $0x1a0] sm:$0xff]
  %v66 = vld [vmem:[%s0 + $0x1a8] sm:$0xff]
  %v67 = vld [vmem:[%s0 + $0x1b0] sm:$0xff]
  %v68 = vld [vmem:[%s0 + $0x1b8] sm:$0xff]
  %v69 = vld [vmem:[%s0 + $0x1c0] sm:$0xff]
  %v70 = vld [vmem:[%s0 + $0x1c8] sm:$0xff]
  %v71 = vld [vmem:[%s0 + $0x1d0] sm:$0xff]
  %v72 = vld [vmem:[%s0 + $0x1d8] sm:$0xff]
  %v73 = vld [vmem:[%s0 + $0x1e0] sm:$0xff]
  %v74 = vld [vmem:[%s0 + $0x1e8] sm:$0xff]
  %v75 = vld [vmem:[%s0 + $0x1f0] sm:$0xff]
  %v76 = vld [vmem:[%s0 + $0x1f8] sm:$0xff]
  %v77 = vadd.f32 %v13, %v14
  %v78 = vadd.f32 %v77, %v15
  %v79 = vadd.f32 %v78, %v16
  %v80 = vadd.f32 %v79, %v17
  %v81 = vadd.f32 %v80, %v18
  %v82 = vadd.f32 %v81, %v19
  %v83 = vadd.f32 %v82, %v20
  %v84 = vadd.f32 %v83, %v21
  %v85 = vadd.f32 %v84, %v22
  %v86 = vadd.f32 %v85, %v23
  %v87 = vadd.f32 %v86, %v24
  %v88 = vadd.f32 %v87, %v25
  %v89 = vadd.f32 %v88, %v26
  %v90 = vadd.f32 %v89, %v27
  %v91 = vadd.f32 %v90, %v28
  %v92 = vadd.f32 %v91, %v29
  %v93 = vadd.f32 %v92, %v30
  %v94 = vadd.f32 %v93, %v31
  %v95 = vadd.f32 %v94, %v32
  %v96 = vadd.f32 %v95, %v33
  %v97 = vadd.f32 %v96, %v34
  %v98 = vadd.f32 %v97, %v35
  %v99 = vadd.f32 %v98, %v36
  %v100 = vadd.f32 %v99, %v37
  %v101 = vadd.f32 %v100, %v38
  %v102 = vadd.f32 %v101, %v39
  %v103 = vadd.f32 %v102, %v40
  %v104 = vadd.f32 %v103, %v41
  %v105 = vadd.f32 %v104, %v42
  %v106 = vadd.f32 %v105, %v43
  %v107 = vadd.f32 %v106, %v44
  %v108 = vadd.f32 %v107, %v45
  %v109 = vadd.f32 %v108, %v46
  %v110 = vadd.f32 %v109, %v47
  %v111 = vadd.f32 %v110, %v48
  %v112 = vadd.f32 %v111, %v49
  %v113 = vadd.f32 %v112, %v50
  %v114 = vadd.f32 %v113, %v51
  %v115 = vadd.f32 %v114, %v52
  %v116 = vadd.f32 %v115, %v53
  %v117 = vadd.f32 %v116, %v54
  %v118 = vadd.f32 %v117, %v55
  %v119 = vadd.f32 %v118, %v56
  %v120 = vadd.f32 %v119, %v57
  %v121 = vadd.f32 %v120, %v58
  %v122 = vadd.f32 %v121, %v59
  %v123 = vadd.f32 %v122, %v60
  %v124 = vadd.f32 %v123, %v61
  %v125 = vadd.f32 %v124, %v62
  %v126 = vadd.f32 %v125, %v63
  %v127 = vadd.f32 %v126, %v64
  %v128 = vadd.f32 %v127, %v65
  %v129 = vadd.f32 %v128, %v66
  %v130 = vadd.f32 %v129, %v67
  %v131 = vadd.f32 %v130, %v68
  %v132 = vadd.f32 %v131, %v69
  %v133 = vadd.f32 %v132, %v70
  %v134 = vadd.f32 %v133, %v71
  %v135 = vadd.f32 %v134, %v72
  %v136 = vadd.f32 %v135, %v73
  %v137 = vadd.f32 %v136, %v74
  %v138 = vadd.f32 %v137, %v75
  %v139 = vadd.f32 %v138, %v76
  %v140 = vrot.slane %v139, 4
  %v141 = vadd.f32 %v139, %v140
  %v142 = vrot.slane %v141, 2
  %v143 = vadd.f32 %v141, %v142
  %v144 = vrot.slane %v143, 1
  %v145 = vadd.f32 %v143, %v144
  %v146 = vmul.f32 %v13, %v13
  %v147 = vmul.f32 %v14, %v14
  %v148 = vmul.f32 %v15, %v15
  %v149 = vmul.f32 %v16, %v16
  %v150 = vmul.f32 %v17, %v17
  %v151 = vmul.f32 %v18, %v18
  %v152 = vmul.f32 %v19, %v19
  %v153 = vmul.f32 %v20, %v20
  %v154 = vmul.f32 %v21, %v21
  %v155 = vmul.f32 %v22, %v22
  %v156 = vmul.f32 %v23, %v23
  %v157 = vmul.f32 %v24, %v24
  %v158 = vmul.f32 %v25, %v25
  %v159 = vmul.f32 %v26, %v26
  %v160 = vmul.f32 %v27, %v27
  %v161 = vmul.f32 %v28, %v28
  %v162 = vmul.f32 %v29, %v29
  %v163 = vmul.f32 %v30, %v30
  %v164 = vmul.f32 %v31, %v31
  %v165 = vmul.f32 %v32, %v32
  %v166 = vmul.f32 %v33, %v33
  %v167 = vmul.f32 %v34, %v34
  %v168 = vmul.f32 %v35, %v35
  %v169 = vmul.f32 %v36, %v36
  %v170 = vmul.f32 %v37, %v37
  %v171 = vmul.f32 %v38, %v38
  %v172 = vmul.f32 %v39, %v39
  %v173 = vmul.f32 %v40, %v40
  %v174 = vmul.f32 %v41, %v41
  %v175 = vmul.f32 %v42, %v42
  %v176 = vmul.f32 %v43, %v43
  %v177 = vmul.f32 %v44, %v44
  %v178 = vmul.f32 %v45, %v45
  %v179 = vmul.f32 %v46, %v46
  %v180 = vmul.f32 %v47, %v47
  %v181 = vmul.f32 %v48, %v48
  %v182 = vmul.f32 %v49, %v49
  %v183 = vmul.f32 %v50, %v50
  %v184 = vmul.f32 %v51, %v51
  %v185 = vmul.f32 %v52, %v52
  %v186 = vmul.f32 %v53, %v53
  %v187 = vmul.f32 %v54, %v54
  %v188 = vmul.f32 %v55, %v55
  %v189 = vmul.f32 %v56, %v56
  %v190 = vmul.f32 %v57, %v57
  %v191 = vmul.f32 %v58, %v58
  %v192 = vmul.f32 %v59, %v59
  %v193 = vmul.f32 %v60, %v60
  %v194 = vmul.f32 %v61, %v61
  %v195 = vmul.f32 %v62, %v62
  %v196 = vmul.f32 %v63, %v63
  %v197 = vmul.f32 %v64, %v64
  %v198 = vmul.f32 %v65, %v65
  %v199 = vmul.f32 %v66, %v66
  %v200 = vmul.f32 %v67, %v67
  %v201 = vmul.f32 %v68, %v68
  %v202 = vmul.f32 %v69, %v69
  %v203 = vmul.f32 %v70, %v70
  %v204 = vmul.f32 %v71, %v71
  %v205 = vmul.f32 %v72, %v72
  %v206 = vmul.f32 %v73, %v73
  %v207 = vmul.f32 %v74, %v74
  %v208 = vmul.f32 %v75, %v75
  %v209 = vmul.f32 %v76, %v76
  %v210 = vadd.f32 %v146, %v147
  %v211 = vadd.f32 %v210, %v148
  %v212 = vadd.f32 %v211, %v149
  %v213 = vadd.f32 %v212, %v150
  %v214 = vadd.f32 %v213, %v151
  %v215 = vadd.f32 %v214, %v152
  %v216 = vadd.f32 %v215, %v153
  %v217 = vadd.f32 %v216, %v154
  %v218 = vadd.f32 %v217, %v155
  %v219 = vadd.f32 %v218, %v156
  %v220 = vadd.f32 %v219, %v157
  %v221 = vadd.f32 %v220, %v158
  %v222 = vadd.f32 %v221, %v159
  %v223 = vadd.f32 %v222, %v160
  %v224 = vadd.f32 %v223, %v161
  %v225 = vadd.f32 %v224, %v162
  %v226 = vadd.f32 %v225, %v163
  %v227 = vadd.f32 %v226, %v164
  %v228 = vadd.f32 %v227, %v165
  %v229 = vadd.f32 %v228, %v166
  %v230 = vadd.f32 %v229, %v167
  %v231 = vadd.f32 %v230, %v168
  %v232 = vadd.f32 %v231, %v169
  %v233 = vadd.f32 %v232, %v170
  %v234 = vadd.f32 %v233, %v171
  %v235 = vadd.f32 %v234, %v172
  %v236 = vadd.f32 %v235, %v173
  %v237 = vadd.f32 %v236, %v174
  %v238 = vadd.f32 %v237, %v175
  %v239 = vadd.f32 %v238, %v176
  %v240 = vadd.f32 %v239, %v177
  %v241 = vadd.f32 %v240, %v178
  %v242 = vadd.f32 %v241, %v179
  %v243 = vadd.f32 %v242, %v180
  %v244 = vadd.f32 %v243, %v181
  %v245 = vadd.f32 %v244, %v182
  %v246 = vadd.f32 %v245, %v183
  %v247 = vadd.f32 %v246, %v184
  %v248 = vadd.f32 %v247, %v185
  %v249 = vadd.f32 %v248, %v186
  %v250 = vadd.f32 %v249, %v187
  %v251 = vadd.f32 %v250, %v188
  %v252 = vadd.f32 %v251, %v189
  %v253 = vadd.f32 %v252, %v190
  %v254 = vadd.f32 %v253, %v191
  %v255 = vadd.f32 %v254, %v192
  %v256 = vadd.f32 %v255, %v193
  %v257 = vadd.f32 %v256, %v194
  %v258 = vadd.f32 %v257, %v195
  %v259 = vadd.f32 %v258, %v196
  %v260 = vadd.f32 %v259, %v197
  %v261 = vadd.f32 %v260, %v198
  %v262 = vadd.f32 %v261, %v199
  %v263 = vadd.f32 %v262, %v200
  %v264 = vadd.f32 %v263, %v201
  %v265 = vadd.f32 %v264, %v202
  %v266 = vadd.f32 %v265, %v203
  %v267 = vadd.f32 %v266, %v204
  %v268 = vadd.f32 %v267, %v205
  %v269 = vadd.f32 %v268, %v206
  %v270 = vadd.f32 %v269, %v207
  %v271 = vadd.f32 %v270, %v208
  %v272 = vadd.f32 %v271, %v209
  %v273 = vrot.slane %v272, 4
  %v274 = vadd.f32 %v272, %v273
  %v275 = vrot.slane %v274, 2
  %v276 = vadd.f32 %v274, %v275
  %v277 = vrot.slane %v276, 1
  %v278 = vadd.f32 %v276, %v277
  %v279 = vld [vmem:[%s1] sm:$0x3]
  %vm280 = vcmask 1040384
  %v281 = vsel %vm280, %v145, %v278
  %v282 = vadd.f32 %v279, %v281
  %283 = vst [vmem:[%s1] sm:$0x3] %v282
  // Predicated region
  $region10: #{unet_forward.45} parent=0 // pred_check
    _
  $region11: #{unet_forward.45} parent=0 // pred_check_branch
    %285 = sbr.rel (0) target = $region13
  $region12: #{unet_forward.45} parent=0 // pred_region
    _
  $region13: #{unet_forward.45} parent=0 // pred_fallthru
    _
  // Predicated region
  $region14: #{unet_forward.45} parent=0 // pred_check
    _
  $region15: #{unet_forward.45} parent=0 // pred_check_branch
    %287 = sbr.rel (0) target = $region17
  $region16: #{unet_forward.45} parent=0 // pred_region
    _
  $region17: #{unet_forward.45} parent=0 // pred_fallthru
    _

// kernel: unet_forward.46
$region0: #{unet_forward.46}
  #allocation0 [shape = 'u32[]', space=smem, size = 0x4, offset = 0x4, fixed_abs, tag = 'smem constant byte address 0x4 - core index']
  #allocation1 [shape = 'u32[72,128]{1,0:T(1,128)}', space=vmem, size = 0x9000, scoped, tag = 'internal scratch']
  %s0 = inlined_call_operand.vmem [shape: f32[512,128], index: 0, kind: input, shape index: {}]
  %s1 = inlined_call_operand.vmem [shape: f32[1,128], index: 1, kind: input, shape index: {}]
  %s2 = inlined_call_operand.vmem [shape: f32[1,128], index: 2, kind: input, shape index: {}]
  %s3 = inlined_call_operand.vmem [shape: f32[512,128], index: 3, kind: output, shape index: {}]
  %s4 = sld [smem:[#allocation0]]
  $region22: #{unet_forward.46} parent=0
    _
  %s6 = ssub.s32 1, %s4
  %s7 = scalar_select 0, %s6, %s4
  // Predicated region
  $region2: #{unet_forward.46} parent=0 // pred_check
    _
  $region3: #{unet_forward.46} parent=0 // pred_check_branch
    %9 = sbr.rel (0) target = $region5
  $region4: #{unet_forward.46} parent=0 // pred_region
    _
  $region5: #{unet_forward.46} parent=0 // pred_fallthru
    _
  // Predicated region
  $region6: #{unet_forward.46} parent=0 // pred_check
    _
  $region7: #{unet_forward.46} parent=0 // pred_check_branch
    %11 = sbr.rel (0) target = $region9
  $region8: #{unet_forward.46} parent=0 // pred_region
    _
  $region9: #{unet_forward.46} parent=0 // pred_fallthru
    _
  // Predicated region
  $region10: #{unet_forward.46} parent=0 // pred_check
    _
  $region11: #{unet_forward.46} parent=0 // pred_check_branch
    %13 = sbr.rel (0) target = $region13
  $region12: #{unet_forward.46} parent=0 // pred_region
    _
  $region13: #{unet_forward.46} parent=0 // pred_fallthru
    _
  %v14 = vld [vmem:[%s0] sm:$0xff]
  %v15 = vld [vmem:[%s0 + $0x8] sm:$0xff]
  %v16 = vld [vmem:[%s0 + $0x10] sm:$0xff]
  %v17 = vld [vmem:[%s0 + $0x18] sm:$0xff]
  %v18 = vld [vmem:[%s0 + $0x20] sm:$0xff]
  %v19 = vld [vmem:[%s0 + $0x28] sm:$0xff]
  %v20 = vld [vmem:[%s0 + $0x30] sm:$0xff]
  %v21 = vld [vmem:[%s0 + $0x38] sm:$0xff]
  %v22 = vld [vmem:[%s0 + $0x40] sm:$0xff]
  %v23 = vld [vmem:[%s0 + $0x48] sm:$0xff]
  %v24 = vld [vmem:[%s0 + $0x50] sm:$0xff]
  %v25 = vld [vmem:[%s0 + $0x58] sm:$0xff]
  %v26 = vld [vmem:[%s0 + $0x60] sm:$0xff]
  %v27 = vld [vmem:[%s0 + $0x68] sm:$0xff]
  %v28 = vld [vmem:[%s0 + $0x70] sm:$0xff]
  %v29 = vld [vmem:[%s0 + $0x78] sm:$0xff]
  %v30 = vld [vmem:[%s0 + $0x80] sm:$0xff]
  %v31 = vld [vmem:[%s0 + $0x88] sm:$0xff]
  %v32 = vld [vmem:[%s0 + $0x90] sm:$0xff]
  %v33 = vld [vmem:[%s0 + $0x98] sm:$0xff]
  %v34 = vld [vmem:[%s0 + $0xa0] sm:$0xff]
  %v35 = vld [vmem:[%s0 + $0xa8] sm:$0xff]
  %v36 = vld [vmem:[%s0 + $0xb0] sm:$0xff]
  %v37 = vld [vmem:[%s0 + $0xb8] sm:$0xff]
  %v38 = vld [vmem:[%s0 + $0xc0] sm:$0xff]
  %v39 = vld [vmem:[%s0 + $0xc8] sm:$0xff]
  %v40 = vld [vmem:[%s0 + $0xd0] sm:$0xff]
  %v41 = vld [vmem:[%s0 + $0xd8] sm:$0xff]
  %v42 = vld [vmem:[%s0 + $0xe0] sm:$0xff]
  %v43 = vld [vmem:[%s0 + $0xe8] sm:$0xff]
  %v44 = vld [vmem:[%s0 + $0xf0] sm:$0xff]
  %v45 = vld [vmem:[%s0 + $0xf8] sm:$0xff]
  %v46 = vld [vmem:[%s0 + $0x100] sm:$0xff]
  %v47 = vld [vmem:[%s0 + $0x108] sm:$0xff]
  %v48 = vld [vmem:[%s0 + $0x110] sm:$0xff]
  %v49 = vld [vmem:[%s0 + $0x118] sm:$0xff]
  %v50 = vld [vmem:[%s0 + $0x120] sm:$0xff]
  %v51 = vld [vmem:[%s0 + $0x128] sm:$0xff]
  %v52 = vld [vmem:[%s0 + $0x130] sm:$0xff]
  %v53 = vld [vmem:[%s0 + $0x138] sm:$0xff]
  %v54 = vld [vmem:[%s0 + $0x140] sm:$0xff]
  %v55 = vld [vmem:[%s0 + $0x148] sm:$0xff]
  %v56 = vld [vmem:[%s0 + $0x150] sm:$0xff]
  %v57 = vld [vmem:[%s0 + $0x158] sm:$0xff]
  %v58 = vld [vmem:[%s0 + $0x160] sm:$0xff]
  %v59 = vld [vmem:[%s0 + $0x168] sm:$0xff]
  %v60 = vld [vmem:[%s0 + $0x170] sm:$0xff]
  %v61 = vld [vmem:[%s0 + $0x178] sm:$0xff]
  %v62 = vld [vmem:[%s0 + $0x180] sm:$0xff]
  %v63 = vld [vmem:[%s0 + $0x188] sm:$0xff]
  %v64 = vld [vmem:[%s0 + $0x190] sm:$0xff]
  %v65 = vld [vmem:[%s0 + $0x198] sm:$0xff]
  %v66 = vld [vmem:[%s0 + $0x1a0] sm:$0xff]
  %v67 = vld [vmem:[%s0 + $0x1a8] sm:$0xff]
  %v68 = vld [vmem:[%s0 + $0x1b0] sm:$0xff]
  %v69 = vld [vmem:[%s0 + $0x1b8] sm:$0xff]
  %v70 = vld [vmem:[%s0 + $0x1c0] sm:$0xff]
  %v71 = vld [vmem:[%s0 + $0x1c8] sm:$0xff]
  %v72 = vld [vmem:[%s0 + $0x1d0] sm:$0xff]
  %v73 = vld [vmem:[%s0 + $0x1d8] sm:$0xff]
  %v74 = vld [vmem:[%s0 + $0x1e0] sm:$0xff]
  %v75 = vld [vmem:[%s0 + $0x1e8] sm:$0xff]
  %v76 = vld [vmem:[%s0 + $0x1f0] sm:$0xff]
  %v77 = vld [vmem:[%s0 + $0x1f8] sm:$0xff]
  %v78 = vld [vmem:[%s1] sm:$0x1]
  %v80 = vperm.slane %v78, 0
  %v82 = vmul.f32 %v14, %v80
  %v83 = vmul.f32 %v15, %v80
  %v84 = vmul.f32 %v16, %v80
  %v85 = vmul.f32 %v17, %v80
  %v86 = vmul.f32 %v18, %v80
  %v87 = vmul.f32 %v19, %v80
  %v88 = vmul.f32 %v20, %v80
  %v89 = vmul.f32 %v21, %v80
  %v90 = vmul.f32 %v22, %v80
  %v91 = vmul.f32 %v23, %v80
  %v92 = vmul.f32 %v24, %v80
  %v93 = vmul.f32 %v25, %v80
  %v94 = vmul.f32 %v26, %v80
  %v95 = vmul.f32 %v27, %v80
  %v96 = vmul.f32 %v28, %v80
  %v97 = vmul.f32 %v29, %v80
  %v98 = vmul.f32 %v30, %v80
  %v99 = vmul.f32 %v31, %v80
  %v100 = vmul.f32 %v32, %v80
  %v101 = vmul.f32 %v33, %v80
  %v102 = vmul.f32 %v34, %v80
  %v103 = vmul.f32 %v35, %v80
  %v104 = vmul.f32 %v36, %v80
  %v105 = vmul.f32 %v37, %v80
  %v106 = vmul.f32 %v38, %v80
  %v107 = vmul.f32 %v39, %v80
  %v108 = vmul.f32 %v40, %v80
  %v109 = vmul.f32 %v41, %v80
  %v110 = vmul.f32 %v42, %v80
  %v111 = vmul.f32 %v43, %v80
  %v112 = vmul.f32 %v44, %v80
  %v113 = vmul.f32 %v45, %v80
  %v114 = vmul.f32 %v46, %v80
  %v115 = vmul.f32 %v47, %v80
  %v116 = vmul.f32 %v48, %v80
  %v117 = vmul.f32 %v49, %v80
  %v118 = vmul.f32 %v50, %v80
  %v119 = vmul.f32 %v51, %v80
  %v120 = vmul.f32 %v52, %v80
  %v121 = vmul.f32 %v53, %v80
  %v122 = vmul.f32 %v54, %v80
  %v123 = vmul.f32 %v55, %v80
  %v124 = vmul.f32 %v56, %v80
  %v125 = vmul.f32 %v57, %v80
  %v126 = vmul.f32 %v58, %v80
  %v127 = vmul.f32 %v59, %v80
  %v128 = vmul.f32 %v60, %v80
  %v129 = vmul.f32 %v61, %v80
  %v130 = vmul.f32 %v62, %v80
  %v131 = vmul.f32 %v63, %v80
  %v132 = vmul.f32 %v64, %v80
  %v133 = vmul.f32 %v65, %v80
  %v134 = vmul.f32 %v66, %v80
  %v135 = vmul.f32 %v67, %v80
  %v136 = vmul.f32 %v68, %v80
  %v137 = vmul.f32 %v69, %v80
  %v138 = vmul.f32 %v70, %v80
  %v139 = vmul.f32 %v71, %v80
  %v140 = vmul.f32 %v72, %v80
  %v141 = vmul.f32 %v73, %v80
  %v142 = vmul.f32 %v74, %v80
  %v143 = vmul.f32 %v75, %v80
  %v144 = vmul.f32 %v76, %v80
  %v145 = vmul.f32 %v77, %v80
  %v146 = vld [vmem:[%s2] sm:$0x1]
  %v148 = vperm.slane %v146, 0
  %v150 = vadd.f32 %v82, %v148
  %v151 = vadd.f32 %v83, %v148
  %v152 = vadd.f32 %v84, %v148
  %v153 = vadd.f32 %v85, %v148
  %v154 = vadd.f32 %v86, %v148
  %v155 = vadd.f32 %v87, %v148
  %v156 = vadd.f32 %v88, %v148
  %v157 = vadd.f32 %v89, %v148
  %v158 = vadd.f32 %v90, %v148
  %v159 = vadd.f32 %v91, %v148
  %v160 = vadd.f32 %v92, %v148
  %v161 = vadd.f32 %v93, %v148
  %v162 = vadd.f32 %v94, %v148
  %v163 = vadd.f32 %v95, %v148
  %v164 = vadd.f32 %v96, %v148
  %v165 = vadd.f32 %v97, %v148
  %v166 = vadd.f32 %v98, %v148
  %v167 = vadd.f32 %v99, %v148
  %v168 = vadd.f32 %v100, %v148
  %v169 = vadd.f32 %v101, %v148
  %v170 = vadd.f32 %v102, %v148
  %v171 = vadd.f32 %v103, %v148
  %v172 = vadd.f32 %v104, %v148
  %v173 = vadd.f32 %v105, %v148
  %v174 = vadd.f32 %v106, %v148
  %v175 = vadd.f32 %v107, %v148
  %v176 = vadd.f32 %v108, %v148
  %v177 = vadd.f32 %v109, %v148
  %v178 = vadd.f32 %v110, %v148
  %v179 = vadd.f32 %v111, %v148
  %v180 = vadd.f32 %v112, %v148
  %v181 = vadd.f32 %v113, %v148
  %v182 = vadd.f32 %v114, %v148
  %v183 = vadd.f32 %v115, %v148
  %v184 = vadd.f32 %v116, %v148
  %v185 = vadd.f32 %v117, %v148
  %v186 = vadd.f32 %v118, %v148
  %v187 = vadd.f32 %v119, %v148
  %v188 = vadd.f32 %v120, %v148
  %v189 = vadd.f32 %v121, %v148
  %v190 = vadd.f32 %v122, %v148
  %v191 = vadd.f32 %v123, %v148
  %v192 = vadd.f32 %v124, %v148
  %v193 = vadd.f32 %v125, %v148
  %v194 = vadd.f32 %v126, %v148
  %v195 = vadd.f32 %v127, %v148
  %v196 = vadd.f32 %v128, %v148
  %v197 = vadd.f32 %v129, %v148
  %v198 = vadd.f32 %v130, %v148
  %v199 = vadd.f32 %v131, %v148
  %v200 = vadd.f32 %v132, %v148
  %v201 = vadd.f32 %v133, %v148
  %v202 = vadd.f32 %v134, %v148
  %v203 = vadd.f32 %v135, %v148
  %v204 = vadd.f32 %v136, %v148
  %v205 = vadd.f32 %v137, %v148
  %v206 = vadd.f32 %v138, %v148
  %v207 = vadd.f32 %v139, %v148
  %v208 = vadd.f32 %v140, %v148
  %v209 = vadd.f32 %v141, %v148
  %v210 = vadd.f32 %v142, %v148
  %v211 = vadd.f32 %v143, %v148
  %v212 = vadd.f32 %v144, %v148
  %v213 = vadd.f32 %v145, %v148
  %214 = vst [vmem:[%s3] sm:$0xff] %v150
  %215 = vst [vmem:[%s3 + $0x8] sm:$0xff] %v151
  %216 = vst [vmem:[%s3 + $0x10] sm:$0xff] %v152
  %217 = vst [vmem:[%s3 + $0x18] sm:$0xff] %v153
  %218 = vst [vmem:[%s3 + $0x20] sm:$0xff] %v154
  %219 = vst [vmem:[%s3 + $0x28] sm:$0xff] %v155
  %220 = vst [vmem:[%s3 + $0x30] sm:$0xff] %v156
  %221 = vst [vmem:[%s3 + $0x38] sm:$0xff] %v157
  %222 = vst [vmem:[%s3 + $0x40] sm:$0xff] %v158
  %223 = vst [vmem:[%s3 + $0x48] sm:$0xff] %v159
  %224 = vst [vmem:[%s3 + $0x50] sm:$0xff] %v160
  %225 = vst [vmem:[%s3 + $0x58] sm:$0xff] %v161
  %226 = vst [vmem:[%s3 + $0x60] sm:$0xff] %v162
  %227 = vst [vmem:[%s3 + $0x68] sm:$0xff] %v163
  %228 = vst [vmem:[%s3 + $0x70] sm:$0xff] %v164
  %229 = vst [vmem:[%s3 + $0x78] sm:$0xff] %v165
  %230 = vst [vmem:[%s3 + $0x80] sm:$0xff] %v166
  %231 = vst [vmem:[%s3 + $0x88] sm:$0xff] %v167
  %232 = vst [vmem:[%s3 + $0x90] sm:$0xff] %v168
  %233 = vst [vmem:[%s3 + $0x98] sm:$0xff] %v169
  %234 = vst [vmem:[%s3 + $0xa0] sm:$0xff] %v170
  %235 = vst [vmem:[%s3 + $0xa8] sm:$0xff] %v171
  %236 = vst [vmem:[%s3 + $0xb0] sm:$0xff] %v172
  %237 = vst [vmem:[%s3 + $0xb8] sm:$0xff] %v173
  %238 = vst [vmem:[%s3 + $0xc0] sm:$0xff] %v174
  %239 = vst [vmem:[%s3 + $0xc8] sm:$0xff] %v175
  %240 = vst [vmem:[%s3 + $0xd0] sm:$0xff] %v176
  %241 = vst [vmem:[%s3 + $0xd8] sm:$0xff] %v177
  %242 = vst [vmem:[%s3 + $0xe0] sm:$0xff] %v178
  %243 = vst [vmem:[%s3 + $0xe8] sm:$0xff] %v179
  %244 = vst [vmem:[%s3 + $0xf0] sm:$0xff] %v180
  %245 = vst [vmem:[%s3 + $0xf8] sm:$0xff] %v181
  %246 = vst [vmem:[%s3 + $0x100] sm:$0xff] %v182
  %247 = vst [vmem:[%s3 + $0x108] sm:$0xff] %v183
  %248 = vst [vmem:[%s3 + $0x110] sm:$0xff] %v184
  %249 = vst [vmem:[%s3 + $0x118] sm:$0xff] %v185
  %250 = vst [vmem:[%s3 + $0x120] sm:$0xff] %v186
  %251 = vst [vmem:[%s3 + $0x128] sm:$0xff] %v187
  %252 = vst [vmem:[%s3 + $0x130] sm:$0xff] %v188
  %253 = vst [vmem:[%s3 + $0x138] sm:$0xff] %v189
  %254 = vst [vmem:[%s3 + $0x140] sm:$0xff] %v190
  %255 = vst [vmem:[%s3 + $0x148] sm:$0xff] %v191
  %256 = vst [vmem:[%s3 + $0x150] sm:$0xff] %v192
  %257 = vst [vmem:[%s3 + $0x158] sm:$0xff] %v193
  %258 = vst [vmem:[%s3 + $0x160] sm:$0xff] %v194
  %259 = vst [vmem:[%s3 + $0x168] sm:$0xff] %v195
  %260 = vst [vmem:[%s3 + $0x170] sm:$0xff] %v196
  %261 = vst [vmem:[%s3 + $0x178] sm:$0xff] %v197
  %262 = vst [vmem:[%s3 + $0x180] sm:$0xff] %v198
  %263 = vst [vmem:[%s3 + $0x188] sm:$0xff] %v199
  %264 = vst [vmem:[%s3 + $0x190] sm:$0xff] %v200
  %265 = vst [vmem:[%s3 + $0x198] sm:$0xff] %v201
  %266 = vst [vmem:[%s3 + $0x1a0] sm:$0xff] %v202
  %267 = vst [vmem:[%s3 + $0x1a8] sm:$0xff] %v203
  %268 = vst [vmem:[%s3 + $0x1b0] sm:$0xff] %v204
  %269 = vst [vmem:[%s3 + $0x1b8] sm:$0xff] %v205
  %270 = vst [vmem:[%s3 + $0x1c0] sm:$0xff] %v206
  %271 = vst [vmem:[%s3 + $0x1c8] sm:$0xff] %v207
  %272 = vst [vmem:[%s3 + $0x1d0] sm:$0xff] %v208
  %273 = vst [vmem:[%s3 + $0x1d8] sm:$0xff] %v209
  %274 = vst [vmem:[%s3 + $0x1e0] sm:$0xff] %v210
  %275 = vst [vmem:[%s3 + $0x1e8] sm:$0xff] %v211
  %276 = vst [vmem:[%s3 + $0x1f0] sm:$0xff] %v212
  %277 = vst [vmem:[%s3 + $0x1f8] sm:$0xff] %v213
  // Predicated region
  $region14: #{unet_forward.46} parent=0 // pred_check
    _
  $region15: #{unet_forward.46} parent=0 // pred_check_branch
    %279 = sbr.rel (0) target = $region17
  $region16: #{unet_forward.46} parent=0 // pred_region
    _
  $region17: #{unet_forward.46} parent=0 // pred_fallthru
    _
  // Predicated region
  $region18: #{unet_forward.46} parent=0 // pred_check
    _
  $region19: #{unet_forward.46} parent=0 // pred_check_branch
    %281 = sbr.rel (0) target = $region21
  $region20: #{unet_forward.46} parent=0 // pred_region
    _
  $region21: #{unet_forward.46} parent=0 // pred_fallthru
    _

// kernel: unet_forward.47
$region0: #{unet_forward.47}
  #allocation0 [shape = 'u32[]', space=smem, size = 0x4, offset = 0x4, fixed_abs, tag = 'smem constant byte address 0x4 - core index']
  #allocation1 [shape = 'u32[72,128]{1,0:T(1,128)}', space=vmem, size = 0x9000, scoped, tag = 'internal scratch']
  #allocation2 [shape = 'f32[512,128]{1,0:T(8,128)}', space=vmem, size = 0x40000, scoped, tag = 'scratch operand']
  %s0 = inlined_call_operand.vmem [shape: bf16[4,512,128], index: 0, kind: input, shape index: {}]
  %s1 = inlined_call_operand.vmem [shape: bf16[4,128,128], index: 1, kind: input, shape index: {}]
  %s2 = inlined_call_operand.vmem [shape: f32[4,1,128], index: 2, kind: input, shape index: {}]
  %s3 = inlined_call_operand.vmem [shape: f32[4,512,128], index: 3, kind: output, shape index: {}]
  %s4 = sld [smem:[#allocation0]]
  $region53: #{unet_forward.47} parent=0
    _
  %s6 = ssub.s32 1, %s4
  %s7 = scalar_select 0, %s6, %s4
  loop: start=0, step=1, limit=6
  $region2: #{unet_forward.47} parent=0 // loop_pre_header
    _
  $region3: #{unet_forward.47} parent=0 // loop_header
    %s9 = sphi 0, %s13
    %p10 = scmp.ge.s32.totalorder %s9, 6
    %s16 = sphi 0, %s42
    %s17 = sphi 0, %s38
    %s18 = sphi 0, %s34
    %s19 = sphi 0, %s30
    %s20 = sphi 0, %s16
    %s21 = sphi 0, %s17
    %s22 = sphi 0, %s18
    %s23 = sphi 0, %s19
    %s24 = sphi 0, %s20
    %s25 = sphi 0, %s21
    %s26 = sphi 0, %s22
    %s27 = sphi 0, %s23
    %s49 = sphi 0, %s51
    %s52 = sphi 0, %s49
    %s53 = sphi 0, %s52
    %s69 = sphi 0, %s53
    %s79 = sphi 0, %s81
    %s82 = sphi 0, %s79
    %s83 = sphi 0, %s82
    %s99 = sphi 0, %s83
    %s107 = sphi 0, %s109
    %s110 = sphi 0, %s107
    %s111 = sphi 0, %s110
    %s127 = sphi 0, %s111
    %s137 = sphi 0, %s139
    %s140 = sphi 0, %s137
    %s141 = sphi 0, %s140
    %s157 = sphi 0, %s141
  $region4: #{unet_forward.47} parent=0 // loop_header_branch
    %12 = sbr.rel (%p10) target = $region8
  $region5: #{unet_forward.47} parent=0 // loop_body
    %s14 = ssub.s32 %s9, 1
    %s15 = ssub.s32 %s9, 2
    %s28 = sadd.s32 1, %s19
    %p29 = scmp.ge.s32.totalorder %s28, 1
    %s30 = scalar_select %p29, 0, %s28
    %s31 = sadd.s32 1, %s18
    %s32 = scalar_select %p29, %s31, %s18
    %p33 = scmp.ge.s32.totalorder %s32, 1
    %s34 = scalar_select %p33, 0, %s32
    %s35 = sadd.s32 1, %s17
    %s36 = scalar_select %p33, %s35, %s17
    %p37 = scmp.ge.s32.totalorder %s36, 1
    %s38 = scalar_select %p37, 0, %s36
    %s39 = sadd.s32 1, %s16
    %s40 = scalar_select %p37, %s39, %s16
    %p41 = scmp.ge.s32.totalorder %s40, 4
    %s42 = scalar_select %p41, 0, %s40
    %s43 = ssub.s32 %s16, %s42
    %s44 = ssub.s32 %s17, %s38
    %s45 = sor.u32 %s43, %s44
    %s46 = ssub.s32 %s19, %s30
    %s47 = sor.u32 %s45, %s46
    %p48 = scmp.eq.s32.totalorder %s47, 0
    %s50 = sadd.s32 %s49, 1
    %s51 = scalar_select %p48, %s49, %s50
    %p54 = pneg %p48
    %p55 = scmp.eq.s32.totalorder %s9, 3
    %p56 = por %p54, %p55
    %p57 = scmp.ne.s32.totalorder %s49, %s52
    %p58 = scmp.eq.s32.totalorder %s9, 0
    %p59 = por %p57, %p58
    %p60 = scmp.ne.s32.totalorder %s49, %s52
    %p61 = scmp.eq.s32.totalorder %s14, 3
    %p62 = por %p60, %p61
    %p63 = scmp.ne.s32.totalorder %s52, %s53
    %p64 = scmp.eq.s32.totalorder %s14, 0
    %p65 = por %p63, %p64
    %p66 = scmp.ne.s32.totalorder %s52, %s53
    %p67 = scmp.eq.s32.totalorder %s15, 3
    %p68 = por %p66, %p67
    %p70 = scmp.ne.s32.totalorder %s53, %s69
    %p71 = scmp.eq.s32.totalorder %s15, 0
    %p72 = por %p70, %p71
    %s73 = ssub.s32 %s16, %s42
    %s74 = ssub.s32 %s19, %s30
    %s75 = sor.u32 %s73, %s74
    %s76 = ssub.s32 %s18, %s34
    %s77 = sor.u32 %s75, %s76
    %p78 = scmp.eq.s32.totalorder %s77, 0
    %s80 = sadd.s32 %s79, 1
    %s81 = scalar_select %p78, %s79, %s80
    %p84 = pneg %p78
    %p85 = scmp.eq.s32.totalorder %s9, 3
    %p86 = por %p84, %p85
    %p87 = scmp.ne.s32.totalorder %s79, %s82
    %p88 = scmp.eq.s32.totalorder %s9, 0
    %p89 = por %p87, %p88
    %p90 = scmp.ne.s32.totalorder %s79, %s82
    %p91 = scmp.eq.s32.totalorder %s14, 3
    %p92 = por %p90, %p91
    %p93 = scmp.ne.s32.totalorder %s82, %s83
    %p94 = scmp.eq.s32.totalorder %s14, 0
    %p95 = por %p93, %p94
    %p96 = scmp.ne.s32.totalorder %s82, %s83
    %p97 = scmp.eq.s32.totalorder %s15, 3
    %p98 = por %p96, %p97
    %p100 = scmp.ne.s32.totalorder %s83, %s99
    %p101 = scmp.eq.s32.totalorder %s15, 0
    %p102 = por %p100, %p101
    %s103 = ssub.s32 %s16, %s42
    %s104 = ssub.s32 %s18, %s34
    %s105 = sor.u32 %s103, %s104
    %p106 = scmp.eq.s32.totalorder %s105, 0
    %s108 = sadd.s32 %s107, 1
    %s109 = scalar_select %p106, %s107, %s108
    %p112 = pneg %p106
    %p113 = scmp.eq.s32.totalorder %s9, 3
    %p114 = por %p112, %p113
    %p115 = scmp.ne.s32.totalorder %s107, %s110
    %p116 = scmp.eq.s32.totalorder %s9, 0
    %p117 = por %p115, %p116
    %p118 = scmp.ne.s32.totalorder %s107, %s110
    %p119 = scmp.eq.s32.totalorder %s14, 3
    %p120 = por %p118, %p119
    %p121 = scmp.ne.s32.totalorder %s110, %s111
    %p122 = scmp.eq.s32.totalorder %s14, 0
    %p123 = por %p121, %p122
    %p124 = scmp.ne.s32.totalorder %s110, %s111
    %p125 = scmp.eq.s32.totalorder %s15, 3
    %p126 = por %p124, %p125
    %p128 = scmp.ne.s32.totalorder %s111, %s127
    %p129 = scmp.eq.s32.totalorder %s15, 0
    %p130 = por %p128, %p129
    %s131 = ssub.s32 %s16, %s42
    %s132 = ssub.s32 %s17, %s38
    %s133 = sor.u32 %s131, %s132
    %s134 = ssub.s32 %s18, %s34
    %s135 = sor.u32 %s133, %s134
    %p136 = scmp.eq.s32.totalorder %s135, 0
    %s138 = sadd.s32 %s137, 1
    %s139 = scalar_select %p136, %s137, %s138
    %p142 = pneg %p136
    %p143 = scmp.eq.s32.totalorder %s9, 3
    %p144 = por %p142, %p143
    %p145 = scmp.ne.s32.totalorder %s137, %s140
    %p146 = scmp.eq.s32.totalorder %s9, 0
    %p147 = por %p145, %p146
    %p148 = scmp.ne.s32.totalorder %s137, %s140
    %p149 = scmp.eq.s32.totalorder %s14, 3
    %p150 = por %p148, %p149
    %p151 = scmp.ne.s32.totalorder %s140, %s141
    %p152 = scmp.eq.s32.totalorder %s14, 0
    %p153 = por %p151, %p152
    %p154 = scmp.ne.s32.totalorder %s140, %s141
    %p155 = scmp.eq.s32.totalorder %s15, 3
    %p156 = por %p154, %p155
    %p158 = scmp.ne.s32.totalorder %s141, %s157
    %p159 = scmp.eq.s32.totalorder %s15, 0
    %p160 = por %p158, %p159
    %p161 = scmp.le.s32.totalorder 1, %s9
    %p162 = scmp.lt.s32.totalorder %s9, 5
    %p163 = pnand %p161, %p162
    %p164 = pneg %p163
    // Predicated region
    $region9: #{unet_forward.47} parent=5 // pred_check
      _
    $region10: #{unet_forward.47} parent=5 // pred_check_branch
      %166 = sbr.rel (%p163) target = $region12
    $region11: #{unet_forward.47} parent=5 // pred_region
      %s167 = ssub.s32 %s9, 1
    $region12: #{unet_forward.47} parent=5 // pred_fallthru
      _
    %p168 = scmp.lt.s32.totalorder %s9, 4
    // Predicated region
    $region13: #{unet_forward.47} parent=5 // pred_check
      %p169 = pneg %p168
    $region14: #{unet_forward.47} parent=5 // pred_check_branch
      %171 = sbr.rel (%p169) target = $region16
    $region15: #{unet_forward.47} parent=5 // pred_region
      // Predicated region
      $region17: #{unet_forward.47} parent=15 // pred_check
        %p172 = pneg %p59
      $region18: #{unet_forward.47} parent=15 // pred_check_branch
        %174 = sbr.rel (%p172) target = $region20
      $region19: #{unet_forward.47} parent=15 // pred_region
        %s175 = smul.u32 64, %s17
        %p176 = scmp.lt.s32.totalorder %s16, 3
        %s177 = scalar_select %p176, %s16, 3
        %p178 = scmp.lt.s32.totalorder %s175, 63
        %s179 = scalar_select %p178, %s175, 63
        %p180 = scmp.lt.s32.totalorder %s19, 0
        %s181 = scalar_select %p180, %s19, 0
        %s182 = sadd.s32 %s181, %s179
        %s183 = smul.addr %s177, 64
        %s184 = sadd.s32 %s182, %s183
        %s185 = smul.addr %s184, 4
        %s186 = scalar_lea.vmem %s0, %s185
        %s187 = smul.u32 64, %s17
      $region20: #{unet_forward.47} parent=15 // pred_fallthru
        _
      // Predicated region
      $region21: #{unet_forward.47} parent=15 // pred_check
        %p188 = pneg %p89
      $region22: #{unet_forward.47} parent=15 // pred_check_branch
        %190 = sbr.rel (%p188) target = $region24
      $region23: #{unet_forward.47} parent=15 // pred_region
        %s191 = smul.u32 16, %s19
        %p192 = scmp.lt.s32.totalorder %s16, 3
        %s193 = scalar_select %p192, %s16, 3
        %p194 = scmp.lt.s32.totalorder %s191, 15
        %s195 = scalar_select %p194, %s191, 15
        %p196 = scmp.lt.s32.totalorder %s18, 0
        %s197 = scalar_select %p196, %s18, 0
        %s198 = sadd.s32 %s197, %s195
        %s199 = smul.addr %s193, 16
        %s200 = sadd.s32 %s198, %s199
        %s201 = smul.addr %s200, 4
        %s202 = scalar_lea.vmem %s1, %s201
        %s203 = smul.u32 16, %s19
      $region24: #{unet_forward.47} parent=15 // pred_fallthru
        _
      // Predicated region
      $region25: #{unet_forward.47} parent=15 // pred_check
        %p204 = pneg %p117
      $region26: #{unet_forward.47} parent=15 // pred_check_branch
        %206 = sbr.rel (%p204) target = $region28
      $region27: #{unet_forward.47} parent=15 // pred_region
        %p207 = scmp.lt.s32.totalorder %s16, 3
        %s208 = scalar_select %p207, %s16, 3
        %p209 = scmp.lt.s32.totalorder %s18, 0
        %s210 = scalar_select %p209, %s18, 0
        %s211 = sadd.s32 %s210, %s208
        %s212 = scalar_lea.vmem %s2, %s211
      $region28: #{unet_forward.47} parent=15 // pred_fallthru
        _
    $region16: #{unet_forward.47} parent=5 // pred_fallthru
      _
    %p213 = scmp.le.s32.totalorder 1, %s9
    %p214 = scmp.lt.s32.totalorder %s9, 5
    %p215 = pnand %p213, %p214
    %p216 = pneg %p215
    // Predicated region
    $region29: #{unet_forward.47} parent=5 // pred_check
      _
    $region30: #{unet_forward.47} parent=5 // pred_check_branch
      %218 = sbr.rel (%p215) target = $region32
    $region31: #{unet_forward.47} parent=5 // pred_region
      %s219 = ssub.s32 %s9, 1
      %s220 = smul.u32 64, %s21
      %p221 = scmp.lt.s32.totalorder %s20, 3
      %s222 = scalar_select %p221, %s20, 3
      %p223 = scmp.lt.s32.totalorder %s220, 63
      %s224 = scalar_select %p223, %s220, 63
      %p225 = scmp.lt.s32.totalorder %s23, 0
      %s226 = scalar_select %p225, %s23, 0
      %s227 = sadd.s32 %s226, %s224
      %s228 = smul.addr %s222, 64
      %s229 = sadd.s32 %s227, %s228
      %s230 = smul.addr %s229, 4
      %s231 = scalar_lea.vmem %s0, %s230
      %p232 = pneg %p65
      %p233 = pneg %p62
      %s234 = smul.u32 16, %s23
      %p235 = scmp.lt.s32.totalorder %s20, 3
      %s236 = scalar_select %p235, %s20, 3
      %p237 = scmp.lt.s32.totalorder %s234, 15
      %s238 = scalar_select %p237, %s234, 15
      %p239 = scmp.lt.s32.totalorder %s22, 0
      %s240 = scalar_select %p239, %s22, 0
      %s241 = sadd.s32 %s240, %s238
      %s242 = smul.addr %s236, 16
      %s243 = sadd.s32 %s241, %s242
      %s244 = smul.addr %s243, 4
      %s245 = scalar_lea.vmem %s1, %s244
      %p246 = pneg %p95
      %p247 = pneg %p92
      %p248 = scmp.lt.s32.totalorder %s20, 3
      %s249 = scalar_select %p248, %s20, 3
      %p250 = scmp.lt.s32.totalorder %s22, 0
      %s251 = scalar_select %p250, %s22, 0
      %s252 = sadd.s32 %s251, %s249
      %s253 = scalar_lea.vmem %s2, %s252
      %p254 = pneg %p123
      %p255 = pneg %p120
      %p256 = pneg %p153
      %p257 = pneg %p150
      %s258 = smul.u32 64, %s21
      %p259 = scmp.lt.s32.totalorder %s20, 3
      %s260 = scalar_select %p259, %s20, 3
      %p261 = scmp.lt.s32.totalorder %s258, 63
      %s262 = scalar_select %p261, %s258, 63
      %p263 = scmp.lt.s32.totalorder %s22, 0
      %s264 = scalar_select %p263, %s22, 0
      %s265 = sadd.s32 %s264, %s262
      %s266 = smul.addr %s260, 64
      %s267 = sadd.s32 %s265, %s266
      %s268 = smul.addr %s267, 8
      %s269 = scalar_lea.vmem %s3, %s268
      %s270 = smul.u32 64, %s21
      %p271 = scmp.lt.s32.totalorder %s20, 3
      %s272 = scalar_select %p271, %s20, 3
      %p273 = scmp.lt.s32.totalorder %s270, 63
      %s274 = scalar_select %p273, %s270, 63
      %p275 = scmp.lt.s32.totalorder %s23, 0
      %s276 = scalar_select %p275, %s23, 0
      %s277 = sadd.s32 %s276, %s274
      %s278 = smul.addr %s272, 64
      %s279 = sadd.s32 %s277, %s278
      %s280 = smul.addr %s279, 4
      %s281 = scalar_lea.vmem %s0, %s280
      %s282 = smul.u32 64, %s21
      %s283 = smul.u32 16, %s23
      %p284 = scmp.lt.s32.totalorder %s20, 3
      %s285 = scalar_select %p284, %s20, 3
      %p286 = scmp.lt.s32.totalorder %s283, 15
      %s287 = scalar_select %p286, %s283, 15
      %p288 = scmp.lt.s32.totalorder %s22, 0
      %s289 = scalar_select %p288, %s22, 0
      %s290 = sadd.s32 %s289, %s287
      %s291 = smul.addr %s285, 16
      %s292 = sadd.s32 %s290, %s291
      %s293 = smul.addr %s292, 4
      %s294 = scalar_lea.vmem %s1, %s293
      %s295 = smul.u32 16, %s23
      %p296 = scmp.lt.s32.totalorder %s20, 3
      %s297 = scalar_select %p296, %s20, 3
      %p298 = scmp.lt.s32.totalorder %s22, 0
      %s299 = scalar_select %p298, %s22, 0
      %s300 = sadd.s32 %s299, %s297
      %s301 = scalar_lea.vmem %s2, %s300
      %s302 = smul.u32 64, %s21
      %p303 = scmp.lt.s32.totalorder %s20, 3
      %s304 = scalar_select %p303, %s20, 3
      %p305 = scmp.lt.s32.totalorder %s302, 63
      %s306 = scalar_select %p305, %s302, 63
      %p307 = scmp.lt.s32.totalorder %s22, 0
      %s308 = scalar_select %p307, %s22, 0
      %s309 = sadd.s32 %s308, %s306
      %s310 = smul.addr %s304, 64
      %s311 = sadd.s32 %s309, %s310
      %s312 = smul.addr %s311, 8
      %s313 = scalar_lea.vmem %s3, %s312
      %s314 = smul.u32 64, %s21
      %p315 = scmp.eq.s32.totalorder %s23, 0
      // Predicated region
      $region33: #{unet_forward.47} parent=31 // pred_check
        %p316 = pneg %p315
      $region34: #{unet_forward.47} parent=31 // pred_check_branch
        %318 = sbr.rel (%p316) target = $region36
      $region35: #{unet_forward.47} parent=31 // pred_region
        %319 = vst [vmem:[#allocation2] sm:$0xff] 0.0
        %320 = vst [vmem:[#allocation2 + $0x8] sm:$0xff] 0.0
        %321 = vst [vmem:[#allocation2 + $0x10] sm:$0xff] 0.0
        %322 = vst [vmem:[#allocation2 + $0x18] sm:$0xff] 0.0
        %323 = vst [vmem:[#allocation2 + $0x20] sm:$0xff] 0.0
        %324 = vst [vmem:[#allocation2 + $0x28] sm:$0xff] 0.0
        %325 = vst [vmem:[#allocation2 + $0x30] sm:$0xff] 0.0
        %326 = vst [vmem:[#allocation2 + $0x38] sm:$0xff] 0.0
        %327 = vst [vmem:[#allocation2 + $0x40] sm:$0xff] 0.0
        %328 = vst [vmem:[#allocation2 + $0x48] sm:$0xff] 0.0
        %329 = vst [vmem:[#allocation2 + $0x50] sm:$0xff] 0.0
        %330 = vst [vmem:[#allocation2 + $0x58] sm:$0xff] 0.0
        %331 = vst [vmem:[#allocation2 + $0x60] sm:$0xff] 0.0
        %332 = vst [vmem:[#allocation2 + $0x68] sm:$0xff] 0.0
        %333 = vst [vmem:[#allocation2 + $0x70] sm:$0xff] 0.0
        %334 = vst [vmem:[#allocation2 + $0x78] sm:$0xff] 0.0
        %335 = vst [vmem:[#allocation2 + $0x80] sm:$0xff] 0.0
        %336 = vst [vmem:[#allocation2 + $0x88] sm:$0xff] 0.0
        %337 = vst [vmem:[#allocation2 + $0x90] sm:$0xff] 0.0
        %338 = vst [vmem:[#allocation2 + $0x98] sm:$0xff] 0.0
        %339 = vst [vmem:[#allocation2 + $0xa0] sm:$0xff] 0.0
        %340 = vst [vmem:[#allocation2 + $0xa8] sm:$0xff] 0.0
        %341 = vst [vmem:[#allocation2 + $0xb0] sm:$0xff] 0.0
        %342 = vst [vmem:[#allocation2 + $0xb8] sm:$0xff] 0.0
        %343 = vst [vmem:[#allocation2 + $0xc0] sm:$0xff] 0.0
        %344 = vst [vmem:[#allocation2 + $0xc8] sm:$0xff] 0.0
        %345 = vst [vmem:[#allocation2 + $0xd0] sm:$0xff] 0.0
        %346 = vst [vmem:[#allocation2 + $0xd8] sm:$0xff] 0.0
        %347 = vst [vmem:[#allocation2 + $0xe0] sm:$0xff] 0.0
        %348 = vst [vmem:[#allocation2 + $0xe8] sm:$0xff] 0.0
        %349 = vst [vmem:[#allocation2 + $0xf0] sm:$0xff] 0.0
        %350 = vst [vmem:[#allocation2 + $0xf8] sm:$0xff] 0.0
        %351 = vst [vmem:[#allocation2 + $0x100] sm:$0xff] 0.0
        %352 = vst [vmem:[#allocation2 + $0x108] sm:$0xff] 0.0
        %353 = vst [vmem:[#allocation2 + $0x110] sm:$0xff] 0.0
        %354 = vst [vmem:[#allocation2 + $0x118] sm:$0xff] 0.0
        %355 = vst [vmem:[#allocation2 + $0x120] sm:$0xff] 0.0
        %356 = vst [vmem:[#allocation2 + $0x128] sm:$0xff] 0.0
        %357 = vst [vmem:[#allocation2 + $0x130] sm:$0xff] 0.0
        %358 = vst [vmem:[#allocation2 + $0x138] sm:$0xff] 0.0
        %359 = vst [vmem:[#allocation2 + $0x140] sm:$0xff] 0.0
        %360 = vst [vmem:[#allocation2 + $0x148] sm:$0xff] 0.0
        %361 = vst [vmem:[#allocation2 + $0x150] sm:$0xff] 0.0
        %362 = vst [vmem:[#allocation2 + $0x158] sm:$0xff] 0.0
        %363 = vst [vmem:[#allocation2 + $0x160] sm:$0xff] 0.0
        %364 = vst [vmem:[#allocation2 + $0x168] sm:$0xff] 0.0
        %365 = vst [vmem:[#allocation2 + $0x170] sm:$0xff] 0.0
        %366 = vst [vmem:[#allocation2 + $0x178] sm:$0xff] 0.0
        %367 = vst [vmem:[#allocation2 + $0x180] sm:$0xff] 0.0
        %368 = vst [vmem:[#allocation2 + $0x188] sm:$0xff] 0.0
        %369 = vst [vmem:[#allocation2 + $0x190] sm:$0xff] 0.0
        %370 = vst [vmem:[#allocation2 + $0x198] sm:$0xff] 0.0
        %371 = vst [vmem:[#allocation2 + $0x1a0] sm:$0xff] 0.0
        %372 = vst [vmem:[#allocation2 + $0x1a8] sm:$0xff] 0.0
        %373 = vst [vmem:[#allocation2 + $0x1b0] sm:$0xff] 0.0
        %374 = vst [vmem:[#allocation2 + $0x1b8] sm:$0xff] 0.0
        %375 = vst [vmem:[#allocation2 + $0x1c0] sm:$0xff] 0.0
        %376 = vst [vmem:[#allocation2 + $0x1c8] sm:$0xff] 0.0
        %377 = vst [vmem:[#allocation2 + $0x1d0] sm:$0xff] 0.0
        %378 = vst [vmem:[#allocation2 + $0x1d8] sm:$0xff] 0.0
        %379 = vst [vmem:[#allocation2 + $0x1e0] sm:$0xff] 0.0
        %380 = vst [vmem:[#allocation2 + $0x1e8] sm:$0xff] 0.0
        %381 = vst [vmem:[#allocation2 + $0x1f0] sm:$0xff] 0.0
        %382 = vst [vmem:[#allocation2 + $0x1f8] sm:$0xff] 0.0
      $region36: #{unet_forward.47} parent=31 // pred_fallthru
        _
      %v383 = vld [vmem:[#allocation2] sm:$0xff]
      %v384 = vld [vmem:[#allocation2 + $0x8] sm:$0xff]
      %v385 = vld [vmem:[#allocation2 + $0x10] sm:$0xff]
      %v386 = vld [vmem:[#allocation2 + $0x18] sm:$0xff]
      %v387 = vld [vmem:[#allocation2 + $0x20] sm:$0xff]
      %v388 = vld [vmem:[#allocation2 + $0x28] sm:$0xff]
      %v389 = vld [vmem:[#allocation2 + $0x30] sm:$0xff]
      %v390 = vld [vmem:[#allocation2 + $0x38] sm:$0xff]
      %v391 = vld [vmem:[#allocation2 + $0x40] sm:$0xff]
      %v392 = vld [vmem:[#allocation2 + $0x48] sm:$0xff]
      %v393 = vld [vmem:[#allocation2 + $0x50] sm:$0xff]
      %v394 = vld [vmem:[#allocation2 + $0x58] sm:$0xff]
      %v395 = vld [vmem:[#allocation2 + $0x60] sm:$0xff]
      %v396 = vld [vmem:[#allocation2 + $0x68] sm:$0xff]
      %v397 = vld [vmem:[#allocation2 + $0x70] sm:$0xff]
      %v398 = vld [vmem:[#allocation2 + $0x78] sm:$0xff]
      %v399 = vld [vmem:[#allocation2 + $0x80] sm:$0xff]
      %v400 = vld [vmem:[#allocation2 + $0x88] sm:$0xff]
      %v401 = vld [vmem:[#allocation2 + $0x90] sm:$0xff]
      %v402 = vld [vmem:[#allocation2 + $0x98] sm:$0xff]
      %v403 = vld [vmem:[#allocation2 + $0xa0] sm:$0xff]
      %v404 = vld [vmem:[#allocation2 + $0xa8] sm:$0xff]
      %v405 = vld [vmem:[#allocation2 + $0xb0] sm:$0xff]
      %v406 = vld [vmem:[#allocation2 + $0xb8] sm:$0xff]
      %v407 = vld [vmem:[#allocation2 + $0xc0] sm:$0xff]
      %v408 = vld [vmem:[#allocation2 + $0xc8] sm:$0xff]
      %v409 = vld [vmem:[#allocation2 + $0xd0] sm:$0xff]
      %v410 = vld [vmem:[#allocation2 + $0xd8] sm:$0xff]
      %v411 = vld [vmem:[#allocation2 + $0xe0] sm:$0xff]
      %v412 = vld [vmem:[#allocation2 + $0xe8] sm:$0xff]
      %v413 = vld [vmem:[#allocation2 + $0xf0] sm:$0xff]
      %v414 = vld [vmem:[#allocation2 + $0xf8] sm:$0xff]
      %v415 = vld [vmem:[#allocation2 + $0x100] sm:$0xff]
      %v416 = vld [vmem:[#allocation2 + $0x108] sm:$0xff]
      %v417 = vld [vmem:[#allocation2 + $0x110] sm:$0xff]
      %v418 = vld [vmem:[#allocation2 + $0x118] sm:$0xff]
      %v419 = vld [vmem:[#allocation2 + $0x120] sm:$0xff]
      %v420 = vld [vmem:[#allocation2 + $0x128] sm:$0xff]
      %v421 = vld [vmem:[#allocation2 + $0x130] sm:$0xff]
      %v422 = vld [vmem:[#allocation2 + $0x138] sm:$0xff]
      %v423 = vld [vmem:[#allocation2 + $0x140] sm:$0xff]
      %v424 = vld [vmem:[#allocation2 + $0x148] sm:$0xff]
      %v425 = vld [vmem:[#allocation2 + $0x150] sm:$0xff]
      %v426 = vld [vmem:[#allocation2 + $0x158] sm:$0xff]
      %v427 = vld [vmem:[#allocation2 + $0x160] sm:$0xff]
      %v428 = vld [vmem:[#allocation2 + $0x168] sm:$0xff]
      %v429 = vld [vmem:[#allocation2 + $0x170] sm:$0xff]
      %v430 = vld [vmem:[#allocation2 + $0x178] sm:$0xff]
      %v431 = vld [vmem:[#allocation2 + $0x180] sm:$0xff]
      %v432 = vld [vmem:[#allocation2 + $0x188] sm:$0xff]
      %v433 = vld [vmem:[#allocation2 + $0x190] sm:$0xff]
      %v434 = vld [vmem:[#allocation2 + $0x198] sm:$0xff]
      %v435 = vld [vmem:[#allocation2 + $0x1a0] sm:$0xff]
      %v436 = vld [vmem:[#allocation2 + $0x1a8] sm:$0xff]
      %v437 = vld [vmem:[#allocation2 + $0x1b0] sm:$0xff]
      %v438 = vld [vmem:[#allocation2 + $0x1b8] sm:$0xff]
      %v439 = vld [vmem:[#allocation2 + $0x1c0] sm:$0xff]
      %v440 = vld [vmem:[#allocation2 + $0x1c8] sm:$0xff]
      %v441 = vld [vmem:[#allocation2 + $0x1d0] sm:$0xff]
      %v442 = vld [vmem:[#allocation2 + $0x1d8] sm:$0xff]
      %v443 = vld [vmem:[#allocation2 + $0x1e0] sm:$0xff]
      %v444 = vld [vmem:[#allocation2 + $0x1e8] sm:$0xff]
      %v445 = vld [vmem:[#allocation2 + $0x1f0] sm:$0xff]
      %v446 = vld [vmem:[#allocation2 + $0x1f8] sm:$0xff]
      %v447 = vld [vmem:[%s281] sm:$0xf]
      %v448 = vld [vmem:[%s281 + $0x4] sm:$0xf]
      %v449 = vld [vmem:[%s281 + $0x8] sm:$0xf]
      %v450 = vld [vmem:[%s281 + $0xc] sm:$0xf]
      %v451 = vld [vmem:[%s281 + $0x10] sm:$0xf]
      %v452 = vld [vmem:[%s281 + $0x14] sm:$0xf]
      %v453 = vld [vmem:[%s281 + $0x18] sm:$0xf]
      %v454 = vld [vmem:[%s281 + $0x1c] sm:$0xf]
      %v455 = vld [vmem:[%s281 + $0x20] sm:$0xf]
      %v456 = vld [vmem:[%s281 + $0x24] sm:$0xf]
      %v457 = vld [vmem:[%s281 + $0x28] sm:$0xf]
      %v458 = vld [vmem:[%s281 + $0x2c] sm:$0xf]
      %v459 = vld [vmem:[%s281 + $0x30] sm:$0xf]
      %v460 = vld [vmem:[%s281 + $0x34] sm:$0xf]
      %v461 = vld [vmem:[%s281 + $0x38] sm:$0xf]
      %v462 = vld [vmem:[%s281 + $0x3c] sm:$0xf]
      %v463 = vld [vmem:[%s281 + $0x40] sm:$0xf]
      %v464 = vld [vmem:[%s281 + $0x44] sm:$0xf]
      %v465 = vld [vmem:[%s281 + $0x48] sm:$0xf]
      %v466 = vld [vmem:[%s281 + $0x4c] sm:$0xf]
      %v467 = vld [vmem:[%s281 + $0x50] sm:$0xf]
      %v468 = vld [vmem:[%s281 + $0x54] sm:$0xf]
      %v469 = vld [vmem:[%s281 + $0x58] sm:$0xf]
      %v470 = vld [vmem:[%s281 + $0x5c] sm:$0xf]
      %v471 = vld [vmem:[%s281 + $0x60] sm:$0xf]
      %v472 = vld [vmem:[%s281 + $0x64] sm:$0xf]
      %v473 = vld [vmem:[%s281 + $0x68] sm:$0xf]
      %v474 = vld [vmem:[%s281 + $0x6c] sm:$0xf]
      %v475 = vld [vmem:[%s281 + $0x70] sm:$0xf]
      %v476 = vld [vmem:[%s281 + $0x74] sm:$0xf]
      %v477 = vld [vmem:[%s281 + $0x78] sm:$0xf]
      %v478 = vld [vmem:[%s281 + $0x7c] sm:$0xf]
      %v479 = vld [vmem:[%s281 + $0x80] sm:$0xf]
      %v480 = vld [vmem:[%s281 + $0x84] sm:$0xf]
      %v481 = vld [vmem:[%s281 + $0x88] sm:$0xf]
      %v482 = vld [vmem:[%s281 + $0x8c] sm:$0xf]
      %v483 = vld [vmem:[%s281 + $0x90] sm:$0xf]
      %v484 = vld [vmem:[%s281 + $0x94] sm:$0xf]
      %v485 = vld [vmem:[%s281 + $0x98] sm:$0xf]
      %v486 = vld [vmem:[%s281 + $0x9c] sm:$0xf]
      %v487 = vld [vmem:[%s281 + $0xa0] sm:$0xf]
      %v488 = vld [vmem:[%s281 + $0xa4] sm:$0xf]
      %v489 = vld [vmem:[%s281 + $0xa8] sm:$0xf]
      %v490 = vld [vmem:[%s281 + $0xac] sm:$0xf]
      %v491 = vld [vmem:[%s281 + $0xb0] sm:$0xf]
      %v492 = vld [vmem:[%s281 + $0xb4] sm:$0xf]
      %v493 = vld [vmem:[%s281 + $0xb8] sm:$0xf]
      %v494 = vld [vmem:[%s281 + $0xbc] sm:$0xf]
      %v495 = vld [vmem:[%s281 + $0xc0] sm:$0xf]
      %v496 = vld [vmem:[%s281 + $0xc4] sm:$0xf]
      %v497 = vld [vmem:[%s281 + $0xc8] sm:$0xf]
      %v498 = vld [vmem:[%s281 + $0xcc] sm:$0xf]
      %v499 = vld [vmem:[%s281 + $0xd0] sm:$0xf]
      %v500 = vld [vmem:[%s281 + $0xd4] sm:$0xf]
      %v501 = vld [vmem:[%s281 + $0xd8] sm:$0xf]
      %v502 = vld [vmem:[%s281 + $0xdc] sm:$0xf]
      %v503 = vld [vmem:[%s281 + $0xe0] sm:$0xf]
      %v504 = vld [vmem:[%s281 + $0xe4] sm:$0xf]
      %v505 = vld [vmem:[%s281 + $0xe8] sm:$0xf]
      %v506 = vld [vmem:[%s281 + $0xec] sm:$0xf]
      %v507 = vld [vmem:[%s281 + $0xf0] sm:$0xf]
      %v508 = vld [vmem:[%s281 + $0xf4] sm:$0xf]
      %v509 = vld [vmem:[%s281 + $0xf8] sm:$0xf]
      %v510 = vld [vmem:[%s281 + $0xfc] sm:$0xf]
      %v511 = vld [vmem:[%s294] sm:$0xf]
      %v512 = vld [vmem:[%s294 + $0x4] sm:$0xf]
      %v513 = vld [vmem:[%s294 + $0x8] sm:$0xf]
      %v514 = vld [vmem:[%s294 + $0xc] sm:$0xf]
      %v515 = vld [vmem:[%s294 + $0x10] sm:$0xf]
      %v516 = vld [vmem:[%s294 + $0x14] sm:$0xf]
      %v517 = vld [vmem:[%s294 + $0x18] sm:$0xf]
      %v518 = vld [vmem:[%s294 + $0x1c] sm:$0xf]
      %v519 = vld [vmem:[%s294 + $0x20] sm:$0xf]
      %v520 = vld [vmem:[%s294 + $0x24] sm:$0xf]
      %v521 = vld [vmem:[%s294 + $0x28] sm:$0xf]
      %v522 = vld [vmem:[%s294 + $0x2c] sm:$0xf]
      %v523 = vld [vmem:[%s294 + $0x30] sm:$0xf]
      %v524 = vld [vmem:[%s294 + $0x34] sm:$0xf]
      %v525 = vld [vmem:[%s294 + $0x38] sm:$0xf]
      %v526 = vld [vmem:[%s294 + $0x3c] sm:$0xf]
      %v591 = vunpack.c.l.b16 %v447
      %v592 = vunpack.c.l.b16 %v448
      %v593 = vunpack.c.l.b16 %v449
      %v594 = vunpack.c.l.b16 %v450
      %v595 = vunpack.c.l.b16 %v451
      %v596 = vunpack.c.l.b16 %v452
      %v597 = vunpack.c.l.b16 %v453
      %v598 = vunpack.c.l.b16 %v454
      %v599 = vunpack.c.l.b16 %v455
      %v600 = vunpack.c.l.b16 %v456
      %v601 = vunpack.c.l.b16 %v457
      %v602 = vunpack.c.l.b16 %v458
      %v603 = vunpack.c.l.b16 %v459
      %v604 = vunpack.c.l.b16 %v460
      %v605 = vunpack.c.l.b16 %v461
      %v606 = vunpack.c.l.b16 %v462
      %v607 = vunpack.c.l.b16 %v463
      %v608 = vunpack.c.l.b16 %v464
      %v609 = vunpack.c.l.b16 %v465
      %v610 = vunpack.c.l.b16 %v466
      %v611 = vunpack.c.l.b16 %v467
      %v612 = vunpack.c.l.b16 %v468
      %v613 = vunpack.c.l.b16 %v469
      %v614 = vunpack.c.l.b16 %v470
      %v615 = vunpack.c.l.b16 %v471
      %v616 = vunpack.c.l.b16 %v472
      %v617 = vunpack.c.l.b16 %v473
      %v618 = vunpack.c.l.b16 %v474
      %v619 = vunpack.c.l.b16 %v475
      %v620 = vunpack.c.l.b16 %v476
      %v621 = vunpack.c.l.b16 %v477
      %v622 = vunpack.c.l.b16 %v478
      %v623 = vunpack.c.l.b16 %v479
      %v624 = vunpack.c.l.b16 %v480
      %v625 = vunpack.c.l.b16 %v481
      %v626 = vunpack.c.l.b16 %v482
      %v627 = vunpack.c.l.b16 %v483
      %v628 = vunpack.c.l.b16 %v484
      %v629 = vunpack.c.l.b16 %v485
      %v630 = vunpack.c.l.b16 %v486
      %v631 = vunpack.c.l.b16 %v487
      %v632 = vunpack.c.l.b16 %v488
      %v633 = vunpack.c.l.b16 %v489
      %v634 = vunpack.c.l.b16 %v490
      %v635 = vunpack.c.l.b16 %v491
      %v636 = vunpack.c.l.b16 %v492
      %v637 = vunpack.c.l.b16 %v493
      %v638 = vunpack.c.l.b16 %v494
      %v639 = vunpack.c.l.b16 %v495
      %v640 = vunpack.c.l.b16 %v496
      %v641 = vunpack.c.l.b16 %v497
      %v642 = vunpack.c.l.b16 %v498
      %v643 = vunpack.c.l.b16 %v499
      %v644 = vunpack.c.l.b16 %v500
      %v645 = vunpack.c.l.b16 %v501
      %v646 = vunpack.c.l.b16 %v502
      %v647 = vunpack.c.l.b16 %v503
      %v648 = vunpack.c.l.b16 %v504
      %v649 = vunpack.c.l.b16 %v505
      %v650 = vunpack.c.l.b16 %v506
      %v651 = vunpack.c.l.b16 %v507
      %v652 = vunpack.c.l.b16 %v508
      %v653 = vunpack.c.l.b16 %v509
      %v654 = vunpack.c.l.b16 %v510
      %v655 = vpack.c.b16 %v592, %v591
      %v656 = vpack.c.b16 %v594, %v593
      %v657 = vpack.c.b16 %v596, %v595
      %v658 = vpack.c.b16 %v598, %v597
      %v659 = vpack.c.b16 %v600, %v599
      %v660 = vpack.c.b16 %v602, %v601
      %v661 = vpack.c.b16 %v604, %v603
      %v662 = vpack.c.b16 %v606, %v605
      %v663 = vpack.c.b16 %v608, %v607
      %v664 = vpack.c.b16 %v610, %v609
      %v665 = vpack.c.b16 %v612, %v611
      %v666 = vpack.c.b16 %v614, %v613
      %v667 = vpack.c.b16 %v616, %v615
      %v668 = vpack.c.b16 %v618, %v617
      %v669 = vpack.c.b16 %v620, %v619
      %v670 = vpack.c.b16 %v622, %v621
      %v671 = vpack.c.b16 %v624, %v623
      %v672 = vpack.c.b16 %v626, %v625
      %v673 = vpack.c.b16 %v628, %v627
      %v674 = vpack.c.b16 %v630, %v629
      %v675 = vpack.c.b16 %v632, %v631
      %v676 = vpack.c.b16 %v634, %v633
      %v677 = vpack.c.b16 %v636, %v635
      %v678 = vpack.c.b16 %v638, %v637
      %v679 = vpack.c.b16 %v640, %v639
      %v680 = vpack.c.b16 %v642, %v641
      %v681 = vpack.c.b16 %v644, %v643
      %v682 = vpack.c.b16 %v646, %v645
      %v683 = vpack.c.b16 %v648, %v647
      %v684 = vpack.c.b16 %v650, %v649
      %v685 = vpack.c.b16 %v652, %v651
      %v686 = vpack.c.b16 %v654, %v653
      %v735 = vunpack.c.l.b16 %v511
      %v736 = vunpack.c.l.b16 %v512
      %v737 = vunpack.c.l.b16 %v513
      %v738 = vunpack.c.l.b16 %v514
      %v739 = vunpack.c.l.b16 %v515
      %v740 = vunpack.c.l.b16 %v516
      %v741 = vunpack.c.l.b16 %v517
      %v742 = vunpack.c.l.b16 %v518
      %v743 = vunpack.c.l.b16 %v519
      %v744 = vunpack.c.l.b16 %v520
      %v745 = vunpack.c.l.b16 %v521
      %v746 = vunpack.c.l.b16 %v522
      %v747 = vunpack.c.l.b16 %v523
      %v748 = vunpack.c.l.b16 %v524
      %v749 = vunpack.c.l.b16 %v525
      %v750 = vunpack.c.l.b16 %v526
      %v751 = vpack.c.b16 %v736, %v735
      %v752 = vpack.c.b16 %v738, %v737
      %v753 = vpack.c.b16 %v740, %v739
      %v754 = vpack.c.b16 %v742, %v741
      %v755 = vpack.c.b16 %v744, %v743
      %v756 = vpack.c.b16 %v746, %v745
      %v757 = vpack.c.b16 %v748, %v747
      %v758 = vpack.c.b16 %v750, %v749
      %767 = vmatpush.bf16.msra.mxu0 %v758
      %768 = vmatpush.bf16.msra.mxu0 %v757
      %769 = vmatpush.bf16.msra.mxu0 %v756
      %770 = vmatpush.bf16.msra.mxu0 %v755
      %771 = vmatpush.bf16.msra.mxu0 %v754
      %772 = vmatpush.bf16.msra.mxu0 %v753
      %773 = vmatpush.bf16.msra.mxu0 %v752
      %774 = vmatpush.bf16.msra.mxu0 %v751
      %775 = vmatmul.bf16.gmra.mxu0 %v655
      %v776 = vpop.f32.mrf.mxu0
      %v777 = vadd.f32 0.0, %v776
      %v778 = vpop.f32.mrf.mxu0
      %v779 = vadd.f32 0.0, %v778
      %780 = vmatmul.bf16.gmra.mxu0 %v656
      %v781 = vpop.f32.mrf.mxu0
      %v782 = vadd.f32 0.0, %v781
      %v783 = vpop.f32.mrf.mxu0
      %v784 = vadd.f32 0.0, %v783
      %785 = vmatmul.bf16.gmra.mxu0 %v657
      %v786 = vpop.f32.mrf.mxu0
      %v787 = vadd.f32 0.0, %v786
      %v788 = vpop.f32.mrf.mxu0
      %v789 = vadd.f32 0.0, %v788
      %790 = vmatmul.bf16.gmra.mxu0 %v658
      %v791 = vpop.f32.mrf.mxu0
      %v792 = vadd.f32 0.0, %v791
      %v793 = vpop.f32.mrf.mxu0
      %v794 = vadd.f32 0.0, %v793
      %795 = vmatmul.bf16.gmra.mxu0 %v659
      %v796 = vpop.f32.mrf.mxu0
      %v797 = vadd.f32 0.0, %v796
      %v798 = vpop.f32.mrf.mxu0
      %v799 = vadd.f32 0.0, %v798
      %800 = vmatmul.bf16.gmra.mxu0 %v660
      %v801 = vpop.f32.mrf.mxu0
      %v802 = vadd.f32 0.0, %v801
      %v803 = vpop.f32.mrf.mxu0
      %v804 = vadd.f32 0.0, %v803
      %805 = vmatmul.bf16.gmra.mxu0 %v661
      %v806 = vpop.f32.mrf.mxu0
      %v807 = vadd.f32 0.0, %v806
      %v808 = vpop.f32.mrf.mxu0
      %v809 = vadd.f32 0.0, %v808
      %810 = vmatmul.bf16.gmra.mxu0 %v662
      %v811 = vpop.f32.mrf.mxu0
      %v812 = vadd.f32 0.0, %v811
      %v813 = vpop.f32.mrf.mxu0
      %v814 = vadd.f32 0.0, %v813
      %815 = vmatmul.bf16.gmra.mxu0 %v663
      %v816 = vpop.f32.mrf.mxu0
      %v817 = vadd.f32 0.0, %v816
      %v818 = vpop.f32.mrf.mxu0
      %v819 = vadd.f32 0.0, %v818
      %820 = vmatmul.bf16.gmra.mxu0 %v664
      %v821 = vpop.f32.mrf.mxu0
      %v822 = vadd.f32 0.0, %v821
      %v823 = vpop.f32.mrf.mxu0
      %v824 = vadd.f32 0.0, %v823
      %825 = vmatmul.bf16.gmra.mxu0 %v665
      %v826 = vpop.f32.mrf.mxu0
      %v827 = vadd.f32 0.0, %v826
      %v828 = vpop.f32.mrf.mxu0
      %v829 = vadd.f32 0.0, %v828
      %830 = vmatmul.bf16.gmra.mxu0 %v666
      %v831 = vpop.f32.mrf.mxu0
      %v832 = vadd.f32 0.0, %v831
      %v833 = vpop.f32.mrf.mxu0
      %v834 = vadd.f32 0.0, %v833
      %835 = vmatmul.bf16.gmra.mxu0 %v667
      %v836 = vpop.f32.mrf.mxu0
      %v837 = vadd.f32 0.0, %v836
      %v838 = vpop.f32.mrf.mxu0
      %v839 = vadd.f32 0.0, %v838
      %840 = vmatmul.bf16.gmra.mxu0 %v668
      %v841 = vpop.f32.mrf.mxu0
      %v842 = vadd.f32 0.0, %v841
      %v843 = vpop.f32.mrf.mxu0
      %v844 = vadd.f32 0.0, %v843
      %845 = vmatmul.bf16.gmra.mxu0 %v669
      %v846 = vpop.f32.mrf.mxu0
      %v847 = vadd.f32 0.0, %v846
      %v848 = vpop.f32.mrf.mxu0
      %v849 = vadd.f32 0.0, %v848
      %850 = vmatmul.bf16.gmra.mxu0 %v670
      %v851 = vpop.f32.mrf.mxu0
      %v852 = vadd.f32 0.0, %v851
      %v853 = vpop.f32.mrf.mxu0
      %v854 = vadd.f32 0.0, %v853
      %855 = vmatmul.bf16.gmra.mxu0 %v671
      %v856 = vpop.f32.mrf.mxu0
      %v857 = vadd.f32 0.0, %v856
      %v858 = vpop.f32.mrf.mxu0
      %v859 = vadd.f32 0.0, %v858
      %860 = vmatmul.bf16.gmra.mxu0 %v672
      %v861 = vpop.f32.mrf.mxu0
      %v862 = vadd.f32 0.0, %v861
      %v863 = vpop.f32.mrf.mxu0
      %v864 = vadd.f32 0.0, %v863
      %865 = vmatmul.bf16.gmra.mxu0 %v673
      %v866 = vpop.f32.mrf.mxu0
      %v867 = vadd.f32 0.0, %v866
      %v868 = vpop.f32.mrf.mxu0
      %v869 = vadd.f32 0.0, %v868
      %870 = vmatmul.bf16.gmra.mxu0 %v674
      %v871 = vpop.f32.mrf.mxu0
      %v872 = vadd.f32 0.0, %v871
      %v873 = vpop.f32.mrf.mxu0
      %v874 = vadd.f32 0.0, %v873
      %875 = vmatmul.bf16.gmra.mxu0 %v675
      %v876 = vpop.f32.mrf.mxu0
      %v877 = vadd.f32 0.0, %v876
      %v878 = vpop.f32.mrf.mxu0
      %v879 = vadd.f32 0.0, %v878
      %880 = vmatmul.bf16.gmra.mxu0 %v676
      %v881 = vpop.f32.mrf.mxu0
      %v882 = vadd.f32 0.0, %v881
      %v883 = vpop.f32.mrf.mxu0
      %v884 = vadd.f32 0.0, %v883
      %885 = vmatmul.bf16.gmra.mxu0 %v677
      %v886 = vpop.f32.mrf.mxu0
      %v887 = vadd.f32 0.0, %v886
      %v888 = vpop.f32.mrf.mxu0
      %v889 = vadd.f32 0.0, %v888
      %890 = vmatmul.bf16.gmra.mxu0 %v678
      %v891 = vpop.f32.mrf.mxu0
      %v892 = vadd.f32 0.0, %v891
      %v893 = vpop.f32.mrf.mxu0
      %v894 = vadd.f32 0.0, %v893
      %895 = vmatmul.bf16.gmra.mxu0 %v679
      %v896 = vpop.f32.mrf.mxu0
      %v897 = vadd.f32 0.0, %v896
      %v898 = vpop.f32.mrf.mxu0
      %v899 = vadd.f32 0.0, %v898
      %900 = vmatmul.bf16.gmra.mxu0 %v680
      %v901 = vpop.f32.mrf.mxu0
      %v902 = vadd.f32 0.0, %v901
      %v903 = vpop.f32.mrf.mxu0
      %v904 = vadd.f32 0.0, %v903
      %905 = vmatmul.bf16.gmra.mxu0 %v681
      %v906 = vpop.f32.mrf.mxu0
      %v907 = vadd.f32 0.0, %v906
      %v908 = vpop.f32.mrf.mxu0
      %v909 = vadd.f32 0.0, %v908
      %910 = vmatmul.bf16.gmra.mxu0 %v682
      %v911 = vpop.f32.mrf.mxu0
      %v912 = vadd.f32 0.0, %v911
      %v913 = vpop.f32.mrf.mxu0
      %v914 = vadd.f32 0.0, %v913
      %915 = vmatmul.bf16.gmra.mxu0 %v683
      %v916 = vpop.f32.mrf.mxu0
      %v917 = vadd.f32 0.0, %v916
      %v918 = vpop.f32.mrf.mxu0
      %v919 = vadd.f32 0.0, %v918
      %920 = vmatmul.bf16.gmra.mxu0 %v684
      %v921 = vpop.f32.mrf.mxu0
      %v922 = vadd.f32 0.0, %v921
      %v923 = vpop.f32.mrf.mxu0
      %v924 = vadd.f32 0.0, %v923
      %925 = vmatmul.bf16.gmra.mxu0 %v685
      %v926 = vpop.f32.mrf.mxu0
      %v927 = vadd.f32 0.0, %v926
      %v928 = vpop.f32.mrf.mxu0
      %v929 = vadd.f32 0.0, %v928
      %930 = vmatmul.bf16.gmra.mxu0 %v686
      %v931 = vpop.f32.mrf.mxu0
      %v932 = vadd.f32 0.0, %v931
      %v933 = vpop.f32.mrf.mxu0
      %v934 = vadd.f32 0.0, %v933
      %935 = vdwg.mxu0
      %v936 = vadd.f32 %v383, %v777
      %v937 = vadd.f32 %v384, %v779
      %v938 = vadd.f32 %v385, %v782
      %v939 = vadd.f32 %v386, %v784
      %v940 = vadd.f32 %v387, %v787
      %v941 = vadd.f32 %v388, %v789
      %v942 = vadd.f32 %v389, %v792
      %v943 = vadd.f32 %v390, %v794
      %v944 = vadd.f32 %v391, %v797
      %v945 = vadd.f32 %v392, %v799
      %v946 = vadd.f32 %v393, %v802
      %v947 = vadd.f32 %v394, %v804
      %v948 = vadd.f32 %v395, %v807
      %v949 = vadd.f32 %v396, %v809
      %v950 = vadd.f32 %v397, %v812
      %v951 = vadd.f32 %v398, %v814
      %v952 = vadd.f32 %v399, %v817
      %v953 = vadd.f32 %v400, %v819
      %v954 = vadd.f32 %v401, %v822
      %v955 = vadd.f32 %v402, %v824
      %v956 = vadd.f32 %v403, %v827
      %v957 = vadd.f32 %v404, %v829
      %v958 = vadd.f32 %v405, %v832
      %v959 = vadd.f32 %v406, %v834
      %v960 = vadd.f32 %v407, %v837
      %v961 = vadd.f32 %v408, %v839
      %v962 = vadd.f32 %v409, %v842
      %v963 = vadd.f32 %v410, %v844
      %v964 = vadd.f32 %v411, %v847
      %v965 = vadd.f32 %v412, %v849
      %v966 = vadd.f32 %v413, %v852
      %v967 = vadd.f32 %v414, %v854
      %v968 = vadd.f32 %v415, %v857
      %v969 = vadd.f32 %v416, %v859
      %v970 = vadd.f32 %v417, %v862
      %v971 = vadd.f32 %v418, %v864
      %v972 = vadd.f32 %v419, %v867
      %v973 = vadd.f32 %v420, %v869
      %v974 = vadd.f32 %v421, %v872
      %v975 = vadd.f32 %v422, %v874
      %v976 = vadd.f32 %v423, %v877
      %v977 = vadd.f32 %v424, %v879
      %v978 = vadd.f32 %v425, %v882
      %v979 = vadd.f32 %v426, %v884
      %v980 = vadd.f32 %v427, %v887
      %v981 = vadd.f32 %v428, %v889
      %v982 = vadd.f32 %v429, %v892
      %v983 = vadd.f32 %v430, %v894
      %v984 = vadd.f32 %v431, %v897
      %v985 = vadd.f32 %v432, %v899
      %v986 = vadd.f32 %v433, %v902
      %v987 = vadd.f32 %v434, %v904
      %v988 = vadd.f32 %v435, %v907
      %v989 = vadd.f32 %v436, %v909
      %v990 = vadd.f32 %v437, %v912
      %v991 = vadd.f32 %v438, %v914
      %v992 = vadd.f32 %v439, %v917
      %v993 = vadd.f32 %v440, %v919
      %v994 = vadd.f32 %v441, %v922
      %v995 = vadd.f32 %v442, %v924
      %v996 = vadd.f32 %v443, %v927
      %v997 = vadd.f32 %v444, %v929
      %v998 = vadd.f32 %v445, %v932
      %v999 = vadd.f32 %v446, %v934
      %1000 = vst [vmem:[#allocation2] sm:$0xff] %v936
      %1001 = vst [vmem:[#allocation2 + $0x8] sm:$0xff] %v937
      %1002 = vst [vmem:[#allocation2 + $0x10] sm:$0xff] %v938
      %1003 = vst [vmem:[#allocation2 + $0x18] sm:$0xff] %v939
      %1004 = vst [vmem:[#allocation2 + $0x20] sm:$0xff] %v940
      %1005 = vst [vmem:[#allocation2 + $0x28] sm:$0xff] %v941
      %1006 = vst [vmem:[#allocation2 + $0x30] sm:$0xff] %v942
      %1007 = vst [vmem:[#allocation2 + $0x38] sm:$0xff] %v943
      %1008 = vst [vmem:[#allocation2 + $0x40] sm:$0xff] %v944
      %1009 = vst [vmem:[#allocation2 + $0x48] sm:$0xff] %v945
      %1010 = vst [vmem:[#allocation2 + $0x50] sm:$0xff] %v946
      %1011 = vst [vmem:[#allocation2 + $0x58] sm:$0xff] %v947
      %1012 = vst [vmem:[#allocation2 + $0x60] sm:$0xff] %v948
      %1013 = vst [vmem:[#allocation2 + $0x68] sm:$0xff] %v949
      %1014 = vst [vmem:[#allocation2 + $0x70] sm:$0xff] %v950
      %1015 = vst [vmem:[#allocation2 + $0x78] sm:$0xff] %v951
      %1016 = vst [vmem:[#allocation2 + $0x80] sm:$0xff] %v952
      %1017 = vst [vmem:[#allocation2 + $0x88] sm:$0xff] %v953
      %1018 = vst [vmem:[#allocation2 + $0x90] sm:$0xff] %v954
      %1019 = vst [vmem:[#allocation2 + $0x98] sm:$0xff] %v955
      %1020 = vst [vmem:[#allocation2 + $0xa0] sm:$0xff] %v956
      %1021 = vst [vmem:[#allocation2 + $0xa8] sm:$0xff] %v957
      %1022 = vst [vmem:[#allocation2 + $0xb0] sm:$0xff] %v958
      %1023 = vst [vmem:[#allocation2 + $0xb8] sm:$0xff] %v959
      %1024 = vst [vmem:[#allocation2 + $0xc0] sm:$0xff] %v960
      %1025 = vst [vmem:[#allocation2 + $0xc8] sm:$0xff] %v961
      %1026 = vst [vmem:[#allocation2 + $0xd0] sm:$0xff] %v962
      %1027 = vst [vmem:[#allocation2 + $0xd8] sm:$0xff] %v963
      %1028 = vst [vmem:[#allocation2 + $0xe0] sm:$0xff] %v964
      %1029 = vst [vmem:[#allocation2 + $0xe8] sm:$0xff] %v965
      %1030 = vst [vmem:[#allocation2 + $0xf0] sm:$0xff] %v966
      %1031 = vst [vmem:[#allocation2 + $0xf8] sm:$0xff] %v967
      %1032 = vst [vmem:[#allocation2 + $0x100] sm:$0xff] %v968
      %1033 = vst [vmem:[#allocation2 + $0x108] sm:$0xff] %v969
      %1034 = vst [vmem:[#allocation2 + $0x110] sm:$0xff] %v970
      %1035 = vst [vmem:[#allocation2 + $0x118] sm:$0xff] %v971
      %1036 = vst [vmem:[#allocation2 + $0x120] sm:$0xff] %v972
      %1037 = vst [vmem:[#allocation2 + $0x128] sm:$0xff] %v973
      %1038 = vst [vmem:[#allocation2 + $0x130] sm:$0xff] %v974
      %1039 = vst [vmem:[#allocation2 + $0x138] sm:$0xff] %v975
      %1040 = vst [vmem:[#allocation2 + $0x140] sm:$0xff] %v976
      %1041 = vst [vmem:[#allocation2 + $0x148] sm:$0xff] %v977
      %1042 = vst [vmem:[#allocation2 + $0x150] sm:$0xff] %v978
      %1043 = vst [vmem:[#allocation2 + $0x158] sm:$0xff] %v979
      %1044 = vst [vmem:[#allocation2 + $0x160] sm:$0xff] %v980
      %1045 = vst [vmem:[#allocation2 + $0x168] sm:$0xff] %v981
      %1046 = vst [vmem:[#allocation2 + $0x170] sm:$0xff] %v982
      %1047 = vst [vmem:[#allocation2 + $0x178] sm:$0xff] %v983
      %1048 = vst [vmem:[#allocation2 + $0x180] sm:$0xff] %v984
      %1049 = vst [vmem:[#allocation2 + $0x188] sm:$0xff] %v985
      %1050 = vst [vmem:[#allocation2 + $0x190] sm:$0xff] %v986
      %1051 = vst [vmem:[#allocation2 + $0x198] sm:$0xff] %v987
      %1052 = vst [vmem:[#allocation2 + $0x1a0] sm:$0xff] %v988
      %1053 = vst [vmem:[#allocation2 + $0x1a8] sm:$0xff] %v989
      %1054 = vst [vmem:[#allocation2 + $0x1b0] sm:$0xff] %v990
      %1055 = vst [vmem:[#allocation2 + $0x1b8] sm:$0xff] %v991
      %1056 = vst [vmem:[#allocation2 + $0x1c0] sm:$0xff] %v992
      %1057 = vst [vmem:[#allocation2 + $0x1c8] sm:$0xff] %v993
      %1058 = vst [vmem:[#allocation2 + $0x1d0] sm:$0xff] %v994
      %1059 = vst [vmem:[#allocation2 + $0x1d8] sm:$0xff] %v995
      %1060 = vst [vmem:[#allocation2 + $0x1e0] sm:$0xff] %v996
      %1061 = vst [vmem:[#allocation2 + $0x1e8] sm:$0xff] %v997
      %1062 = vst [vmem:[#allocation2 + $0x1f0] sm:$0xff] %v998
      %1063 = vst [vmem:[#allocation2 + $0x1f8] sm:$0xff] %v999
      // Predicated region
      $region37: #{unet_forward.47} parent=31 // pred_check
        %p1064 = pneg %p315
      $region38: #{unet_forward.47} parent=31 // pred_check_branch
        %1066 = sbr.rel (%p1064) target = $region40
      $region39: #{unet_forward.47} parent=31 // pred_region
        %v1067 = vld [vmem:[#allocation2] sm:$0xff]
        %v1068 = vld [vmem:[#allocation2 + $0x8] sm:$0xff]
        %v1069 = vld [vmem:[#allocation2 + $0x10] sm:$0xff]
        %v1070 = vld [vmem:[#allocation2 + $0x18] sm:$0xff]
        %v1071 = vld [vmem:[#allocation2 + $0x20] sm:$0xff]
        %v1072 = vld [vmem:[#allocation2 + $0x28] sm:$0xff]
        %v1073 = vld [vmem:[#allocation2 + $0x30] sm:$0xff]
        %v1074 = vld [vmem:[#allocation2 + $0x38] sm:$0xff]
        %v1075 = vld [vmem:[#allocation2 + $0x40] sm:$0xff]
        %v1076 = vld [vmem:[#allocation2 + $0x48] sm:$0xff]
        %v1077 = vld [vmem:[#allocation2 + $0x50] sm:$0xff]
        %v1078 = vld [vmem:[#allocation2 + $0x58] sm:$0xff]
        %v1079 = vld [vmem:[#allocation2 + $0x60] sm:$0xff]
        %v1080 = vld [vmem:[#allocation2 + $0x68] sm:$0xff]
        %v1081 = vld [vmem:[#allocation2 + $0x70] sm:$0xff]
        %v1082 = vld [vmem:[#allocation2 + $0x78] sm:$0xff]
        %v1083 = vld [vmem:[#allocation2 + $0x80] sm:$0xff]
        %v1084 = vld [vmem:[#allocation2 + $0x88] sm:$0xff]
        %v1085 = vld [vmem:[#allocation2 + $0x90] sm:$0xff]
        %v1086 = vld [vmem:[#allocation2 + $0x98] sm:$0xff]
        %v1087 = vld [vmem:[#allocation2 + $0xa0] sm:$0xff]
        %v1088 = vld [vmem:[#allocation2 + $0xa8] sm:$0xff]
        %v1089 = vld [vmem:[#allocation2 + $0xb0] sm:$0xff]
        %v1090 = vld [vmem:[#allocation2 + $0xb8] sm:$0xff]
        %v1091 = vld [vmem:[#allocation2 + $0xc0] sm:$0xff]
        %v1092 = vld [vmem:[#allocation2 + $0xc8] sm:$0xff]
        %v1093 = vld [vmem:[#allocation2 + $0xd0] sm:$0xff]
        %v1094 = vld [vmem:[#allocation2 + $0xd8] sm:$0xff]
        %v1095 = vld [vmem:[#allocation2 + $0xe0] sm:$0xff]
        %v1096 = vld [vmem:[#allocation2 + $0xe8] sm:$0xff]
        %v1097 = vld [vmem:[#allocation2 + $0xf0] sm:$0xff]
        %v1098 = vld [vmem:[#allocation2 + $0xf8] sm:$0xff]
        %v1099 = vld [vmem:[#allocation2 + $0x100] sm:$0xff]
        %v1100 = vld [vmem:[#allocation2 + $0x108] sm:$0xff]
        %v1101 = vld [vmem:[#allocation2 + $0x110] sm:$0xff]
        %v1102 = vld [vmem:[#allocation2 + $0x118] sm:$0xff]
        %v1103 = vld [vmem:[#allocation2 + $0x120] sm:$0xff]
        %v1104 = vld [vmem:[#allocation2 + $0x128] sm:$0xff]
        %v1105 = vld [vmem:[#allocation2 + $0x130] sm:$0xff]
        %v1106 = vld [vmem:[#allocation2 + $0x138] sm:$0xff]
        %v1107 = vld [vmem:[#allocation2 + $0x140] sm:$0xff]
        %v1108 = vld [vmem:[#allocation2 + $0x148] sm:$0xff]
        %v1109 = vld [vmem:[#allocation2 + $0x150] sm:$0xff]
        %v1110 = vld [vmem:[#allocation2 + $0x158] sm:$0xff]
        %v1111 = vld [vmem:[#allocation2 + $0x160] sm:$0xff]
        %v1112 = vld [vmem:[#allocation2 + $0x168] sm:$0xff]
        %v1113 = vld [vmem:[#allocation2 + $0x170] sm:$0xff]
        %v1114 = vld [vmem:[#allocation2 + $0x178] sm:$0xff]
        %v1115 = vld [vmem:[#allocation2 + $0x180] sm:$0xff]
        %v1116 = vld [vmem:[#allocation2 + $0x188] sm:$0xff]
        %v1117 = vld [vmem:[#allocation2 + $0x190] sm:$0xff]
        %v1118 = vld [vmem:[#allocation2 + $0x198] sm:$0xff]
        %v1119 = vld [vmem:[#allocation2 + $0x1a0] sm:$0xff]
        %v1120 = vld [vmem:[#allocation2 + $0x1a8] sm:$0xff]
        %v1121 = vld [vmem:[#allocation2 + $0x1b0] sm:$0xff]
        %v1122 = vld [vmem:[#allocation2 + $0x1b8] sm:$0xff]
        %v1123 = vld [vmem:[#allocation2 + $0x1c0] sm:$0xff]
        %v1124 = vld [vmem:[#allocation2 + $0x1c8] sm:$0xff]
        %v1125 = vld [vmem:[#allocation2 + $0x1d0] sm:$0xff]
        %v1126 = vld [vmem:[#allocation2 + $0x1d8] sm:$0xff]
        %v1127 = vld [vmem:[#allocation2 + $0x1e0] sm:$0xff]
        %v1128 = vld [vmem:[#allocation2 + $0x1e8] sm:$0xff]
        %v1129 = vld [vmem:[#allocation2 + $0x1f0] sm:$0xff]
        %v1130 = vld [vmem:[#allocation2 + $0x1f8] sm:$0xff]
        %v1131 = vld [vmem:[%s301] sm:$0x1]
        %v1133 = vperm.slane %v1131, 0
        %v1135 = vadd.f32 %v1067, %v1133
        %v1136 = vadd.f32 %v1068, %v1133
        %v1137 = vadd.f32 %v1069, %v1133
        %v1138 = vadd.f32 %v1070, %v1133
        %v1139 = vadd.f32 %v1071, %v1133
        %v1140 = vadd.f32 %v1072, %v1133
        %v1141 = vadd.f32 %v1073, %v1133
        %v1142 = vadd.f32 %v1074, %v1133
        %v1143 = vadd.f32 %v1075, %v1133
        %v1144 = vadd.f32 %v1076, %v1133
        %v1145 = vadd.f32 %v1077, %v1133
        %v1146 = vadd.f32 %v1078, %v1133
        %v1147 = vadd.f32 %v1079, %v1133
        %v1148 = vadd.f32 %v1080, %v1133
        %v1149 = vadd.f32 %v1081, %v1133
        %v1150 = vadd.f32 %v1082, %v1133
        %v1151 = vadd.f32 %v1083, %v1133
        %v1152 = vadd.f32 %v1084, %v1133
        %v1153 = vadd.f32 %v1085, %v1133
        %v1154 = vadd.f32 %v1086, %v1133
        %v1155 = vadd.f32 %v1087, %v1133
        %v1156 = vadd.f32 %v1088, %v1133
        %v1157 = vadd.f32 %v1089, %v1133
        %v1158 = vadd.f32 %v1090, %v1133
        %v1159 = vadd.f32 %v1091, %v1133
        %v1160 = vadd.f32 %v1092, %v1133
        %v1161 = vadd.f32 %v1093, %v1133
        %v1162 = vadd.f32 %v1094, %v1133
        %v1163 = vadd.f32 %v1095, %v1133
        %v1164 = vadd.f32 %v1096, %v1133
        %v1165 = vadd.f32 %v1097, %v1133
        %v1166 = vadd.f32 %v1098, %v1133
        %v1167 = vadd.f32 %v1099, %v1133
        %v1168 = vadd.f32 %v1100, %v1133
        %v1169 = vadd.f32 %v1101, %v1133
        %v1170 = vadd.f32 %v1102, %v1133
        %v1171 = vadd.f32 %v1103, %v1133
        %v1172 = vadd.f32 %v1104, %v1133
        %v1173 = vadd.f32 %v1105, %v1133
        %v1174 = vadd.f32 %v1106, %v1133
        %v1175 = vadd.f32 %v1107, %v1133
        %v1176 = vadd.f32 %v1108, %v1133
        %v1177 = vadd.f32 %v1109, %v1133
        %v1178 = vadd.f32 %v1110, %v1133
        %v1179 = vadd.f32 %v1111, %v1133
        %v1180 = vadd.f32 %v1112, %v1133
        %v1181 = vadd.f32 %v1113, %v1133
        %v1182 = vadd.f32 %v1114, %v1133
        %v1183 = vadd.f32 %v1115, %v1133
        %v1184 = vadd.f32 %v1116, %v1133
        %v1185 = vadd.f32 %v1117, %v1133
        %v1186 = vadd.f32 %v1118, %v1133
        %v1187 = vadd.f32 %v1119, %v1133
        %v1188 = vadd.f32 %v1120, %v1133
        %v1189 = vadd.f32 %v1121, %v1133
        %v1190 = vadd.f32 %v1122, %v1133
        %v1191 = vadd.f32 %v1123, %v1133
        %v1192 = vadd.f32 %v1124, %v1133
        %v1193 = vadd.f32 %v1125, %v1133
        %v1194 = vadd.f32 %v1126, %v1133
        %v1195 = vadd.f32 %v1127, %v1133
        %v1196 = vadd.f32 %v1128, %v1133
        %v1197 = vadd.f32 %v1129, %v1133
        %v1198 = vadd.f32 %v1130, %v1133
        %1199 = vst [vmem:[%s313] sm:$0xff] %v1135
        %1200 = vst [vmem:[%s313 + $0x8] sm:$0xff] %v1136
        %1201 = vst [vmem:[%s313 + $0x10] sm:$0xff] %v1137
        %1202 = vst [vmem:[%s313 + $0x18] sm:$0xff] %v1138
        %1203 = vst [vmem:[%s313 + $0x20] sm:$0xff] %v1139
        %1204 = vst [vmem:[%s313 + $0x28] sm:$0xff] %v1140
        %1205 = vst [vmem:[%s313 + $0x30] sm:$0xff] %v1141
        %1206 = vst [vmem:[%s313 + $0x38] sm:$0xff] %v1142
        %1207 = vst [vmem:[%s313 + $0x40] sm:$0xff] %v1143
        %1208 = vst [vmem:[%s313 + $0x48] sm:$0xff] %v1144
        %1209 = vst [vmem:[%s313 + $0x50] sm:$0xff] %v1145
        %1210 = vst [vmem:[%s313 + $0x58] sm:$0xff] %v1146
        %1211 = vst [vmem:[%s313 + $0x60] sm:$0xff] %v1147
        %1212 = vst [vmem:[%s313 + $0x68] sm:$0xff] %v1148
        %1213 = vst [vmem:[%s313 + $0x70] sm:$0xff] %v1149
        %1214 = vst [vmem:[%s313 + $0x78] sm:$0xff] %v1150
        %1215 = vst [vmem:[%s313 + $0x80] sm:$0xff] %v1151
        %1216 = vst [vmem:[%s313 + $0x88] sm:$0xff] %v1152
        %1217 = vst [vmem:[%s313 + $0x90] sm:$0xff] %v1153
        %1218 = vst [vmem:[%s313 + $0x98] sm:$0xff] %v1154
        %1219 = vst [vmem:[%s313 + $0xa0] sm:$0xff] %v1155
        %1220 = vst [vmem:[%s313 + $0xa8] sm:$0xff] %v1156
        %1221 = vst [vmem:[%s313 + $0xb0] sm:$0xff] %v1157
        %1222 = vst [vmem:[%s313 + $0xb8] sm:$0xff] %v1158
        %1223 = vst [vmem:[%s313 + $0xc0] sm:$0xff] %v1159
        %1224 = vst [vmem:[%s313 + $0xc8] sm:$0xff] %v1160
        %1225 = vst [vmem:[%s313 + $0xd0] sm:$0xff] %v1161
        %1226 = vst [vmem:[%s313 + $0xd8] sm:$0xff] %v1162
        %1227 = vst [vmem:[%s313 + $0xe0] sm:$0xff] %v1163
        %1228 = vst [vmem:[%s313 + $0xe8] sm:$0xff] %v1164
        %1229 = vst [vmem:[%s313 + $0xf0] sm:$0xff] %v1165
        %1230 = vst [vmem:[%s313 + $0xf8] sm:$0xff] %v1166
        %1231 = vst [vmem:[%s313 + $0x100] sm:$0xff] %v1167
        %1232 = vst [vmem:[%s313 + $0x108] sm:$0xff] %v1168
        %1233 = vst [vmem:[%s313 + $0x110] sm:$0xff] %v1169
        %1234 = vst [vmem:[%s313 + $0x118] sm:$0xff] %v1170
        %1235 = vst [vmem:[%s313 + $0x120] sm:$0xff] %v1171
        %1236 = vst [vmem:[%s313 + $0x128] sm:$0xff] %v1172
        %1237 = vst [vmem:[%s313 + $0x130] sm:$0xff] %v1173
        %1238 = vst [vmem:[%s313 + $0x138] sm:$0xff] %v1174
        %1239 = vst [vmem:[%s313 + $0x140] sm:$0xff] %v1175
        %1240 = vst [vmem:[%s313 + $0x148] sm:$0xff] %v1176
        %1241 = vst [vmem:[%s313 + $0x150] sm:$0xff] %v1177
        %1242 = vst [vmem:[%s313 + $0x158] sm:$0xff] %v1178
        %1243 = vst [vmem:[%s313 + $0x160] sm:$0xff] %v1179
        %1244 = vst [vmem:[%s313 + $0x168] sm:$0xff] %v1180
        %1245 = vst [vmem:[%s313 + $0x170] sm:$0xff] %v1181
        %1246 = vst [vmem:[%s313 + $0x178] sm:$0xff] %v1182
        %1247 = vst [vmem:[%s313 + $0x180] sm:$0xff] %v1183
        %1248 = vst [vmem:[%s313 + $0x188] sm:$0xff] %v1184
        %1249 = vst [vmem:[%s313 + $0x190] sm:$0xff] %v1185
        %1250 = vst [vmem:[%s313 + $0x198] sm:$0xff] %v1186
        %1251 = vst [vmem:[%s313 + $0x1a0] sm:$0xff] %v1187
        %1252 = vst [vmem:[%s313 + $0x1a8] sm:$0xff] %v1188
        %1253 = vst [vmem:[%s313 + $0x1b0] sm:$0xff] %v1189
        %1254 = vst [vmem:[%s313 + $0x1b8] sm:$0xff] %v1190
        %1255 = vst [vmem:[%s313 + $0x1c0] sm:$0xff] %v1191
        %1256 = vst [vmem:[%s313 + $0x1c8] sm:$0xff] %v1192
        %1257 = vst [vmem:[%s313 + $0x1d0] sm:$0xff] %v1193
        %1258 = vst [vmem:[%s313 + $0x1d8] sm:$0xff] %v1194
        %1259 = vst [vmem:[%s313 + $0x1e0] sm:$0xff] %v1195
        %1260 = vst [vmem:[%s313 + $0x1e8] sm:$0xff] %v1196
        %1261 = vst [vmem:[%s313 + $0x1f0] sm:$0xff] %v1197
        %1262 = vst [vmem:[%s313 + $0x1f8] sm:$0xff] %v1198
      $region40: #{unet_forward.47} parent=31 // pred_fallthru
        _
      %s1263 = smul.u32 64, %s21
      %p1264 = scmp.lt.s32.totalorder %s20, 3
      %s1265 = scalar_select %p1264, %s20, 3
      %p1266 = scmp.lt.s32.totalorder %s1263, 63
      %s1267 = scalar_select %p1266, %s1263, 63
      %p1268 = scmp.lt.s32.totalorder %s22, 0
      %s1269 = scalar_select %p1268, %s22, 0
      %s1270 = sadd.s32 %s1269, %s1267
      %s1271 = smul.addr %s1265, 64
      %s1272 = sadd.s32 %s1270, %s1271
      %s1273 = smul.addr %s1272, 8
      %s1274 = scalar_lea.vmem %s3, %s1273
      // Predicated region
      $region41: #{unet_forward.47} parent=31 // pred_check
        %p1275 = pneg %p150
      $region42: #{unet_forward.47} parent=31 // pred_check_branch
        %1277 = sbr.rel (%p1275) target = $region44
      $region43: #{unet_forward.47} parent=31 // pred_region
        %s1278 = smul.u32 64, %s21
      $region44: #{unet_forward.47} parent=31 // pred_fallthru
        _
    $region32: #{unet_forward.47} parent=5 // pred_fallthru
      _
    %p1279 = scmp.le.s32.totalorder 2, %s9
    // Predicated region
    $region45: #{unet_forward.47} parent=5 // pred_check
      %p1280 = pneg %p1279
    $region46: #{unet_forward.47} parent=5 // pred_check_branch
      %1282 = sbr.rel (%p1280) target = $region48
    $region47: #{unet_forward.47} parent=5 // pred_region
      %s1283 = ssub.s32 %s9, 2
      // Predicated region
      $region49: #{unet_forward.47} parent=47 // pred_check
        %p1284 = pneg %p156
      $region50: #{unet_forward.47} parent=47 // pred_check_branch
        %1286 = sbr.rel (%p1284) target = $region52
      $region51: #{unet_forward.47} parent=47 // pred_region
        %s1287 = smul.u32 64, %s25
        %p1288 = scmp.lt.s32.totalorder %s24, 3
        %s1289 = scalar_select %p1288, %s24, 3
        %p1290 = scmp.lt.s32.totalorder %s1287, 63
        %s1291 = scalar_select %p1290, %s1287, 63
        %p1292 = scmp.lt.s32.totalorder %s26, 0
        %s1293 = scalar_select %p1292, %s26, 0
        %s1294 = sadd.s32 %s1293, %s1291
        %s1295 = smul.addr %s1289, 64
        %s1296 = sadd.s32 %s1294, %s1295
        %s1297 = smul.addr %s1296, 8
        %s1298 = scalar_lea.vmem %s3, %s1297
      $region52: #{unet_forward.47} parent=47 // pred_fallthru
        _
    $region48: #{unet_forward.47} parent=5 // pred_fallthru
      _
  $region6: #{unet_forward.47} parent=0 // loop_footer
    %s13 = sadd.s32 1, %s9
  $region7: #{unet_forward.47} parent=0 // loop_footer_branch
    %8 = sbr.rel target = $region3
  $region8: #{unet_forward.47} parent=0 // loop_exit
    _

</llo_original>
